<compile_context>
chip_gen: v7x
topology: tpu7x:2x2x1
jax: 0.10.0
libtpu: 0.0.40
codegen_flags: <defaults>
</compile_context>

<pallas_src>
import math
from functools import partial

import jax
import jax.numpy as jnp
from jax import lax
from jax.experimental import pallas as pl
from jax.experimental.pallas import tpu as pltpu


# ----------------------------------------------------------------------------
# Fused Pallas kernel: PrefSimMat mask + TransformerEncoder + FC
# ----------------------------------------------------------------------------
def _layer_norm(x, w, b, eps=1e-5):
    mu = jnp.mean(x, axis=-1, keepdims=True)
    var = jnp.mean((x - mu) ** 2, axis=-1, keepdims=True)
    return (x - mu) * lax.rsqrt(var + eps) * w + b


def _dot_bt(a, b):
    """a @ b.T without materializing a transpose (contract last dims)."""
    return lax.dot_general(a, b, (((1,), (1,)), ((), ())),
                           preferred_element_type=jnp.float32)


def _policy_net_kernel(emb_ref, mask_in_ref,
                       qkv_w_ref,      # (Ln, 3, D, D)
                       out_w_ref,      # (Ln, D, D)
                       w1_ref,         # (Ln, D, Dff)
                       w2_ref,         # (Ln, Dff, D)
                       b1_ref,         # (Ln, 1, Dff)
                       small_ref,      # (Ln, 16, D) packed small vectors
                       fc_w_ref,       # (D, V)
                       fc_b_ref,       # (1, V)
                       out_ref,        # (N, V)
                       *, n_head, n_layers, dis_mode):
    """Single-step fused PolicyNet forward; everything resident in VMEM."""
    L, D = emb_ref.shape
    dh = D // n_head
    scale = 1.0 / math.sqrt(dh)

    # ---- PrefSimMat: additive float attention mask (L, L) -------------------
    if dis_mode == 'EucDis':
        p_u = mask_in_ref[...]                                    # (L, F)
        r = jnp.sum(p_u * p_u, axis=-1, keepdims=True)            # (L, 1)
        gram = _dot_bt(p_u, p_u)                                  # (L, L) on MXU
        d2 = jnp.maximum(r + r.T - 2.0 * gram, 0.0)               # squared L2
        dist = jnp.sqrt(d2)                                       # pairwise L2
        row_n = jnp.sqrt(jnp.sum(d2, axis=-1, keepdims=True))     # row L2 norm of dist
        sim_mat = 1.0 - dist / jnp.maximum(row_n, 1e-12)          # 1 - F.normalize
    elif dis_mode == 'CosSim':
        p_u = mask_in_ref[...]
        gram = _dot_bt(p_u, p_u)
        nrm = jnp.maximum(
            jnp.sqrt(jnp.sum(p_u * p_u, axis=-1, keepdims=True)), 1e-8)
        sim_mat = jnp.abs(gram / (nrm * nrm.T))                   # torch-style per-norm eps
    else:  # 'RBF': mask supplied directly as inp['a_m']
        # TODO(synk): a fully -inf row produces NaN (matches torch softmax semantics).
        sim_mat = mask_in_ref[...]

    # ---- TransformerEncoder: post-norm layers, Dropout = identity (eval) ----
    x = emb_ref[...].astype(jnp.float32)                          # (L, D)
    for l in range(n_layers):                                     # static layer loop
        sp = small_ref[l]                                         # (16, D)
        q_b, k_b, v_b = sp[0:1, :], sp[1:2, :], sp[2:3, :]
        out_b, b2 = sp[3:4, :], sp[4:5, :]
        ln1_w, ln1_b = sp[5:6, :], sp[6:7, :]
        ln2_w, ln2_b = sp[7:8, :], sp[8:9, :]

        # multi-head self-attention: three whole-tile QKV matmuls
        q = jnp.dot(x, qkv_w_ref[l, 0], preferred_element_type=jnp.float32) + q_b
        k = jnp.dot(x, qkv_w_ref[l, 1], preferred_element_type=jnp.float32) + k_b
        v = jnp.dot(x, qkv_w_ref[l, 2], preferred_element_type=jnp.float32) + v_b

        heads = []
        for h in range(n_head):                                   # small static loop
            sl = slice(h * dh, (h + 1) * dh)
            qh, kh, vh = q[:, sl], k[:, sl], v[:, sl]
            s = _dot_bt(qh, kh) * scale + sim_mat                 # no explicit transpose
            s = s - jnp.max(s, axis=-1, keepdims=True)
            p = jnp.exp(s)
            p = p * pl.reciprocal(jnp.sum(p, axis=-1, keepdims=True), approx=True)
            heads.append(jnp.dot(p, vh, preferred_element_type=jnp.float32))
        attn = jnp.concatenate(heads, axis=-1)                    # stays in vregs
        attn = jnp.dot(attn, out_w_ref[l],
                       preferred_element_type=jnp.float32) + out_b
        x = _layer_norm(x + attn, ln1_w, ln1_b)

        # feed-forward (ReLU)
        h1 = jnp.maximum(
            jnp.dot(x, w1_ref[l], preferred_element_type=jnp.float32)
            + b1_ref[l], 0.0)
        h2 = jnp.dot(h1, w2_ref[l], preferred_element_type=jnp.float32) + b2
        x = _layer_norm(x + h2, ln2_w, ln2_b)

    # ---- final FC: logits (SoftMax is declared but unused in forward) -------
    out_ref[...] = jnp.dot(x, fc_w_ref[...],
                           preferred_element_type=jnp.float32) + fc_b_ref[...]


# ----------------------------------------------------------------------------
# pallas_call wrapper (single fused launch)
# ----------------------------------------------------------------------------
def _full_spec(a):
    nd = a.ndim
    return pl.BlockSpec(a.shape, lambda i, _nd=nd: (0,) * _nd)


def policy_net_forward(params, inp, cfg):
    """JAX/Pallas equivalent of PolicyNet.forward (eval semantics)."""
    # Embedding lookup stays in plain-JAX glue (data-dependent gather).
    emb = jnp.take(params['data_num_emb'], inp['d_n'], axis=0).astype(jnp.float32)

    dis_mode = cfg['PolDisMode']
    if dis_mode == 'RBF':
        mask_in = inp['a_m'].astype(jnp.float32)       # (N, N) supplied mask
    else:
        mask_in = inp['p_u'].astype(jnp.float32)       # (N, F) preference vectors

    N, _ = emb.shape
    V = params['fc_w'].shape[1]

    args = (emb, mask_in,
            params['qkv_w'], params['out_w'],
            params['w1'], params['w2'], params['b1'],
            params['small'],
            params['fc_w'], params['fc_b'])

    # TODO(synk): batching B independent sequences along rows (M -> 128/256)
    #             would fill the MXU and allow a 'parallel' batch grid axis to
    #             engage v7x's second TensorCore; the module forward is
    #             single-sequence, so that needs an API extension.
    # TODO(synk): if Ln/D/Dff ever outgrow VMEM, switch to a grid-over-layers
    #             variant (weight BlockSpecs indexed by l, pipeline_mode=
    #             pl.Buffered(2)) instead of the fully-resident form.
    return pl.pallas_call(
        partial(_policy_net_kernel, n_head=cfg['PolNHead'],
                n_layers=cfg['PolLayerNum'], dis_mode=dis_mode),
        out_shape=jax.ShapeDtypeStruct((N, V), jnp.float32),
        grid=(1,),
        in_specs=[_full_spec(a) for a in args],
        out_specs=pl.BlockSpec((N, V), lambda i: (0, 0)),
        compiler_params=pltpu.CompilerParams(
            dimension_semantics=("arbitrary",),
            vmem_limit_bytes=32 * 1024 * 1024),
    )(*args)


# ----------------------------------------------------------------------------
# Deterministic parameter init (shapes mirror the nn.Module __init__; per-layer
# tensors stacked on a leading PolLayerNum axis, matmul weights pre-transposed;
# small per-layer vectors packed into one (Ln, 16, D) slab:
#   row 0..2 : q/k/v bias   row 3 : out-proj bias   row 4 : FFN b2
#   row 5/6  : LN1 w/b      row 7/8 : LN2 w/b       rows 9..15 : padding)
# ----------------------------------------------------------------------------
def init_params(key, cfg):
    D, Dff, Ln, V = cfg['PolEmbDim'], cfg['PolDff'], cfg['PolLayerNum'], cfg['PolCluNum']
    ks = jax.random.split(key, 6)
    s = 0.02
    f32 = jnp.float32
    small = jnp.zeros((Ln, 16, D), f32)
    small = small.at[:, 5, :].set(1.0)     # ln1_w
    small = small.at[:, 7, :].set(1.0)     # ln2_w
    return dict(
        data_num_emb=jax.random.normal(ks[0], (cfg['CatNDataN'], D), f32) * s,
        qkv_w=jax.random.normal(ks[1], (Ln, 3, D, D), f32) * s,
        out_w=jax.random.normal(ks[2], (Ln, D, D), f32) * s,
        w1=jax.random.normal(ks[3], (Ln, D, Dff), f32) * s,
        w2=jax.random.normal(ks[4], (Ln, Dff, D), f32) * s,
        b1=jnp.zeros((Ln, 1, Dff), f32),
        small=small,
        fc_w=jax.random.normal(ks[5], (D, V), f32) * s,
        fc_b=jnp.zeros((1, V), f32),
    )


# ----------------------------------------------------------------------------
if __name__ == "__main__":
    cfg = dict(CatNDataN=64, PolEmbDim=32, PolNHead=4, PolLayerNum=2,
               PolCluNum=16,
               PolDff=2048,            # nn.TransformerEncoderLayer default dim_feedforward
               PolDisMode='EucDis', PolDropRate=0.1)
    N = 8          # sequence length (number of category tokens, d_n entries)
    PrefDim = 32   # feature dim of per-category preference vectors p_u

    key = jax.random.PRNGKey(0)
    kp, kd, ku = jax.random.split(key, 3)
    params = init_params(kp, cfg)

    d_n = jax.random.randint(kd, (N,), 0, cfg['CatNDataN'], dtype=jnp.int32)
    p_u = jax.random.uniform(ku, (N, PrefDim), jnp.float32)
    inp = dict(d_n=d_n, p_u=p_u)

    fc_out = policy_net_forward(params, inp, cfg)
    jax.block_until_ready(fc_out)
    assert fc_out.shape == (N, cfg['PolCluNum'])
    assert bool(jnp.all(jnp.isfinite(fc_out)))
    print("KERNEL_OK")
</pallas_src>

<mosaic_0001>
module attributes {stable_mosaic.version = 11 : i64} {
  func.func @_policy_net_kernel(%arg0: i32, %arg1: memref<8x32xf32, #tpu.memory_space<vmem>>, %arg2: memref<8x32xf32, #tpu.memory_space<vmem>>, %arg3: memref<2x3x32x32xf32, #tpu.memory_space<vmem>>, %arg4: memref<2x32x32xf32, #tpu.memory_space<vmem>>, %arg5: memref<2x32x2048xf32, #tpu.memory_space<vmem>>, %arg6: memref<2x2048x32xf32, #tpu.memory_space<vmem>>, %arg7: memref<2x1x2048xf32, #tpu.memory_space<vmem>>, %arg8: memref<2x16x32xf32, #tpu.memory_space<vmem>>, %arg9: memref<32x16xf32, #tpu.memory_space<vmem>>, %arg10: memref<1x16xf32, #tpu.memory_space<vmem>>, %arg11: memref<8x16xf32, #tpu.memory_space<vmem>>) attributes {dimension_semantics = [#tpu.dimension_semantics<arbitrary>], iteration_bounds = array<i64: 1>, scalar_prefetch = 0 : i64, scratch_operands = 0 : i64, tpu.core_type = #tpu.core_type<tc>, window_params = [{pipeline_mode = #tpu.pipeline_mode<synchronous>, transform_indices = @transform_0, window_bounds = array<i64: 8, 32>}, {pipeline_mode = #tpu.pipeline_mode<synchronous>, transform_indices = @transform_1, window_bounds = array<i64: 8, 32>}, {pipeline_mode = #tpu.pipeline_mode<synchronous>, transform_indices = @transform_2, window_bounds = array<i64: 2, 3, 32, 32>}, {pipeline_mode = #tpu.pipeline_mode<synchronous>, transform_indices = @transform_3, window_bounds = array<i64: 2, 32, 32>}, {pipeline_mode = #tpu.pipeline_mode<synchronous>, transform_indices = @transform_4, window_bounds = array<i64: 2, 32, 2048>}, {pipeline_mode = #tpu.pipeline_mode<synchronous>, transform_indices = @transform_5, window_bounds = array<i64: 2, 2048, 32>}, {pipeline_mode = #tpu.pipeline_mode<synchronous>, transform_indices = @transform_6, window_bounds = array<i64: 2, 1, 2048>}, {pipeline_mode = #tpu.pipeline_mode<synchronous>, transform_indices = @transform_7, window_bounds = array<i64: 2, 16, 32>}, {pipeline_mode = #tpu.pipeline_mode<synchronous>, transform_indices = @transform_8, window_bounds = array<i64: 32, 16>}, {pipeline_mode = #tpu.pipeline_mode<synchronous>, transform_indices = @transform_9, window_bounds = array<i64: 1, 16>}, {pipeline_mode = #tpu.pipeline_mode<synchronous>, transform_indices = @transform_10, window_bounds = array<i64: 8, 16>}]} {
    %c0 = arith.constant 0 : index
    %c0_0 = arith.constant 0 : index
    %0 = vector.load %arg2[%c0, %c0_0] : memref<8x32xf32, #tpu.memory_space<vmem>>, vector<8x32xf32>
    %1 = arith.mulf %0, %0 : vector<8x32xf32>
    %cst = arith.constant dense<0.000000e+00> : vector<8xf32>
    %2 = vector.multi_reduction <add>, %1, %cst [1] : vector<8x32xf32> to vector<8xf32>
    %3 = vector.shape_cast %2 : vector<8xf32> to vector<8x1xf32>
    %cst_1 = arith.constant dense<0.000000e+00> : vector<8x8xf32>
    %4 = tpu.matmul %0, %0, %cst_1 {dimension_numbers = #tpu.dot_dimension_numbers<[1], [1], [0], [0], [0, 0, 1, 0], [], []>} : vector<8x32xf32>, vector<8x32xf32>, vector<8x8xf32> -> vector<8x8xf32>
    %5 = tpu.transpose %3, [1, 0] : vector<8x1xf32> -> vector<1x8xf32>
    %6 = vector.broadcast %3 : vector<8x1xf32> to vector<8x8xf32>
    %7 = vector.broadcast %5 : vector<1x8xf32> to vector<8x8xf32>
    %8 = arith.addf %6, %7 : vector<8x8xf32>
    %cst_2 = arith.constant 2.000000e+00 : f32
    %9 = vector.broadcast %cst_2 : f32 to vector<8x8xf32>
    %10 = arith.mulf %9, %4 : vector<8x8xf32>
    %11 = arith.subf %8, %10 : vector<8x8xf32>
    %cst_3 = arith.constant 0.000000e+00 : f32
    %12 = vector.broadcast %cst_3 : f32 to vector<8x8xf32>
    %13 = arith.maximumf %11, %12 : vector<8x8xf32>
    %14 = math.sqrt %13 : vector<8x8xf32>
    %cst_4 = arith.constant dense<0.000000e+00> : vector<8xf32>
    %15 = vector.multi_reduction <add>, %13, %cst_4 [1] : vector<8x8xf32> to vector<8xf32>
    %16 = vector.shape_cast %15 : vector<8xf32> to vector<8x1xf32>
    %17 = math.sqrt %16 : vector<8x1xf32>
    %cst_5 = arith.constant 9.99999996E-13 : f32
    %18 = vector.broadcast %cst_5 : f32 to vector<8x1xf32>
    %19 = arith.maximumf %17, %18 : vector<8x1xf32>
    %20 = vector.broadcast %19 : vector<8x1xf32> to vector<8x8xf32>
    %21 = arith.divf %14, %20 : vector<8x8xf32>
    %cst_6 = arith.constant 1.000000e+00 : f32
    %22 = vector.broadcast %cst_6 : f32 to vector<8x8xf32>
    %23 = arith.subf %22, %21 : vector<8x8xf32>
    %c0_7 = arith.constant 0 : index
    %c0_8 = arith.constant 0 : index
    %24 = vector.load %arg1[%c0_7, %c0_8] : memref<8x32xf32, #tpu.memory_space<vmem>>, vector<8x32xf32>
    %c0_9 = arith.constant 0 : index
    %c0_10 = arith.constant 0 : index
    %c0_11 = arith.constant 0 : index
    %25 = vector.load %arg8[%c0_9, %c0_10, %c0_11] : memref<2x16x32xf32, #tpu.memory_space<vmem>>, vector<1x16x32xf32>
    %26 = vector.shape_cast %25 : vector<1x16x32xf32> to vector<16x32xf32>
    %27 = vector.extract_strided_slice %26 {offsets = [0, 0], sizes = [1, 32], strides = [1, 1]} : vector<16x32xf32> to vector<1x32xf32>
    %28 = vector.extract_strided_slice %26 {offsets = [1, 0], sizes = [1, 32], strides = [1, 1]} : vector<16x32xf32> to vector<1x32xf32>
    %29 = vector.extract_strided_slice %26 {offsets = [2, 0], sizes = [1, 32], strides = [1, 1]} : vector<16x32xf32> to vector<1x32xf32>
    %30 = vector.extract_strided_slice %26 {offsets = [3, 0], sizes = [1, 32], strides = [1, 1]} : vector<16x32xf32> to vector<1x32xf32>
    %31 = vector.extract_strided_slice %26 {offsets = [4, 0], sizes = [1, 32], strides = [1, 1]} : vector<16x32xf32> to vector<1x32xf32>
    %32 = vector.extract_strided_slice %26 {offsets = [5, 0], sizes = [1, 32], strides = [1, 1]} : vector<16x32xf32> to vector<1x32xf32>
    %33 = vector.extract_strided_slice %26 {offsets = [6, 0], sizes = [1, 32], strides = [1, 1]} : vector<16x32xf32> to vector<1x32xf32>
    %34 = vector.extract_strided_slice %26 {offsets = [7, 0], sizes = [1, 32], strides = [1, 1]} : vector<16x32xf32> to vector<1x32xf32>
    %35 = vector.extract_strided_slice %26 {offsets = [8, 0], sizes = [1, 32], strides = [1, 1]} : vector<16x32xf32> to vector<1x32xf32>
    %c0_12 = arith.constant 0 : index
    %c0_13 = arith.constant 0 : index
    %c0_14 = arith.constant 0 : index
    %c0_15 = arith.constant 0 : index
    %36 = vector.load %arg3[%c0_12, %c0_13, %c0_14, %c0_15] : memref<2x3x32x32xf32, #tpu.memory_space<vmem>>, vector<1x1x32x32xf32>
    %37 = vector.shape_cast %36 : vector<1x1x32x32xf32> to vector<32x32xf32>
    %cst_16 = arith.constant dense<0.000000e+00> : vector<8x32xf32>
    %38 = tpu.matmul %24, %37, %cst_16 {dimension_numbers = #tpu.dot_dimension_numbers<[1], [0], [0], [1], [0, 0, 1, 1], [], []>} : vector<8x32xf32>, vector<32x32xf32>, vector<8x32xf32> -> vector<8x32xf32>
    %39 = vector.broadcast %27 : vector<1x32xf32> to vector<8x32xf32>
    %40 = arith.addf %38, %39 : vector<8x32xf32>
    %c0_17 = arith.constant 0 : index
    %c1 = arith.constant 1 : index
    %c0_18 = arith.constant 0 : index
    %c0_19 = arith.constant 0 : index
    %41 = vector.load %arg3[%c0_17, %c1, %c0_18, %c0_19] : memref<2x3x32x32xf32, #tpu.memory_space<vmem>>, vector<1x1x32x32xf32>
    %42 = vector.shape_cast %41 : vector<1x1x32x32xf32> to vector<32x32xf32>
    %cst_20 = arith.constant dense<0.000000e+00> : vector<8x32xf32>
    %43 = tpu.matmul %24, %42, %cst_20 {dimension_numbers = #tpu.dot_dimension_numbers<[1], [0], [0], [1], [0, 0, 1, 1], [], []>} : vector<8x32xf32>, vector<32x32xf32>, vector<8x32xf32> -> vector<8x32xf32>
    %44 = vector.broadcast %28 : vector<1x32xf32> to vector<8x32xf32>
    %45 = arith.addf %43, %44 : vector<8x32xf32>
    %c0_21 = arith.constant 0 : index
    %c2 = arith.constant 2 : index
    %c0_22 = arith.constant 0 : index
    %c0_23 = arith.constant 0 : index
    %46 = vector.load %arg3[%c0_21, %c2, %c0_22, %c0_23] : memref<2x3x32x32xf32, #tpu.memory_space<vmem>>, vector<1x1x32x32xf32>
    %47 = vector.shape_cast %46 : vector<1x1x32x32xf32> to vector<32x32xf32>
    %cst_24 = arith.constant dense<0.000000e+00> : vector<8x32xf32>
    %48 = tpu.matmul %24, %47, %cst_24 {dimension_numbers = #tpu.dot_dimension_numbers<[1], [0], [0], [1], [0, 0, 1, 1], [], []>} : vector<8x32xf32>, vector<32x32xf32>, vector<8x32xf32> -> vector<8x32xf32>
    %49 = vector.broadcast %29 : vector<1x32xf32> to vector<8x32xf32>
    %50 = arith.addf %48, %49 : vector<8x32xf32>
    %51 = vector.extract_strided_slice %40 {offsets = [0, 0], sizes = [8, 8], strides = [1, 1]} : vector<8x32xf32> to vector<8x8xf32>
    %52 = vector.extract_strided_slice %45 {offsets = [0, 0], sizes = [8, 8], strides = [1, 1]} : vector<8x32xf32> to vector<8x8xf32>
    %53 = vector.extract_strided_slice %50 {offsets = [0, 0], sizes = [8, 8], strides = [1, 1]} : vector<8x32xf32> to vector<8x8xf32>
    %cst_25 = arith.constant dense<0.000000e+00> : vector<8x8xf32>
    %54 = tpu.matmul %51, %52, %cst_25 {dimension_numbers = #tpu.dot_dimension_numbers<[1], [1], [0], [0], [0, 0, 1, 0], [], []>} : vector<8x8xf32>, vector<8x8xf32>, vector<8x8xf32> -> vector<8x8xf32>
    %cst_26 = arith.constant 0.353553385 : f32
    %55 = vector.broadcast %cst_26 : f32 to vector<8x8xf32>
    %56 = arith.mulf %54, %55 : vector<8x8xf32>
    %57 = arith.addf %56, %23 : vector<8x8xf32>
    %cst_27 = arith.constant dense<0xFF800000> : vector<8xf32>
    %58 = vector.multi_reduction <maximumf>, %57, %cst_27 [1] : vector<8x8xf32> to vector<8xf32>
    %59 = vector.shape_cast %58 : vector<8xf32> to vector<8x1xf32>
    %60 = vector.broadcast %59 : vector<8x1xf32> to vector<8x8xf32>
    %61 = arith.subf %57, %60 : vector<8x8xf32>
    %62 = math.exp %61 : vector<8x8xf32>
    %cst_28 = arith.constant dense<0.000000e+00> : vector<8xf32>
    %63 = vector.multi_reduction <add>, %62, %cst_28 [1] : vector<8x8xf32> to vector<8xf32>
    %64 = vector.shape_cast %63 : vector<8xf32> to vector<8x1xf32>
    %65 = tpu.reciprocal %64 {approx = true} : vector<8x1xf32> -> vector<8x1xf32>
    %66 = vector.broadcast %65 : vector<8x1xf32> to vector<8x8xf32>
    %67 = arith.mulf %62, %66 : vector<8x8xf32>
    %cst_29 = arith.constant dense<0.000000e+00> : vector<8x8xf32>
    %68 = tpu.matmul %67, %53, %cst_29 {dimension_numbers = #tpu.dot_dimension_numbers<[1], [0], [0], [1], [0, 0, 1, 1], [], []>} : vector<8x8xf32>, vector<8x8xf32>, vector<8x8xf32> -> vector<8x8xf32>
    %69 = vector.extract_strided_slice %40 {offsets = [0, 8], sizes = [8, 8], strides = [1, 1]} : vector<8x32xf32> to vector<8x8xf32>
    %70 = vector.extract_strided_slice %45 {offsets = [0, 8], sizes = [8, 8], strides = [1, 1]} : vector<8x32xf32> to vector<8x8xf32>
    %71 = vector.extract_strided_slice %50 {offsets = [0, 8], sizes = [8, 8], strides = [1, 1]} : vector<8x32xf32> to vector<8x8xf32>
    %cst_30 = arith.constant dense<0.000000e+00> : vector<8x8xf32>
    %72 = tpu.matmul %69, %70, %cst_30 {dimension_numbers = #tpu.dot_dimension_numbers<[1], [1], [0], [0], [0, 0, 1, 0], [], []>} : vector<8x8xf32>, vector<8x8xf32>, vector<8x8xf32> -> vector<8x8xf32>
    %cst_31 = arith.constant 0.353553385 : f32
    %73 = vector.broadcast %cst_31 : f32 to vector<8x8xf32>
    %74 = arith.mulf %72, %73 : vector<8x8xf32>
    %75 = arith.addf %74, %23 : vector<8x8xf32>
    %cst_32 = arith.constant dense<0xFF800000> : vector<8xf32>
    %76 = vector.multi_reduction <maximumf>, %75, %cst_32 [1] : vector<8x8xf32> to vector<8xf32>
    %77 = vector.shape_cast %76 : vector<8xf32> to vector<8x1xf32>
    %78 = vector.broadcast %77 : vector<8x1xf32> to vector<8x8xf32>
    %79 = arith.subf %75, %78 : vector<8x8xf32>
    %80 = math.exp %79 : vector<8x8xf32>
    %cst_33 = arith.constant dense<0.000000e+00> : vector<8xf32>
    %81 = vector.multi_reduction <add>, %80, %cst_33 [1] : vector<8x8xf32> to vector<8xf32>
    %82 = vector.shape_cast %81 : vector<8xf32> to vector<8x1xf32>
    %83 = tpu.reciprocal %82 {approx = true} : vector<8x1xf32> -> vector<8x1xf32>
    %84 = vector.broadcast %83 : vector<8x1xf32> to vector<8x8xf32>
    %85 = arith.mulf %80, %84 : vector<8x8xf32>
    %cst_34 = arith.constant dense<0.000000e+00> : vector<8x8xf32>
    %86 = tpu.matmul %85, %71, %cst_34 {dimension_numbers = #tpu.dot_dimension_numbers<[1], [0], [0], [1], [0, 0, 1, 1], [], []>} : vector<8x8xf32>, vector<8x8xf32>, vector<8x8xf32> -> vector<8x8xf32>
    %87 = vector.extract_strided_slice %40 {offsets = [0, 16], sizes = [8, 8], strides = [1, 1]} : vector<8x32xf32> to vector<8x8xf32>
    %88 = vector.extract_strided_slice %45 {offsets = [0, 16], sizes = [8, 8], strides = [1, 1]} : vector<8x32xf32> to vector<8x8xf32>
    %89 = vector.extract_strided_slice %50 {offsets = [0, 16], sizes = [8, 8], strides = [1, 1]} : vector<8x32xf32> to vector<8x8xf32>
    %cst_35 = arith.constant dense<0.000000e+00> : vector<8x8xf32>
    %90 = tpu.matmul %87, %88, %cst_35 {dimension_numbers = #tpu.dot_dimension_numbers<[1], [1], [0], [0], [0, 0, 1, 0], [], []>} : vector<8x8xf32>, vector<8x8xf32>, vector<8x8xf32> -> vector<8x8xf32>
    %cst_36 = arith.constant 0.353553385 : f32
    %91 = vector.broadcast %cst_36 : f32 to vector<8x8xf32>
    %92 = arith.mulf %90, %91 : vector<8x8xf32>
    %93 = arith.addf %92, %23 : vector<8x8xf32>
    %cst_37 = arith.constant dense<0xFF800000> : vector<8xf32>
    %94 = vector.multi_reduction <maximumf>, %93, %cst_37 [1] : vector<8x8xf32> to vector<8xf32>
    %95 = vector.shape_cast %94 : vector<8xf32> to vector<8x1xf32>
    %96 = vector.broadcast %95 : vector<8x1xf32> to vector<8x8xf32>
    %97 = arith.subf %93, %96 : vector<8x8xf32>
    %98 = math.exp %97 : vector<8x8xf32>
    %cst_38 = arith.constant dense<0.000000e+00> : vector<8xf32>
    %99 = vector.multi_reduction <add>, %98, %cst_38 [1] : vector<8x8xf32> to vector<8xf32>
    %100 = vector.shape_cast %99 : vector<8xf32> to vector<8x1xf32>
    %101 = tpu.reciprocal %100 {approx = true} : vector<8x1xf32> -> vector<8x1xf32>
    %102 = vector.broadcast %101 : vector<8x1xf32> to vector<8x8xf32>
    %103 = arith.mulf %98, %102 : vector<8x8xf32>
    %cst_39 = arith.constant dense<0.000000e+00> : vector<8x8xf32>
    %104 = tpu.matmul %103, %89, %cst_39 {dimension_numbers = #tpu.dot_dimension_numbers<[1], [0], [0], [1], [0, 0, 1, 1], [], []>} : vector<8x8xf32>, vector<8x8xf32>, vector<8x8xf32> -> vector<8x8xf32>
    %105 = vector.extract_strided_slice %40 {offsets = [0, 24], sizes = [8, 8], strides = [1, 1]} : vector<8x32xf32> to vector<8x8xf32>
    %106 = vector.extract_strided_slice %45 {offsets = [0, 24], sizes = [8, 8], strides = [1, 1]} : vector<8x32xf32> to vector<8x8xf32>
    %107 = vector.extract_strided_slice %50 {offsets = [0, 24], sizes = [8, 8], strides = [1, 1]} : vector<8x32xf32> to vector<8x8xf32>
    %cst_40 = arith.constant dense<0.000000e+00> : vector<8x8xf32>
    %108 = tpu.matmul %105, %106, %cst_40 {dimension_numbers = #tpu.dot_dimension_numbers<[1], [1], [0], [0], [0, 0, 1, 0], [], []>} : vector<8x8xf32>, vector<8x8xf32>, vector<8x8xf32> -> vector<8x8xf32>
    %cst_41 = arith.constant 0.353553385 : f32
    %109 = vector.broadcast %cst_41 : f32 to vector<8x8xf32>
    %110 = arith.mulf %108, %109 : vector<8x8xf32>
    %111 = arith.addf %110, %23 : vector<8x8xf32>
    %cst_42 = arith.constant dense<0xFF800000> : vector<8xf32>
    %112 = vector.multi_reduction <maximumf>, %111, %cst_42 [1] : vector<8x8xf32> to vector<8xf32>
    %113 = vector.shape_cast %112 : vector<8xf32> to vector<8x1xf32>
    %114 = vector.broadcast %113 : vector<8x1xf32> to vector<8x8xf32>
    %115 = arith.subf %111, %114 : vector<8x8xf32>
    %116 = math.exp %115 : vector<8x8xf32>
    %cst_43 = arith.constant dense<0.000000e+00> : vector<8xf32>
    %117 = vector.multi_reduction <add>, %116, %cst_43 [1] : vector<8x8xf32> to vector<8xf32>
    %118 = vector.shape_cast %117 : vector<8xf32> to vector<8x1xf32>
    %119 = tpu.reciprocal %118 {approx = true} : vector<8x1xf32> -> vector<8x1xf32>
    %120 = vector.broadcast %119 : vector<8x1xf32> to vector<8x8xf32>
    %121 = arith.mulf %116, %120 : vector<8x8xf32>
    %cst_44 = arith.constant dense<0.000000e+00> : vector<8x8xf32>
    %122 = tpu.matmul %121, %107, %cst_44 {dimension_numbers = #tpu.dot_dimension_numbers<[1], [0], [0], [1], [0, 0, 1, 1], [], []>} : vector<8x8xf32>, vector<8x8xf32>, vector<8x8xf32> -> vector<8x8xf32>
    %123 = tpu.concatenate %68, %86, %104, %122 in 1 : vector<8x8xf32>, vector<8x8xf32>, vector<8x8xf32>, vector<8x8xf32> -> vector<8x32xf32>
    %c0_45 = arith.constant 0 : index
    %c0_46 = arith.constant 0 : index
    %c0_47 = arith.constant 0 : index
    %124 = vector.load %arg4[%c0_45, %c0_46, %c0_47] : memref<2x32x32xf32, #tpu.memory_space<vmem>>, vector<1x32x32xf32>
    %125 = vector.shape_cast %124 : vector<1x32x32xf32> to vector<32x32xf32>
    %cst_48 = arith.constant dense<0.000000e+00> : vector<8x32xf32>
    %126 = tpu.matmul %123, %125, %cst_48 {dimension_numbers = #tpu.dot_dimension_numbers<[1], [0], [0], [1], [0, 0, 1, 1], [], []>} : vector<8x32xf32>, vector<32x32xf32>, vector<8x32xf32> -> vector<8x32xf32>
    %127 = vector.broadcast %30 : vector<1x32xf32> to vector<8x32xf32>
    %128 = arith.addf %126, %127 : vector<8x32xf32>
    %129 = arith.addf %24, %128 : vector<8x32xf32>
    %cst_49 = arith.constant dense<0.000000e+00> : vector<8xf32>
    %130 = vector.multi_reduction <add>, %129, %cst_49 [1] : vector<8x32xf32> to vector<8xf32>
    %131 = vector.shape_cast %130 : vector<8xf32> to vector<8x1xf32>
    %cst_50 = arith.constant 3.200000e+01 : f32
    %132 = vector.broadcast %cst_50 : f32 to vector<8x1xf32>
    %133 = arith.divf %131, %132 : vector<8x1xf32>
    %134 = vector.broadcast %133 : vector<8x1xf32> to vector<8x32xf32>
    %135 = arith.subf %129, %134 : vector<8x32xf32>
    %136 = arith.mulf %135, %135 : vector<8x32xf32>
    %cst_51 = arith.constant dense<0.000000e+00> : vector<8xf32>
    %137 = vector.multi_reduction <add>, %136, %cst_51 [1] : vector<8x32xf32> to vector<8xf32>
    %138 = vector.shape_cast %137 : vector<8xf32> to vector<8x1xf32>
    %cst_52 = arith.constant 3.200000e+01 : f32
    %139 = vector.broadcast %cst_52 : f32 to vector<8x1xf32>
    %140 = arith.divf %138, %139 : vector<8x1xf32>
    %141 = vector.broadcast %133 : vector<8x1xf32> to vector<8x32xf32>
    %142 = arith.subf %129, %141 : vector<8x32xf32>
    %cst_53 = arith.constant 9.99999974E-6 : f32
    %143 = vector.broadcast %cst_53 : f32 to vector<8x1xf32>
    %144 = arith.addf %140, %143 : vector<8x1xf32>
    %145 = math.rsqrt %144 : vector<8x1xf32>
    %146 = vector.broadcast %145 : vector<8x1xf32> to vector<8x32xf32>
    %147 = arith.mulf %142, %146 : vector<8x32xf32>
    %148 = vector.broadcast %32 : vector<1x32xf32> to vector<8x32xf32>
    %149 = arith.mulf %147, %148 : vector<8x32xf32>
    %150 = vector.broadcast %33 : vector<1x32xf32> to vector<8x32xf32>
    %151 = arith.addf %149, %150 : vector<8x32xf32>
    %c0_54 = arith.constant 0 : index
    %c0_55 = arith.constant 0 : index
    %c0_56 = arith.constant 0 : index
    %152 = vector.load %arg5[%c0_54, %c0_55, %c0_56] : memref<2x32x2048xf32, #tpu.memory_space<vmem>>, vector<1x32x2048xf32>
    %153 = vector.shape_cast %152 : vector<1x32x2048xf32> to vector<32x2048xf32>
    %cst_57 = arith.constant dense<0.000000e+00> : vector<8x2048xf32>
    %154 = tpu.matmul %151, %153, %cst_57 {dimension_numbers = #tpu.dot_dimension_numbers<[1], [0], [0], [1], [0, 0, 1, 1], [], []>} : vector<8x32xf32>, vector<32x2048xf32>, vector<8x2048xf32> -> vector<8x2048xf32>
    %c0_58 = arith.constant 0 : index
    %c0_59 = arith.constant 0 : index
    %c0_60 = arith.constant 0 : index
    %155 = vector.load %arg7[%c0_58, %c0_59, %c0_60] : memref<2x1x2048xf32, #tpu.memory_space<vmem>>, vector<1x1x2048xf32>
    %156 = vector.shape_cast %155 : vector<1x1x2048xf32> to vector<1x2048xf32>
    %157 = vector.broadcast %156 : vector<1x2048xf32> to vector<8x2048xf32>
    %158 = arith.addf %154, %157 : vector<8x2048xf32>
    %cst_61 = arith.constant 0.000000e+00 : f32
    %159 = vector.broadcast %cst_61 : f32 to vector<8x2048xf32>
    %160 = arith.maximumf %158, %159 : vector<8x2048xf32>
    %c0_62 = arith.constant 0 : index
    %c0_63 = arith.constant 0 : index
    %c0_64 = arith.constant 0 : index
    %161 = vector.load %arg6[%c0_62, %c0_63, %c0_64] : memref<2x2048x32xf32, #tpu.memory_space<vmem>>, vector<1x2048x32xf32>
    %162 = vector.shape_cast %161 : vector<1x2048x32xf32> to vector<2048x32xf32>
    %cst_65 = arith.constant dense<0.000000e+00> : vector<8x32xf32>
    %163 = tpu.matmul %160, %162, %cst_65 {dimension_numbers = #tpu.dot_dimension_numbers<[1], [0], [0], [1], [0, 0, 1, 1], [], []>} : vector<8x2048xf32>, vector<2048x32xf32>, vector<8x32xf32> -> vector<8x32xf32>
    %164 = vector.broadcast %31 : vector<1x32xf32> to vector<8x32xf32>
    %165 = arith.addf %163, %164 : vector<8x32xf32>
    %166 = arith.addf %151, %165 : vector<8x32xf32>
    %cst_66 = arith.constant dense<0.000000e+00> : vector<8xf32>
    %167 = vector.multi_reduction <add>, %166, %cst_66 [1] : vector<8x32xf32> to vector<8xf32>
    %168 = vector.shape_cast %167 : vector<8xf32> to vector<8x1xf32>
    %cst_67 = arith.constant 3.200000e+01 : f32
    %169 = vector.broadcast %cst_67 : f32 to vector<8x1xf32>
    %170 = arith.divf %168, %169 : vector<8x1xf32>
    %171 = vector.broadcast %170 : vector<8x1xf32> to vector<8x32xf32>
    %172 = arith.subf %166, %171 : vector<8x32xf32>
    %173 = arith.mulf %172, %172 : vector<8x32xf32>
    %cst_68 = arith.constant dense<0.000000e+00> : vector<8xf32>
    %174 = vector.multi_reduction <add>, %173, %cst_68 [1] : vector<8x32xf32> to vector<8xf32>
    %175 = vector.shape_cast %174 : vector<8xf32> to vector<8x1xf32>
    %cst_69 = arith.constant 3.200000e+01 : f32
    %176 = vector.broadcast %cst_69 : f32 to vector<8x1xf32>
    %177 = arith.divf %175, %176 : vector<8x1xf32>
    %178 = vector.broadcast %170 : vector<8x1xf32> to vector<8x32xf32>
    %179 = arith.subf %166, %178 : vector<8x32xf32>
    %cst_70 = arith.constant 9.99999974E-6 : f32
    %180 = vector.broadcast %cst_70 : f32 to vector<8x1xf32>
    %181 = arith.addf %177, %180 : vector<8x1xf32>
    %182 = math.rsqrt %181 : vector<8x1xf32>
    %183 = vector.broadcast %182 : vector<8x1xf32> to vector<8x32xf32>
    %184 = arith.mulf %179, %183 : vector<8x32xf32>
    %185 = vector.broadcast %34 : vector<1x32xf32> to vector<8x32xf32>
    %186 = arith.mulf %184, %185 : vector<8x32xf32>
    %187 = vector.broadcast %35 : vector<1x32xf32> to vector<8x32xf32>
    %188 = arith.addf %186, %187 : vector<8x32xf32>
    %c1_71 = arith.constant 1 : index
    %c0_72 = arith.constant 0 : index
    %c0_73 = arith.constant 0 : index
    %189 = vector.load %arg8[%c1_71, %c0_72, %c0_73] : memref<2x16x32xf32, #tpu.memory_space<vmem>>, vector<1x16x32xf32>
    %190 = vector.shape_cast %189 : vector<1x16x32xf32> to vector<16x32xf32>
    %191 = vector.extract_strided_slice %190 {offsets = [0, 0], sizes = [1, 32], strides = [1, 1]} : vector<16x32xf32> to vector<1x32xf32>
    %192 = vector.extract_strided_slice %190 {offsets = [1, 0], sizes = [1, 32], strides = [1, 1]} : vector<16x32xf32> to vector<1x32xf32>
    %193 = vector.extract_strided_slice %190 {offsets = [2, 0], sizes = [1, 32], strides = [1, 1]} : vector<16x32xf32> to vector<1x32xf32>
    %194 = vector.extract_strided_slice %190 {offsets = [3, 0], sizes = [1, 32], strides = [1, 1]} : vector<16x32xf32> to vector<1x32xf32>
    %195 = vector.extract_strided_slice %190 {offsets = [4, 0], sizes = [1, 32], strides = [1, 1]} : vector<16x32xf32> to vector<1x32xf32>
    %196 = vector.extract_strided_slice %190 {offsets = [5, 0], sizes = [1, 32], strides = [1, 1]} : vector<16x32xf32> to vector<1x32xf32>
    %197 = vector.extract_strided_slice %190 {offsets = [6, 0], sizes = [1, 32], strides = [1, 1]} : vector<16x32xf32> to vector<1x32xf32>
    %198 = vector.extract_strided_slice %190 {offsets = [7, 0], sizes = [1, 32], strides = [1, 1]} : vector<16x32xf32> to vector<1x32xf32>
    %199 = vector.extract_strided_slice %190 {offsets = [8, 0], sizes = [1, 32], strides = [1, 1]} : vector<16x32xf32> to vector<1x32xf32>
    %c1_74 = arith.constant 1 : index
    %c0_75 = arith.constant 0 : index
    %c0_76 = arith.constant 0 : index
    %c0_77 = arith.constant 0 : index
    %200 = vector.load %arg3[%c1_74, %c0_75, %c0_76, %c0_77] : memref<2x3x32x32xf32, #tpu.memory_space<vmem>>, vector<1x1x32x32xf32>
    %201 = vector.shape_cast %200 : vector<1x1x32x32xf32> to vector<32x32xf32>
    %cst_78 = arith.constant dense<0.000000e+00> : vector<8x32xf32>
    %202 = tpu.matmul %188, %201, %cst_78 {dimension_numbers = #tpu.dot_dimension_numbers<[1], [0], [0], [1], [0, 0, 1, 1], [], []>} : vector<8x32xf32>, vector<32x32xf32>, vector<8x32xf32> -> vector<8x32xf32>
    %203 = vector.broadcast %191 : vector<1x32xf32> to vector<8x32xf32>
    %204 = arith.addf %202, %203 : vector<8x32xf32>
    %c1_79 = arith.constant 1 : index
    %c1_80 = arith.constant 1 : index
    %c0_81 = arith.constant 0 : index
    %c0_82 = arith.constant 0 : index
    %205 = vector.load %arg3[%c1_79, %c1_80, %c0_81, %c0_82] : memref<2x3x32x32xf32, #tpu.memory_space<vmem>>, vector<1x1x32x32xf32>
    %206 = vector.shape_cast %205 : vector<1x1x32x32xf32> to vector<32x32xf32>
    %cst_83 = arith.constant dense<0.000000e+00> : vector<8x32xf32>
    %207 = tpu.matmul %188, %206, %cst_83 {dimension_numbers = #tpu.dot_dimension_numbers<[1], [0], [0], [1], [0, 0, 1, 1], [], []>} : vector<8x32xf32>, vector<32x32xf32>, vector<8x32xf32> -> vector<8x32xf32>
    %208 = vector.broadcast %192 : vector<1x32xf32> to vector<8x32xf32>
    %209 = arith.addf %207, %208 : vector<8x32xf32>
    %c1_84 = arith.constant 1 : index
    %c2_85 = arith.constant 2 : index
    %c0_86 = arith.constant 0 : index
    %c0_87 = arith.constant 0 : index
    %210 = vector.load %arg3[%c1_84, %c2_85, %c0_86, %c0_87] : memref<2x3x32x32xf32, #tpu.memory_space<vmem>>, vector<1x1x32x32xf32>
    %211 = vector.shape_cast %210 : vector<1x1x32x32xf32> to vector<32x32xf32>
    %cst_88 = arith.constant dense<0.000000e+00> : vector<8x32xf32>
    %212 = tpu.matmul %188, %211, %cst_88 {dimension_numbers = #tpu.dot_dimension_numbers<[1], [0], [0], [1], [0, 0, 1, 1], [], []>} : vector<8x32xf32>, vector<32x32xf32>, vector<8x32xf32> -> vector<8x32xf32>
    %213 = vector.broadcast %193 : vector<1x32xf32> to vector<8x32xf32>
    %214 = arith.addf %212, %213 : vector<8x32xf32>
    %215 = vector.extract_strided_slice %204 {offsets = [0, 0], sizes = [8, 8], strides = [1, 1]} : vector<8x32xf32> to vector<8x8xf32>
    %216 = vector.extract_strided_slice %209 {offsets = [0, 0], sizes = [8, 8], strides = [1, 1]} : vector<8x32xf32> to vector<8x8xf32>
    %217 = vector.extract_strided_slice %214 {offsets = [0, 0], sizes = [8, 8], strides = [1, 1]} : vector<8x32xf32> to vector<8x8xf32>
    %cst_89 = arith.constant dense<0.000000e+00> : vector<8x8xf32>
    %218 = tpu.matmul %215, %216, %cst_89 {dimension_numbers = #tpu.dot_dimension_numbers<[1], [1], [0], [0], [0, 0, 1, 0], [], []>} : vector<8x8xf32>, vector<8x8xf32>, vector<8x8xf32> -> vector<8x8xf32>
    %cst_90 = arith.constant 0.353553385 : f32
    %219 = vector.broadcast %cst_90 : f32 to vector<8x8xf32>
    %220 = arith.mulf %218, %219 : vector<8x8xf32>
    %221 = arith.addf %220, %23 : vector<8x8xf32>
    %cst_91 = arith.constant dense<0xFF800000> : vector<8xf32>
    %222 = vector.multi_reduction <maximumf>, %221, %cst_91 [1] : vector<8x8xf32> to vector<8xf32>
    %223 = vector.shape_cast %222 : vector<8xf32> to vector<8x1xf32>
    %224 = vector.broadcast %223 : vector<8x1xf32> to vector<8x8xf32>
    %225 = arith.subf %221, %224 : vector<8x8xf32>
    %226 = math.exp %225 : vector<8x8xf32>
    %cst_92 = arith.constant dense<0.000000e+00> : vector<8xf32>
    %227 = vector.multi_reduction <add>, %226, %cst_92 [1] : vector<8x8xf32> to vector<8xf32>
    %228 = vector.shape_cast %227 : vector<8xf32> to vector<8x1xf32>
    %229 = tpu.reciprocal %228 {approx = true} : vector<8x1xf32> -> vector<8x1xf32>
    %230 = vector.broadcast %229 : vector<8x1xf32> to vector<8x8xf32>
    %231 = arith.mulf %226, %230 : vector<8x8xf32>
    %cst_93 = arith.constant dense<0.000000e+00> : vector<8x8xf32>
    %232 = tpu.matmul %231, %217, %cst_93 {dimension_numbers = #tpu.dot_dimension_numbers<[1], [0], [0], [1], [0, 0, 1, 1], [], []>} : vector<8x8xf32>, vector<8x8xf32>, vector<8x8xf32> -> vector<8x8xf32>
    %233 = vector.extract_strided_slice %204 {offsets = [0, 8], sizes = [8, 8], strides = [1, 1]} : vector<8x32xf32> to vector<8x8xf32>
    %234 = vector.extract_strided_slice %209 {offsets = [0, 8], sizes = [8, 8], strides = [1, 1]} : vector<8x32xf32> to vector<8x8xf32>
    %235 = vector.extract_strided_slice %214 {offsets = [0, 8], sizes = [8, 8], strides = [1, 1]} : vector<8x32xf32> to vector<8x8xf32>
    %cst_94 = arith.constant dense<0.000000e+00> : vector<8x8xf32>
    %236 = tpu.matmul %233, %234, %cst_94 {dimension_numbers = #tpu.dot_dimension_numbers<[1], [1], [0], [0], [0, 0, 1, 0], [], []>} : vector<8x8xf32>, vector<8x8xf32>, vector<8x8xf32> -> vector<8x8xf32>
    %cst_95 = arith.constant 0.353553385 : f32
    %237 = vector.broadcast %cst_95 : f32 to vector<8x8xf32>
    %238 = arith.mulf %236, %237 : vector<8x8xf32>
    %239 = arith.addf %238, %23 : vector<8x8xf32>
    %cst_96 = arith.constant dense<0xFF800000> : vector<8xf32>
    %240 = vector.multi_reduction <maximumf>, %239, %cst_96 [1] : vector<8x8xf32> to vector<8xf32>
    %241 = vector.shape_cast %240 : vector<8xf32> to vector<8x1xf32>
    %242 = vector.broadcast %241 : vector<8x1xf32> to vector<8x8xf32>
    %243 = arith.subf %239, %242 : vector<8x8xf32>
    %244 = math.exp %243 : vector<8x8xf32>
    %cst_97 = arith.constant dense<0.000000e+00> : vector<8xf32>
    %245 = vector.multi_reduction <add>, %244, %cst_97 [1] : vector<8x8xf32> to vector<8xf32>
    %246 = vector.shape_cast %245 : vector<8xf32> to vector<8x1xf32>
    %247 = tpu.reciprocal %246 {approx = true} : vector<8x1xf32> -> vector<8x1xf32>
    %248 = vector.broadcast %247 : vector<8x1xf32> to vector<8x8xf32>
    %249 = arith.mulf %244, %248 : vector<8x8xf32>
    %cst_98 = arith.constant dense<0.000000e+00> : vector<8x8xf32>
    %250 = tpu.matmul %249, %235, %cst_98 {dimension_numbers = #tpu.dot_dimension_numbers<[1], [0], [0], [1], [0, 0, 1, 1], [], []>} : vector<8x8xf32>, vector<8x8xf32>, vector<8x8xf32> -> vector<8x8xf32>
    %251 = vector.extract_strided_slice %204 {offsets = [0, 16], sizes = [8, 8], strides = [1, 1]} : vector<8x32xf32> to vector<8x8xf32>
    %252 = vector.extract_strided_slice %209 {offsets = [0, 16], sizes = [8, 8], strides = [1, 1]} : vector<8x32xf32> to vector<8x8xf32>
    %253 = vector.extract_strided_slice %214 {offsets = [0, 16], sizes = [8, 8], strides = [1, 1]} : vector<8x32xf32> to vector<8x8xf32>
    %cst_99 = arith.constant dense<0.000000e+00> : vector<8x8xf32>
    %254 = tpu.matmul %251, %252, %cst_99 {dimension_numbers = #tpu.dot_dimension_numbers<[1], [1], [0], [0], [0, 0, 1, 0], [], []>} : vector<8x8xf32>, vector<8x8xf32>, vector<8x8xf32> -> vector<8x8xf32>
    %cst_100 = arith.constant 0.353553385 : f32
    %255 = vector.broadcast %cst_100 : f32 to vector<8x8xf32>
    %256 = arith.mulf %254, %255 : vector<8x8xf32>
    %257 = arith.addf %256, %23 : vector<8x8xf32>
    %cst_101 = arith.constant dense<0xFF800000> : vector<8xf32>
    %258 = vector.multi_reduction <maximumf>, %257, %cst_101 [1] : vector<8x8xf32> to vector<8xf32>
    %259 = vector.shape_cast %258 : vector<8xf32> to vector<8x1xf32>
    %260 = vector.broadcast %259 : vector<8x1xf32> to vector<8x8xf32>
    %261 = arith.subf %257, %260 : vector<8x8xf32>
    %262 = math.exp %261 : vector<8x8xf32>
    %cst_102 = arith.constant dense<0.000000e+00> : vector<8xf32>
    %263 = vector.multi_reduction <add>, %262, %cst_102 [1] : vector<8x8xf32> to vector<8xf32>
    %264 = vector.shape_cast %263 : vector<8xf32> to vector<8x1xf32>
    %265 = tpu.reciprocal %264 {approx = true} : vector<8x1xf32> -> vector<8x1xf32>
    %266 = vector.broadcast %265 : vector<8x1xf32> to vector<8x8xf32>
    %267 = arith.mulf %262, %266 : vector<8x8xf32>
    %cst_103 = arith.constant dense<0.000000e+00> : vector<8x8xf32>
    %268 = tpu.matmul %267, %253, %cst_103 {dimension_numbers = #tpu.dot_dimension_numbers<[1], [0], [0], [1], [0, 0, 1, 1], [], []>} : vector<8x8xf32>, vector<8x8xf32>, vector<8x8xf32> -> vector<8x8xf32>
    %269 = vector.extract_strided_slice %204 {offsets = [0, 24], sizes = [8, 8], strides = [1, 1]} : vector<8x32xf32> to vector<8x8xf32>
    %270 = vector.extract_strided_slice %209 {offsets = [0, 24], sizes = [8, 8], strides = [1, 1]} : vector<8x32xf32> to vector<8x8xf32>
    %271 = vector.extract_strided_slice %214 {offsets = [0, 24], sizes = [8, 8], strides = [1, 1]} : vector<8x32xf32> to vector<8x8xf32>
    %cst_104 = arith.constant dense<0.000000e+00> : vector<8x8xf32>
    %272 = tpu.matmul %269, %270, %cst_104 {dimension_numbers = #tpu.dot_dimension_numbers<[1], [1], [0], [0], [0, 0, 1, 0], [], []>} : vector<8x8xf32>, vector<8x8xf32>, vector<8x8xf32> -> vector<8x8xf32>
    %cst_105 = arith.constant 0.353553385 : f32
    %273 = vector.broadcast %cst_105 : f32 to vector<8x8xf32>
    %274 = arith.mulf %272, %273 : vector<8x8xf32>
    %275 = arith.addf %274, %23 : vector<8x8xf32>
    %cst_106 = arith.constant dense<0xFF800000> : vector<8xf32>
    %276 = vector.multi_reduction <maximumf>, %275, %cst_106 [1] : vector<8x8xf32> to vector<8xf32>
    %277 = vector.shape_cast %276 : vector<8xf32> to vector<8x1xf32>
    %278 = vector.broadcast %277 : vector<8x1xf32> to vector<8x8xf32>
    %279 = arith.subf %275, %278 : vector<8x8xf32>
    %280 = math.exp %279 : vector<8x8xf32>
    %cst_107 = arith.constant dense<0.000000e+00> : vector<8xf32>
    %281 = vector.multi_reduction <add>, %280, %cst_107 [1] : vector<8x8xf32> to vector<8xf32>
    %282 = vector.shape_cast %281 : vector<8xf32> to vector<8x1xf32>
    %283 = tpu.reciprocal %282 {approx = true} : vector<8x1xf32> -> vector<8x1xf32>
    %284 = vector.broadcast %283 : vector<8x1xf32> to vector<8x8xf32>
    %285 = arith.mulf %280, %284 : vector<8x8xf32>
    %cst_108 = arith.constant dense<0.000000e+00> : vector<8x8xf32>
    %286 = tpu.matmul %285, %271, %cst_108 {dimension_numbers = #tpu.dot_dimension_numbers<[1], [0], [0], [1], [0, 0, 1, 1], [], []>} : vector<8x8xf32>, vector<8x8xf32>, vector<8x8xf32> -> vector<8x8xf32>
    %287 = tpu.concatenate %232, %250, %268, %286 in 1 : vector<8x8xf32>, vector<8x8xf32>, vector<8x8xf32>, vector<8x8xf32> -> vector<8x32xf32>
    %c1_109 = arith.constant 1 : index
    %c0_110 = arith.constant 0 : index
    %c0_111 = arith.constant 0 : index
    %288 = vector.load %arg4[%c1_109, %c0_110, %c0_111] : memref<2x32x32xf32, #tpu.memory_space<vmem>>, vector<1x32x32xf32>
    %289 = vector.shape_cast %288 : vector<1x32x32xf32> to vector<32x32xf32>
    %cst_112 = arith.constant dense<0.000000e+00> : vector<8x32xf32>
    %290 = tpu.matmul %287, %289, %cst_112 {dimension_numbers = #tpu.dot_dimension_numbers<[1], [0], [0], [1], [0, 0, 1, 1], [], []>} : vector<8x32xf32>, vector<32x32xf32>, vector<8x32xf32> -> vector<8x32xf32>
    %291 = vector.broadcast %194 : vector<1x32xf32> to vector<8x32xf32>
    %292 = arith.addf %290, %291 : vector<8x32xf32>
    %293 = arith.addf %188, %292 : vector<8x32xf32>
    %cst_113 = arith.constant dense<0.000000e+00> : vector<8xf32>
    %294 = vector.multi_reduction <add>, %293, %cst_113 [1] : vector<8x32xf32> to vector<8xf32>
    %295 = vector.shape_cast %294 : vector<8xf32> to vector<8x1xf32>
    %cst_114 = arith.constant 3.200000e+01 : f32
    %296 = vector.broadcast %cst_114 : f32 to vector<8x1xf32>
    %297 = arith.divf %295, %296 : vector<8x1xf32>
    %298 = vector.broadcast %297 : vector<8x1xf32> to vector<8x32xf32>
    %299 = arith.subf %293, %298 : vector<8x32xf32>
    %300 = arith.mulf %299, %299 : vector<8x32xf32>
    %cst_115 = arith.constant dense<0.000000e+00> : vector<8xf32>
    %301 = vector.multi_reduction <add>, %300, %cst_115 [1] : vector<8x32xf32> to vector<8xf32>
    %302 = vector.shape_cast %301 : vector<8xf32> to vector<8x1xf32>
    %cst_116 = arith.constant 3.200000e+01 : f32
    %303 = vector.broadcast %cst_116 : f32 to vector<8x1xf32>
    %304 = arith.divf %302, %303 : vector<8x1xf32>
    %305 = vector.broadcast %297 : vector<8x1xf32> to vector<8x32xf32>
    %306 = arith.subf %293, %305 : vector<8x32xf32>
    %cst_117 = arith.constant 9.99999974E-6 : f32
    %307 = vector.broadcast %cst_117 : f32 to vector<8x1xf32>
    %308 = arith.addf %304, %307 : vector<8x1xf32>
    %309 = math.rsqrt %308 : vector<8x1xf32>
    %310 = vector.broadcast %309 : vector<8x1xf32> to vector<8x32xf32>
    %311 = arith.mulf %306, %310 : vector<8x32xf32>
    %312 = vector.broadcast %196 : vector<1x32xf32> to vector<8x32xf32>
    %313 = arith.mulf %311, %312 : vector<8x32xf32>
    %314 = vector.broadcast %197 : vector<1x32xf32> to vector<8x32xf32>
    %315 = arith.addf %313, %314 : vector<8x32xf32>
    %c1_118 = arith.constant 1 : index
    %c0_119 = arith.constant 0 : index
    %c0_120 = arith.constant 0 : index
    %316 = vector.load %arg5[%c1_118, %c0_119, %c0_120] : memref<2x32x2048xf32, #tpu.memory_space<vmem>>, vector<1x32x2048xf32>
    %317 = vector.shape_cast %316 : vector<1x32x2048xf32> to vector<32x2048xf32>
    %cst_121 = arith.constant dense<0.000000e+00> : vector<8x2048xf32>
    %318 = tpu.matmul %315, %317, %cst_121 {dimension_numbers = #tpu.dot_dimension_numbers<[1], [0], [0], [1], [0, 0, 1, 1], [], []>} : vector<8x32xf32>, vector<32x2048xf32>, vector<8x2048xf32> -> vector<8x2048xf32>
    %c1_122 = arith.constant 1 : index
    %c0_123 = arith.constant 0 : index
    %c0_124 = arith.constant 0 : index
    %319 = vector.load %arg7[%c1_122, %c0_123, %c0_124] : memref<2x1x2048xf32, #tpu.memory_space<vmem>>, vector<1x1x2048xf32>
    %320 = vector.shape_cast %319 : vector<1x1x2048xf32> to vector<1x2048xf32>
    %321 = vector.broadcast %320 : vector<1x2048xf32> to vector<8x2048xf32>
    %322 = arith.addf %318, %321 : vector<8x2048xf32>
    %cst_125 = arith.constant 0.000000e+00 : f32
    %323 = vector.broadcast %cst_125 : f32 to vector<8x2048xf32>
    %324 = arith.maximumf %322, %323 : vector<8x2048xf32>
    %c1_126 = arith.constant 1 : index
    %c0_127 = arith.constant 0 : index
    %c0_128 = arith.constant 0 : index
    %325 = vector.load %arg6[%c1_126, %c0_127, %c0_128] : memref<2x2048x32xf32, #tpu.memory_space<vmem>>, vector<1x2048x32xf32>
    %326 = vector.shape_cast %325 : vector<1x2048x32xf32> to vector<2048x32xf32>
    %cst_129 = arith.constant dense<0.000000e+00> : vector<8x32xf32>
    %327 = tpu.matmul %324, %326, %cst_129 {dimension_numbers = #tpu.dot_dimension_numbers<[1], [0], [0], [1], [0, 0, 1, 1], [], []>} : vector<8x2048xf32>, vector<2048x32xf32>, vector<8x32xf32> -> vector<8x32xf32>
    %328 = vector.broadcast %195 : vector<1x32xf32> to vector<8x32xf32>
    %329 = arith.addf %327, %328 : vector<8x32xf32>
    %330 = arith.addf %315, %329 : vector<8x32xf32>
    %cst_130 = arith.constant dense<0.000000e+00> : vector<8xf32>
    %331 = vector.multi_reduction <add>, %330, %cst_130 [1] : vector<8x32xf32> to vector<8xf32>
    %332 = vector.shape_cast %331 : vector<8xf32> to vector<8x1xf32>
    %cst_131 = arith.constant 3.200000e+01 : f32
    %333 = vector.broadcast %cst_131 : f32 to vector<8x1xf32>
    %334 = arith.divf %332, %333 : vector<8x1xf32>
    %335 = vector.broadcast %334 : vector<8x1xf32> to vector<8x32xf32>
    %336 = arith.subf %330, %335 : vector<8x32xf32>
    %337 = arith.mulf %336, %336 : vector<8x32xf32>
    %cst_132 = arith.constant dense<0.000000e+00> : vector<8xf32>
    %338 = vector.multi_reduction <add>, %337, %cst_132 [1] : vector<8x32xf32> to vector<8xf32>
    %339 = vector.shape_cast %338 : vector<8xf32> to vector<8x1xf32>
    %cst_133 = arith.constant 3.200000e+01 : f32
    %340 = vector.broadcast %cst_133 : f32 to vector<8x1xf32>
    %341 = arith.divf %339, %340 : vector<8x1xf32>
    %342 = vector.broadcast %334 : vector<8x1xf32> to vector<8x32xf32>
    %343 = arith.subf %330, %342 : vector<8x32xf32>
    %cst_134 = arith.constant 9.99999974E-6 : f32
    %344 = vector.broadcast %cst_134 : f32 to vector<8x1xf32>
    %345 = arith.addf %341, %344 : vector<8x1xf32>
    %346 = math.rsqrt %345 : vector<8x1xf32>
    %347 = vector.broadcast %346 : vector<8x1xf32> to vector<8x32xf32>
    %348 = arith.mulf %343, %347 : vector<8x32xf32>
    %349 = vector.broadcast %198 : vector<1x32xf32> to vector<8x32xf32>
    %350 = arith.mulf %348, %349 : vector<8x32xf32>
    %351 = vector.broadcast %199 : vector<1x32xf32> to vector<8x32xf32>
    %352 = arith.addf %350, %351 : vector<8x32xf32>
    %c0_135 = arith.constant 0 : index
    %c0_136 = arith.constant 0 : index
    %353 = vector.load %arg9[%c0_135, %c0_136] : memref<32x16xf32, #tpu.memory_space<vmem>>, vector<32x16xf32>
    %cst_137 = arith.constant dense<0.000000e+00> : vector<8x16xf32>
    %354 = tpu.matmul %352, %353, %cst_137 {dimension_numbers = #tpu.dot_dimension_numbers<[1], [0], [0], [1], [0, 0, 1, 1], [], []>} : vector<8x32xf32>, vector<32x16xf32>, vector<8x16xf32> -> vector<8x16xf32>
    %c0_138 = arith.constant 0 : index
    %c0_139 = arith.constant 0 : index
    %355 = vector.load %arg10[%c0_138, %c0_139] : memref<1x16xf32, #tpu.memory_space<vmem>>, vector<1x16xf32>
    %356 = vector.broadcast %355 : vector<1x16xf32> to vector<8x16xf32>
    %357 = arith.addf %354, %356 : vector<8x16xf32>
    %c0_140 = arith.constant 0 : index
    %c0_141 = arith.constant 0 : index
    %358 = vector.load %arg11[%c0_140, %c0_141] : memref<8x16xf32, #tpu.memory_space<vmem>>, vector<8x16xf32>
    tpu.vector_store %arg11[%c0_140, %c0_141], %357 {strides = array<i32>} : memref<8x16xf32, #tpu.memory_space<vmem>>, vector<8x16xf32>,
    return
  }
  func.func @transform_0(%arg0: i32) -> (i32, i32) {
    %c0_i32 = arith.constant 0 : i32
    %c0_i32_0 = arith.constant 0 : i32
    %c0_i32_1 = arith.constant 0 : i32
    return %c0_i32, %c0_i32_0 : i32, i32
  }
  func.func @transform_1(%arg0: i32) -> (i32, i32) {
    %c0_i32 = arith.constant 0 : i32
    %c0_i32_0 = arith.constant 0 : i32
    %c0_i32_1 = arith.constant 0 : i32
    return %c0_i32, %c0_i32_0 : i32, i32
  }
  func.func @transform_2(%arg0: i32) -> (i32, i32, i32, i32) {
    %c0_i32 = arith.constant 0 : i32
    %c0_i32_0 = arith.constant 0 : i32
    %c0_i32_1 = arith.constant 0 : i32
    %c0_i32_2 = arith.constant 0 : i32
    %c0_i32_3 = arith.constant 0 : i32
    return %c0_i32, %c0_i32_0, %c0_i32_1, %c0_i32_2 : i32, i32, i32, i32
  }
  func.func @transform_3(%arg0: i32) -> (i32, i32, i32) {
    %c0_i32 = arith.constant 0 : i32
    %c0_i32_0 = arith.constant 0 : i32
    %c0_i32_1 = arith.constant 0 : i32
    %c0_i32_2 = arith.constant 0 : i32
    return %c0_i32, %c0_i32_0, %c0_i32_1 : i32, i32, i32
  }
  func.func @transform_4(%arg0: i32) -> (i32, i32, i32) {
    %c0_i32 = arith.constant 0 : i32
    %c0_i32_0 = arith.constant 0 : i32
    %c0_i32_1 = arith.constant 0 : i32
    %c0_i32_2 = arith.constant 0 : i32
    return %c0_i32, %c0_i32_0, %c0_i32_1 : i32, i32, i32
  }
  func.func @transform_5(%arg0: i32) -> (i32, i32, i32) {
    %c0_i32 = arith.constant 0 : i32
    %c0_i32_0 = arith.constant 0 : i32
    %c0_i32_1 = arith.constant 0 : i32
    %c0_i32_2 = arith.constant 0 : i32
    return %c0_i32, %c0_i32_0, %c0_i32_1 : i32, i32, i32
  }
  func.func @transform_6(%arg0: i32) -> (i32, i32, i32) {
    %c0_i32 = arith.constant 0 : i32
    %c0_i32_0 = arith.constant 0 : i32
    %c0_i32_1 = arith.constant 0 : i32
    %c0_i32_2 = arith.constant 0 : i32
    return %c0_i32, %c0_i32_0, %c0_i32_1 : i32, i32, i32
  }
  func.func @transform_7(%arg0: i32) -> (i32, i32, i32) {
    %c0_i32 = arith.constant 0 : i32
    %c0_i32_0 = arith.constant 0 : i32
    %c0_i32_1 = arith.constant 0 : i32
    %c0_i32_2 = arith.constant 0 : i32
    return %c0_i32, %c0_i32_0, %c0_i32_1 : i32, i32, i32
  }
  func.func @transform_8(%arg0: i32) -> (i32, i32) {
    %c0_i32 = arith.constant 0 : i32
    %c0_i32_0 = arith.constant 0 : i32
    %c0_i32_1 = arith.constant 0 : i32
    return %c0_i32, %c0_i32_0 : i32, i32
  }
  func.func @transform_9(%arg0: i32) -> (i32, i32) {
    %c0_i32 = arith.constant 0 : i32
    %c0_i32_0 = arith.constant 0 : i32
    %c0_i32_1 = arith.constant 0 : i32
    return %c0_i32, %c0_i32_0 : i32, i32
  }
  func.func @transform_10(%arg0: i32) -> (i32, i32) {
    %c0_i32 = arith.constant 0 : i32
    %c0_i32_0 = arith.constant 0 : i32
    %c0_i32_1 = arith.constant 0 : i32
    return %c0_i32, %c0_i32_0 : i32, i32
  }
}

</mosaic_0001>

<llo_original>
// kernel: tpu_custom_call.1
$region0: #{tpu_custom_call.1}
  #allocation0 [shape = 'u32[]', space=smem, size = 0x4, offset = 0x4, fixed_abs, tag = 'smem constant byte address 0x4 - core index']
  #allocation1 [shape = 'u32[144,128]{1,0:T(1,128)}', space=vmem, size = 0x12000, scoped, tag = 'internal scratch']
  %s0 = inlined_call_operand.vmem [shape: f32[8,32], index: 0, kind: input, shape index: {}]
  %s1 = inlined_call_operand.vmem [shape: f32[8,32], index: 1, kind: input, shape index: {}]
  %s2 = inlined_call_operand.vmem [shape: f32[2,3,32,32], index: 2, kind: input, shape index: {}]
  %s3 = inlined_call_operand.vmem [shape: f32[2,32,32], index: 3, kind: input, shape index: {}]
  %s4 = inlined_call_operand.vmem [shape: f32[2,32,2048], index: 4, kind: input, shape index: {}]
  %s5 = inlined_call_operand.vmem [shape: f32[2,2048,32], index: 5, kind: input, shape index: {}]
  %s6 = inlined_call_operand.vmem [shape: f32[2,1,2048], index: 6, kind: input, shape index: {}]
  %s7 = inlined_call_operand.vmem [shape: f32[2,16,32], index: 7, kind: input, shape index: {}]
  %s8 = inlined_call_operand.vmem [shape: f32[32,16], index: 8, kind: input, shape index: {}]
  %s9 = inlined_call_operand.vmem [shape: f32[1,16], index: 9, kind: input, shape index: {}]
  %s10 = inlined_call_operand.hbm [shape: f32[8,16], index: 10, kind: output, shape index: {}]
  %s11 = sld [smem:[#allocation0]]
  $region50: #{tpu_custom_call.1} parent=0
    _
  %s13 = ssub.s32 1, %s11
  %s14 = scalar_select 0, %s13, %s11
  $region1: #{tpu_custom_call.1} parent=0
    #allocation2 [shape = 'u8[4096]{0}', space=vmem, size = 0x1000, scoped, tag = 'output window, operand 0, single buffered']
    #allocation3 [shape = 's32[1]{0}', space=sflag, size = 0x4, scoped, tag = 'scoped memory for tpu_custom_call.1']
    %15 = vsyncpa [#allocation3], 0
    // Predicated region
    $region2: #{tpu_custom_call.1} parent=1 // pred_check
      _
    $region3: #{tpu_custom_call.1} parent=1 // pred_check_branch
      %17 = sbr.rel (0) target = $region5
    $region4: #{tpu_custom_call.1} parent=1 // pred_region
      _
    $region5: #{tpu_custom_call.1} parent=1 // pred_fallthru
      _
    // Predicated region
    $region6: #{tpu_custom_call.1} parent=1 // pred_check
      _
    $region7: #{tpu_custom_call.1} parent=1 // pred_check_branch
      %19 = sbr.rel (0) target = $region9
    $region8: #{tpu_custom_call.1} parent=1 // pred_region
      _
    $region9: #{tpu_custom_call.1} parent=1 // pred_fallthru
      _
    // Predicated region
    $region10: #{tpu_custom_call.1} parent=1 // pred_check
      _
    $region11: #{tpu_custom_call.1} parent=1 // pred_check_branch
      %21 = sbr.rel (0) target = $region13
    $region12: #{tpu_custom_call.1} parent=1 // pred_region
      _
    $region13: #{tpu_custom_call.1} parent=1 // pred_fallthru
      _
    // Predicated region
    $region14: #{tpu_custom_call.1} parent=1 // pred_check
      _
    $region15: #{tpu_custom_call.1} parent=1 // pred_check_branch
      %23 = sbr.rel (0) target = $region17
    $region16: #{tpu_custom_call.1} parent=1 // pred_region
      _
    $region17: #{tpu_custom_call.1} parent=1 // pred_fallthru
      _
    // Predicated region
    $region18: #{tpu_custom_call.1} parent=1 // pred_check
      _
    $region19: #{tpu_custom_call.1} parent=1 // pred_check_branch
      %25 = sbr.rel (0) target = $region21
    $region20: #{tpu_custom_call.1} parent=1 // pred_region
      _
    $region21: #{tpu_custom_call.1} parent=1 // pred_fallthru
      _
    // Predicated region
    $region22: #{tpu_custom_call.1} parent=1 // pred_check
      _
    $region23: #{tpu_custom_call.1} parent=1 // pred_check_branch
      %27 = sbr.rel (0) target = $region25
    $region24: #{tpu_custom_call.1} parent=1 // pred_region
      _
    $region25: #{tpu_custom_call.1} parent=1 // pred_fallthru
      _
    // Predicated region
    $region26: #{tpu_custom_call.1} parent=1 // pred_check
      _
    $region27: #{tpu_custom_call.1} parent=1 // pred_check_branch
      %29 = sbr.rel (0) target = $region29
    $region28: #{tpu_custom_call.1} parent=1 // pred_region
      _
    $region29: #{tpu_custom_call.1} parent=1 // pred_fallthru
      _
    // Predicated region
    $region30: #{tpu_custom_call.1} parent=1 // pred_check
      _
    $region31: #{tpu_custom_call.1} parent=1 // pred_check_branch
      %31 = sbr.rel (0) target = $region33
    $region32: #{tpu_custom_call.1} parent=1 // pred_region
      _
    $region33: #{tpu_custom_call.1} parent=1 // pred_fallthru
      _
    // Predicated region
    $region34: #{tpu_custom_call.1} parent=1 // pred_check
      _
    $region35: #{tpu_custom_call.1} parent=1 // pred_check_branch
      %33 = sbr.rel (0) target = $region37
    $region36: #{tpu_custom_call.1} parent=1 // pred_region
      _
    $region37: #{tpu_custom_call.1} parent=1 // pred_fallthru
      _
    // Predicated region
    $region38: #{tpu_custom_call.1} parent=1 // pred_check
      _
    $region39: #{tpu_custom_call.1} parent=1 // pred_check_branch
      %35 = sbr.rel (0) target = $region41
    $region40: #{tpu_custom_call.1} parent=1 // pred_region
      _
    $region41: #{tpu_custom_call.1} parent=1 // pred_fallthru
      _
    %v36 = vld [vmem:[%s1] sm:$0xff]
    %v37 = vmul.f32 %v36, %v36
    %vm38 = vcmask 261120
    %v39 = vsel %vm38, %v37, 0.0
    %40 = vadd.xlane.f32.xlu0 %v39
    %v41 = vpop.xlane.xlu0 %40
    %v43 = vsel %vm38, %v36, 0
    %45 = vmatprep.subr.mxu0 0.0
    %46 = vmatpush1.xpose.msra.mxu0 %v43
    %47 = vmatprep.subr.mxu0 0.0
    %48 = vmatpush1.xpose.msra.mxu0 0.0
    %49 = vmatprep.subr.mxu0 0.0
    %50 = vmatpush1.xpose.msra.mxu0 0.0
    %51 = vmatprep.subr.mxu0 0.0
    %52 = vmatpush1.xpose.msra.mxu0 0.0
    %53 = vmatprep.subr.mxu0 0.0
    %54 = vmatpush1.xpose.msra.mxu0 0.0
    %55 = vmatprep.subr.mxu0 0.0
    %56 = vmatpush1.xpose.msra.mxu0 0.0
    %57 = vmatprep.subr.mxu0 0.0
    %58 = vmatpush1.xpose.msra.mxu0 0.0
    %59 = vmatprep.subr.mxu0 0.0
    %60 = vmatpush1.xpose.msra.mxu0 0.0
    %61 = vmatprep.subr.mxu0 0.0
    %62 = vmatpush1.xpose.msra.mxu0 0.0
    %63 = vmatprep.subr.mxu0 0.0
    %64 = vmatpush1.xpose.msra.mxu0 0.0
    %65 = vmatprep.subr.mxu0 0.0
    %66 = vmatpush1.xpose.msra.mxu0 0.0
    %67 = vmatprep.subr.mxu0 0.0
    %68 = vmatpush1.xpose.msra.mxu0 0.0
    %69 = vmatprep.subr.mxu0 0.0
    %70 = vmatpush1.xpose.msra.mxu0 0.0
    %71 = vmatprep.subr.mxu0 0.0
    %72 = vmatpush1.xpose.msra.mxu0 0.0
    %73 = vmatprep.subr.mxu0 0.0
    %74 = vmatpush1.xpose.msra.mxu0 0.0
    %75 = vmatprep.subr.mxu0 0.0
    %76 = vmatpush1.xpose.msra.mxu0 0.0
    %77 = vmatprep.subr.mxu0 0.0
    %78 = vmatpush1.xpose.msra.mxu0 0.0
    %79 = vmatprep.subr.mxu0 0.0
    %80 = vmatpush1.xpose.msra.mxu0 0.0
    %81 = vmatprep.subr.mxu0 0.0
    %82 = vmatpush1.xpose.msra.mxu0 0.0
    %83 = vmatprep.subr.mxu0 0.0
    %84 = vmatpush1.xpose.msra.mxu0 0.0
    %85 = vmatprep.subr.mxu0 0.0
    %86 = vmatpush1.xpose.msra.mxu0 0.0
    %87 = vmatprep.subr.mxu0 0.0
    %88 = vmatpush1.xpose.msra.mxu0 0.0
    %89 = vmatprep.subr.mxu0 0.0
    %90 = vmatpush1.xpose.msra.mxu0 0.0
    %91 = vmatprep.subr.mxu0 0.0
    %92 = vmatpush1.xpose.msra.mxu0 0.0
    %93 = vmatprep.subr.mxu0 0.0
    %94 = vmatpush1.xpose.msra.mxu0 0.0
    %95 = vmatprep.subr.mxu0 0.0
    %96 = vmatpush1.xpose.msra.mxu0 0.0
    %97 = vmatprep.subr.mxu0 0.0
    %98 = vmatpush1.xpose.msra.mxu0 0.0
    %99 = vmatprep.subr.mxu0 0.0
    %100 = vmatpush1.xpose.msra.mxu0 0.0
    %101 = vmatprep.subr.mxu0 0.0
    %102 = vmatpush1.xpose.msra.mxu0 0.0
    %103 = vmatprep.subr.mxu0 0.0
    %104 = vmatpush1.xpose.msra.mxu0 0.0
    %105 = vmatprep.subr.mxu0 0.0
    %106 = vmatpush1.xpose.msra.mxu0 0.0
    %107 = vmatprep.subr.mxu0 0.0
    %108 = vmatpush1.xpose.msra.mxu0 0.0
    %109 = vmatprep.mubr.f32.mxu0 0.0
    %110 = vmatmul.mubr.f32.gmra.mrb[0].mxu0 %v43
    %v111 = vpop.f32.mrb[0].mxu0
    %v112 = vadd.f32 0.0, %v111
    %v113 = vpop.f32.mrb[0].mxu0
    %114 = vdwg.mxu0
    %115 = vxpose.xlu0.b32.start [1/16] %v41, 128
    %116 = vxpose.xlu0.b32.cont [2/16] 0.0, 128
    %117 = vxpose.xlu0.b32.cont [3/16] 0.0, 128
    %118 = vxpose.xlu0.b32.cont [4/16] 0.0, 128
    %119 = vxpose.xlu0.b32.cont [5/16] 0.0, 128
    %120 = vxpose.xlu0.b32.cont [6/16] 0.0, 128
    %121 = vxpose.xlu0.b32.cont [7/16] 0.0, 128
    %122 = vxpose.xlu0.b32.cont [8/16] 0.0, 128
    %123 = vxpose.xlu0.b32.cont [9/16] 0.0, 128
    %124 = vxpose.xlu0.b32.cont [10/16] 0.0, 128
    %125 = vxpose.xlu0.b32.cont [11/16] 0.0, 128
    %126 = vxpose.xlu0.b32.cont [12/16] 0.0, 128
    %127 = vxpose.xlu0.b32.cont [13/16] 0.0, 128
    %128 = vxpose.xlu0.b32.cont [14/16] 0.0, 128
    %129 = vxpose.xlu0.b32.cont [15/16] 0.0, 128
    %130 = vxpose.xlu0.b32.end [16/16] 0.0, 128
    %v131 = vpop.trf.xlu0
    %v132 = vpop.trf.xlu0
    %v133 = vpop.trf.xlu0
    %v134 = vpop.trf.xlu0
    %v135 = vpop.trf.xlu0
    %v136 = vpop.trf.xlu0
    %v137 = vpop.trf.xlu0
    %v138 = vpop.trf.xlu0
    %v139 = vpop.trf.xlu0
    %v140 = vpop.trf.xlu0
    %v141 = vpop.trf.xlu0
    %v142 = vpop.trf.xlu0
    %v143 = vpop.trf.xlu0
    %v144 = vpop.trf.xlu0
    %v145 = vpop.trf.xlu0
    %v146 = vpop.trf.xlu0
    %v147 = vlaneseq
    %v148 = vshrl.u32 %v147, 7
    %v149 = vsub.s32 0, %v148
    %v150 = vrot.slane %v131, %v149
    %v151 = vadd.f32 %v41, %v150
    %v152 = vmul.f32 %v112, 2.0
    %v153 = vsub.f32 %v151, %v152
    %v154 = vmax.f32 %v153, 0.0
    %v155 = vrsqrt.pop %v154
    %v156 = vmul.f32 %v154, %v155
    %vm157 = vcmp.eq.f32.partialorder %v154, inf
    %v158 = vsel %vm157, %v154, %v156
    %vm159 = vcmp.eq.f32.partialorder %v154, 0.0
    %v160 = vand.u32 %v154, 2147483648
    %v161 = vsel %vm159, %v160, %v158
    %vm162 = vcmask 64512
    %v163 = vsel %vm162, %v154, 0.0
    %164 = vadd.xlane.f32.xlu0 %v163
    %v165 = vpop.xlane.xlu0 %164
    %v166 = vrsqrt.pop %v165
    %v167 = vmul.f32 %v165, %v166
    %vm168 = vcmp.eq.f32.partialorder %v165, inf
    %v169 = vsel %vm168, %v165, %v167
    %vm170 = vcmp.eq.f32.partialorder %v165, 0.0
    %v171 = vand.u32 %v165, 2147483648
    %v172 = vsel %vm170, %v171, %v169
    %v173 = vmax.f32 %v172, 1e-12
    %v174 = vrcp.pop %v173
    %v175 = vmul.f32 %v161, %v174
    %v176 = vsub.f32 1.0, %v175
    %v177 = vld [vmem:[%s0] sm:$0xff]
    %v178 = vld [vmem:[%s7] sm:$0xff]
    %v179 = vld [vmem:[%s7 + $0x8] sm:$0xff]
    %v180 = vld [vmem:[%s2] sm:$0xff]
    %v181 = vld [vmem:[%s2 + $0x8] sm:$0xff]
    %v182 = vld [vmem:[%s2 + $0x10] sm:$0xff]
    %v183 = vld [vmem:[%s2 + $0x18] sm:$0xff]
    %v184 = vlaneseq
    %v185 = vshrl.u32 %v184, 7
    %v186 = vsub.s32 0, %v185
    %v187 = vrot.slane %v178, %v186
    %v189 = vsel %vm38, %v177, 0
    %191 = vmatprep.subr.mxu0 0.0
    %192 = vmatpush1.msra.mxu0 %v180
    %193 = vmatprep.subr.mxu0 0.0
    %194 = vmatpush1.msra.mxu0 %v181
    %195 = vmatprep.subr.mxu0 0.0
    %196 = vmatpush1.msra.mxu0 %v182
    %197 = vmatprep.subr.mxu0 0.0
    %198 = vmatpush1.msra.mxu0 %v183
    %199 = vmatprep.subr.mxu0 0.0
    %200 = vmatpush1.msra.mxu0 0.0
    %201 = vmatprep.subr.mxu0 0.0
    %202 = vmatpush1.msra.mxu0 0.0
    %203 = vmatprep.subr.mxu0 0.0
    %204 = vmatpush1.msra.mxu0 0.0
    %205 = vmatprep.subr.mxu0 0.0
    %206 = vmatpush1.msra.mxu0 0.0
    %207 = vmatprep.subr.mxu0 0.0
    %208 = vmatpush1.msra.mxu0 0.0
    %209 = vmatprep.subr.mxu0 0.0
    %210 = vmatpush1.msra.mxu0 0.0
    %211 = vmatprep.subr.mxu0 0.0
    %212 = vmatpush1.msra.mxu0 0.0
    %213 = vmatprep.subr.mxu0 0.0
    %214 = vmatpush1.msra.mxu0 0.0
    %215 = vmatprep.subr.mxu0 0.0
    %216 = vmatpush1.msra.mxu0 0.0
    %217 = vmatprep.subr.mxu0 0.0
    %218 = vmatpush1.msra.mxu0 0.0
    %219 = vmatprep.subr.mxu0 0.0
    %220 = vmatpush1.msra.mxu0 0.0
    %221 = vmatprep.subr.mxu0 0.0
    %222 = vmatpush1.msra.mxu0 0.0
    %223 = vmatprep.subr.mxu0 0.0
    %224 = vmatpush1.msra.mxu0 0.0
    %225 = vmatprep.subr.mxu0 0.0
    %226 = vmatpush1.msra.mxu0 0.0
    %227 = vmatprep.subr.mxu0 0.0
    %228 = vmatpush1.msra.mxu0 0.0
    %229 = vmatprep.subr.mxu0 0.0
    %230 = vmatpush1.msra.mxu0 0.0
    %231 = vmatprep.subr.mxu0 0.0
    %232 = vmatpush1.msra.mxu0 0.0
    %233 = vmatprep.subr.mxu0 0.0
    %234 = vmatpush1.msra.mxu0 0.0
    %235 = vmatprep.subr.mxu0 0.0
    %236 = vmatpush1.msra.mxu0 0.0
    %237 = vmatprep.subr.mxu0 0.0
    %238 = vmatpush1.msra.mxu0 0.0
    %239 = vmatprep.subr.mxu0 0.0
    %240 = vmatpush1.msra.mxu0 0.0
    %241 = vmatprep.subr.mxu0 0.0
    %242 = vmatpush1.msra.mxu0 0.0
    %243 = vmatprep.subr.mxu0 0.0
    %244 = vmatpush1.msra.mxu0 0.0
    %245 = vmatprep.subr.mxu0 0.0
    %246 = vmatpush1.msra.mxu0 0.0
    %247 = vmatprep.subr.mxu0 0.0
    %248 = vmatpush1.msra.mxu0 0.0
    %249 = vmatprep.subr.mxu0 0.0
    %250 = vmatpush1.msra.mxu0 0.0
    %251 = vmatprep.subr.mxu0 0.0
    %252 = vmatpush1.msra.mxu0 0.0
    %253 = vmatprep.subr.mxu0 0.0
    %254 = vmatpush1.msra.mxu0 0.0
    %255 = vmatprep.mubr.f32.mxu0 0.0
    %256 = vmatmul.mubr.f32.gmra.mrb[0].mxu0 %v189
    %v257 = vpop.f32.mrb[0].mxu0
    %v258 = vadd.f32 %v187, %v257
    %v259 = vpop.f32.mrb[0].mxu0
    %260 = vdwg.mxu0
    %s261 = scalar_lea.vmem %s2, 32
    %v262 = vld [vmem:[%s261] sm:$0xff]
    %v263 = vld [vmem:[%s261 + $0x8] sm:$0xff]
    %v264 = vld [vmem:[%s261 + $0x10] sm:$0xff]
    %v265 = vld [vmem:[%s261 + $0x18] sm:$0xff]
    %v266 = vlaneseq
    %v267 = vshrl.u32 %v266, 7
    %v268 = vsub.s32 1, %v267
    %v269 = vrot.slane %v178, %v268
    %270 = vmatprep.subr.mxu0 0.0
    %271 = vmatpush1.msra.mxu0 %v262
    %272 = vmatprep.subr.mxu0 0.0
    %273 = vmatpush1.msra.mxu0 %v263
    %274 = vmatprep.subr.mxu0 0.0
    %275 = vmatpush1.msra.mxu0 %v264
    %276 = vmatprep.subr.mxu0 0.0
    %277 = vmatpush1.msra.mxu0 %v265
    %278 = vmatprep.subr.mxu0 0.0
    %279 = vmatpush1.msra.mxu0 0.0
    %280 = vmatprep.subr.mxu0 0.0
    %281 = vmatpush1.msra.mxu0 0.0
    %282 = vmatprep.subr.mxu0 0.0
    %283 = vmatpush1.msra.mxu0 0.0
    %284 = vmatprep.subr.mxu0 0.0
    %285 = vmatpush1.msra.mxu0 0.0
    %286 = vmatprep.subr.mxu0 0.0
    %287 = vmatpush1.msra.mxu0 0.0
    %288 = vmatprep.subr.mxu0 0.0
    %289 = vmatpush1.msra.mxu0 0.0
    %290 = vmatprep.subr.mxu0 0.0
    %291 = vmatpush1.msra.mxu0 0.0
    %292 = vmatprep.subr.mxu0 0.0
    %293 = vmatpush1.msra.mxu0 0.0
    %294 = vmatprep.subr.mxu0 0.0
    %295 = vmatpush1.msra.mxu0 0.0
    %296 = vmatprep.subr.mxu0 0.0
    %297 = vmatpush1.msra.mxu0 0.0
    %298 = vmatprep.subr.mxu0 0.0
    %299 = vmatpush1.msra.mxu0 0.0
    %300 = vmatprep.subr.mxu0 0.0
    %301 = vmatpush1.msra.mxu0 0.0
    %302 = vmatprep.subr.mxu0 0.0
    %303 = vmatpush1.msra.mxu0 0.0
    %304 = vmatprep.subr.mxu0 0.0
    %305 = vmatpush1.msra.mxu0 0.0
    %306 = vmatprep.subr.mxu0 0.0
    %307 = vmatpush1.msra.mxu0 0.0
    %308 = vmatprep.subr.mxu0 0.0
    %309 = vmatpush1.msra.mxu0 0.0
    %310 = vmatprep.subr.mxu0 0.0
    %311 = vmatpush1.msra.mxu0 0.0
    %312 = vmatprep.subr.mxu0 0.0
    %313 = vmatpush1.msra.mxu0 0.0
    %314 = vmatprep.subr.mxu0 0.0
    %315 = vmatpush1.msra.mxu0 0.0
    %316 = vmatprep.subr.mxu0 0.0
    %317 = vmatpush1.msra.mxu0 0.0
    %318 = vmatprep.subr.mxu0 0.0
    %319 = vmatpush1.msra.mxu0 0.0
    %320 = vmatprep.subr.mxu0 0.0
    %321 = vmatpush1.msra.mxu0 0.0
    %322 = vmatprep.subr.mxu0 0.0
    %323 = vmatpush1.msra.mxu0 0.0
    %324 = vmatprep.subr.mxu0 0.0
    %325 = vmatpush1.msra.mxu0 0.0
    %326 = vmatprep.subr.mxu0 0.0
    %327 = vmatpush1.msra.mxu0 0.0
    %328 = vmatprep.subr.mxu0 0.0
    %329 = vmatpush1.msra.mxu0 0.0
    %330 = vmatprep.subr.mxu0 0.0
    %331 = vmatpush1.msra.mxu0 0.0
    %332 = vmatprep.subr.mxu0 0.0
    %333 = vmatpush1.msra.mxu0 0.0
    %334 = vmatprep.mubr.f32.mxu0 0.0
    %335 = vmatmul.mubr.f32.gmra.mrb[0].mxu0 %v189
    %v336 = vpop.f32.mrb[0].mxu0
    %v337 = vadd.f32 %v269, %v336
    %v338 = vpop.f32.mrb[0].mxu0
    %339 = vdwg.mxu0
    %s340 = scalar_lea.vmem %s2, 64
    %v341 = vld [vmem:[%s340] sm:$0xff]
    %v342 = vld [vmem:[%s340 + $0x8] sm:$0xff]
    %v343 = vld [vmem:[%s340 + $0x10] sm:$0xff]
    %v344 = vld [vmem:[%s340 + $0x18] sm:$0xff]
    %v345 = vlaneseq
    %v346 = vshrl.u32 %v345, 7
    %v347 = vsub.s32 2, %v346
    %v348 = vrot.slane %v178, %v347
    %349 = vmatprep.subr.mxu0 0.0
    %350 = vmatpush1.msra.mxu0 %v341
    %351 = vmatprep.subr.mxu0 0.0
    %352 = vmatpush1.msra.mxu0 %v342
    %353 = vmatprep.subr.mxu0 0.0
    %354 = vmatpush1.msra.mxu0 %v343
    %355 = vmatprep.subr.mxu0 0.0
    %356 = vmatpush1.msra.mxu0 %v344
    %357 = vmatprep.subr.mxu0 0.0
    %358 = vmatpush1.msra.mxu0 0.0
    %359 = vmatprep.subr.mxu0 0.0
    %360 = vmatpush1.msra.mxu0 0.0
    %361 = vmatprep.subr.mxu0 0.0
    %362 = vmatpush1.msra.mxu0 0.0
    %363 = vmatprep.subr.mxu0 0.0
    %364 = vmatpush1.msra.mxu0 0.0
    %365 = vmatprep.subr.mxu0 0.0
    %366 = vmatpush1.msra.mxu0 0.0
    %367 = vmatprep.subr.mxu0 0.0
    %368 = vmatpush1.msra.mxu0 0.0
    %369 = vmatprep.subr.mxu0 0.0
    %370 = vmatpush1.msra.mxu0 0.0
    %371 = vmatprep.subr.mxu0 0.0
    %372 = vmatpush1.msra.mxu0 0.0
    %373 = vmatprep.subr.mxu0 0.0
    %374 = vmatpush1.msra.mxu0 0.0
    %375 = vmatprep.subr.mxu0 0.0
    %376 = vmatpush1.msra.mxu0 0.0
    %377 = vmatprep.subr.mxu0 0.0
    %378 = vmatpush1.msra.mxu0 0.0
    %379 = vmatprep.subr.mxu0 0.0
    %380 = vmatpush1.msra.mxu0 0.0
    %381 = vmatprep.subr.mxu0 0.0
    %382 = vmatpush1.msra.mxu0 0.0
    %383 = vmatprep.subr.mxu0 0.0
    %384 = vmatpush1.msra.mxu0 0.0
    %385 = vmatprep.subr.mxu0 0.0
    %386 = vmatpush1.msra.mxu0 0.0
    %387 = vmatprep.subr.mxu0 0.0
    %388 = vmatpush1.msra.mxu0 0.0
    %389 = vmatprep.subr.mxu0 0.0
    %390 = vmatpush1.msra.mxu0 0.0
    %391 = vmatprep.subr.mxu0 0.0
    %392 = vmatpush1.msra.mxu0 0.0
    %393 = vmatprep.subr.mxu0 0.0
    %394 = vmatpush1.msra.mxu0 0.0
    %395 = vmatprep.subr.mxu0 0.0
    %396 = vmatpush1.msra.mxu0 0.0
    %397 = vmatprep.subr.mxu0 0.0
    %398 = vmatpush1.msra.mxu0 0.0
    %399 = vmatprep.subr.mxu0 0.0
    %400 = vmatpush1.msra.mxu0 0.0
    %401 = vmatprep.subr.mxu0 0.0
    %402 = vmatpush1.msra.mxu0 0.0
    %403 = vmatprep.subr.mxu0 0.0
    %404 = vmatpush1.msra.mxu0 0.0
    %405 = vmatprep.subr.mxu0 0.0
    %406 = vmatpush1.msra.mxu0 0.0
    %407 = vmatprep.subr.mxu0 0.0
    %408 = vmatpush1.msra.mxu0 0.0
    %409 = vmatprep.subr.mxu0 0.0
    %410 = vmatpush1.msra.mxu0 0.0
    %411 = vmatprep.subr.mxu0 0.0
    %412 = vmatpush1.msra.mxu0 0.0
    %413 = vmatprep.mubr.f32.mxu0 0.0
    %414 = vmatmul.mubr.f32.gmra.mrb[0].mxu0 %v189
    %v415 = vpop.f32.mrb[0].mxu0
    %v416 = vadd.f32 %v348, %v415
    %v417 = vpop.f32.mrb[0].mxu0
    %418 = vdwg.mxu0
    %v420 = vsel %vm162, %v258, 0
    %v423 = vsel %vm162, %v337, 0
    %425 = vmatprep.subr.mxu0 0.0
    %426 = vmatpush1.xpose.msra.mxu0 %v423
    %427 = vmatprep.subr.mxu0 0.0
    %428 = vmatpush1.xpose.msra.mxu0 0.0
    %429 = vmatprep.subr.mxu0 0.0
    %430 = vmatpush1.xpose.msra.mxu0 0.0
    %431 = vmatprep.subr.mxu0 0.0
    %432 = vmatpush1.xpose.msra.mxu0 0.0
    %433 = vmatprep.subr.mxu0 0.0
    %434 = vmatpush1.xpose.msra.mxu0 0.0
    %435 = vmatprep.subr.mxu0 0.0
    %436 = vmatpush1.xpose.msra.mxu0 0.0
    %437 = vmatprep.subr.mxu0 0.0
    %438 = vmatpush1.xpose.msra.mxu0 0.0
    %439 = vmatprep.subr.mxu0 0.0
    %440 = vmatpush1.xpose.msra.mxu0 0.0
    %441 = vmatprep.subr.mxu0 0.0
    %442 = vmatpush1.xpose.msra.mxu0 0.0
    %443 = vmatprep.subr.mxu0 0.0
    %444 = vmatpush1.xpose.msra.mxu0 0.0
    %445 = vmatprep.subr.mxu0 0.0
    %446 = vmatpush1.xpose.msra.mxu0 0.0
    %447 = vmatprep.subr.mxu0 0.0
    %448 = vmatpush1.xpose.msra.mxu0 0.0
    %449 = vmatprep.subr.mxu0 0.0
    %450 = vmatpush1.xpose.msra.mxu0 0.0
    %451 = vmatprep.subr.mxu0 0.0
    %452 = vmatpush1.xpose.msra.mxu0 0.0
    %453 = vmatprep.subr.mxu0 0.0
    %454 = vmatpush1.xpose.msra.mxu0 0.0
    %455 = vmatprep.subr.mxu0 0.0
    %456 = vmatpush1.xpose.msra.mxu0 0.0
    %457 = vmatprep.subr.mxu0 0.0
    %458 = vmatpush1.xpose.msra.mxu0 0.0
    %459 = vmatprep.subr.mxu0 0.0
    %460 = vmatpush1.xpose.msra.mxu0 0.0
    %461 = vmatprep.subr.mxu0 0.0
    %462 = vmatpush1.xpose.msra.mxu0 0.0
    %463 = vmatprep.subr.mxu0 0.0
    %464 = vmatpush1.xpose.msra.mxu0 0.0
    %465 = vmatprep.subr.mxu0 0.0
    %466 = vmatpush1.xpose.msra.mxu0 0.0
    %467 = vmatprep.subr.mxu0 0.0
    %468 = vmatpush1.xpose.msra.mxu0 0.0
    %469 = vmatprep.subr.mxu0 0.0
    %470 = vmatpush1.xpose.msra.mxu0 0.0
    %471 = vmatprep.subr.mxu0 0.0
    %472 = vmatpush1.xpose.msra.mxu0 0.0
    %473 = vmatprep.subr.mxu0 0.0
    %474 = vmatpush1.xpose.msra.mxu0 0.0
    %475 = vmatprep.subr.mxu0 0.0
    %476 = vmatpush1.xpose.msra.mxu0 0.0
    %477 = vmatprep.subr.mxu0 0.0
    %478 = vmatpush1.xpose.msra.mxu0 0.0
    %479 = vmatprep.subr.mxu0 0.0
    %480 = vmatpush1.xpose.msra.mxu0 0.0
    %481 = vmatprep.subr.mxu0 0.0
    %482 = vmatpush1.xpose.msra.mxu0 0.0
    %483 = vmatprep.subr.mxu0 0.0
    %484 = vmatpush1.xpose.msra.mxu0 0.0
    %485 = vmatprep.subr.mxu0 0.0
    %486 = vmatpush1.xpose.msra.mxu0 0.0
    %487 = vmatprep.subr.mxu0 0.0
    %488 = vmatpush1.xpose.msra.mxu0 0.0
    %489 = vmatprep.mubr.f32.mxu0 0.0
    %490 = vmatmul.mubr.f32.gmra.mrb[0].mxu0 %v420
    %v491 = vpop.f32.mrb[0].mxu0
    %v492 = vadd.f32 0.0, %v491
    %v493 = vpop.f32.mrb[0].mxu0
    %494 = vdwg.mxu0
    %v495 = vmul.f32 %v492, 0.35355338
    %v496 = vadd.f32 %v495, %v176
    %v497 = vsel %vm162, %v496, -inf
    %498 = vmax.xlane.f32.xlu0 %v497
    %v499 = vpop.xlane.xlu0 %498
    %v500 = vsub.f32 %v496, %v499
    %v501 = vmul.f32 %v500, 1.442695
    %v502 = vpow.pop %v501
    %v503 = vsel %vm162, %v502, 0.0
    %504 = vadd.xlane.f32.xlu0 %v503
    %v505 = vpop.xlane.xlu0 %504
    %v506 = vrcp.pop %v505
    %v507 = vmul.f32 %v502, %v506
    %v509 = vsel %vm162, %v507, 0
    %511 = vmatprep.subr.mxu0 0.0
    %512 = vmatpush1.msra.mxu0 %v416
    %513 = vmatprep.subr.mxu0 0.0
    %514 = vmatpush1.msra.mxu0 0.0
    %515 = vmatprep.subr.mxu0 0.0
    %516 = vmatpush1.msra.mxu0 0.0
    %517 = vmatprep.subr.mxu0 0.0
    %518 = vmatpush1.msra.mxu0 0.0
    %519 = vmatprep.subr.mxu0 0.0
    %520 = vmatpush1.msra.mxu0 0.0
    %521 = vmatprep.subr.mxu0 0.0
    %522 = vmatpush1.msra.mxu0 0.0
    %523 = vmatprep.subr.mxu0 0.0
    %524 = vmatpush1.msra.mxu0 0.0
    %525 = vmatprep.subr.mxu0 0.0
    %526 = vmatpush1.msra.mxu0 0.0
    %527 = vmatprep.subr.mxu0 0.0
    %528 = vmatpush1.msra.mxu0 0.0
    %529 = vmatprep.subr.mxu0 0.0
    %530 = vmatpush1.msra.mxu0 0.0
    %531 = vmatprep.subr.mxu0 0.0
    %532 = vmatpush1.msra.mxu0 0.0
    %533 = vmatprep.subr.mxu0 0.0
    %534 = vmatpush1.msra.mxu0 0.0
    %535 = vmatprep.subr.mxu0 0.0
    %536 = vmatpush1.msra.mxu0 0.0
    %537 = vmatprep.subr.mxu0 0.0
    %538 = vmatpush1.msra.mxu0 0.0
    %539 = vmatprep.subr.mxu0 0.0
    %540 = vmatpush1.msra.mxu0 0.0
    %541 = vmatprep.subr.mxu0 0.0
    %542 = vmatpush1.msra.mxu0 0.0
    %543 = vmatprep.subr.mxu0 0.0
    %544 = vmatpush1.msra.mxu0 0.0
    %545 = vmatprep.subr.mxu0 0.0
    %546 = vmatpush1.msra.mxu0 0.0
    %547 = vmatprep.subr.mxu0 0.0
    %548 = vmatpush1.msra.mxu0 0.0
    %549 = vmatprep.subr.mxu0 0.0
    %550 = vmatpush1.msra.mxu0 0.0
    %551 = vmatprep.subr.mxu0 0.0
    %552 = vmatpush1.msra.mxu0 0.0
    %553 = vmatprep.subr.mxu0 0.0
    %554 = vmatpush1.msra.mxu0 0.0
    %555 = vmatprep.subr.mxu0 0.0
    %556 = vmatpush1.msra.mxu0 0.0
    %557 = vmatprep.subr.mxu0 0.0
    %558 = vmatpush1.msra.mxu0 0.0
    %559 = vmatprep.subr.mxu0 0.0
    %560 = vmatpush1.msra.mxu0 0.0
    %561 = vmatprep.subr.mxu0 0.0
    %562 = vmatpush1.msra.mxu0 0.0
    %563 = vmatprep.subr.mxu0 0.0
    %564 = vmatpush1.msra.mxu0 0.0
    %565 = vmatprep.subr.mxu0 0.0
    %566 = vmatpush1.msra.mxu0 0.0
    %567 = vmatprep.subr.mxu0 0.0
    %568 = vmatpush1.msra.mxu0 0.0
    %569 = vmatprep.subr.mxu0 0.0
    %570 = vmatpush1.msra.mxu0 0.0
    %571 = vmatprep.subr.mxu0 0.0
    %572 = vmatpush1.msra.mxu0 0.0
    %573 = vmatprep.subr.mxu0 0.0
    %574 = vmatpush1.msra.mxu0 0.0
    %575 = vmatprep.mubr.f32.mxu0 0.0
    %576 = vmatmul.mubr.f32.gmra.mrb[0].mxu0 %v509
    %v577 = vpop.f32.mrb[0].mxu0
    %v578 = vadd.f32 0.0, %v577
    %v579 = vpop.f32.mrb[0].mxu0
    %580 = vdwg.mxu0
    %581 = vrot.lane.b32.xlu0 %v258, 120
    %v582 = vpop.permute.xlu0 %581
    %583 = vrot.lane.b32.xlu0 %v337, 120
    %v584 = vpop.permute.xlu0 %583
    %v585 = vsel %vm162, %v582, 0
    %v587 = vsel %vm162, %v584, 0
    %589 = vmatprep.subr.mxu0 0.0
    %590 = vmatpush1.xpose.msra.mxu0 %v587
    %591 = vmatprep.subr.mxu0 0.0
    %592 = vmatpush1.xpose.msra.mxu0 0.0
    %593 = vmatprep.subr.mxu0 0.0
    %594 = vmatpush1.xpose.msra.mxu0 0.0
    %595 = vmatprep.subr.mxu0 0.0
    %596 = vmatpush1.xpose.msra.mxu0 0.0
    %597 = vmatprep.subr.mxu0 0.0
    %598 = vmatpush1.xpose.msra.mxu0 0.0
    %599 = vmatprep.subr.mxu0 0.0
    %600 = vmatpush1.xpose.msra.mxu0 0.0
    %601 = vmatprep.subr.mxu0 0.0
    %602 = vmatpush1.xpose.msra.mxu0 0.0
    %603 = vmatprep.subr.mxu0 0.0
    %604 = vmatpush1.xpose.msra.mxu0 0.0
    %605 = vmatprep.subr.mxu0 0.0
    %606 = vmatpush1.xpose.msra.mxu0 0.0
    %607 = vmatprep.subr.mxu0 0.0
    %608 = vmatpush1.xpose.msra.mxu0 0.0
    %609 = vmatprep.subr.mxu0 0.0
    %610 = vmatpush1.xpose.msra.mxu0 0.0
    %611 = vmatprep.subr.mxu0 0.0
    %612 = vmatpush1.xpose.msra.mxu0 0.0
    %613 = vmatprep.subr.mxu0 0.0
    %614 = vmatpush1.xpose.msra.mxu0 0.0
    %615 = vmatprep.subr.mxu0 0.0
    %616 = vmatpush1.xpose.msra.mxu0 0.0
    %617 = vmatprep.subr.mxu0 0.0
    %618 = vmatpush1.xpose.msra.mxu0 0.0
    %619 = vmatprep.subr.mxu0 0.0
    %620 = vmatpush1.xpose.msra.mxu0 0.0
    %621 = vmatprep.subr.mxu0 0.0
    %622 = vmatpush1.xpose.msra.mxu0 0.0
    %623 = vmatprep.subr.mxu0 0.0
    %624 = vmatpush1.xpose.msra.mxu0 0.0
    %625 = vmatprep.subr.mxu0 0.0
    %626 = vmatpush1.xpose.msra.mxu0 0.0
    %627 = vmatprep.subr.mxu0 0.0
    %628 = vmatpush1.xpose.msra.mxu0 0.0
    %629 = vmatprep.subr.mxu0 0.0
    %630 = vmatpush1.xpose.msra.mxu0 0.0
    %631 = vmatprep.subr.mxu0 0.0
    %632 = vmatpush1.xpose.msra.mxu0 0.0
    %633 = vmatprep.subr.mxu0 0.0
    %634 = vmatpush1.xpose.msra.mxu0 0.0
    %635 = vmatprep.subr.mxu0 0.0
    %636 = vmatpush1.xpose.msra.mxu0 0.0
    %637 = vmatprep.subr.mxu0 0.0
    %638 = vmatpush1.xpose.msra.mxu0 0.0
    %639 = vmatprep.subr.mxu0 0.0
    %640 = vmatpush1.xpose.msra.mxu0 0.0
    %641 = vmatprep.subr.mxu0 0.0
    %642 = vmatpush1.xpose.msra.mxu0 0.0
    %643 = vmatprep.subr.mxu0 0.0
    %644 = vmatpush1.xpose.msra.mxu0 0.0
    %645 = vmatprep.subr.mxu0 0.0
    %646 = vmatpush1.xpose.msra.mxu0 0.0
    %647 = vmatprep.subr.mxu0 0.0
    %648 = vmatpush1.xpose.msra.mxu0 0.0
    %649 = vmatprep.subr.mxu0 0.0
    %650 = vmatpush1.xpose.msra.mxu0 0.0
    %651 = vmatprep.subr.mxu0 0.0
    %652 = vmatpush1.xpose.msra.mxu0 0.0
    %653 = vmatprep.mubr.f32.mxu0 0.0
    %654 = vmatmul.mubr.f32.gmra.mrb[0].mxu0 %v585
    %v655 = vpop.f32.mrb[0].mxu0
    %v656 = vadd.f32 0.0, %v655
    %v657 = vpop.f32.mrb[0].mxu0
    %658 = vdwg.mxu0
    %v659 = vmul.f32 %v656, 0.35355338
    %v660 = vadd.f32 %v659, %v176
    %v661 = vsel %vm162, %v660, -inf
    %662 = vmax.xlane.f32.xlu0 %v661
    %v663 = vpop.xlane.xlu0 %662
    %v664 = vsub.f32 %v660, %v663
    %v665 = vmul.f32 %v664, 1.442695
    %v666 = vpow.pop %v665
    %v667 = vsel %vm162, %v666, 0.0
    %668 = vadd.xlane.f32.xlu0 %v667
    %v669 = vpop.xlane.xlu0 %668
    %v670 = vrcp.pop %v669
    %v671 = vmul.f32 %v666, %v670
    %673 = vrot.lane.b32.xlu0 %v416, 120
    %v674 = vpop.permute.xlu0 %673
    %v677 = vsel %vm162, %v671, 0
    %679 = vmatprep.subr.mxu0 0.0
    %680 = vmatpush1.msra.mxu0 %v674
    %681 = vmatprep.subr.mxu0 0.0
    %682 = vmatpush1.msra.mxu0 0.0
    %683 = vmatprep.subr.mxu0 0.0
    %684 = vmatpush1.msra.mxu0 0.0
    %685 = vmatprep.subr.mxu0 0.0
    %686 = vmatpush1.msra.mxu0 0.0
    %687 = vmatprep.subr.mxu0 0.0
    %688 = vmatpush1.msra.mxu0 0.0
    %689 = vmatprep.subr.mxu0 0.0
    %690 = vmatpush1.msra.mxu0 0.0
    %691 = vmatprep.subr.mxu0 0.0
    %692 = vmatpush1.msra.mxu0 0.0
    %693 = vmatprep.subr.mxu0 0.0
    %694 = vmatpush1.msra.mxu0 0.0
    %695 = vmatprep.subr.mxu0 0.0
    %696 = vmatpush1.msra.mxu0 0.0
    %697 = vmatprep.subr.mxu0 0.0
    %698 = vmatpush1.msra.mxu0 0.0
    %699 = vmatprep.subr.mxu0 0.0
    %700 = vmatpush1.msra.mxu0 0.0
    %701 = vmatprep.subr.mxu0 0.0
    %702 = vmatpush1.msra.mxu0 0.0
    %703 = vmatprep.subr.mxu0 0.0
    %704 = vmatpush1.msra.mxu0 0.0
    %705 = vmatprep.subr.mxu0 0.0
    %706 = vmatpush1.msra.mxu0 0.0
    %707 = vmatprep.subr.mxu0 0.0
    %708 = vmatpush1.msra.mxu0 0.0
    %709 = vmatprep.subr.mxu0 0.0
    %710 = vmatpush1.msra.mxu0 0.0
    %711 = vmatprep.subr.mxu0 0.0
    %712 = vmatpush1.msra.mxu0 0.0
    %713 = vmatprep.subr.mxu0 0.0
    %714 = vmatpush1.msra.mxu0 0.0
    %715 = vmatprep.subr.mxu0 0.0
    %716 = vmatpush1.msra.mxu0 0.0
    %717 = vmatprep.subr.mxu0 0.0
    %718 = vmatpush1.msra.mxu0 0.0
    %719 = vmatprep.subr.mxu0 0.0
    %720 = vmatpush1.msra.mxu0 0.0
    %721 = vmatprep.subr.mxu0 0.0
    %722 = vmatpush1.msra.mxu0 0.0
    %723 = vmatprep.subr.mxu0 0.0
    %724 = vmatpush1.msra.mxu0 0.0
    %725 = vmatprep.subr.mxu0 0.0
    %726 = vmatpush1.msra.mxu0 0.0
    %727 = vmatprep.subr.mxu0 0.0
    %728 = vmatpush1.msra.mxu0 0.0
    %729 = vmatprep.subr.mxu0 0.0
    %730 = vmatpush1.msra.mxu0 0.0
    %731 = vmatprep.subr.mxu0 0.0
    %732 = vmatpush1.msra.mxu0 0.0
    %733 = vmatprep.subr.mxu0 0.0
    %734 = vmatpush1.msra.mxu0 0.0
    %735 = vmatprep.subr.mxu0 0.0
    %736 = vmatpush1.msra.mxu0 0.0
    %737 = vmatprep.subr.mxu0 0.0
    %738 = vmatpush1.msra.mxu0 0.0
    %739 = vmatprep.subr.mxu0 0.0
    %740 = vmatpush1.msra.mxu0 0.0
    %741 = vmatprep.subr.mxu0 0.0
    %742 = vmatpush1.msra.mxu0 0.0
    %743 = vmatprep.mubr.f32.mxu0 0.0
    %744 = vmatmul.mubr.f32.gmra.mrb[0].mxu0 %v677
    %v745 = vpop.f32.mrb[0].mxu0
    %v746 = vadd.f32 0.0, %v745
    %v747 = vpop.f32.mrb[0].mxu0
    %748 = vdwg.mxu0
    %749 = vrot.lane.b32.xlu0 %v258, 112
    %v750 = vpop.permute.xlu0 %749
    %751 = vrot.lane.b32.xlu0 %v337, 112
    %v752 = vpop.permute.xlu0 %751
    %v753 = vsel %vm162, %v750, 0
    %v755 = vsel %vm162, %v752, 0
    %757 = vmatprep.subr.mxu0 0.0
    %758 = vmatpush1.xpose.msra.mxu0 %v755
    %759 = vmatprep.subr.mxu0 0.0
    %760 = vmatpush1.xpose.msra.mxu0 0.0
    %761 = vmatprep.subr.mxu0 0.0
    %762 = vmatpush1.xpose.msra.mxu0 0.0
    %763 = vmatprep.subr.mxu0 0.0
    %764 = vmatpush1.xpose.msra.mxu0 0.0
    %765 = vmatprep.subr.mxu0 0.0
    %766 = vmatpush1.xpose.msra.mxu0 0.0
    %767 = vmatprep.subr.mxu0 0.0
    %768 = vmatpush1.xpose.msra.mxu0 0.0
    %769 = vmatprep.subr.mxu0 0.0
    %770 = vmatpush1.xpose.msra.mxu0 0.0
    %771 = vmatprep.subr.mxu0 0.0
    %772 = vmatpush1.xpose.msra.mxu0 0.0
    %773 = vmatprep.subr.mxu0 0.0
    %774 = vmatpush1.xpose.msra.mxu0 0.0
    %775 = vmatprep.subr.mxu0 0.0
    %776 = vmatpush1.xpose.msra.mxu0 0.0
    %777 = vmatprep.subr.mxu0 0.0
    %778 = vmatpush1.xpose.msra.mxu0 0.0
    %779 = vmatprep.subr.mxu0 0.0
    %780 = vmatpush1.xpose.msra.mxu0 0.0
    %781 = vmatprep.subr.mxu0 0.0
    %782 = vmatpush1.xpose.msra.mxu0 0.0
    %783 = vmatprep.subr.mxu0 0.0
    %784 = vmatpush1.xpose.msra.mxu0 0.0
    %785 = vmatprep.subr.mxu0 0.0
    %786 = vmatpush1.xpose.msra.mxu0 0.0
    %787 = vmatprep.subr.mxu0 0.0
    %788 = vmatpush1.xpose.msra.mxu0 0.0
    %789 = vmatprep.subr.mxu0 0.0
    %790 = vmatpush1.xpose.msra.mxu0 0.0
    %791 = vmatprep.subr.mxu0 0.0
    %792 = vmatpush1.xpose.msra.mxu0 0.0
    %793 = vmatprep.subr.mxu0 0.0
    %794 = vmatpush1.xpose.msra.mxu0 0.0
    %795 = vmatprep.subr.mxu0 0.0
    %796 = vmatpush1.xpose.msra.mxu0 0.0
    %797 = vmatprep.subr.mxu0 0.0
    %798 = vmatpush1.xpose.msra.mxu0 0.0
    %799 = vmatprep.subr.mxu0 0.0
    %800 = vmatpush1.xpose.msra.mxu0 0.0
    %801 = vmatprep.subr.mxu0 0.0
    %802 = vmatpush1.xpose.msra.mxu0 0.0
    %803 = vmatprep.subr.mxu0 0.0
    %804 = vmatpush1.xpose.msra.mxu0 0.0
    %805 = vmatprep.subr.mxu0 0.0
    %806 = vmatpush1.xpose.msra.mxu0 0.0
    %807 = vmatprep.subr.mxu0 0.0
    %808 = vmatpush1.xpose.msra.mxu0 0.0
    %809 = vmatprep.subr.mxu0 0.0
    %810 = vmatpush1.xpose.msra.mxu0 0.0
    %811 = vmatprep.subr.mxu0 0.0
    %812 = vmatpush1.xpose.msra.mxu0 0.0
    %813 = vmatprep.subr.mxu0 0.0
    %814 = vmatpush1.xpose.msra.mxu0 0.0
    %815 = vmatprep.subr.mxu0 0.0
    %816 = vmatpush1.xpose.msra.mxu0 0.0
    %817 = vmatprep.subr.mxu0 0.0
    %818 = vmatpush1.xpose.msra.mxu0 0.0
    %819 = vmatprep.subr.mxu0 0.0
    %820 = vmatpush1.xpose.msra.mxu0 0.0
    %821 = vmatprep.mubr.f32.mxu0 0.0
    %822 = vmatmul.mubr.f32.gmra.mrb[0].mxu0 %v753
    %v823 = vpop.f32.mrb[0].mxu0
    %v824 = vadd.f32 0.0, %v823
    %v825 = vpop.f32.mrb[0].mxu0
    %826 = vdwg.mxu0
    %v827 = vmul.f32 %v824, 0.35355338
    %v828 = vadd.f32 %v827, %v176
    %v829 = vsel %vm162, %v828, -inf
    %830 = vmax.xlane.f32.xlu0 %v829
    %v831 = vpop.xlane.xlu0 %830
    %v832 = vsub.f32 %v828, %v831
    %v833 = vmul.f32 %v832, 1.442695
    %v834 = vpow.pop %v833
    %v835 = vsel %vm162, %v834, 0.0
    %836 = vadd.xlane.f32.xlu0 %v835
    %v837 = vpop.xlane.xlu0 %836
    %v838 = vrcp.pop %v837
    %v839 = vmul.f32 %v834, %v838
    %840 = vrot.lane.b32.xlu0 %v416, 112
    %v841 = vpop.permute.xlu0 %840
    %v844 = vsel %vm162, %v839, 0
    %846 = vmatprep.subr.mxu0 0.0
    %847 = vmatpush1.msra.mxu0 %v841
    %848 = vmatprep.subr.mxu0 0.0
    %849 = vmatpush1.msra.mxu0 0.0
    %850 = vmatprep.subr.mxu0 0.0
    %851 = vmatpush1.msra.mxu0 0.0
    %852 = vmatprep.subr.mxu0 0.0
    %853 = vmatpush1.msra.mxu0 0.0
    %854 = vmatprep.subr.mxu0 0.0
    %855 = vmatpush1.msra.mxu0 0.0
    %856 = vmatprep.subr.mxu0 0.0
    %857 = vmatpush1.msra.mxu0 0.0
    %858 = vmatprep.subr.mxu0 0.0
    %859 = vmatpush1.msra.mxu0 0.0
    %860 = vmatprep.subr.mxu0 0.0
    %861 = vmatpush1.msra.mxu0 0.0
    %862 = vmatprep.subr.mxu0 0.0
    %863 = vmatpush1.msra.mxu0 0.0
    %864 = vmatprep.subr.mxu0 0.0
    %865 = vmatpush1.msra.mxu0 0.0
    %866 = vmatprep.subr.mxu0 0.0
    %867 = vmatpush1.msra.mxu0 0.0
    %868 = vmatprep.subr.mxu0 0.0
    %869 = vmatpush1.msra.mxu0 0.0
    %870 = vmatprep.subr.mxu0 0.0
    %871 = vmatpush1.msra.mxu0 0.0
    %872 = vmatprep.subr.mxu0 0.0
    %873 = vmatpush1.msra.mxu0 0.0
    %874 = vmatprep.subr.mxu0 0.0
    %875 = vmatpush1.msra.mxu0 0.0
    %876 = vmatprep.subr.mxu0 0.0
    %877 = vmatpush1.msra.mxu0 0.0
    %878 = vmatprep.subr.mxu0 0.0
    %879 = vmatpush1.msra.mxu0 0.0
    %880 = vmatprep.subr.mxu0 0.0
    %881 = vmatpush1.msra.mxu0 0.0
    %882 = vmatprep.subr.mxu0 0.0
    %883 = vmatpush1.msra.mxu0 0.0
    %884 = vmatprep.subr.mxu0 0.0
    %885 = vmatpush1.msra.mxu0 0.0
    %886 = vmatprep.subr.mxu0 0.0
    %887 = vmatpush1.msra.mxu0 0.0
    %888 = vmatprep.subr.mxu0 0.0
    %889 = vmatpush1.msra.mxu0 0.0
    %890 = vmatprep.subr.mxu0 0.0
    %891 = vmatpush1.msra.mxu0 0.0
    %892 = vmatprep.subr.mxu0 0.0
    %893 = vmatpush1.msra.mxu0 0.0
    %894 = vmatprep.subr.mxu0 0.0
    %895 = vmatpush1.msra.mxu0 0.0
    %896 = vmatprep.subr.mxu0 0.0
    %897 = vmatpush1.msra.mxu0 0.0
    %898 = vmatprep.subr.mxu0 0.0
    %899 = vmatpush1.msra.mxu0 0.0
    %900 = vmatprep.subr.mxu0 0.0
    %901 = vmatpush1.msra.mxu0 0.0
    %902 = vmatprep.subr.mxu0 0.0
    %903 = vmatpush1.msra.mxu0 0.0
    %904 = vmatprep.subr.mxu0 0.0
    %905 = vmatpush1.msra.mxu0 0.0
    %906 = vmatprep.subr.mxu0 0.0
    %907 = vmatpush1.msra.mxu0 0.0
    %908 = vmatprep.subr.mxu0 0.0
    %909 = vmatpush1.msra.mxu0 0.0
    %910 = vmatprep.mubr.f32.mxu0 0.0
    %911 = vmatmul.mubr.f32.gmra.mrb[0].mxu0 %v844
    %v912 = vpop.f32.mrb[0].mxu0
    %v913 = vadd.f32 0.0, %v912
    %v914 = vpop.f32.mrb[0].mxu0
    %915 = vdwg.mxu0
    %916 = vrot.lane.b32.xlu0 %v258, 104
    %v917 = vpop.permute.xlu0 %916
    %918 = vrot.lane.b32.xlu0 %v337, 104
    %v919 = vpop.permute.xlu0 %918
    %v920 = vsel %vm162, %v917, 0
    %v922 = vsel %vm162, %v919, 0
    %924 = vmatprep.subr.mxu0 0.0
    %925 = vmatpush1.xpose.msra.mxu0 %v922
    %926 = vmatprep.subr.mxu0 0.0
    %927 = vmatpush1.xpose.msra.mxu0 0.0
    %928 = vmatprep.subr.mxu0 0.0
    %929 = vmatpush1.xpose.msra.mxu0 0.0
    %930 = vmatprep.subr.mxu0 0.0
    %931 = vmatpush1.xpose.msra.mxu0 0.0
    %932 = vmatprep.subr.mxu0 0.0
    %933 = vmatpush1.xpose.msra.mxu0 0.0
    %934 = vmatprep.subr.mxu0 0.0
    %935 = vmatpush1.xpose.msra.mxu0 0.0
    %936 = vmatprep.subr.mxu0 0.0
    %937 = vmatpush1.xpose.msra.mxu0 0.0
    %938 = vmatprep.subr.mxu0 0.0
    %939 = vmatpush1.xpose.msra.mxu0 0.0
    %940 = vmatprep.subr.mxu0 0.0
    %941 = vmatpush1.xpose.msra.mxu0 0.0
    %942 = vmatprep.subr.mxu0 0.0
    %943 = vmatpush1.xpose.msra.mxu0 0.0
    %944 = vmatprep.subr.mxu0 0.0
    %945 = vmatpush1.xpose.msra.mxu0 0.0
    %946 = vmatprep.subr.mxu0 0.0
    %947 = vmatpush1.xpose.msra.mxu0 0.0
    %948 = vmatprep.subr.mxu0 0.0
    %949 = vmatpush1.xpose.msra.mxu0 0.0
    %950 = vmatprep.subr.mxu0 0.0
    %951 = vmatpush1.xpose.msra.mxu0 0.0
    %952 = vmatprep.subr.mxu0 0.0
    %953 = vmatpush1.xpose.msra.mxu0 0.0
    %954 = vmatprep.subr.mxu0 0.0
    %955 = vmatpush1.xpose.msra.mxu0 0.0
    %956 = vmatprep.subr.mxu0 0.0
    %957 = vmatpush1.xpose.msra.mxu0 0.0
    %958 = vmatprep.subr.mxu0 0.0
    %959 = vmatpush1.xpose.msra.mxu0 0.0
    %960 = vmatprep.subr.mxu0 0.0
    %961 = vmatpush1.xpose.msra.mxu0 0.0
    %962 = vmatprep.subr.mxu0 0.0
    %963 = vmatpush1.xpose.msra.mxu0 0.0
    %964 = vmatprep.subr.mxu0 0.0
    %965 = vmatpush1.xpose.msra.mxu0 0.0
    %966 = vmatprep.subr.mxu0 0.0
    %967 = vmatpush1.xpose.msra.mxu0 0.0
    %968 = vmatprep.subr.mxu0 0.0
    %969 = vmatpush1.xpose.msra.mxu0 0.0
    %970 = vmatprep.subr.mxu0 0.0
    %971 = vmatpush1.xpose.msra.mxu0 0.0
    %972 = vmatprep.subr.mxu0 0.0
    %973 = vmatpush1.xpose.msra.mxu0 0.0
    %974 = vmatprep.subr.mxu0 0.0
    %975 = vmatpush1.xpose.msra.mxu0 0.0
    %976 = vmatprep.subr.mxu0 0.0
    %977 = vmatpush1.xpose.msra.mxu0 0.0
    %978 = vmatprep.subr.mxu0 0.0
    %979 = vmatpush1.xpose.msra.mxu0 0.0
    %980 = vmatprep.subr.mxu0 0.0
    %981 = vmatpush1.xpose.msra.mxu0 0.0
    %982 = vmatprep.subr.mxu0 0.0
    %983 = vmatpush1.xpose.msra.mxu0 0.0
    %984 = vmatprep.subr.mxu0 0.0
    %985 = vmatpush1.xpose.msra.mxu0 0.0
    %986 = vmatprep.subr.mxu0 0.0
    %987 = vmatpush1.xpose.msra.mxu0 0.0
    %988 = vmatprep.mubr.f32.mxu0 0.0
    %989 = vmatmul.mubr.f32.gmra.mrb[0].mxu0 %v920
    %v990 = vpop.f32.mrb[0].mxu0
    %v991 = vadd.f32 0.0, %v990
    %v992 = vpop.f32.mrb[0].mxu0
    %993 = vdwg.mxu0
    %v994 = vmul.f32 %v991, 0.35355338
    %v995 = vadd.f32 %v994, %v176
    %v996 = vsel %vm162, %v995, -inf
    %997 = vmax.xlane.f32.xlu0 %v996
    %v998 = vpop.xlane.xlu0 %997
    %v999 = vsub.f32 %v995, %v998
    %v1000 = vmul.f32 %v999, 1.442695
    %v1001 = vpow.pop %v1000
    %v1002 = vsel %vm162, %v1001, 0.0
    %1003 = vadd.xlane.f32.xlu0 %v1002
    %v1004 = vpop.xlane.xlu0 %1003
    %v1005 = vrcp.pop %v1004
    %v1006 = vmul.f32 %v1001, %v1005
    %1007 = vrot.lane.b32.xlu0 %v416, 104
    %v1008 = vpop.permute.xlu0 %1007
    %v1011 = vsel %vm162, %v1006, 0
    %1013 = vmatprep.subr.mxu0 0.0
    %1014 = vmatpush1.msra.mxu0 %v1008
    %1015 = vmatprep.subr.mxu0 0.0
    %1016 = vmatpush1.msra.mxu0 0.0
    %1017 = vmatprep.subr.mxu0 0.0
    %1018 = vmatpush1.msra.mxu0 0.0
    %1019 = vmatprep.subr.mxu0 0.0
    %1020 = vmatpush1.msra.mxu0 0.0
    %1021 = vmatprep.subr.mxu0 0.0
    %1022 = vmatpush1.msra.mxu0 0.0
    %1023 = vmatprep.subr.mxu0 0.0
    %1024 = vmatpush1.msra.mxu0 0.0
    %1025 = vmatprep.subr.mxu0 0.0
    %1026 = vmatpush1.msra.mxu0 0.0
    %1027 = vmatprep.subr.mxu0 0.0
    %1028 = vmatpush1.msra.mxu0 0.0
    %1029 = vmatprep.subr.mxu0 0.0
    %1030 = vmatpush1.msra.mxu0 0.0
    %1031 = vmatprep.subr.mxu0 0.0
    %1032 = vmatpush1.msra.mxu0 0.0
    %1033 = vmatprep.subr.mxu0 0.0
    %1034 = vmatpush1.msra.mxu0 0.0
    %1035 = vmatprep.subr.mxu0 0.0
    %1036 = vmatpush1.msra.mxu0 0.0
    %1037 = vmatprep.subr.mxu0 0.0
    %1038 = vmatpush1.msra.mxu0 0.0
    %1039 = vmatprep.subr.mxu0 0.0
    %1040 = vmatpush1.msra.mxu0 0.0
    %1041 = vmatprep.subr.mxu0 0.0
    %1042 = vmatpush1.msra.mxu0 0.0
    %1043 = vmatprep.subr.mxu0 0.0
    %1044 = vmatpush1.msra.mxu0 0.0
    %1045 = vmatprep.subr.mxu0 0.0
    %1046 = vmatpush1.msra.mxu0 0.0
    %1047 = vmatprep.subr.mxu0 0.0
    %1048 = vmatpush1.msra.mxu0 0.0
    %1049 = vmatprep.subr.mxu0 0.0
    %1050 = vmatpush1.msra.mxu0 0.0
    %1051 = vmatprep.subr.mxu0 0.0
    %1052 = vmatpush1.msra.mxu0 0.0
    %1053 = vmatprep.subr.mxu0 0.0
    %1054 = vmatpush1.msra.mxu0 0.0
    %1055 = vmatprep.subr.mxu0 0.0
    %1056 = vmatpush1.msra.mxu0 0.0
    %1057 = vmatprep.subr.mxu0 0.0
    %1058 = vmatpush1.msra.mxu0 0.0
    %1059 = vmatprep.subr.mxu0 0.0
    %1060 = vmatpush1.msra.mxu0 0.0
    %1061 = vmatprep.subr.mxu0 0.0
    %1062 = vmatpush1.msra.mxu0 0.0
    %1063 = vmatprep.subr.mxu0 0.0
    %1064 = vmatpush1.msra.mxu0 0.0
    %1065 = vmatprep.subr.mxu0 0.0
    %1066 = vmatpush1.msra.mxu0 0.0
    %1067 = vmatprep.subr.mxu0 0.0
    %1068 = vmatpush1.msra.mxu0 0.0
    %1069 = vmatprep.subr.mxu0 0.0
    %1070 = vmatpush1.msra.mxu0 0.0
    %1071 = vmatprep.subr.mxu0 0.0
    %1072 = vmatpush1.msra.mxu0 0.0
    %1073 = vmatprep.subr.mxu0 0.0
    %1074 = vmatpush1.msra.mxu0 0.0
    %1075 = vmatprep.subr.mxu0 0.0
    %1076 = vmatpush1.msra.mxu0 0.0
    %1077 = vmatprep.mubr.f32.mxu0 0.0
    %1078 = vmatmul.mubr.f32.gmra.mrb[0].mxu0 %v1011
    %v1079 = vpop.f32.mrb[0].mxu0
    %v1080 = vadd.f32 0.0, %v1079
    %v1081 = vpop.f32.mrb[0].mxu0
    %1082 = vdwg.mxu0
    %1084 = vrot.lane.b32.xlu0 %v746, 8
    %v1085 = vpop.permute.xlu0 %1084
    %1088 = vrot.lane.b32.xlu0 %v913, 16
    %v1089 = vpop.permute.xlu0 %1088
    %1092 = vrot.lane.b32.xlu0 %v1080, 24
    %v1093 = vpop.permute.xlu0 %1092
    %v1095 = vsel %vm162, %v578, %v1085
    %vm1096 = vcmask 130048
    %v1097 = vsel %vm1096, %v1095, %v1089
    %vm1098 = vcmask 195584
    %v1099 = vsel %vm1098, %v1097, %v1093
    %v1100 = vld [vmem:[%s3] sm:$0xff]
    %v1101 = vld [vmem:[%s3 + $0x8] sm:$0xff]
    %v1102 = vld [vmem:[%s3 + $0x10] sm:$0xff]
    %v1103 = vld [vmem:[%s3 + $0x18] sm:$0xff]
    %v1104 = vlaneseq
    %v1105 = vshrl.u32 %v1104, 7
    %v1106 = vsub.s32 3, %v1105
    %v1107 = vrot.slane %v178, %v1106
    %v1109 = vsel %vm38, %v1099, 0
    %1111 = vmatprep.subr.mxu0 0.0
    %1112 = vmatpush1.msra.mxu0 %v1100
    %1113 = vmatprep.subr.mxu0 0.0
    %1114 = vmatpush1.msra.mxu0 %v1101
    %1115 = vmatprep.subr.mxu0 0.0
    %1116 = vmatpush1.msra.mxu0 %v1102
    %1117 = vmatprep.subr.mxu0 0.0
    %1118 = vmatpush1.msra.mxu0 %v1103
    %1119 = vmatprep.subr.mxu0 0.0
    %1120 = vmatpush1.msra.mxu0 0.0
    %1121 = vmatprep.subr.mxu0 0.0
    %1122 = vmatpush1.msra.mxu0 0.0
    %1123 = vmatprep.subr.mxu0 0.0
    %1124 = vmatpush1.msra.mxu0 0.0
    %1125 = vmatprep.subr.mxu0 0.0
    %1126 = vmatpush1.msra.mxu0 0.0
    %1127 = vmatprep.subr.mxu0 0.0
    %1128 = vmatpush1.msra.mxu0 0.0
    %1129 = vmatprep.subr.mxu0 0.0
    %1130 = vmatpush1.msra.mxu0 0.0
    %1131 = vmatprep.subr.mxu0 0.0
    %1132 = vmatpush1.msra.mxu0 0.0
    %1133 = vmatprep.subr.mxu0 0.0
    %1134 = vmatpush1.msra.mxu0 0.0
    %1135 = vmatprep.subr.mxu0 0.0
    %1136 = vmatpush1.msra.mxu0 0.0
    %1137 = vmatprep.subr.mxu0 0.0
    %1138 = vmatpush1.msra.mxu0 0.0
    %1139 = vmatprep.subr.mxu0 0.0
    %1140 = vmatpush1.msra.mxu0 0.0
    %1141 = vmatprep.subr.mxu0 0.0
    %1142 = vmatpush1.msra.mxu0 0.0
    %1143 = vmatprep.subr.mxu0 0.0
    %1144 = vmatpush1.msra.mxu0 0.0
    %1145 = vmatprep.subr.mxu0 0.0
    %1146 = vmatpush1.msra.mxu0 0.0
    %1147 = vmatprep.subr.mxu0 0.0
    %1148 = vmatpush1.msra.mxu0 0.0
    %1149 = vmatprep.subr.mxu0 0.0
    %1150 = vmatpush1.msra.mxu0 0.0
    %1151 = vmatprep.subr.mxu0 0.0
    %1152 = vmatpush1.msra.mxu0 0.0
    %1153 = vmatprep.subr.mxu0 0.0
    %1154 = vmatpush1.msra.mxu0 0.0
    %1155 = vmatprep.subr.mxu0 0.0
    %1156 = vmatpush1.msra.mxu0 0.0
    %1157 = vmatprep.subr.mxu0 0.0
    %1158 = vmatpush1.msra.mxu0 0.0
    %1159 = vmatprep.subr.mxu0 0.0
    %1160 = vmatpush1.msra.mxu0 0.0
    %1161 = vmatprep.subr.mxu0 0.0
    %1162 = vmatpush1.msra.mxu0 0.0
    %1163 = vmatprep.subr.mxu0 0.0
    %1164 = vmatpush1.msra.mxu0 0.0
    %1165 = vmatprep.subr.mxu0 0.0
    %1166 = vmatpush1.msra.mxu0 0.0
    %1167 = vmatprep.subr.mxu0 0.0
    %1168 = vmatpush1.msra.mxu0 0.0
    %1169 = vmatprep.subr.mxu0 0.0
    %1170 = vmatpush1.msra.mxu0 0.0
    %1171 = vmatprep.subr.mxu0 0.0
    %1172 = vmatpush1.msra.mxu0 0.0
    %1173 = vmatprep.subr.mxu0 0.0
    %1174 = vmatpush1.msra.mxu0 0.0
    %1175 = vmatprep.mubr.f32.mxu0 0.0
    %1176 = vmatmul.mubr.f32.gmra.mrb[0].mxu0 %v1109
    %v1177 = vpop.f32.mrb[0].mxu0
    %v1178 = vadd.f32 %v1107, %v1177
    %v1179 = vpop.f32.mrb[0].mxu0
    %1180 = vdwg.mxu0
    %v1181 = vadd.f32 %v177, %v1178
    %v1182 = vsel %vm38, %v1181, 0.0
    %1183 = vadd.xlane.f32.xlu0 %v1182
    %v1184 = vpop.xlane.xlu0 %1183
    %v1185 = vrcp.pop 32.0
    %v1186 = vmul.f32 %v1184, %v1185
    %v1187 = vsub.f32 %v1181, %v1186
    %v1188 = vmul.f32 %v1187, %v1187
    %v1189 = vsel %vm38, %v1188, 0.0
    %1190 = vadd.xlane.f32.xlu0 %v1189
    %v1191 = vpop.xlane.xlu0 %1190
    %v1192 = vmul.f32 %v1191, %v1185
    %v1193 = vadd.f32 %v1192, 1e-05
    %v1194 = vrsqrt.pop %v1193
    %v1195 = vmul.f32 %v1187, %v1194
    %v1196 = vlaneseq
    %v1197 = vshrl.u32 %v1196, 7
    %v1198 = vsub.s32 5, %v1197
    %v1199 = vrot.slane %v178, %v1198
    %v1200 = vmul.f32 %v1195, %v1199
    %v1201 = vlaneseq
    %v1202 = vshrl.u32 %v1201, 7
    %v1203 = vsub.s32 6, %v1202
    %v1204 = vrot.slane %v178, %v1203
    %v1205 = vadd.f32 %v1200, %v1204
    %v1206 = vld [vmem:[%s4] sm:$0xff]
    %v1207 = vld [vmem:[%s4 + $0x8] sm:$0xff]
    %v1208 = vld [vmem:[%s4 + $0x10] sm:$0xff]
    %v1209 = vld [vmem:[%s4 + $0x18] sm:$0xff]
    %v1210 = vld [vmem:[%s4 + $0x20] sm:$0xff]
    %v1211 = vld [vmem:[%s4 + $0x28] sm:$0xff]
    %v1212 = vld [vmem:[%s4 + $0x30] sm:$0xff]
    %v1213 = vld [vmem:[%s4 + $0x38] sm:$0xff]
    %v1214 = vld [vmem:[%s4 + $0x40] sm:$0xff]
    %v1215 = vld [vmem:[%s4 + $0x48] sm:$0xff]
    %v1216 = vld [vmem:[%s4 + $0x50] sm:$0xff]
    %v1217 = vld [vmem:[%s4 + $0x58] sm:$0xff]
    %v1218 = vld [vmem:[%s4 + $0x60] sm:$0xff]
    %v1219 = vld [vmem:[%s4 + $0x68] sm:$0xff]
    %v1220 = vld [vmem:[%s4 + $0x70] sm:$0xff]
    %v1221 = vld [vmem:[%s4 + $0x78] sm:$0xff]
    %v1222 = vld [vmem:[%s4 + $0x80] sm:$0xff]
    %v1223 = vld [vmem:[%s4 + $0x88] sm:$0xff]
    %v1224 = vld [vmem:[%s4 + $0x90] sm:$0xff]
    %v1225 = vld [vmem:[%s4 + $0x98] sm:$0xff]
    %v1226 = vld [vmem:[%s4 + $0xa0] sm:$0xff]
    %v1227 = vld [vmem:[%s4 + $0xa8] sm:$0xff]
    %v1228 = vld [vmem:[%s4 + $0xb0] sm:$0xff]
    %v1229 = vld [vmem:[%s4 + $0xb8] sm:$0xff]
    %v1230 = vld [vmem:[%s4 + $0xc0] sm:$0xff]
    %v1231 = vld [vmem:[%s4 + $0xc8] sm:$0xff]
    %v1232 = vld [vmem:[%s4 + $0xd0] sm:$0xff]
    %v1233 = vld [vmem:[%s4 + $0xd8] sm:$0xff]
    %v1234 = vld [vmem:[%s4 + $0xe0] sm:$0xff]
    %v1235 = vld [vmem:[%s4 + $0xe8] sm:$0xff]
    %v1236 = vld [vmem:[%s4 + $0xf0] sm:$0xff]
    %v1237 = vld [vmem:[%s4 + $0xf8] sm:$0xff]
    %v1238 = vld [vmem:[%s4 + $0x100] sm:$0xff]
    %v1239 = vld [vmem:[%s4 + $0x108] sm:$0xff]
    %v1240 = vld [vmem:[%s4 + $0x110] sm:$0xff]
    %v1241 = vld [vmem:[%s4 + $0x118] sm:$0xff]
    %v1242 = vld [vmem:[%s4 + $0x120] sm:$0xff]
    %v1243 = vld [vmem:[%s4 + $0x128] sm:$0xff]
    %v1244 = vld [vmem:[%s4 + $0x130] sm:$0xff]
    %v1245 = vld [vmem:[%s4 + $0x138] sm:$0xff]
    %v1246 = vld [vmem:[%s4 + $0x140] sm:$0xff]
    %v1247 = vld [vmem:[%s4 + $0x148] sm:$0xff]
    %v1248 = vld [vmem:[%s4 + $0x150] sm:$0xff]
    %v1249 = vld [vmem:[%s4 + $0x158] sm:$0xff]
    %v1250 = vld [vmem:[%s4 + $0x160] sm:$0xff]
    %v1251 = vld [vmem:[%s4 + $0x168] sm:$0xff]
    %v1252 = vld [vmem:[%s4 + $0x170] sm:$0xff]
    %v1253 = vld [vmem:[%s4 + $0x178] sm:$0xff]
    %v1254 = vld [vmem:[%s4 + $0x180] sm:$0xff]
    %v1255 = vld [vmem:[%s4 + $0x188] sm:$0xff]
    %v1256 = vld [vmem:[%s4 + $0x190] sm:$0xff]
    %v1257 = vld [vmem:[%s4 + $0x198] sm:$0xff]
    %v1258 = vld [vmem:[%s4 + $0x1a0] sm:$0xff]
    %v1259 = vld [vmem:[%s4 + $0x1a8] sm:$0xff]
    %v1260 = vld [vmem:[%s4 + $0x1b0] sm:$0xff]
    %v1261 = vld [vmem:[%s4 + $0x1b8] sm:$0xff]
    %v1262 = vld [vmem:[%s4 + $0x1c0] sm:$0xff]
    %v1263 = vld [vmem:[%s4 + $0x1c8] sm:$0xff]
    %v1264 = vld [vmem:[%s4 + $0x1d0] sm:$0xff]
    %v1265 = vld [vmem:[%s4 + $0x1d8] sm:$0xff]
    %v1266 = vld [vmem:[%s4 + $0x1e0] sm:$0xff]
    %v1267 = vld [vmem:[%s4 + $0x1e8] sm:$0xff]
    %v1268 = vld [vmem:[%s4 + $0x1f0] sm:$0xff]
    %v1269 = vld [vmem:[%s4 + $0x1f8] sm:$0xff]
    %v1270 = vld [vmem:[%s6] sm:$0xff]
    %v1271 = vld [vmem:[%s6 + $0x8] sm:$0xff]
    %v1274 = vlaneseq
    %v1275 = vshrl.u32 %v1274, 7
    %v1276 = vsub.s32 0, %v1275
    %v1277 = vrot.slane %v1270, %v1276
    %v1278 = vlaneseq
    %v1279 = vshrl.u32 %v1278, 7
    %v1280 = vsub.s32 1, %v1279
    %v1281 = vrot.slane %v1270, %v1280
    %v1282 = vlaneseq
    %v1283 = vshrl.u32 %v1282, 7
    %v1284 = vsub.s32 2, %v1283
    %v1285 = vrot.slane %v1270, %v1284
    %v1286 = vlaneseq
    %v1287 = vshrl.u32 %v1286, 7
    %v1288 = vsub.s32 3, %v1287
    %v1289 = vrot.slane %v1270, %v1288
    %v1290 = vlaneseq
    %v1291 = vshrl.u32 %v1290, 7
    %v1292 = vsub.s32 4, %v1291
    %v1293 = vrot.slane %v1270, %v1292
    %v1294 = vlaneseq
    %v1295 = vshrl.u32 %v1294, 7
    %v1296 = vsub.s32 5, %v1295
    %v1297 = vrot.slane %v1270, %v1296
    %v1298 = vlaneseq
    %v1299 = vshrl.u32 %v1298, 7
    %v1300 = vsub.s32 6, %v1299
    %v1301 = vrot.slane %v1270, %v1300
    %v1302 = vlaneseq
    %v1303 = vshrl.u32 %v1302, 7
    %v1304 = vsub.s32 7, %v1303
    %v1305 = vrot.slane %v1270, %v1304
    %v1306 = vlaneseq
    %v1307 = vshrl.u32 %v1306, 7
    %v1308 = vsub.s32 0, %v1307
    %v1309 = vrot.slane %v1271, %v1308
    %v1310 = vlaneseq
    %v1311 = vshrl.u32 %v1310, 7
    %v1312 = vsub.s32 1, %v1311
    %v1313 = vrot.slane %v1271, %v1312
    %v1314 = vlaneseq
    %v1315 = vshrl.u32 %v1314, 7
    %v1316 = vsub.s32 2, %v1315
    %v1317 = vrot.slane %v1271, %v1316
    %v1318 = vlaneseq
    %v1319 = vshrl.u32 %v1318, 7
    %v1320 = vsub.s32 3, %v1319
    %v1321 = vrot.slane %v1271, %v1320
    %v1322 = vlaneseq
    %v1323 = vshrl.u32 %v1322, 7
    %v1324 = vsub.s32 4, %v1323
    %v1325 = vrot.slane %v1271, %v1324
    %v1326 = vlaneseq
    %v1327 = vshrl.u32 %v1326, 7
    %v1328 = vsub.s32 5, %v1327
    %v1329 = vrot.slane %v1271, %v1328
    %v1330 = vlaneseq
    %v1331 = vshrl.u32 %v1330, 7
    %v1332 = vsub.s32 6, %v1331
    %v1333 = vrot.slane %v1271, %v1332
    %v1334 = vlaneseq
    %v1335 = vshrl.u32 %v1334, 7
    %v1336 = vsub.s32 7, %v1335
    %v1337 = vrot.slane %v1271, %v1336
    %v1355 = vsel %vm38, %v1205, 0
    %1357 = vmatprep.subr.mxu0 %v1207
    %1358 = vmatpush1.msra.mxu0 %v1206
    %1359 = vmatprep.subr.mxu0 %v1223
    %1360 = vmatpush1.msra.mxu0 %v1222
    %1361 = vmatprep.subr.mxu0 %v1239
    %1362 = vmatpush1.msra.mxu0 %v1238
    %1363 = vmatprep.subr.mxu0 %v1255
    %1364 = vmatpush1.msra.mxu0 %v1254
    %1365 = vmatprep.subr.mxu0 0.0
    %1366 = vmatpush1.msra.mxu0 0.0
    %1367 = vmatprep.subr.mxu0 0.0
    %1368 = vmatpush1.msra.mxu0 0.0
    %1369 = vmatprep.subr.mxu0 0.0
    %1370 = vmatpush1.msra.mxu0 0.0
    %1371 = vmatprep.subr.mxu0 0.0
    %1372 = vmatpush1.msra.mxu0 0.0
    %1373 = vmatprep.subr.mxu0 0.0
    %1374 = vmatpush1.msra.mxu0 0.0
    %1375 = vmatprep.subr.mxu0 0.0
    %1376 = vmatpush1.msra.mxu0 0.0
    %1377 = vmatprep.subr.mxu0 0.0
    %1378 = vmatpush1.msra.mxu0 0.0
    %1379 = vmatprep.subr.mxu0 0.0
    %1380 = vmatpush1.msra.mxu0 0.0
    %1381 = vmatprep.subr.mxu0 0.0
    %1382 = vmatpush1.msra.mxu0 0.0
    %1383 = vmatprep.subr.mxu0 0.0
    %1384 = vmatpush1.msra.mxu0 0.0
    %1385 = vmatprep.subr.mxu0 0.0
    %1386 = vmatpush1.msra.mxu0 0.0
    %1387 = vmatprep.subr.mxu0 0.0
    %1388 = vmatpush1.msra.mxu0 0.0
    %1389 = vmatprep.subr.mxu0 0.0
    %1390 = vmatpush1.msra.mxu0 0.0
    %1391 = vmatprep.subr.mxu0 0.0
    %1392 = vmatpush1.msra.mxu0 0.0
    %1393 = vmatprep.subr.mxu0 0.0
    %1394 = vmatpush1.msra.mxu0 0.0
    %1395 = vmatprep.subr.mxu0 0.0
    %1396 = vmatpush1.msra.mxu0 0.0
    %1397 = vmatprep.subr.mxu0 0.0
    %1398 = vmatpush1.msra.mxu0 0.0
    %1399 = vmatprep.subr.mxu0 0.0
    %1400 = vmatpush1.msra.mxu0 0.0
    %1401 = vmatprep.subr.mxu0 0.0
    %1402 = vmatpush1.msra.mxu0 0.0
    %1403 = vmatprep.subr.mxu0 0.0
    %1404 = vmatpush1.msra.mxu0 0.0
    %1405 = vmatprep.subr.mxu0 0.0
    %1406 = vmatpush1.msra.mxu0 0.0
    %1407 = vmatprep.subr.mxu0 0.0
    %1408 = vmatpush1.msra.mxu0 0.0
    %1409 = vmatprep.subr.mxu0 0.0
    %1410 = vmatpush1.msra.mxu0 0.0
    %1411 = vmatprep.subr.mxu0 0.0
    %1412 = vmatpush1.msra.mxu0 0.0
    %1413 = vmatprep.subr.mxu0 0.0
    %1414 = vmatpush1.msra.mxu0 0.0
    %1415 = vmatprep.subr.mxu0 0.0
    %1416 = vmatpush1.msra.mxu0 0.0
    %1417 = vmatprep.subr.mxu0 0.0
    %1418 = vmatpush1.msra.mxu0 0.0
    %1419 = vmatprep.subr.mxu0 0.0
    %1420 = vmatpush1.msra.mxu0 0.0
    %1421 = vmatprep.mubr.f32.mxu0 0.0
    %1422 = vmatmul.mubr.f32.gmra.mrb[0].mxu0 %v1355
    %v1423 = vpop.f32.mrb[0].mxu0
    %v1424 = vadd.f32 %v1277, %v1423
    %v1425 = vpop.f32.mrb[0].mxu0
    %v1426 = vadd.f32 %v1281, %v1425
    %1427 = vdwg.mxu0
    %1428 = vmatprep.subr.mxu0 %v1209
    %1429 = vmatpush1.msra.mxu0 %v1208
    %1430 = vmatprep.subr.mxu0 %v1225
    %1431 = vmatpush1.msra.mxu0 %v1224
    %1432 = vmatprep.subr.mxu0 %v1241
    %1433 = vmatpush1.msra.mxu0 %v1240
    %1434 = vmatprep.subr.mxu0 %v1257
    %1435 = vmatpush1.msra.mxu0 %v1256
    %1436 = vmatprep.subr.mxu0 0.0
    %1437 = vmatpush1.msra.mxu0 0.0
    %1438 = vmatprep.subr.mxu0 0.0
    %1439 = vmatpush1.msra.mxu0 0.0
    %1440 = vmatprep.subr.mxu0 0.0
    %1441 = vmatpush1.msra.mxu0 0.0
    %1442 = vmatprep.subr.mxu0 0.0
    %1443 = vmatpush1.msra.mxu0 0.0
    %1444 = vmatprep.subr.mxu0 0.0
    %1445 = vmatpush1.msra.mxu0 0.0
    %1446 = vmatprep.subr.mxu0 0.0
    %1447 = vmatpush1.msra.mxu0 0.0
    %1448 = vmatprep.subr.mxu0 0.0
    %1449 = vmatpush1.msra.mxu0 0.0
    %1450 = vmatprep.subr.mxu0 0.0
    %1451 = vmatpush1.msra.mxu0 0.0
    %1452 = vmatprep.subr.mxu0 0.0
    %1453 = vmatpush1.msra.mxu0 0.0
    %1454 = vmatprep.subr.mxu0 0.0
    %1455 = vmatpush1.msra.mxu0 0.0
    %1456 = vmatprep.subr.mxu0 0.0
    %1457 = vmatpush1.msra.mxu0 0.0
    %1458 = vmatprep.subr.mxu0 0.0
    %1459 = vmatpush1.msra.mxu0 0.0
    %1460 = vmatprep.subr.mxu0 0.0
    %1461 = vmatpush1.msra.mxu0 0.0
    %1462 = vmatprep.subr.mxu0 0.0
    %1463 = vmatpush1.msra.mxu0 0.0
    %1464 = vmatprep.subr.mxu0 0.0
    %1465 = vmatpush1.msra.mxu0 0.0
    %1466 = vmatprep.subr.mxu0 0.0
    %1467 = vmatpush1.msra.mxu0 0.0
    %1468 = vmatprep.subr.mxu0 0.0
    %1469 = vmatpush1.msra.mxu0 0.0
    %1470 = vmatprep.subr.mxu0 0.0
    %1471 = vmatpush1.msra.mxu0 0.0
    %1472 = vmatprep.subr.mxu0 0.0
    %1473 = vmatpush1.msra.mxu0 0.0
    %1474 = vmatprep.subr.mxu0 0.0
    %1475 = vmatpush1.msra.mxu0 0.0
    %1476 = vmatprep.subr.mxu0 0.0
    %1477 = vmatpush1.msra.mxu0 0.0
    %1478 = vmatprep.subr.mxu0 0.0
    %1479 = vmatpush1.msra.mxu0 0.0
    %1480 = vmatprep.subr.mxu0 0.0
    %1481 = vmatpush1.msra.mxu0 0.0
    %1482 = vmatprep.subr.mxu0 0.0
    %1483 = vmatpush1.msra.mxu0 0.0
    %1484 = vmatprep.subr.mxu0 0.0
    %1485 = vmatpush1.msra.mxu0 0.0
    %1486 = vmatprep.subr.mxu0 0.0
    %1487 = vmatpush1.msra.mxu0 0.0
    %1488 = vmatprep.subr.mxu0 0.0
    %1489 = vmatpush1.msra.mxu0 0.0
    %1490 = vmatprep.subr.mxu0 0.0
    %1491 = vmatpush1.msra.mxu0 0.0
    %1492 = vmatprep.mubr.f32.mxu0 0.0
    %1493 = vmatmul.mubr.f32.gmra.mrb[0].mxu0 %v1355
    %v1494 = vpop.f32.mrb[0].mxu0
    %v1495 = vadd.f32 %v1285, %v1494
    %v1496 = vpop.f32.mrb[0].mxu0
    %v1497 = vadd.f32 %v1289, %v1496
    %1498 = vdwg.mxu0
    %1499 = vmatprep.subr.mxu0 %v1211
    %1500 = vmatpush1.msra.mxu0 %v1210
    %1501 = vmatprep.subr.mxu0 %v1227
    %1502 = vmatpush1.msra.mxu0 %v1226
    %1503 = vmatprep.subr.mxu0 %v1243
    %1504 = vmatpush1.msra.mxu0 %v1242
    %1505 = vmatprep.subr.mxu0 %v1259
    %1506 = vmatpush1.msra.mxu0 %v1258
    %1507 = vmatprep.subr.mxu0 0.0
    %1508 = vmatpush1.msra.mxu0 0.0
    %1509 = vmatprep.subr.mxu0 0.0
    %1510 = vmatpush1.msra.mxu0 0.0
    %1511 = vmatprep.subr.mxu0 0.0
    %1512 = vmatpush1.msra.mxu0 0.0
    %1513 = vmatprep.subr.mxu0 0.0
    %1514 = vmatpush1.msra.mxu0 0.0
    %1515 = vmatprep.subr.mxu0 0.0
    %1516 = vmatpush1.msra.mxu0 0.0
    %1517 = vmatprep.subr.mxu0 0.0
    %1518 = vmatpush1.msra.mxu0 0.0
    %1519 = vmatprep.subr.mxu0 0.0
    %1520 = vmatpush1.msra.mxu0 0.0
    %1521 = vmatprep.subr.mxu0 0.0
    %1522 = vmatpush1.msra.mxu0 0.0
    %1523 = vmatprep.subr.mxu0 0.0
    %1524 = vmatpush1.msra.mxu0 0.0
    %1525 = vmatprep.subr.mxu0 0.0
    %1526 = vmatpush1.msra.mxu0 0.0
    %1527 = vmatprep.subr.mxu0 0.0
    %1528 = vmatpush1.msra.mxu0 0.0
    %1529 = vmatprep.subr.mxu0 0.0
    %1530 = vmatpush1.msra.mxu0 0.0
    %1531 = vmatprep.subr.mxu0 0.0
    %1532 = vmatpush1.msra.mxu0 0.0
    %1533 = vmatprep.subr.mxu0 0.0
    %1534 = vmatpush1.msra.mxu0 0.0
    %1535 = vmatprep.subr.mxu0 0.0
    %1536 = vmatpush1.msra.mxu0 0.0
    %1537 = vmatprep.subr.mxu0 0.0
    %1538 = vmatpush1.msra.mxu0 0.0
    %1539 = vmatprep.subr.mxu0 0.0
    %1540 = vmatpush1.msra.mxu0 0.0
    %1541 = vmatprep.subr.mxu0 0.0
    %1542 = vmatpush1.msra.mxu0 0.0
    %1543 = vmatprep.subr.mxu0 0.0
    %1544 = vmatpush1.msra.mxu0 0.0
    %1545 = vmatprep.subr.mxu0 0.0
    %1546 = vmatpush1.msra.mxu0 0.0
    %1547 = vmatprep.subr.mxu0 0.0
    %1548 = vmatpush1.msra.mxu0 0.0
    %1549 = vmatprep.subr.mxu0 0.0
    %1550 = vmatpush1.msra.mxu0 0.0
    %1551 = vmatprep.subr.mxu0 0.0
    %1552 = vmatpush1.msra.mxu0 0.0
    %1553 = vmatprep.subr.mxu0 0.0
    %1554 = vmatpush1.msra.mxu0 0.0
    %1555 = vmatprep.subr.mxu0 0.0
    %1556 = vmatpush1.msra.mxu0 0.0
    %1557 = vmatprep.subr.mxu0 0.0
    %1558 = vmatpush1.msra.mxu0 0.0
    %1559 = vmatprep.subr.mxu0 0.0
    %1560 = vmatpush1.msra.mxu0 0.0
    %1561 = vmatprep.subr.mxu0 0.0
    %1562 = vmatpush1.msra.mxu0 0.0
    %1563 = vmatprep.mubr.f32.mxu0 0.0
    %1564 = vmatmul.mubr.f32.gmra.mrb[0].mxu0 %v1355
    %v1565 = vpop.f32.mrb[0].mxu0
    %v1566 = vadd.f32 %v1293, %v1565
    %v1567 = vpop.f32.mrb[0].mxu0
    %v1568 = vadd.f32 %v1297, %v1567
    %1569 = vdwg.mxu0
    %1570 = vmatprep.subr.mxu0 %v1213
    %1571 = vmatpush1.msra.mxu0 %v1212
    %1572 = vmatprep.subr.mxu0 %v1229
    %1573 = vmatpush1.msra.mxu0 %v1228
    %1574 = vmatprep.subr.mxu0 %v1245
    %1575 = vmatpush1.msra.mxu0 %v1244
    %1576 = vmatprep.subr.mxu0 %v1261
    %1577 = vmatpush1.msra.mxu0 %v1260
    %1578 = vmatprep.subr.mxu0 0.0
    %1579 = vmatpush1.msra.mxu0 0.0
    %1580 = vmatprep.subr.mxu0 0.0
    %1581 = vmatpush1.msra.mxu0 0.0
    %1582 = vmatprep.subr.mxu0 0.0
    %1583 = vmatpush1.msra.mxu0 0.0
    %1584 = vmatprep.subr.mxu0 0.0
    %1585 = vmatpush1.msra.mxu0 0.0
    %1586 = vmatprep.subr.mxu0 0.0
    %1587 = vmatpush1.msra.mxu0 0.0
    %1588 = vmatprep.subr.mxu0 0.0
    %1589 = vmatpush1.msra.mxu0 0.0
    %1590 = vmatprep.subr.mxu0 0.0
    %1591 = vmatpush1.msra.mxu0 0.0
    %1592 = vmatprep.subr.mxu0 0.0
    %1593 = vmatpush1.msra.mxu0 0.0
    %1594 = vmatprep.subr.mxu0 0.0
    %1595 = vmatpush1.msra.mxu0 0.0
    %1596 = vmatprep.subr.mxu0 0.0
    %1597 = vmatpush1.msra.mxu0 0.0
    %1598 = vmatprep.subr.mxu0 0.0
    %1599 = vmatpush1.msra.mxu0 0.0
    %1600 = vmatprep.subr.mxu0 0.0
    %1601 = vmatpush1.msra.mxu0 0.0
    %1602 = vmatprep.subr.mxu0 0.0
    %1603 = vmatpush1.msra.mxu0 0.0
    %1604 = vmatprep.subr.mxu0 0.0
    %1605 = vmatpush1.msra.mxu0 0.0
    %1606 = vmatprep.subr.mxu0 0.0
    %1607 = vmatpush1.msra.mxu0 0.0
    %1608 = vmatprep.subr.mxu0 0.0
    %1609 = vmatpush1.msra.mxu0 0.0
    %1610 = vmatprep.subr.mxu0 0.0
    %1611 = vmatpush1.msra.mxu0 0.0
    %1612 = vmatprep.subr.mxu0 0.0
    %1613 = vmatpush1.msra.mxu0 0.0
    %1614 = vmatprep.subr.mxu0 0.0
    %1615 = vmatpush1.msra.mxu0 0.0
    %1616 = vmatprep.subr.mxu0 0.0
    %1617 = vmatpush1.msra.mxu0 0.0
    %1618 = vmatprep.subr.mxu0 0.0
    %1619 = vmatpush1.msra.mxu0 0.0
    %1620 = vmatprep.subr.mxu0 0.0
    %1621 = vmatpush1.msra.mxu0 0.0
    %1622 = vmatprep.subr.mxu0 0.0
    %1623 = vmatpush1.msra.mxu0 0.0
    %1624 = vmatprep.subr.mxu0 0.0
    %1625 = vmatpush1.msra.mxu0 0.0
    %1626 = vmatprep.subr.mxu0 0.0
    %1627 = vmatpush1.msra.mxu0 0.0
    %1628 = vmatprep.subr.mxu0 0.0
    %1629 = vmatpush1.msra.mxu0 0.0
    %1630 = vmatprep.subr.mxu0 0.0
    %1631 = vmatpush1.msra.mxu0 0.0
    %1632 = vmatprep.subr.mxu0 0.0
    %1633 = vmatpush1.msra.mxu0 0.0
    %1634 = vmatprep.mubr.f32.mxu0 0.0
    %1635 = vmatmul.mubr.f32.gmra.mrb[0].mxu0 %v1355
    %v1636 = vpop.f32.mrb[0].mxu0
    %v1637 = vadd.f32 %v1301, %v1636
    %v1638 = vpop.f32.mrb[0].mxu0
    %v1639 = vadd.f32 %v1305, %v1638
    %1640 = vdwg.mxu0
    %1641 = vmatprep.subr.mxu0 %v1215
    %1642 = vmatpush1.msra.mxu0 %v1214
    %1643 = vmatprep.subr.mxu0 %v1231
    %1644 = vmatpush1.msra.mxu0 %v1230
    %1645 = vmatprep.subr.mxu0 %v1247
    %1646 = vmatpush1.msra.mxu0 %v1246
    %1647 = vmatprep.subr.mxu0 %v1263
    %1648 = vmatpush1.msra.mxu0 %v1262
    %1649 = vmatprep.subr.mxu0 0.0
    %1650 = vmatpush1.msra.mxu0 0.0
    %1651 = vmatprep.subr.mxu0 0.0
    %1652 = vmatpush1.msra.mxu0 0.0
    %1653 = vmatprep.subr.mxu0 0.0
    %1654 = vmatpush1.msra.mxu0 0.0
    %1655 = vmatprep.subr.mxu0 0.0
    %1656 = vmatpush1.msra.mxu0 0.0
    %1657 = vmatprep.subr.mxu0 0.0
    %1658 = vmatpush1.msra.mxu0 0.0
    %1659 = vmatprep.subr.mxu0 0.0
    %1660 = vmatpush1.msra.mxu0 0.0
    %1661 = vmatprep.subr.mxu0 0.0
    %1662 = vmatpush1.msra.mxu0 0.0
    %1663 = vmatprep.subr.mxu0 0.0
    %1664 = vmatpush1.msra.mxu0 0.0
    %1665 = vmatprep.subr.mxu0 0.0
    %1666 = vmatpush1.msra.mxu0 0.0
    %1667 = vmatprep.subr.mxu0 0.0
    %1668 = vmatpush1.msra.mxu0 0.0
    %1669 = vmatprep.subr.mxu0 0.0
    %1670 = vmatpush1.msra.mxu0 0.0
    %1671 = vmatprep.subr.mxu0 0.0
    %1672 = vmatpush1.msra.mxu0 0.0
    %1673 = vmatprep.subr.mxu0 0.0
    %1674 = vmatpush1.msra.mxu0 0.0
    %1675 = vmatprep.subr.mxu0 0.0
    %1676 = vmatpush1.msra.mxu0 0.0
    %1677 = vmatprep.subr.mxu0 0.0
    %1678 = vmatpush1.msra.mxu0 0.0
    %1679 = vmatprep.subr.mxu0 0.0
    %1680 = vmatpush1.msra.mxu0 0.0
    %1681 = vmatprep.subr.mxu0 0.0
    %1682 = vmatpush1.msra.mxu0 0.0
    %1683 = vmatprep.subr.mxu0 0.0
    %1684 = vmatpush1.msra.mxu0 0.0
    %1685 = vmatprep.subr.mxu0 0.0
    %1686 = vmatpush1.msra.mxu0 0.0
    %1687 = vmatprep.subr.mxu0 0.0
    %1688 = vmatpush1.msra.mxu0 0.0
    %1689 = vmatprep.subr.mxu0 0.0
    %1690 = vmatpush1.msra.mxu0 0.0
    %1691 = vmatprep.subr.mxu0 0.0
    %1692 = vmatpush1.msra.mxu0 0.0
    %1693 = vmatprep.subr.mxu0 0.0
    %1694 = vmatpush1.msra.mxu0 0.0
    %1695 = vmatprep.subr.mxu0 0.0
    %1696 = vmatpush1.msra.mxu0 0.0
    %1697 = vmatprep.subr.mxu0 0.0
    %1698 = vmatpush1.msra.mxu0 0.0
    %1699 = vmatprep.subr.mxu0 0.0
    %1700 = vmatpush1.msra.mxu0 0.0
    %1701 = vmatprep.subr.mxu0 0.0
    %1702 = vmatpush1.msra.mxu0 0.0
    %1703 = vmatprep.subr.mxu0 0.0
    %1704 = vmatpush1.msra.mxu0 0.0
    %1705 = vmatprep.mubr.f32.mxu0 0.0
    %1706 = vmatmul.mubr.f32.gmra.mrb[0].mxu0 %v1355
    %v1707 = vpop.f32.mrb[0].mxu0
    %v1708 = vadd.f32 %v1309, %v1707
    %v1709 = vpop.f32.mrb[0].mxu0
    %v1710 = vadd.f32 %v1313, %v1709
    %1711 = vdwg.mxu0
    %1712 = vmatprep.subr.mxu0 %v1217
    %1713 = vmatpush1.msra.mxu0 %v1216
    %1714 = vmatprep.subr.mxu0 %v1233
    %1715 = vmatpush1.msra.mxu0 %v1232
    %1716 = vmatprep.subr.mxu0 %v1249
    %1717 = vmatpush1.msra.mxu0 %v1248
    %1718 = vmatprep.subr.mxu0 %v1265
    %1719 = vmatpush1.msra.mxu0 %v1264
    %1720 = vmatprep.subr.mxu0 0.0
    %1721 = vmatpush1.msra.mxu0 0.0
    %1722 = vmatprep.subr.mxu0 0.0
    %1723 = vmatpush1.msra.mxu0 0.0
    %1724 = vmatprep.subr.mxu0 0.0
    %1725 = vmatpush1.msra.mxu0 0.0
    %1726 = vmatprep.subr.mxu0 0.0
    %1727 = vmatpush1.msra.mxu0 0.0
    %1728 = vmatprep.subr.mxu0 0.0
    %1729 = vmatpush1.msra.mxu0 0.0
    %1730 = vmatprep.subr.mxu0 0.0
    %1731 = vmatpush1.msra.mxu0 0.0
    %1732 = vmatprep.subr.mxu0 0.0
    %1733 = vmatpush1.msra.mxu0 0.0
    %1734 = vmatprep.subr.mxu0 0.0
    %1735 = vmatpush1.msra.mxu0 0.0
    %1736 = vmatprep.subr.mxu0 0.0
    %1737 = vmatpush1.msra.mxu0 0.0
    %1738 = vmatprep.subr.mxu0 0.0
    %1739 = vmatpush1.msra.mxu0 0.0
    %1740 = vmatprep.subr.mxu0 0.0
    %1741 = vmatpush1.msra.mxu0 0.0
    %1742 = vmatprep.subr.mxu0 0.0
    %1743 = vmatpush1.msra.mxu0 0.0
    %1744 = vmatprep.subr.mxu0 0.0
    %1745 = vmatpush1.msra.mxu0 0.0
    %1746 = vmatprep.subr.mxu0 0.0
    %1747 = vmatpush1.msra.mxu0 0.0
    %1748 = vmatprep.subr.mxu0 0.0
    %1749 = vmatpush1.msra.mxu0 0.0
    %1750 = vmatprep.subr.mxu0 0.0
    %1751 = vmatpush1.msra.mxu0 0.0
    %1752 = vmatprep.subr.mxu0 0.0
    %1753 = vmatpush1.msra.mxu0 0.0
    %1754 = vmatprep.subr.mxu0 0.0
    %1755 = vmatpush1.msra.mxu0 0.0
    %1756 = vmatprep.subr.mxu0 0.0
    %1757 = vmatpush1.msra.mxu0 0.0
    %1758 = vmatprep.subr.mxu0 0.0
    %1759 = vmatpush1.msra.mxu0 0.0
    %1760 = vmatprep.subr.mxu0 0.0
    %1761 = vmatpush1.msra.mxu0 0.0
    %1762 = vmatprep.subr.mxu0 0.0
    %1763 = vmatpush1.msra.mxu0 0.0
    %1764 = vmatprep.subr.mxu0 0.0
    %1765 = vmatpush1.msra.mxu0 0.0
    %1766 = vmatprep.subr.mxu0 0.0
    %1767 = vmatpush1.msra.mxu0 0.0
    %1768 = vmatprep.subr.mxu0 0.0
    %1769 = vmatpush1.msra.mxu0 0.0
    %1770 = vmatprep.subr.mxu0 0.0
    %1771 = vmatpush1.msra.mxu0 0.0
    %1772 = vmatprep.subr.mxu0 0.0
    %1773 = vmatpush1.msra.mxu0 0.0
    %1774 = vmatprep.subr.mxu0 0.0
    %1775 = vmatpush1.msra.mxu0 0.0
    %1776 = vmatprep.mubr.f32.mxu0 0.0
    %1777 = vmatmul.mubr.f32.gmra.mrb[0].mxu0 %v1355
    %v1778 = vpop.f32.mrb[0].mxu0
    %v1779 = vadd.f32 %v1317, %v1778
    %v1780 = vpop.f32.mrb[0].mxu0
    %v1781 = vadd.f32 %v1321, %v1780
    %1782 = vdwg.mxu0
    %1783 = vmatprep.subr.mxu0 %v1219
    %1784 = vmatpush1.msra.mxu0 %v1218
    %1785 = vmatprep.subr.mxu0 %v1235
    %1786 = vmatpush1.msra.mxu0 %v1234
    %1787 = vmatprep.subr.mxu0 %v1251
    %1788 = vmatpush1.msra.mxu0 %v1250
    %1789 = vmatprep.subr.mxu0 %v1267
    %1790 = vmatpush1.msra.mxu0 %v1266
    %1791 = vmatprep.subr.mxu0 0.0
    %1792 = vmatpush1.msra.mxu0 0.0
    %1793 = vmatprep.subr.mxu0 0.0
    %1794 = vmatpush1.msra.mxu0 0.0
    %1795 = vmatprep.subr.mxu0 0.0
    %1796 = vmatpush1.msra.mxu0 0.0
    %1797 = vmatprep.subr.mxu0 0.0
    %1798 = vmatpush1.msra.mxu0 0.0
    %1799 = vmatprep.subr.mxu0 0.0
    %1800 = vmatpush1.msra.mxu0 0.0
    %1801 = vmatprep.subr.mxu0 0.0
    %1802 = vmatpush1.msra.mxu0 0.0
    %1803 = vmatprep.subr.mxu0 0.0
    %1804 = vmatpush1.msra.mxu0 0.0
    %1805 = vmatprep.subr.mxu0 0.0
    %1806 = vmatpush1.msra.mxu0 0.0
    %1807 = vmatprep.subr.mxu0 0.0
    %1808 = vmatpush1.msra.mxu0 0.0
    %1809 = vmatprep.subr.mxu0 0.0
    %1810 = vmatpush1.msra.mxu0 0.0
    %1811 = vmatprep.subr.mxu0 0.0
    %1812 = vmatpush1.msra.mxu0 0.0
    %1813 = vmatprep.subr.mxu0 0.0
    %1814 = vmatpush1.msra.mxu0 0.0
    %1815 = vmatprep.subr.mxu0 0.0
    %1816 = vmatpush1.msra.mxu0 0.0
    %1817 = vmatprep.subr.mxu0 0.0
    %1818 = vmatpush1.msra.mxu0 0.0
    %1819 = vmatprep.subr.mxu0 0.0
    %1820 = vmatpush1.msra.mxu0 0.0
    %1821 = vmatprep.subr.mxu0 0.0
    %1822 = vmatpush1.msra.mxu0 0.0
    %1823 = vmatprep.subr.mxu0 0.0
    %1824 = vmatpush1.msra.mxu0 0.0
    %1825 = vmatprep.subr.mxu0 0.0
    %1826 = vmatpush1.msra.mxu0 0.0
    %1827 = vmatprep.subr.mxu0 0.0
    %1828 = vmatpush1.msra.mxu0 0.0
    %1829 = vmatprep.subr.mxu0 0.0
    %1830 = vmatpush1.msra.mxu0 0.0
    %1831 = vmatprep.subr.mxu0 0.0
    %1832 = vmatpush1.msra.mxu0 0.0
    %1833 = vmatprep.subr.mxu0 0.0
    %1834 = vmatpush1.msra.mxu0 0.0
    %1835 = vmatprep.subr.mxu0 0.0
    %1836 = vmatpush1.msra.mxu0 0.0
    %1837 = vmatprep.subr.mxu0 0.0
    %1838 = vmatpush1.msra.mxu0 0.0
    %1839 = vmatprep.subr.mxu0 0.0
    %1840 = vmatpush1.msra.mxu0 0.0
    %1841 = vmatprep.subr.mxu0 0.0
    %1842 = vmatpush1.msra.mxu0 0.0
    %1843 = vmatprep.subr.mxu0 0.0
    %1844 = vmatpush1.msra.mxu0 0.0
    %1845 = vmatprep.subr.mxu0 0.0
    %1846 = vmatpush1.msra.mxu0 0.0
    %1847 = vmatprep.mubr.f32.mxu0 0.0
    %1848 = vmatmul.mubr.f32.gmra.mrb[0].mxu0 %v1355
    %v1849 = vpop.f32.mrb[0].mxu0
    %v1850 = vadd.f32 %v1325, %v1849
    %v1851 = vpop.f32.mrb[0].mxu0
    %v1852 = vadd.f32 %v1329, %v1851
    %1853 = vdwg.mxu0
    %1854 = vmatprep.subr.mxu0 %v1221
    %1855 = vmatpush1.msra.mxu0 %v1220
    %1856 = vmatprep.subr.mxu0 %v1237
    %1857 = vmatpush1.msra.mxu0 %v1236
    %1858 = vmatprep.subr.mxu0 %v1253
    %1859 = vmatpush1.msra.mxu0 %v1252
    %1860 = vmatprep.subr.mxu0 %v1269
    %1861 = vmatpush1.msra.mxu0 %v1268
    %1862 = vmatprep.subr.mxu0 0.0
    %1863 = vmatpush1.msra.mxu0 0.0
    %1864 = vmatprep.subr.mxu0 0.0
    %1865 = vmatpush1.msra.mxu0 0.0
    %1866 = vmatprep.subr.mxu0 0.0
    %1867 = vmatpush1.msra.mxu0 0.0
    %1868 = vmatprep.subr.mxu0 0.0
    %1869 = vmatpush1.msra.mxu0 0.0
    %1870 = vmatprep.subr.mxu0 0.0
    %1871 = vmatpush1.msra.mxu0 0.0
    %1872 = vmatprep.subr.mxu0 0.0
    %1873 = vmatpush1.msra.mxu0 0.0
    %1874 = vmatprep.subr.mxu0 0.0
    %1875 = vmatpush1.msra.mxu0 0.0
    %1876 = vmatprep.subr.mxu0 0.0
    %1877 = vmatpush1.msra.mxu0 0.0
    %1878 = vmatprep.subr.mxu0 0.0
    %1879 = vmatpush1.msra.mxu0 0.0
    %1880 = vmatprep.subr.mxu0 0.0
    %1881 = vmatpush1.msra.mxu0 0.0
    %1882 = vmatprep.subr.mxu0 0.0
    %1883 = vmatpush1.msra.mxu0 0.0
    %1884 = vmatprep.subr.mxu0 0.0
    %1885 = vmatpush1.msra.mxu0 0.0
    %1886 = vmatprep.subr.mxu0 0.0
    %1887 = vmatpush1.msra.mxu0 0.0
    %1888 = vmatprep.subr.mxu0 0.0
    %1889 = vmatpush1.msra.mxu0 0.0
    %1890 = vmatprep.subr.mxu0 0.0
    %1891 = vmatpush1.msra.mxu0 0.0
    %1892 = vmatprep.subr.mxu0 0.0
    %1893 = vmatpush1.msra.mxu0 0.0
    %1894 = vmatprep.subr.mxu0 0.0
    %1895 = vmatpush1.msra.mxu0 0.0
    %1896 = vmatprep.subr.mxu0 0.0
    %1897 = vmatpush1.msra.mxu0 0.0
    %1898 = vmatprep.subr.mxu0 0.0
    %1899 = vmatpush1.msra.mxu0 0.0
    %1900 = vmatprep.subr.mxu0 0.0
    %1901 = vmatpush1.msra.mxu0 0.0
    %1902 = vmatprep.subr.mxu0 0.0
    %1903 = vmatpush1.msra.mxu0 0.0
    %1904 = vmatprep.subr.mxu0 0.0
    %1905 = vmatpush1.msra.mxu0 0.0
    %1906 = vmatprep.subr.mxu0 0.0
    %1907 = vmatpush1.msra.mxu0 0.0
    %1908 = vmatprep.subr.mxu0 0.0
    %1909 = vmatpush1.msra.mxu0 0.0
    %1910 = vmatprep.subr.mxu0 0.0
    %1911 = vmatpush1.msra.mxu0 0.0
    %1912 = vmatprep.subr.mxu0 0.0
    %1913 = vmatpush1.msra.mxu0 0.0
    %1914 = vmatprep.subr.mxu0 0.0
    %1915 = vmatpush1.msra.mxu0 0.0
    %1916 = vmatprep.subr.mxu0 0.0
    %1917 = vmatpush1.msra.mxu0 0.0
    %1918 = vmatprep.mubr.f32.mxu0 0.0
    %1919 = vmatmul.mubr.f32.gmra.mrb[0].mxu0 %v1355
    %v1920 = vpop.f32.mrb[0].mxu0
    %v1921 = vadd.f32 %v1333, %v1920
    %v1922 = vpop.f32.mrb[0].mxu0
    %v1923 = vadd.f32 %v1337, %v1922
    %1924 = vdwg.mxu0
    %v1925 = vmax.f32 %v1424, 0.0
    %v1926 = vmax.f32 %v1426, 0.0
    %v1927 = vmax.f32 %v1495, 0.0
    %v1928 = vmax.f32 %v1497, 0.0
    %v1929 = vmax.f32 %v1566, 0.0
    %v1930 = vmax.f32 %v1568, 0.0
    %v1931 = vmax.f32 %v1637, 0.0
    %v1932 = vmax.f32 %v1639, 0.0
    %v1933 = vmax.f32 %v1708, 0.0
    %v1934 = vmax.f32 %v1710, 0.0
    %v1935 = vmax.f32 %v1779, 0.0
    %v1936 = vmax.f32 %v1781, 0.0
    %v1937 = vmax.f32 %v1850, 0.0
    %v1938 = vmax.f32 %v1852, 0.0
    %v1939 = vmax.f32 %v1921, 0.0
    %v1940 = vmax.f32 %v1923, 0.0
    %v1941 = vld [vmem:[%s5] sm:$0xff]
    %v1942 = vld [vmem:[%s5 + $0x8] sm:$0xff]
    %v1943 = vld [vmem:[%s5 + $0x10] sm:$0xff]
    %v1944 = vld [vmem:[%s5 + $0x18] sm:$0xff]
    %v1945 = vld [vmem:[%s5 + $0x20] sm:$0xff]
    %v1946 = vld [vmem:[%s5 + $0x28] sm:$0xff]
    %v1947 = vld [vmem:[%s5 + $0x30] sm:$0xff]
    %v1948 = vld [vmem:[%s5 + $0x38] sm:$0xff]
    %v1949 = vld [vmem:[%s5 + $0x40] sm:$0xff]
    %v1950 = vld [vmem:[%s5 + $0x48] sm:$0xff]
    %v1951 = vld [vmem:[%s5 + $0x50] sm:$0xff]
    %v1952 = vld [vmem:[%s5 + $0x58] sm:$0xff]
    %v1953 = vld [vmem:[%s5 + $0x60] sm:$0xff]
    %v1954 = vld [vmem:[%s5 + $0x68] sm:$0xff]
    %v1955 = vld [vmem:[%s5 + $0x70] sm:$0xff]
    %v1956 = vld [vmem:[%s5 + $0x78] sm:$0xff]
    %v1957 = vld [vmem:[%s5 + $0x80] sm:$0xff]
    %v1958 = vld [vmem:[%s5 + $0x88] sm:$0xff]
    %v1959 = vld [vmem:[%s5 + $0x90] sm:$0xff]
    %v1960 = vld [vmem:[%s5 + $0x98] sm:$0xff]
    %v1961 = vld [vmem:[%s5 + $0xa0] sm:$0xff]
    %v1962 = vld [vmem:[%s5 + $0xa8] sm:$0xff]
    %v1963 = vld [vmem:[%s5 + $0xb0] sm:$0xff]
    %v1964 = vld [vmem:[%s5 + $0xb8] sm:$0xff]
    %v1965 = vld [vmem:[%s5 + $0xc0] sm:$0xff]
    %v1966 = vld [vmem:[%s5 + $0xc8] sm:$0xff]
    %v1967 = vld [vmem:[%s5 + $0xd0] sm:$0xff]
    %v1968 = vld [vmem:[%s5 + $0xd8] sm:$0xff]
    %v1969 = vld [vmem:[%s5 + $0xe0] sm:$0xff]
    %v1970 = vld [vmem:[%s5 + $0xe8] sm:$0xff]
    %v1971 = vld [vmem:[%s5 + $0xf0] sm:$0xff]
    %v1972 = vld [vmem:[%s5 + $0xf8] sm:$0xff]
    %v1973 = vld [vmem:[%s5 + $0x100] sm:$0xff]
    %v1974 = vld [vmem:[%s5 + $0x108] sm:$0xff]
    %v1975 = vld [vmem:[%s5 + $0x110] sm:$0xff]
    %v1976 = vld [vmem:[%s5 + $0x118] sm:$0xff]
    %v1977 = vld [vmem:[%s5 + $0x120] sm:$0xff]
    %v1978 = vld [vmem:[%s5 + $0x128] sm:$0xff]
    %v1979 = vld [vmem:[%s5 + $0x130] sm:$0xff]
    %v1980 = vld [vmem:[%s5 + $0x138] sm:$0xff]
    %v1981 = vld [vmem:[%s5 + $0x140] sm:$0xff]
    %v1982 = vld [vmem:[%s5 + $0x148] sm:$0xff]
    %v1983 = vld [vmem:[%s5 + $0x150] sm:$0xff]
    %v1984 = vld [vmem:[%s5 + $0x158] sm:$0xff]
    %v1985 = vld [vmem:[%s5 + $0x160] sm:$0xff]
    %v1986 = vld [vmem:[%s5 + $0x168] sm:$0xff]
    %v1987 = vld [vmem:[%s5 + $0x170] sm:$0xff]
    %v1988 = vld [vmem:[%s5 + $0x178] sm:$0xff]
    %v1989 = vld [vmem:[%s5 + $0x180] sm:$0xff]
    %v1990 = vld [vmem:[%s5 + $0x188] sm:$0xff]
    %v1991 = vld [vmem:[%s5 + $0x190] sm:$0xff]
    %v1992 = vld [vmem:[%s5 + $0x198] sm:$0xff]
    %v1993 = vld [vmem:[%s5 + $0x1a0] sm:$0xff]
    %v1994 = vld [vmem:[%s5 + $0x1a8] sm:$0xff]
    %v1995 = vld [vmem:[%s5 + $0x1b0] sm:$0xff]
    %v1996 = vld [vmem:[%s5 + $0x1b8] sm:$0xff]
    %v1997 = vld [vmem:[%s5 + $0x1c0] sm:$0xff]
    %v1998 = vld [vmem:[%s5 + $0x1c8] sm:$0xff]
    %v1999 = vld [vmem:[%s5 + $0x1d0] sm:$0xff]
    %v2000 = vld [vmem:[%s5 + $0x1d8] sm:$0xff]
    %v2001 = vld [vmem:[%s5 + $0x1e0] sm:$0xff]
    %v2002 = vld [vmem:[%s5 + $0x1e8] sm:$0xff]
    %v2003 = vld [vmem:[%s5 + $0x1f0] sm:$0xff]
    %v2004 = vld [vmem:[%s5 + $0x1f8] sm:$0xff]
    %v2005 = vld [vmem:[%s5 + $0x200] sm:$0xff]
    %v2006 = vld [vmem:[%s5 + $0x208] sm:$0xff]
    %v2007 = vld [vmem:[%s5 + $0x210] sm:$0xff]
    %v2008 = vld [vmem:[%s5 + $0x218] sm:$0xff]
    %v2009 = vld [vmem:[%s5 + $0x220] sm:$0xff]
    %v2010 = vld [vmem:[%s5 + $0x228] sm:$0xff]
    %v2011 = vld [vmem:[%s5 + $0x230] sm:$0xff]
    %v2012 = vld [vmem:[%s5 + $0x238] sm:$0xff]
    %v2013 = vld [vmem:[%s5 + $0x240] sm:$0xff]
    %v2014 = vld [vmem:[%s5 + $0x248] sm:$0xff]
    %v2015 = vld [vmem:[%s5 + $0x250] sm:$0xff]
    %v2016 = vld [vmem:[%s5 + $0x258] sm:$0xff]
    %v2017 = vld [vmem:[%s5 + $0x260] sm:$0xff]
    %v2018 = vld [vmem:[%s5 + $0x268] sm:$0xff]
    %v2019 = vld [vmem:[%s5 + $0x270] sm:$0xff]
    %v2020 = vld [vmem:[%s5 + $0x278] sm:$0xff]
    %v2021 = vld [vmem:[%s5 + $0x280] sm:$0xff]
    %v2022 = vld [vmem:[%s5 + $0x288] sm:$0xff]
    %v2023 = vld [vmem:[%s5 + $0x290] sm:$0xff]
    %v2024 = vld [vmem:[%s5 + $0x298] sm:$0xff]
    %v2025 = vld [vmem:[%s5 + $0x2a0] sm:$0xff]
    %v2026 = vld [vmem:[%s5 + $0x2a8] sm:$0xff]
    %v2027 = vld [vmem:[%s5 + $0x2b0] sm:$0xff]
    %v2028 = vld [vmem:[%s5 + $0x2b8] sm:$0xff]
    %v2029 = vld [vmem:[%s5 + $0x2c0] sm:$0xff]
    %v2030 = vld [vmem:[%s5 + $0x2c8] sm:$0xff]
    %v2031 = vld [vmem:[%s5 + $0x2d0] sm:$0xff]
    %v2032 = vld [vmem:[%s5 + $0x2d8] sm:$0xff]
    %v2033 = vld [vmem:[%s5 + $0x2e0] sm:$0xff]
    %v2034 = vld [vmem:[%s5 + $0x2e8] sm:$0xff]
    %v2035 = vld [vmem:[%s5 + $0x2f0] sm:$0xff]
    %v2036 = vld [vmem:[%s5 + $0x2f8] sm:$0xff]
    %v2037 = vld [vmem:[%s5 + $0x300] sm:$0xff]
    %v2038 = vld [vmem:[%s5 + $0x308] sm:$0xff]
    %v2039 = vld [vmem:[%s5 + $0x310] sm:$0xff]
    %v2040 = vld [vmem:[%s5 + $0x318] sm:$0xff]
    %v2041 = vld [vmem:[%s5 + $0x320] sm:$0xff]
    %v2042 = vld [vmem:[%s5 + $0x328] sm:$0xff]
    %v2043 = vld [vmem:[%s5 + $0x330] sm:$0xff]
    %v2044 = vld [vmem:[%s5 + $0x338] sm:$0xff]
    %v2045 = vld [vmem:[%s5 + $0x340] sm:$0xff]
    %v2046 = vld [vmem:[%s5 + $0x348] sm:$0xff]
    %v2047 = vld [vmem:[%s5 + $0x350] sm:$0xff]
    %v2048 = vld [vmem:[%s5 + $0x358] sm:$0xff]
    %v2049 = vld [vmem:[%s5 + $0x360] sm:$0xff]
    %v2050 = vld [vmem:[%s5 + $0x368] sm:$0xff]
    %v2051 = vld [vmem:[%s5 + $0x370] sm:$0xff]
    %v2052 = vld [vmem:[%s5 + $0x378] sm:$0xff]
    %v2053 = vld [vmem:[%s5 + $0x380] sm:$0xff]
    %v2054 = vld [vmem:[%s5 + $0x388] sm:$0xff]
    %v2055 = vld [vmem:[%s5 + $0x390] sm:$0xff]
    %v2056 = vld [vmem:[%s5 + $0x398] sm:$0xff]
    %v2057 = vld [vmem:[%s5 + $0x3a0] sm:$0xff]
    %v2058 = vld [vmem:[%s5 + $0x3a8] sm:$0xff]
    %v2059 = vld [vmem:[%s5 + $0x3b0] sm:$0xff]
    %v2060 = vld [vmem:[%s5 + $0x3b8] sm:$0xff]
    %v2061 = vld [vmem:[%s5 + $0x3c0] sm:$0xff]
    %v2062 = vld [vmem:[%s5 + $0x3c8] sm:$0xff]
    %v2063 = vld [vmem:[%s5 + $0x3d0] sm:$0xff]
    %v2064 = vld [vmem:[%s5 + $0x3d8] sm:$0xff]
    %v2065 = vld [vmem:[%s5 + $0x3e0] sm:$0xff]
    %v2066 = vld [vmem:[%s5 + $0x3e8] sm:$0xff]
    %v2067 = vld [vmem:[%s5 + $0x3f0] sm:$0xff]
    %v2068 = vld [vmem:[%s5 + $0x3f8] sm:$0xff]
    %v2069 = vld [vmem:[%s5 + $0x400] sm:$0xff]
    %v2070 = vld [vmem:[%s5 + $0x408] sm:$0xff]
    %v2071 = vld [vmem:[%s5 + $0x410] sm:$0xff]
    %v2072 = vld [vmem:[%s5 + $0x418] sm:$0xff]
    %v2073 = vld [vmem:[%s5 + $0x420] sm:$0xff]
    %v2074 = vld [vmem:[%s5 + $0x428] sm:$0xff]
    %v2075 = vld [vmem:[%s5 + $0x430] sm:$0xff]
    %v2076 = vld [vmem:[%s5 + $0x438] sm:$0xff]
    %v2077 = vld [vmem:[%s5 + $0x440] sm:$0xff]
    %v2078 = vld [vmem:[%s5 + $0x448] sm:$0xff]
    %v2079 = vld [vmem:[%s5 + $0x450] sm:$0xff]
    %v2080 = vld [vmem:[%s5 + $0x458] sm:$0xff]
    %v2081 = vld [vmem:[%s5 + $0x460] sm:$0xff]
    %v2082 = vld [vmem:[%s5 + $0x468] sm:$0xff]
    %v2083 = vld [vmem:[%s5 + $0x470] sm:$0xff]
    %v2084 = vld [vmem:[%s5 + $0x478] sm:$0xff]
    %v2085 = vld [vmem:[%s5 + $0x480] sm:$0xff]
    %v2086 = vld [vmem:[%s5 + $0x488] sm:$0xff]
    %v2087 = vld [vmem:[%s5 + $0x490] sm:$0xff]
    %v2088 = vld [vmem:[%s5 + $0x498] sm:$0xff]
    %v2089 = vld [vmem:[%s5 + $0x4a0] sm:$0xff]
    %v2090 = vld [vmem:[%s5 + $0x4a8] sm:$0xff]
    %v2091 = vld [vmem:[%s5 + $0x4b0] sm:$0xff]
    %v2092 = vld [vmem:[%s5 + $0x4b8] sm:$0xff]
    %v2093 = vld [vmem:[%s5 + $0x4c0] sm:$0xff]
    %v2094 = vld [vmem:[%s5 + $0x4c8] sm:$0xff]
    %v2095 = vld [vmem:[%s5 + $0x4d0] sm:$0xff]
    %v2096 = vld [vmem:[%s5 + $0x4d8] sm:$0xff]
    %v2097 = vld [vmem:[%s5 + $0x4e0] sm:$0xff]
    %v2098 = vld [vmem:[%s5 + $0x4e8] sm:$0xff]
    %v2099 = vld [vmem:[%s5 + $0x4f0] sm:$0xff]
    %v2100 = vld [vmem:[%s5 + $0x4f8] sm:$0xff]
    %v2101 = vld [vmem:[%s5 + $0x500] sm:$0xff]
    %v2102 = vld [vmem:[%s5 + $0x508] sm:$0xff]
    %v2103 = vld [vmem:[%s5 + $0x510] sm:$0xff]
    %v2104 = vld [vmem:[%s5 + $0x518] sm:$0xff]
    %v2105 = vld [vmem:[%s5 + $0x520] sm:$0xff]
    %v2106 = vld [vmem:[%s5 + $0x528] sm:$0xff]
    %v2107 = vld [vmem:[%s5 + $0x530] sm:$0xff]
    %v2108 = vld [vmem:[%s5 + $0x538] sm:$0xff]
    %v2109 = vld [vmem:[%s5 + $0x540] sm:$0xff]
    %v2110 = vld [vmem:[%s5 + $0x548] sm:$0xff]
    %v2111 = vld [vmem:[%s5 + $0x550] sm:$0xff]
    %v2112 = vld [vmem:[%s5 + $0x558] sm:$0xff]
    %v2113 = vld [vmem:[%s5 + $0x560] sm:$0xff]
    %v2114 = vld [vmem:[%s5 + $0x568] sm:$0xff]
    %v2115 = vld [vmem:[%s5 + $0x570] sm:$0xff]
    %v2116 = vld [vmem:[%s5 + $0x578] sm:$0xff]
    %v2117 = vld [vmem:[%s5 + $0x580] sm:$0xff]
    %v2118 = vld [vmem:[%s5 + $0x588] sm:$0xff]
    %v2119 = vld [vmem:[%s5 + $0x590] sm:$0xff]
    %v2120 = vld [vmem:[%s5 + $0x598] sm:$0xff]
    %v2121 = vld [vmem:[%s5 + $0x5a0] sm:$0xff]
    %v2122 = vld [vmem:[%s5 + $0x5a8] sm:$0xff]
    %v2123 = vld [vmem:[%s5 + $0x5b0] sm:$0xff]
    %v2124 = vld [vmem:[%s5 + $0x5b8] sm:$0xff]
    %v2125 = vld [vmem:[%s5 + $0x5c0] sm:$0xff]
    %v2126 = vld [vmem:[%s5 + $0x5c8] sm:$0xff]
    %v2127 = vld [vmem:[%s5 + $0x5d0] sm:$0xff]
    %v2128 = vld [vmem:[%s5 + $0x5d8] sm:$0xff]
    %v2129 = vld [vmem:[%s5 + $0x5e0] sm:$0xff]
    %v2130 = vld [vmem:[%s5 + $0x5e8] sm:$0xff]
    %v2131 = vld [vmem:[%s5 + $0x5f0] sm:$0xff]
    %v2132 = vld [vmem:[%s5 + $0x5f8] sm:$0xff]
    %v2133 = vld [vmem:[%s5 + $0x600] sm:$0xff]
    %v2134 = vld [vmem:[%s5 + $0x608] sm:$0xff]
    %v2135 = vld [vmem:[%s5 + $0x610] sm:$0xff]
    %v2136 = vld [vmem:[%s5 + $0x618] sm:$0xff]
    %v2137 = vld [vmem:[%s5 + $0x620] sm:$0xff]
    %v2138 = vld [vmem:[%s5 + $0x628] sm:$0xff]
    %v2139 = vld [vmem:[%s5 + $0x630] sm:$0xff]
    %v2140 = vld [vmem:[%s5 + $0x638] sm:$0xff]
    %v2141 = vld [vmem:[%s5 + $0x640] sm:$0xff]
    %v2142 = vld [vmem:[%s5 + $0x648] sm:$0xff]
    %v2143 = vld [vmem:[%s5 + $0x650] sm:$0xff]
    %v2144 = vld [vmem:[%s5 + $0x658] sm:$0xff]
    %v2145 = vld [vmem:[%s5 + $0x660] sm:$0xff]
    %v2146 = vld [vmem:[%s5 + $0x668] sm:$0xff]
    %v2147 = vld [vmem:[%s5 + $0x670] sm:$0xff]
    %v2148 = vld [vmem:[%s5 + $0x678] sm:$0xff]
    %v2149 = vld [vmem:[%s5 + $0x680] sm:$0xff]
    %v2150 = vld [vmem:[%s5 + $0x688] sm:$0xff]
    %v2151 = vld [vmem:[%s5 + $0x690] sm:$0xff]
    %v2152 = vld [vmem:[%s5 + $0x698] sm:$0xff]
    %v2153 = vld [vmem:[%s5 + $0x6a0] sm:$0xff]
    %v2154 = vld [vmem:[%s5 + $0x6a8] sm:$0xff]
    %v2155 = vld [vmem:[%s5 + $0x6b0] sm:$0xff]
    %v2156 = vld [vmem:[%s5 + $0x6b8] sm:$0xff]
    %v2157 = vld [vmem:[%s5 + $0x6c0] sm:$0xff]
    %v2158 = vld [vmem:[%s5 + $0x6c8] sm:$0xff]
    %v2159 = vld [vmem:[%s5 + $0x6d0] sm:$0xff]
    %v2160 = vld [vmem:[%s5 + $0x6d8] sm:$0xff]
    %v2161 = vld [vmem:[%s5 + $0x6e0] sm:$0xff]
    %v2162 = vld [vmem:[%s5 + $0x6e8] sm:$0xff]
    %v2163 = vld [vmem:[%s5 + $0x6f0] sm:$0xff]
    %v2164 = vld [vmem:[%s5 + $0x6f8] sm:$0xff]
    %v2165 = vld [vmem:[%s5 + $0x700] sm:$0xff]
    %v2166 = vld [vmem:[%s5 + $0x708] sm:$0xff]
    %v2167 = vld [vmem:[%s5 + $0x710] sm:$0xff]
    %v2168 = vld [vmem:[%s5 + $0x718] sm:$0xff]
    %v2169 = vld [vmem:[%s5 + $0x720] sm:$0xff]
    %v2170 = vld [vmem:[%s5 + $0x728] sm:$0xff]
    %v2171 = vld [vmem:[%s5 + $0x730] sm:$0xff]
    %v2172 = vld [vmem:[%s5 + $0x738] sm:$0xff]
    %v2173 = vld [vmem:[%s5 + $0x740] sm:$0xff]
    %v2174 = vld [vmem:[%s5 + $0x748] sm:$0xff]
    %v2175 = vld [vmem:[%s5 + $0x750] sm:$0xff]
    %v2176 = vld [vmem:[%s5 + $0x758] sm:$0xff]
    %v2177 = vld [vmem:[%s5 + $0x760] sm:$0xff]
    %v2178 = vld [vmem:[%s5 + $0x768] sm:$0xff]
    %v2179 = vld [vmem:[%s5 + $0x770] sm:$0xff]
    %v2180 = vld [vmem:[%s5 + $0x778] sm:$0xff]
    %v2181 = vld [vmem:[%s5 + $0x780] sm:$0xff]
    %v2182 = vld [vmem:[%s5 + $0x788] sm:$0xff]
    %v2183 = vld [vmem:[%s5 + $0x790] sm:$0xff]
    %v2184 = vld [vmem:[%s5 + $0x798] sm:$0xff]
    %v2185 = vld [vmem:[%s5 + $0x7a0] sm:$0xff]
    %v2186 = vld [vmem:[%s5 + $0x7a8] sm:$0xff]
    %v2187 = vld [vmem:[%s5 + $0x7b0] sm:$0xff]
    %v2188 = vld [vmem:[%s5 + $0x7b8] sm:$0xff]
    %v2189 = vld [vmem:[%s5 + $0x7c0] sm:$0xff]
    %v2190 = vld [vmem:[%s5 + $0x7c8] sm:$0xff]
    %v2191 = vld [vmem:[%s5 + $0x7d0] sm:$0xff]
    %v2192 = vld [vmem:[%s5 + $0x7d8] sm:$0xff]
    %v2193 = vld [vmem:[%s5 + $0x7e0] sm:$0xff]
    %v2194 = vld [vmem:[%s5 + $0x7e8] sm:$0xff]
    %v2195 = vld [vmem:[%s5 + $0x7f0] sm:$0xff]
    %v2196 = vld [vmem:[%s5 + $0x7f8] sm:$0xff]
    %v2197 = vlaneseq
    %v2198 = vshrl.u32 %v2197, 7
    %v2199 = vsub.s32 4, %v2198
    %v2200 = vrot.slane %v178, %v2199
    %2201 = vmatprep.subr.mxu0 0.0
    %2202 = vmatpush1.msra.mxu0 %v1941
    %2203 = vmatprep.subr.mxu0 0.0
    %2204 = vmatpush1.msra.mxu0 %v1942
    %2205 = vmatprep.subr.mxu0 0.0
    %2206 = vmatpush1.msra.mxu0 %v1943
    %2207 = vmatprep.subr.mxu0 0.0
    %2208 = vmatpush1.msra.mxu0 %v1944
    %2209 = vmatprep.subr.mxu0 0.0
    %2210 = vmatpush1.msra.mxu0 %v1945
    %2211 = vmatprep.subr.mxu0 0.0
    %2212 = vmatpush1.msra.mxu0 %v1946
    %2213 = vmatprep.subr.mxu0 0.0
    %2214 = vmatpush1.msra.mxu0 %v1947
    %2215 = vmatprep.subr.mxu0 0.0
    %2216 = vmatpush1.msra.mxu0 %v1948
    %2217 = vmatprep.subr.mxu0 0.0
    %2218 = vmatpush1.msra.mxu0 %v1949
    %2219 = vmatprep.subr.mxu0 0.0
    %2220 = vmatpush1.msra.mxu0 %v1950
    %2221 = vmatprep.subr.mxu0 0.0
    %2222 = vmatpush1.msra.mxu0 %v1951
    %2223 = vmatprep.subr.mxu0 0.0
    %2224 = vmatpush1.msra.mxu0 %v1952
    %2225 = vmatprep.subr.mxu0 0.0
    %2226 = vmatpush1.msra.mxu0 %v1953
    %2227 = vmatprep.subr.mxu0 0.0
    %2228 = vmatpush1.msra.mxu0 %v1954
    %2229 = vmatprep.subr.mxu0 0.0
    %2230 = vmatpush1.msra.mxu0 %v1955
    %2231 = vmatprep.subr.mxu0 0.0
    %2232 = vmatpush1.msra.mxu0 %v1956
    %2233 = vmatprep.subr.mxu0 0.0
    %2234 = vmatpush1.msra.mxu0 %v1957
    %2235 = vmatprep.subr.mxu0 0.0
    %2236 = vmatpush1.msra.mxu0 %v1958
    %2237 = vmatprep.subr.mxu0 0.0
    %2238 = vmatpush1.msra.mxu0 %v1959
    %2239 = vmatprep.subr.mxu0 0.0
    %2240 = vmatpush1.msra.mxu0 %v1960
    %2241 = vmatprep.subr.mxu0 0.0
    %2242 = vmatpush1.msra.mxu0 %v1961
    %2243 = vmatprep.subr.mxu0 0.0
    %2244 = vmatpush1.msra.mxu0 %v1962
    %2245 = vmatprep.subr.mxu0 0.0
    %2246 = vmatpush1.msra.mxu0 %v1963
    %2247 = vmatprep.subr.mxu0 0.0
    %2248 = vmatpush1.msra.mxu0 %v1964
    %2249 = vmatprep.subr.mxu0 0.0
    %2250 = vmatpush1.msra.mxu0 %v1965
    %2251 = vmatprep.subr.mxu0 0.0
    %2252 = vmatpush1.msra.mxu0 %v1966
    %2253 = vmatprep.subr.mxu0 0.0
    %2254 = vmatpush1.msra.mxu0 %v1967
    %2255 = vmatprep.subr.mxu0 0.0
    %2256 = vmatpush1.msra.mxu0 %v1968
    %2257 = vmatprep.subr.mxu0 0.0
    %2258 = vmatpush1.msra.mxu0 %v1969
    %2259 = vmatprep.subr.mxu0 0.0
    %2260 = vmatpush1.msra.mxu0 %v1970
    %2261 = vmatprep.subr.mxu0 0.0
    %2262 = vmatpush1.msra.mxu0 %v1971
    %2263 = vmatprep.subr.mxu0 0.0
    %2264 = vmatpush1.msra.mxu0 %v1972
    %2265 = vmatprep.mubr.f32.mxu0 %v1926
    %2266 = vmatmul.mubr.f32.gmra.mrb[0].mxu0 %v1925
    %v2267 = vpop.f32.mrb[0].mxu0
    %v2268 = vadd.f32 %v2200, %v2267
    %v2269 = vpop.f32.mrb[0].mxu0
    %2270 = vdwg.mxu0
    %2271 = vmatprep.subr.mxu0 0.0
    %2272 = vmatpush1.msra.mxu0 %v1973
    %2273 = vmatprep.subr.mxu0 0.0
    %2274 = vmatpush1.msra.mxu0 %v1974
    %2275 = vmatprep.subr.mxu0 0.0
    %2276 = vmatpush1.msra.mxu0 %v1975
    %2277 = vmatprep.subr.mxu0 0.0
    %2278 = vmatpush1.msra.mxu0 %v1976
    %2279 = vmatprep.subr.mxu0 0.0
    %2280 = vmatpush1.msra.mxu0 %v1977
    %2281 = vmatprep.subr.mxu0 0.0
    %2282 = vmatpush1.msra.mxu0 %v1978
    %2283 = vmatprep.subr.mxu0 0.0
    %2284 = vmatpush1.msra.mxu0 %v1979
    %2285 = vmatprep.subr.mxu0 0.0
    %2286 = vmatpush1.msra.mxu0 %v1980
    %2287 = vmatprep.subr.mxu0 0.0
    %2288 = vmatpush1.msra.mxu0 %v1981
    %2289 = vmatprep.subr.mxu0 0.0
    %2290 = vmatpush1.msra.mxu0 %v1982
    %2291 = vmatprep.subr.mxu0 0.0
    %2292 = vmatpush1.msra.mxu0 %v1983
    %2293 = vmatprep.subr.mxu0 0.0
    %2294 = vmatpush1.msra.mxu0 %v1984
    %2295 = vmatprep.subr.mxu0 0.0
    %2296 = vmatpush1.msra.mxu0 %v1985
    %2297 = vmatprep.subr.mxu0 0.0
    %2298 = vmatpush1.msra.mxu0 %v1986
    %2299 = vmatprep.subr.mxu0 0.0
    %2300 = vmatpush1.msra.mxu0 %v1987
    %2301 = vmatprep.subr.mxu0 0.0
    %2302 = vmatpush1.msra.mxu0 %v1988
    %2303 = vmatprep.subr.mxu0 0.0
    %2304 = vmatpush1.msra.mxu0 %v1989
    %2305 = vmatprep.subr.mxu0 0.0
    %2306 = vmatpush1.msra.mxu0 %v1990
    %2307 = vmatprep.subr.mxu0 0.0
    %2308 = vmatpush1.msra.mxu0 %v1991
    %2309 = vmatprep.subr.mxu0 0.0
    %2310 = vmatpush1.msra.mxu0 %v1992
    %2311 = vmatprep.subr.mxu0 0.0
    %2312 = vmatpush1.msra.mxu0 %v1993
    %2313 = vmatprep.subr.mxu0 0.0
    %2314 = vmatpush1.msra.mxu0 %v1994
    %2315 = vmatprep.subr.mxu0 0.0
    %2316 = vmatpush1.msra.mxu0 %v1995
    %2317 = vmatprep.subr.mxu0 0.0
    %2318 = vmatpush1.msra.mxu0 %v1996
    %2319 = vmatprep.subr.mxu0 0.0
    %2320 = vmatpush1.msra.mxu0 %v1997
    %2321 = vmatprep.subr.mxu0 0.0
    %2322 = vmatpush1.msra.mxu0 %v1998
    %2323 = vmatprep.subr.mxu0 0.0
    %2324 = vmatpush1.msra.mxu0 %v1999
    %2325 = vmatprep.subr.mxu0 0.0
    %2326 = vmatpush1.msra.mxu0 %v2000
    %2327 = vmatprep.subr.mxu0 0.0
    %2328 = vmatpush1.msra.mxu0 %v2001
    %2329 = vmatprep.subr.mxu0 0.0
    %2330 = vmatpush1.msra.mxu0 %v2002
    %2331 = vmatprep.subr.mxu0 0.0
    %2332 = vmatpush1.msra.mxu0 %v2003
    %2333 = vmatprep.subr.mxu0 0.0
    %2334 = vmatpush1.msra.mxu0 %v2004
    %2335 = vmatprep.mubr.f32.mxu0 %v1928
    %2336 = vmatmul.mubr.f32.gmra.mrb[0].mxu0 %v1927
    %v2337 = vpop.f32.mrb[0].mxu0
    %v2338 = vadd.f32 %v2268, %v2337
    %v2339 = vpop.f32.mrb[0].mxu0
    %2340 = vdwg.mxu0
    %2341 = vmatprep.subr.mxu0 0.0
    %2342 = vmatpush1.msra.mxu0 %v2005
    %2343 = vmatprep.subr.mxu0 0.0
    %2344 = vmatpush1.msra.mxu0 %v2006
    %2345 = vmatprep.subr.mxu0 0.0
    %2346 = vmatpush1.msra.mxu0 %v2007
    %2347 = vmatprep.subr.mxu0 0.0
    %2348 = vmatpush1.msra.mxu0 %v2008
    %2349 = vmatprep.subr.mxu0 0.0
    %2350 = vmatpush1.msra.mxu0 %v2009
    %2351 = vmatprep.subr.mxu0 0.0
    %2352 = vmatpush1.msra.mxu0 %v2010
    %2353 = vmatprep.subr.mxu0 0.0
    %2354 = vmatpush1.msra.mxu0 %v2011
    %2355 = vmatprep.subr.mxu0 0.0
    %2356 = vmatpush1.msra.mxu0 %v2012
    %2357 = vmatprep.subr.mxu0 0.0
    %2358 = vmatpush1.msra.mxu0 %v2013
    %2359 = vmatprep.subr.mxu0 0.0
    %2360 = vmatpush1.msra.mxu0 %v2014
    %2361 = vmatprep.subr.mxu0 0.0
    %2362 = vmatpush1.msra.mxu0 %v2015
    %2363 = vmatprep.subr.mxu0 0.0
    %2364 = vmatpush1.msra.mxu0 %v2016
    %2365 = vmatprep.subr.mxu0 0.0
    %2366 = vmatpush1.msra.mxu0 %v2017
    %2367 = vmatprep.subr.mxu0 0.0
    %2368 = vmatpush1.msra.mxu0 %v2018
    %2369 = vmatprep.subr.mxu0 0.0
    %2370 = vmatpush1.msra.mxu0 %v2019
    %2371 = vmatprep.subr.mxu0 0.0
    %2372 = vmatpush1.msra.mxu0 %v2020
    %2373 = vmatprep.subr.mxu0 0.0
    %2374 = vmatpush1.msra.mxu0 %v2021
    %2375 = vmatprep.subr.mxu0 0.0
    %2376 = vmatpush1.msra.mxu0 %v2022
    %2377 = vmatprep.subr.mxu0 0.0
    %2378 = vmatpush1.msra.mxu0 %v2023
    %2379 = vmatprep.subr.mxu0 0.0
    %2380 = vmatpush1.msra.mxu0 %v2024
    %2381 = vmatprep.subr.mxu0 0.0
    %2382 = vmatpush1.msra.mxu0 %v2025
    %2383 = vmatprep.subr.mxu0 0.0
    %2384 = vmatpush1.msra.mxu0 %v2026
    %2385 = vmatprep.subr.mxu0 0.0
    %2386 = vmatpush1.msra.mxu0 %v2027
    %2387 = vmatprep.subr.mxu0 0.0
    %2388 = vmatpush1.msra.mxu0 %v2028
    %2389 = vmatprep.subr.mxu0 0.0
    %2390 = vmatpush1.msra.mxu0 %v2029
    %2391 = vmatprep.subr.mxu0 0.0
    %2392 = vmatpush1.msra.mxu0 %v2030
    %2393 = vmatprep.subr.mxu0 0.0
    %2394 = vmatpush1.msra.mxu0 %v2031
    %2395 = vmatprep.subr.mxu0 0.0
    %2396 = vmatpush1.msra.mxu0 %v2032
    %2397 = vmatprep.subr.mxu0 0.0
    %2398 = vmatpush1.msra.mxu0 %v2033
    %2399 = vmatprep.subr.mxu0 0.0
    %2400 = vmatpush1.msra.mxu0 %v2034
    %2401 = vmatprep.subr.mxu0 0.0
    %2402 = vmatpush1.msra.mxu0 %v2035
    %2403 = vmatprep.subr.mxu0 0.0
    %2404 = vmatpush1.msra.mxu0 %v2036
    %2405 = vmatprep.mubr.f32.mxu0 %v1930
    %2406 = vmatmul.mubr.f32.gmra.mrb[0].mxu0 %v1929
    %v2407 = vpop.f32.mrb[0].mxu0
    %v2408 = vadd.f32 %v2338, %v2407
    %v2409 = vpop.f32.mrb[0].mxu0
    %2410 = vdwg.mxu0
    %2411 = vmatprep.subr.mxu0 0.0
    %2412 = vmatpush1.msra.mxu0 %v2037
    %2413 = vmatprep.subr.mxu0 0.0
    %2414 = vmatpush1.msra.mxu0 %v2038
    %2415 = vmatprep.subr.mxu0 0.0
    %2416 = vmatpush1.msra.mxu0 %v2039
    %2417 = vmatprep.subr.mxu0 0.0
    %2418 = vmatpush1.msra.mxu0 %v2040
    %2419 = vmatprep.subr.mxu0 0.0
    %2420 = vmatpush1.msra.mxu0 %v2041
    %2421 = vmatprep.subr.mxu0 0.0
    %2422 = vmatpush1.msra.mxu0 %v2042
    %2423 = vmatprep.subr.mxu0 0.0
    %2424 = vmatpush1.msra.mxu0 %v2043
    %2425 = vmatprep.subr.mxu0 0.0
    %2426 = vmatpush1.msra.mxu0 %v2044
    %2427 = vmatprep.subr.mxu0 0.0
    %2428 = vmatpush1.msra.mxu0 %v2045
    %2429 = vmatprep.subr.mxu0 0.0
    %2430 = vmatpush1.msra.mxu0 %v2046
    %2431 = vmatprep.subr.mxu0 0.0
    %2432 = vmatpush1.msra.mxu0 %v2047
    %2433 = vmatprep.subr.mxu0 0.0
    %2434 = vmatpush1.msra.mxu0 %v2048
    %2435 = vmatprep.subr.mxu0 0.0
    %2436 = vmatpush1.msra.mxu0 %v2049
    %2437 = vmatprep.subr.mxu0 0.0
    %2438 = vmatpush1.msra.mxu0 %v2050
    %2439 = vmatprep.subr.mxu0 0.0
    %2440 = vmatpush1.msra.mxu0 %v2051
    %2441 = vmatprep.subr.mxu0 0.0
    %2442 = vmatpush1.msra.mxu0 %v2052
    %2443 = vmatprep.subr.mxu0 0.0
    %2444 = vmatpush1.msra.mxu0 %v2053
    %2445 = vmatprep.subr.mxu0 0.0
    %2446 = vmatpush1.msra.mxu0 %v2054
    %2447 = vmatprep.subr.mxu0 0.0
    %2448 = vmatpush1.msra.mxu0 %v2055
    %2449 = vmatprep.subr.mxu0 0.0
    %2450 = vmatpush1.msra.mxu0 %v2056
    %2451 = vmatprep.subr.mxu0 0.0
    %2452 = vmatpush1.msra.mxu0 %v2057
    %2453 = vmatprep.subr.mxu0 0.0
    %2454 = vmatpush1.msra.mxu0 %v2058
    %2455 = vmatprep.subr.mxu0 0.0
    %2456 = vmatpush1.msra.mxu0 %v2059
    %2457 = vmatprep.subr.mxu0 0.0
    %2458 = vmatpush1.msra.mxu0 %v2060
    %2459 = vmatprep.subr.mxu0 0.0
    %2460 = vmatpush1.msra.mxu0 %v2061
    %2461 = vmatprep.subr.mxu0 0.0
    %2462 = vmatpush1.msra.mxu0 %v2062
    %2463 = vmatprep.subr.mxu0 0.0
    %2464 = vmatpush1.msra.mxu0 %v2063
    %2465 = vmatprep.subr.mxu0 0.0
    %2466 = vmatpush1.msra.mxu0 %v2064
    %2467 = vmatprep.subr.mxu0 0.0
    %2468 = vmatpush1.msra.mxu0 %v2065
    %2469 = vmatprep.subr.mxu0 0.0
    %2470 = vmatpush1.msra.mxu0 %v2066
    %2471 = vmatprep.subr.mxu0 0.0
    %2472 = vmatpush1.msra.mxu0 %v2067
    %2473 = vmatprep.subr.mxu0 0.0
    %2474 = vmatpush1.msra.mxu0 %v2068
    %2475 = vmatprep.mubr.f32.mxu0 %v1932
    %2476 = vmatmul.mubr.f32.gmra.mrb[0].mxu0 %v1931
    %v2477 = vpop.f32.mrb[0].mxu0
    %v2478 = vadd.f32 %v2408, %v2477
    %v2479 = vpop.f32.mrb[0].mxu0
    %2480 = vdwg.mxu0
    %2481 = vmatprep.subr.mxu0 0.0
    %2482 = vmatpush1.msra.mxu0 %v2069
    %2483 = vmatprep.subr.mxu0 0.0
    %2484 = vmatpush1.msra.mxu0 %v2070
    %2485 = vmatprep.subr.mxu0 0.0
    %2486 = vmatpush1.msra.mxu0 %v2071
    %2487 = vmatprep.subr.mxu0 0.0
    %2488 = vmatpush1.msra.mxu0 %v2072
    %2489 = vmatprep.subr.mxu0 0.0
    %2490 = vmatpush1.msra.mxu0 %v2073
    %2491 = vmatprep.subr.mxu0 0.0
    %2492 = vmatpush1.msra.mxu0 %v2074
    %2493 = vmatprep.subr.mxu0 0.0
    %2494 = vmatpush1.msra.mxu0 %v2075
    %2495 = vmatprep.subr.mxu0 0.0
    %2496 = vmatpush1.msra.mxu0 %v2076
    %2497 = vmatprep.subr.mxu0 0.0
    %2498 = vmatpush1.msra.mxu0 %v2077
    %2499 = vmatprep.subr.mxu0 0.0
    %2500 = vmatpush1.msra.mxu0 %v2078
    %2501 = vmatprep.subr.mxu0 0.0
    %2502 = vmatpush1.msra.mxu0 %v2079
    %2503 = vmatprep.subr.mxu0 0.0
    %2504 = vmatpush1.msra.mxu0 %v2080
    %2505 = vmatprep.subr.mxu0 0.0
    %2506 = vmatpush1.msra.mxu0 %v2081
    %2507 = vmatprep.subr.mxu0 0.0
    %2508 = vmatpush1.msra.mxu0 %v2082
    %2509 = vmatprep.subr.mxu0 0.0
    %2510 = vmatpush1.msra.mxu0 %v2083
    %2511 = vmatprep.subr.mxu0 0.0
    %2512 = vmatpush1.msra.mxu0 %v2084
    %2513 = vmatprep.subr.mxu0 0.0
    %2514 = vmatpush1.msra.mxu0 %v2085
    %2515 = vmatprep.subr.mxu0 0.0
    %2516 = vmatpush1.msra.mxu0 %v2086
    %2517 = vmatprep.subr.mxu0 0.0
    %2518 = vmatpush1.msra.mxu0 %v2087
    %2519 = vmatprep.subr.mxu0 0.0
    %2520 = vmatpush1.msra.mxu0 %v2088
    %2521 = vmatprep.subr.mxu0 0.0
    %2522 = vmatpush1.msra.mxu0 %v2089
    %2523 = vmatprep.subr.mxu0 0.0
    %2524 = vmatpush1.msra.mxu0 %v2090
    %2525 = vmatprep.subr.mxu0 0.0
    %2526 = vmatpush1.msra.mxu0 %v2091
    %2527 = vmatprep.subr.mxu0 0.0
    %2528 = vmatpush1.msra.mxu0 %v2092
    %2529 = vmatprep.subr.mxu0 0.0
    %2530 = vmatpush1.msra.mxu0 %v2093
    %2531 = vmatprep.subr.mxu0 0.0
    %2532 = vmatpush1.msra.mxu0 %v2094
    %2533 = vmatprep.subr.mxu0 0.0
    %2534 = vmatpush1.msra.mxu0 %v2095
    %2535 = vmatprep.subr.mxu0 0.0
    %2536 = vmatpush1.msra.mxu0 %v2096
    %2537 = vmatprep.subr.mxu0 0.0
    %2538 = vmatpush1.msra.mxu0 %v2097
    %2539 = vmatprep.subr.mxu0 0.0
    %2540 = vmatpush1.msra.mxu0 %v2098
    %2541 = vmatprep.subr.mxu0 0.0
    %2542 = vmatpush1.msra.mxu0 %v2099
    %2543 = vmatprep.subr.mxu0 0.0
    %2544 = vmatpush1.msra.mxu0 %v2100
    %2545 = vmatprep.mubr.f32.mxu0 %v1934
    %2546 = vmatmul.mubr.f32.gmra.mrb[0].mxu0 %v1933
    %v2547 = vpop.f32.mrb[0].mxu0
    %v2548 = vadd.f32 %v2478, %v2547
    %v2549 = vpop.f32.mrb[0].mxu0
    %2550 = vdwg.mxu0
    %2551 = vmatprep.subr.mxu0 0.0
    %2552 = vmatpush1.msra.mxu0 %v2101
    %2553 = vmatprep.subr.mxu0 0.0
    %2554 = vmatpush1.msra.mxu0 %v2102
    %2555 = vmatprep.subr.mxu0 0.0
    %2556 = vmatpush1.msra.mxu0 %v2103
    %2557 = vmatprep.subr.mxu0 0.0
    %2558 = vmatpush1.msra.mxu0 %v2104
    %2559 = vmatprep.subr.mxu0 0.0
    %2560 = vmatpush1.msra.mxu0 %v2105
    %2561 = vmatprep.subr.mxu0 0.0
    %2562 = vmatpush1.msra.mxu0 %v2106
    %2563 = vmatprep.subr.mxu0 0.0
    %2564 = vmatpush1.msra.mxu0 %v2107
    %2565 = vmatprep.subr.mxu0 0.0
    %2566 = vmatpush1.msra.mxu0 %v2108
    %2567 = vmatprep.subr.mxu0 0.0
    %2568 = vmatpush1.msra.mxu0 %v2109
    %2569 = vmatprep.subr.mxu0 0.0
    %2570 = vmatpush1.msra.mxu0 %v2110
    %2571 = vmatprep.subr.mxu0 0.0
    %2572 = vmatpush1.msra.mxu0 %v2111
    %2573 = vmatprep.subr.mxu0 0.0
    %2574 = vmatpush1.msra.mxu0 %v2112
    %2575 = vmatprep.subr.mxu0 0.0
    %2576 = vmatpush1.msra.mxu0 %v2113
    %2577 = vmatprep.subr.mxu0 0.0
    %2578 = vmatpush1.msra.mxu0 %v2114
    %2579 = vmatprep.subr.mxu0 0.0
    %2580 = vmatpush1.msra.mxu0 %v2115
    %2581 = vmatprep.subr.mxu0 0.0
    %2582 = vmatpush1.msra.mxu0 %v2116
    %2583 = vmatprep.subr.mxu0 0.0
    %2584 = vmatpush1.msra.mxu0 %v2117
    %2585 = vmatprep.subr.mxu0 0.0
    %2586 = vmatpush1.msra.mxu0 %v2118
    %2587 = vmatprep.subr.mxu0 0.0
    %2588 = vmatpush1.msra.mxu0 %v2119
    %2589 = vmatprep.subr.mxu0 0.0
    %2590 = vmatpush1.msra.mxu0 %v2120
    %2591 = vmatprep.subr.mxu0 0.0
    %2592 = vmatpush1.msra.mxu0 %v2121
    %2593 = vmatprep.subr.mxu0 0.0
    %2594 = vmatpush1.msra.mxu0 %v2122
    %2595 = vmatprep.subr.mxu0 0.0
    %2596 = vmatpush1.msra.mxu0 %v2123
    %2597 = vmatprep.subr.mxu0 0.0
    %2598 = vmatpush1.msra.mxu0 %v2124
    %2599 = vmatprep.subr.mxu0 0.0
    %2600 = vmatpush1.msra.mxu0 %v2125
    %2601 = vmatprep.subr.mxu0 0.0
    %2602 = vmatpush1.msra.mxu0 %v2126
    %2603 = vmatprep.subr.mxu0 0.0
    %2604 = vmatpush1.msra.mxu0 %v2127
    %2605 = vmatprep.subr.mxu0 0.0
    %2606 = vmatpush1.msra.mxu0 %v2128
    %2607 = vmatprep.subr.mxu0 0.0
    %2608 = vmatpush1.msra.mxu0 %v2129
    %2609 = vmatprep.subr.mxu0 0.0
    %2610 = vmatpush1.msra.mxu0 %v2130
    %2611 = vmatprep.subr.mxu0 0.0
    %2612 = vmatpush1.msra.mxu0 %v2131
    %2613 = vmatprep.subr.mxu0 0.0
    %2614 = vmatpush1.msra.mxu0 %v2132
    %2615 = vmatprep.mubr.f32.mxu0 %v1936
    %2616 = vmatmul.mubr.f32.gmra.mrb[0].mxu0 %v1935
    %v2617 = vpop.f32.mrb[0].mxu0
    %v2618 = vadd.f32 %v2548, %v2617
    %v2619 = vpop.f32.mrb[0].mxu0
    %2620 = vdwg.mxu0
    %2621 = vmatprep.subr.mxu0 0.0
    %2622 = vmatpush1.msra.mxu0 %v2133
    %2623 = vmatprep.subr.mxu0 0.0
    %2624 = vmatpush1.msra.mxu0 %v2134
    %2625 = vmatprep.subr.mxu0 0.0
    %2626 = vmatpush1.msra.mxu0 %v2135
    %2627 = vmatprep.subr.mxu0 0.0
    %2628 = vmatpush1.msra.mxu0 %v2136
    %2629 = vmatprep.subr.mxu0 0.0
    %2630 = vmatpush1.msra.mxu0 %v2137
    %2631 = vmatprep.subr.mxu0 0.0
    %2632 = vmatpush1.msra.mxu0 %v2138
    %2633 = vmatprep.subr.mxu0 0.0
    %2634 = vmatpush1.msra.mxu0 %v2139
    %2635 = vmatprep.subr.mxu0 0.0
    %2636 = vmatpush1.msra.mxu0 %v2140
    %2637 = vmatprep.subr.mxu0 0.0
    %2638 = vmatpush1.msra.mxu0 %v2141
    %2639 = vmatprep.subr.mxu0 0.0
    %2640 = vmatpush1.msra.mxu0 %v2142
    %2641 = vmatprep.subr.mxu0 0.0
    %2642 = vmatpush1.msra.mxu0 %v2143
    %2643 = vmatprep.subr.mxu0 0.0
    %2644 = vmatpush1.msra.mxu0 %v2144
    %2645 = vmatprep.subr.mxu0 0.0
    %2646 = vmatpush1.msra.mxu0 %v2145
    %2647 = vmatprep.subr.mxu0 0.0
    %2648 = vmatpush1.msra.mxu0 %v2146
    %2649 = vmatprep.subr.mxu0 0.0
    %2650 = vmatpush1.msra.mxu0 %v2147
    %2651 = vmatprep.subr.mxu0 0.0
    %2652 = vmatpush1.msra.mxu0 %v2148
    %2653 = vmatprep.subr.mxu0 0.0
    %2654 = vmatpush1.msra.mxu0 %v2149
    %2655 = vmatprep.subr.mxu0 0.0
    %2656 = vmatpush1.msra.mxu0 %v2150
    %2657 = vmatprep.subr.mxu0 0.0
    %2658 = vmatpush1.msra.mxu0 %v2151
    %2659 = vmatprep.subr.mxu0 0.0
    %2660 = vmatpush1.msra.mxu0 %v2152
    %2661 = vmatprep.subr.mxu0 0.0
    %2662 = vmatpush1.msra.mxu0 %v2153
    %2663 = vmatprep.subr.mxu0 0.0
    %2664 = vmatpush1.msra.mxu0 %v2154
    %2665 = vmatprep.subr.mxu0 0.0
    %2666 = vmatpush1.msra.mxu0 %v2155
    %2667 = vmatprep.subr.mxu0 0.0
    %2668 = vmatpush1.msra.mxu0 %v2156
    %2669 = vmatprep.subr.mxu0 0.0
    %2670 = vmatpush1.msra.mxu0 %v2157
    %2671 = vmatprep.subr.mxu0 0.0
    %2672 = vmatpush1.msra.mxu0 %v2158
    %2673 = vmatprep.subr.mxu0 0.0
    %2674 = vmatpush1.msra.mxu0 %v2159
    %2675 = vmatprep.subr.mxu0 0.0
    %2676 = vmatpush1.msra.mxu0 %v2160
    %2677 = vmatprep.subr.mxu0 0.0
    %2678 = vmatpush1.msra.mxu0 %v2161
    %2679 = vmatprep.subr.mxu0 0.0
    %2680 = vmatpush1.msra.mxu0 %v2162
    %2681 = vmatprep.subr.mxu0 0.0
    %2682 = vmatpush1.msra.mxu0 %v2163
    %2683 = vmatprep.subr.mxu0 0.0
    %2684 = vmatpush1.msra.mxu0 %v2164
    %2685 = vmatprep.mubr.f32.mxu0 %v1938
    %2686 = vmatmul.mubr.f32.gmra.mrb[0].mxu0 %v1937
    %v2687 = vpop.f32.mrb[0].mxu0
    %v2688 = vadd.f32 %v2618, %v2687
    %v2689 = vpop.f32.mrb[0].mxu0
    %2690 = vdwg.mxu0
    %2691 = vmatprep.subr.mxu0 0.0
    %2692 = vmatpush1.msra.mxu0 %v2165
    %2693 = vmatprep.subr.mxu0 0.0
    %2694 = vmatpush1.msra.mxu0 %v2166
    %2695 = vmatprep.subr.mxu0 0.0
    %2696 = vmatpush1.msra.mxu0 %v2167
    %2697 = vmatprep.subr.mxu0 0.0
    %2698 = vmatpush1.msra.mxu0 %v2168
    %2699 = vmatprep.subr.mxu0 0.0
    %2700 = vmatpush1.msra.mxu0 %v2169
    %2701 = vmatprep.subr.mxu0 0.0
    %2702 = vmatpush1.msra.mxu0 %v2170
    %2703 = vmatprep.subr.mxu0 0.0
    %2704 = vmatpush1.msra.mxu0 %v2171
    %2705 = vmatprep.subr.mxu0 0.0
    %2706 = vmatpush1.msra.mxu0 %v2172
    %2707 = vmatprep.subr.mxu0 0.0
    %2708 = vmatpush1.msra.mxu0 %v2173
    %2709 = vmatprep.subr.mxu0 0.0
    %2710 = vmatpush1.msra.mxu0 %v2174
    %2711 = vmatprep.subr.mxu0 0.0
    %2712 = vmatpush1.msra.mxu0 %v2175
    %2713 = vmatprep.subr.mxu0 0.0
    %2714 = vmatpush1.msra.mxu0 %v2176
    %2715 = vmatprep.subr.mxu0 0.0
    %2716 = vmatpush1.msra.mxu0 %v2177
    %2717 = vmatprep.subr.mxu0 0.0
    %2718 = vmatpush1.msra.mxu0 %v2178
    %2719 = vmatprep.subr.mxu0 0.0
    %2720 = vmatpush1.msra.mxu0 %v2179
    %2721 = vmatprep.subr.mxu0 0.0
    %2722 = vmatpush1.msra.mxu0 %v2180
    %2723 = vmatprep.subr.mxu0 0.0
    %2724 = vmatpush1.msra.mxu0 %v2181
    %2725 = vmatprep.subr.mxu0 0.0
    %2726 = vmatpush1.msra.mxu0 %v2182
    %2727 = vmatprep.subr.mxu0 0.0
    %2728 = vmatpush1.msra.mxu0 %v2183
    %2729 = vmatprep.subr.mxu0 0.0
    %2730 = vmatpush1.msra.mxu0 %v2184
    %2731 = vmatprep.subr.mxu0 0.0
    %2732 = vmatpush1.msra.mxu0 %v2185
    %2733 = vmatprep.subr.mxu0 0.0
    %2734 = vmatpush1.msra.mxu0 %v2186
    %2735 = vmatprep.subr.mxu0 0.0
    %2736 = vmatpush1.msra.mxu0 %v2187
    %2737 = vmatprep.subr.mxu0 0.0
    %2738 = vmatpush1.msra.mxu0 %v2188
    %2739 = vmatprep.subr.mxu0 0.0
    %2740 = vmatpush1.msra.mxu0 %v2189
    %2741 = vmatprep.subr.mxu0 0.0
    %2742 = vmatpush1.msra.mxu0 %v2190
    %2743 = vmatprep.subr.mxu0 0.0
    %2744 = vmatpush1.msra.mxu0 %v2191
    %2745 = vmatprep.subr.mxu0 0.0
    %2746 = vmatpush1.msra.mxu0 %v2192
    %2747 = vmatprep.subr.mxu0 0.0
    %2748 = vmatpush1.msra.mxu0 %v2193
    %2749 = vmatprep.subr.mxu0 0.0
    %2750 = vmatpush1.msra.mxu0 %v2194
    %2751 = vmatprep.subr.mxu0 0.0
    %2752 = vmatpush1.msra.mxu0 %v2195
    %2753 = vmatprep.subr.mxu0 0.0
    %2754 = vmatpush1.msra.mxu0 %v2196
    %2755 = vmatprep.mubr.f32.mxu0 %v1940
    %2756 = vmatmul.mubr.f32.gmra.mrb[0].mxu0 %v1939
    %v2757 = vpop.f32.mrb[0].mxu0
    %v2758 = vadd.f32 %v2688, %v2757
    %v2759 = vpop.f32.mrb[0].mxu0
    %2760 = vdwg.mxu0
    %v2761 = vadd.f32 %v1205, %v2758
    %v2762 = vsel %vm38, %v2761, 0.0
    %2763 = vadd.xlane.f32.xlu0 %v2762
    %v2764 = vpop.xlane.xlu0 %2763
    %v2765 = vmul.f32 %v2764, %v1185
    %v2766 = vsub.f32 %v2761, %v2765
    %v2767 = vmul.f32 %v2766, %v2766
    %v2768 = vsel %vm38, %v2767, 0.0
    %2769 = vadd.xlane.f32.xlu0 %v2768
    %v2770 = vpop.xlane.xlu0 %2769
    %v2771 = vmul.f32 %v2770, %v1185
    %v2772 = vadd.f32 %v2771, 1e-05
    %v2773 = vrsqrt.pop %v2772
    %v2774 = vmul.f32 %v2766, %v2773
    %v2775 = vlaneseq
    %v2776 = vshrl.u32 %v2775, 7
    %v2777 = vsub.s32 7, %v2776
    %v2778 = vrot.slane %v178, %v2777
    %v2779 = vmul.f32 %v2774, %v2778
    %v2780 = vlaneseq
    %v2781 = vshrl.u32 %v2780, 7
    %v2782 = vsub.s32 0, %v2781
    %v2783 = vrot.slane %v179, %v2782
    %v2784 = vadd.f32 %v2779, %v2783
    %s2785 = scalar_lea.vmem %s7, 16
    %v2786 = vld [vmem:[%s2785] sm:$0xff]
    %v2787 = vld [vmem:[%s2785 + $0x8] sm:$0xff]
    %s2788 = scalar_lea.vmem %s2, 96
    %v2789 = vld [vmem:[%s2788] sm:$0xff]
    %v2790 = vld [vmem:[%s2788 + $0x8] sm:$0xff]
    %v2791 = vld [vmem:[%s2788 + $0x10] sm:$0xff]
    %v2792 = vld [vmem:[%s2788 + $0x18] sm:$0xff]
    %v2793 = vlaneseq
    %v2794 = vshrl.u32 %v2793, 7
    %v2795 = vsub.s32 0, %v2794
    %v2796 = vrot.slane %v2786, %v2795
    %v2798 = vsel %vm38, %v2784, 0
    %2800 = vmatprep.subr.mxu0 0.0
    %2801 = vmatpush1.msra.mxu0 %v2789
    %2802 = vmatprep.subr.mxu0 0.0
    %2803 = vmatpush1.msra.mxu0 %v2790
    %2804 = vmatprep.subr.mxu0 0.0
    %2805 = vmatpush1.msra.mxu0 %v2791
    %2806 = vmatprep.subr.mxu0 0.0
    %2807 = vmatpush1.msra.mxu0 %v2792
    %2808 = vmatprep.subr.mxu0 0.0
    %2809 = vmatpush1.msra.mxu0 0.0
    %2810 = vmatprep.subr.mxu0 0.0
    %2811 = vmatpush1.msra.mxu0 0.0
    %2812 = vmatprep.subr.mxu0 0.0
    %2813 = vmatpush1.msra.mxu0 0.0
    %2814 = vmatprep.subr.mxu0 0.0
    %2815 = vmatpush1.msra.mxu0 0.0
    %2816 = vmatprep.subr.mxu0 0.0
    %2817 = vmatpush1.msra.mxu0 0.0
    %2818 = vmatprep.subr.mxu0 0.0
    %2819 = vmatpush1.msra.mxu0 0.0
    %2820 = vmatprep.subr.mxu0 0.0
    %2821 = vmatpush1.msra.mxu0 0.0
    %2822 = vmatprep.subr.mxu0 0.0
    %2823 = vmatpush1.msra.mxu0 0.0
    %2824 = vmatprep.subr.mxu0 0.0
    %2825 = vmatpush1.msra.mxu0 0.0
    %2826 = vmatprep.subr.mxu0 0.0
    %2827 = vmatpush1.msra.mxu0 0.0
    %2828 = vmatprep.subr.mxu0 0.0
    %2829 = vmatpush1.msra.mxu0 0.0
    %2830 = vmatprep.subr.mxu0 0.0
    %2831 = vmatpush1.msra.mxu0 0.0
    %2832 = vmatprep.subr.mxu0 0.0
    %2833 = vmatpush1.msra.mxu0 0.0
    %2834 = vmatprep.subr.mxu0 0.0
    %2835 = vmatpush1.msra.mxu0 0.0
    %2836 = vmatprep.subr.mxu0 0.0
    %2837 = vmatpush1.msra.mxu0 0.0
    %2838 = vmatprep.subr.mxu0 0.0
    %2839 = vmatpush1.msra.mxu0 0.0
    %2840 = vmatprep.subr.mxu0 0.0
    %2841 = vmatpush1.msra.mxu0 0.0
    %2842 = vmatprep.subr.mxu0 0.0
    %2843 = vmatpush1.msra.mxu0 0.0
    %2844 = vmatprep.subr.mxu0 0.0
    %2845 = vmatpush1.msra.mxu0 0.0
    %2846 = vmatprep.subr.mxu0 0.0
    %2847 = vmatpush1.msra.mxu0 0.0
    %2848 = vmatprep.subr.mxu0 0.0
    %2849 = vmatpush1.msra.mxu0 0.0
    %2850 = vmatprep.subr.mxu0 0.0
    %2851 = vmatpush1.msra.mxu0 0.0
    %2852 = vmatprep.subr.mxu0 0.0
    %2853 = vmatpush1.msra.mxu0 0.0
    %2854 = vmatprep.subr.mxu0 0.0
    %2855 = vmatpush1.msra.mxu0 0.0
    %2856 = vmatprep.subr.mxu0 0.0
    %2857 = vmatpush1.msra.mxu0 0.0
    %2858 = vmatprep.subr.mxu0 0.0
    %2859 = vmatpush1.msra.mxu0 0.0
    %2860 = vmatprep.subr.mxu0 0.0
    %2861 = vmatpush1.msra.mxu0 0.0
    %2862 = vmatprep.subr.mxu0 0.0
    %2863 = vmatpush1.msra.mxu0 0.0
    %2864 = vmatprep.mubr.f32.mxu0 0.0
    %2865 = vmatmul.mubr.f32.gmra.mrb[0].mxu0 %v2798
    %v2866 = vpop.f32.mrb[0].mxu0
    %v2867 = vadd.f32 %v2796, %v2866
    %v2868 = vpop.f32.mrb[0].mxu0
    %2869 = vdwg.mxu0
    %s2870 = scalar_lea.vmem %s2, 128
    %v2871 = vld [vmem:[%s2870] sm:$0xff]
    %v2872 = vld [vmem:[%s2870 + $0x8] sm:$0xff]
    %v2873 = vld [vmem:[%s2870 + $0x10] sm:$0xff]
    %v2874 = vld [vmem:[%s2870 + $0x18] sm:$0xff]
    %v2875 = vlaneseq
    %v2876 = vshrl.u32 %v2875, 7
    %v2877 = vsub.s32 1, %v2876
    %v2878 = vrot.slane %v2786, %v2877
    %2879 = vmatprep.subr.mxu0 0.0
    %2880 = vmatpush1.msra.mxu0 %v2871
    %2881 = vmatprep.subr.mxu0 0.0
    %2882 = vmatpush1.msra.mxu0 %v2872
    %2883 = vmatprep.subr.mxu0 0.0
    %2884 = vmatpush1.msra.mxu0 %v2873
    %2885 = vmatprep.subr.mxu0 0.0
    %2886 = vmatpush1.msra.mxu0 %v2874
    %2887 = vmatprep.subr.mxu0 0.0
    %2888 = vmatpush1.msra.mxu0 0.0
    %2889 = vmatprep.subr.mxu0 0.0
    %2890 = vmatpush1.msra.mxu0 0.0
    %2891 = vmatprep.subr.mxu0 0.0
    %2892 = vmatpush1.msra.mxu0 0.0
    %2893 = vmatprep.subr.mxu0 0.0
    %2894 = vmatpush1.msra.mxu0 0.0
    %2895 = vmatprep.subr.mxu0 0.0
    %2896 = vmatpush1.msra.mxu0 0.0
    %2897 = vmatprep.subr.mxu0 0.0
    %2898 = vmatpush1.msra.mxu0 0.0
    %2899 = vmatprep.subr.mxu0 0.0
    %2900 = vmatpush1.msra.mxu0 0.0
    %2901 = vmatprep.subr.mxu0 0.0
    %2902 = vmatpush1.msra.mxu0 0.0
    %2903 = vmatprep.subr.mxu0 0.0
    %2904 = vmatpush1.msra.mxu0 0.0
    %2905 = vmatprep.subr.mxu0 0.0
    %2906 = vmatpush1.msra.mxu0 0.0
    %2907 = vmatprep.subr.mxu0 0.0
    %2908 = vmatpush1.msra.mxu0 0.0
    %2909 = vmatprep.subr.mxu0 0.0
    %2910 = vmatpush1.msra.mxu0 0.0
    %2911 = vmatprep.subr.mxu0 0.0
    %2912 = vmatpush1.msra.mxu0 0.0
    %2913 = vmatprep.subr.mxu0 0.0
    %2914 = vmatpush1.msra.mxu0 0.0
    %2915 = vmatprep.subr.mxu0 0.0
    %2916 = vmatpush1.msra.mxu0 0.0
    %2917 = vmatprep.subr.mxu0 0.0
    %2918 = vmatpush1.msra.mxu0 0.0
    %2919 = vmatprep.subr.mxu0 0.0
    %2920 = vmatpush1.msra.mxu0 0.0
    %2921 = vmatprep.subr.mxu0 0.0
    %2922 = vmatpush1.msra.mxu0 0.0
    %2923 = vmatprep.subr.mxu0 0.0
    %2924 = vmatpush1.msra.mxu0 0.0
    %2925 = vmatprep.subr.mxu0 0.0
    %2926 = vmatpush1.msra.mxu0 0.0
    %2927 = vmatprep.subr.mxu0 0.0
    %2928 = vmatpush1.msra.mxu0 0.0
    %2929 = vmatprep.subr.mxu0 0.0
    %2930 = vmatpush1.msra.mxu0 0.0
    %2931 = vmatprep.subr.mxu0 0.0
    %2932 = vmatpush1.msra.mxu0 0.0
    %2933 = vmatprep.subr.mxu0 0.0
    %2934 = vmatpush1.msra.mxu0 0.0
    %2935 = vmatprep.subr.mxu0 0.0
    %2936 = vmatpush1.msra.mxu0 0.0
    %2937 = vmatprep.subr.mxu0 0.0
    %2938 = vmatpush1.msra.mxu0 0.0
    %2939 = vmatprep.subr.mxu0 0.0
    %2940 = vmatpush1.msra.mxu0 0.0
    %2941 = vmatprep.subr.mxu0 0.0
    %2942 = vmatpush1.msra.mxu0 0.0
    %2943 = vmatprep.mubr.f32.mxu0 0.0
    %2944 = vmatmul.mubr.f32.gmra.mrb[0].mxu0 %v2798
    %v2945 = vpop.f32.mrb[0].mxu0
    %v2946 = vadd.f32 %v2878, %v2945
    %v2947 = vpop.f32.mrb[0].mxu0
    %2948 = vdwg.mxu0
    %s2949 = scalar_lea.vmem %s2, 160
    %v2950 = vld [vmem:[%s2949] sm:$0xff]
    %v2951 = vld [vmem:[%s2949 + $0x8] sm:$0xff]
    %v2952 = vld [vmem:[%s2949 + $0x10] sm:$0xff]
    %v2953 = vld [vmem:[%s2949 + $0x18] sm:$0xff]
    %v2954 = vlaneseq
    %v2955 = vshrl.u32 %v2954, 7
    %v2956 = vsub.s32 2, %v2955
    %v2957 = vrot.slane %v2786, %v2956
    %2958 = vmatprep.subr.mxu0 0.0
    %2959 = vmatpush1.msra.mxu0 %v2950
    %2960 = vmatprep.subr.mxu0 0.0
    %2961 = vmatpush1.msra.mxu0 %v2951
    %2962 = vmatprep.subr.mxu0 0.0
    %2963 = vmatpush1.msra.mxu0 %v2952
    %2964 = vmatprep.subr.mxu0 0.0
    %2965 = vmatpush1.msra.mxu0 %v2953
    %2966 = vmatprep.subr.mxu0 0.0
    %2967 = vmatpush1.msra.mxu0 0.0
    %2968 = vmatprep.subr.mxu0 0.0
    %2969 = vmatpush1.msra.mxu0 0.0
    %2970 = vmatprep.subr.mxu0 0.0
    %2971 = vmatpush1.msra.mxu0 0.0
    %2972 = vmatprep.subr.mxu0 0.0
    %2973 = vmatpush1.msra.mxu0 0.0
    %2974 = vmatprep.subr.mxu0 0.0
    %2975 = vmatpush1.msra.mxu0 0.0
    %2976 = vmatprep.subr.mxu0 0.0
    %2977 = vmatpush1.msra.mxu0 0.0
    %2978 = vmatprep.subr.mxu0 0.0
    %2979 = vmatpush1.msra.mxu0 0.0
    %2980 = vmatprep.subr.mxu0 0.0
    %2981 = vmatpush1.msra.mxu0 0.0
    %2982 = vmatprep.subr.mxu0 0.0
    %2983 = vmatpush1.msra.mxu0 0.0
    %2984 = vmatprep.subr.mxu0 0.0
    %2985 = vmatpush1.msra.mxu0 0.0
    %2986 = vmatprep.subr.mxu0 0.0
    %2987 = vmatpush1.msra.mxu0 0.0
    %2988 = vmatprep.subr.mxu0 0.0
    %2989 = vmatpush1.msra.mxu0 0.0
    %2990 = vmatprep.subr.mxu0 0.0
    %2991 = vmatpush1.msra.mxu0 0.0
    %2992 = vmatprep.subr.mxu0 0.0
    %2993 = vmatpush1.msra.mxu0 0.0
    %2994 = vmatprep.subr.mxu0 0.0
    %2995 = vmatpush1.msra.mxu0 0.0
    %2996 = vmatprep.subr.mxu0 0.0
    %2997 = vmatpush1.msra.mxu0 0.0
    %2998 = vmatprep.subr.mxu0 0.0
    %2999 = vmatpush1.msra.mxu0 0.0
    %3000 = vmatprep.subr.mxu0 0.0
    %3001 = vmatpush1.msra.mxu0 0.0
    %3002 = vmatprep.subr.mxu0 0.0
    %3003 = vmatpush1.msra.mxu0 0.0
    %3004 = vmatprep.subr.mxu0 0.0
    %3005 = vmatpush1.msra.mxu0 0.0
    %3006 = vmatprep.subr.mxu0 0.0
    %3007 = vmatpush1.msra.mxu0 0.0
    %3008 = vmatprep.subr.mxu0 0.0
    %3009 = vmatpush1.msra.mxu0 0.0
    %3010 = vmatprep.subr.mxu0 0.0
    %3011 = vmatpush1.msra.mxu0 0.0
    %3012 = vmatprep.subr.mxu0 0.0
    %3013 = vmatpush1.msra.mxu0 0.0
    %3014 = vmatprep.subr.mxu0 0.0
    %3015 = vmatpush1.msra.mxu0 0.0
    %3016 = vmatprep.subr.mxu0 0.0
    %3017 = vmatpush1.msra.mxu0 0.0
    %3018 = vmatprep.subr.mxu0 0.0
    %3019 = vmatpush1.msra.mxu0 0.0
    %3020 = vmatprep.subr.mxu0 0.0
    %3021 = vmatpush1.msra.mxu0 0.0
    %3022 = vmatprep.mubr.f32.mxu0 0.0
    %3023 = vmatmul.mubr.f32.gmra.mrb[0].mxu0 %v2798
    %v3024 = vpop.f32.mrb[0].mxu0
    %v3025 = vadd.f32 %v2957, %v3024
    %v3026 = vpop.f32.mrb[0].mxu0
    %3027 = vdwg.mxu0
    %v3029 = vsel %vm162, %v2867, 0
    %v3032 = vsel %vm162, %v2946, 0
    %3034 = vmatprep.subr.mxu0 0.0
    %3035 = vmatpush1.xpose.msra.mxu0 %v3032
    %3036 = vmatprep.subr.mxu0 0.0
    %3037 = vmatpush1.xpose.msra.mxu0 0.0
    %3038 = vmatprep.subr.mxu0 0.0
    %3039 = vmatpush1.xpose.msra.mxu0 0.0
    %3040 = vmatprep.subr.mxu0 0.0
    %3041 = vmatpush1.xpose.msra.mxu0 0.0
    %3042 = vmatprep.subr.mxu0 0.0
    %3043 = vmatpush1.xpose.msra.mxu0 0.0
    %3044 = vmatprep.subr.mxu0 0.0
    %3045 = vmatpush1.xpose.msra.mxu0 0.0
    %3046 = vmatprep.subr.mxu0 0.0
    %3047 = vmatpush1.xpose.msra.mxu0 0.0
    %3048 = vmatprep.subr.mxu0 0.0
    %3049 = vmatpush1.xpose.msra.mxu0 0.0
    %3050 = vmatprep.subr.mxu0 0.0
    %3051 = vmatpush1.xpose.msra.mxu0 0.0
    %3052 = vmatprep.subr.mxu0 0.0
    %3053 = vmatpush1.xpose.msra.mxu0 0.0
    %3054 = vmatprep.subr.mxu0 0.0
    %3055 = vmatpush1.xpose.msra.mxu0 0.0
    %3056 = vmatprep.subr.mxu0 0.0
    %3057 = vmatpush1.xpose.msra.mxu0 0.0
    %3058 = vmatprep.subr.mxu0 0.0
    %3059 = vmatpush1.xpose.msra.mxu0 0.0
    %3060 = vmatprep.subr.mxu0 0.0
    %3061 = vmatpush1.xpose.msra.mxu0 0.0
    %3062 = vmatprep.subr.mxu0 0.0
    %3063 = vmatpush1.xpose.msra.mxu0 0.0
    %3064 = vmatprep.subr.mxu0 0.0
    %3065 = vmatpush1.xpose.msra.mxu0 0.0
    %3066 = vmatprep.subr.mxu0 0.0
    %3067 = vmatpush1.xpose.msra.mxu0 0.0
    %3068 = vmatprep.subr.mxu0 0.0
    %3069 = vmatpush1.xpose.msra.mxu0 0.0
    %3070 = vmatprep.subr.mxu0 0.0
    %3071 = vmatpush1.xpose.msra.mxu0 0.0
    %3072 = vmatprep.subr.mxu0 0.0
    %3073 = vmatpush1.xpose.msra.mxu0 0.0
    %3074 = vmatprep.subr.mxu0 0.0
    %3075 = vmatpush1.xpose.msra.mxu0 0.0
    %3076 = vmatprep.subr.mxu0 0.0
    %3077 = vmatpush1.xpose.msra.mxu0 0.0
    %3078 = vmatprep.subr.mxu0 0.0
    %3079 = vmatpush1.xpose.msra.mxu0 0.0
    %3080 = vmatprep.subr.mxu0 0.0
    %3081 = vmatpush1.xpose.msra.mxu0 0.0
    %3082 = vmatprep.subr.mxu0 0.0
    %3083 = vmatpush1.xpose.msra.mxu0 0.0
    %3084 = vmatprep.subr.mxu0 0.0
    %3085 = vmatpush1.xpose.msra.mxu0 0.0
    %3086 = vmatprep.subr.mxu0 0.0
    %3087 = vmatpush1.xpose.msra.mxu0 0.0
    %3088 = vmatprep.subr.mxu0 0.0
    %3089 = vmatpush1.xpose.msra.mxu0 0.0
    %3090 = vmatprep.subr.mxu0 0.0
    %3091 = vmatpush1.xpose.msra.mxu0 0.0
    %3092 = vmatprep.subr.mxu0 0.0
    %3093 = vmatpush1.xpose.msra.mxu0 0.0
    %3094 = vmatprep.subr.mxu0 0.0
    %3095 = vmatpush1.xpose.msra.mxu0 0.0
    %3096 = vmatprep.subr.mxu0 0.0
    %3097 = vmatpush1.xpose.msra.mxu0 0.0
    %3098 = vmatprep.mubr.f32.mxu0 0.0
    %3099 = vmatmul.mubr.f32.gmra.mrb[0].mxu0 %v3029
    %v3100 = vpop.f32.mrb[0].mxu0
    %v3101 = vadd.f32 0.0, %v3100
    %v3102 = vpop.f32.mrb[0].mxu0
    %3103 = vdwg.mxu0
    %v3104 = vmul.f32 %v3101, 0.35355338
    %v3105 = vadd.f32 %v3104, %v176
    %v3106 = vsel %vm162, %v3105, -inf
    %3107 = vmax.xlane.f32.xlu0 %v3106
    %v3108 = vpop.xlane.xlu0 %3107
    %v3109 = vsub.f32 %v3105, %v3108
    %v3110 = vmul.f32 %v3109, 1.442695
    %v3111 = vpow.pop %v3110
    %v3112 = vsel %vm162, %v3111, 0.0
    %3113 = vadd.xlane.f32.xlu0 %v3112
    %v3114 = vpop.xlane.xlu0 %3113
    %v3115 = vrcp.pop %v3114
    %v3116 = vmul.f32 %v3111, %v3115
    %v3118 = vsel %vm162, %v3116, 0
    %3120 = vmatprep.subr.mxu0 0.0
    %3121 = vmatpush1.msra.mxu0 %v3025
    %3122 = vmatprep.subr.mxu0 0.0
    %3123 = vmatpush1.msra.mxu0 0.0
    %3124 = vmatprep.subr.mxu0 0.0
    %3125 = vmatpush1.msra.mxu0 0.0
    %3126 = vmatprep.subr.mxu0 0.0
    %3127 = vmatpush1.msra.mxu0 0.0
    %3128 = vmatprep.subr.mxu0 0.0
    %3129 = vmatpush1.msra.mxu0 0.0
    %3130 = vmatprep.subr.mxu0 0.0
    %3131 = vmatpush1.msra.mxu0 0.0
    %3132 = vmatprep.subr.mxu0 0.0
    %3133 = vmatpush1.msra.mxu0 0.0
    %3134 = vmatprep.subr.mxu0 0.0
    %3135 = vmatpush1.msra.mxu0 0.0
    %3136 = vmatprep.subr.mxu0 0.0
    %3137 = vmatpush1.msra.mxu0 0.0
    %3138 = vmatprep.subr.mxu0 0.0
    %3139 = vmatpush1.msra.mxu0 0.0
    %3140 = vmatprep.subr.mxu0 0.0
    %3141 = vmatpush1.msra.mxu0 0.0
    %3142 = vmatprep.subr.mxu0 0.0
    %3143 = vmatpush1.msra.mxu0 0.0
    %3144 = vmatprep.subr.mxu0 0.0
    %3145 = vmatpush1.msra.mxu0 0.0
    %3146 = vmatprep.subr.mxu0 0.0
    %3147 = vmatpush1.msra.mxu0 0.0
    %3148 = vmatprep.subr.mxu0 0.0
    %3149 = vmatpush1.msra.mxu0 0.0
    %3150 = vmatprep.subr.mxu0 0.0
    %3151 = vmatpush1.msra.mxu0 0.0
    %3152 = vmatprep.subr.mxu0 0.0
    %3153 = vmatpush1.msra.mxu0 0.0
    %3154 = vmatprep.subr.mxu0 0.0
    %3155 = vmatpush1.msra.mxu0 0.0
    %3156 = vmatprep.subr.mxu0 0.0
    %3157 = vmatpush1.msra.mxu0 0.0
    %3158 = vmatprep.subr.mxu0 0.0
    %3159 = vmatpush1.msra.mxu0 0.0
    %3160 = vmatprep.subr.mxu0 0.0
    %3161 = vmatpush1.msra.mxu0 0.0
    %3162 = vmatprep.subr.mxu0 0.0
    %3163 = vmatpush1.msra.mxu0 0.0
    %3164 = vmatprep.subr.mxu0 0.0
    %3165 = vmatpush1.msra.mxu0 0.0
    %3166 = vmatprep.subr.mxu0 0.0
    %3167 = vmatpush1.msra.mxu0 0.0
    %3168 = vmatprep.subr.mxu0 0.0
    %3169 = vmatpush1.msra.mxu0 0.0
    %3170 = vmatprep.subr.mxu0 0.0
    %3171 = vmatpush1.msra.mxu0 0.0
    %3172 = vmatprep.subr.mxu0 0.0
    %3173 = vmatpush1.msra.mxu0 0.0
    %3174 = vmatprep.subr.mxu0 0.0
    %3175 = vmatpush1.msra.mxu0 0.0
    %3176 = vmatprep.subr.mxu0 0.0
    %3177 = vmatpush1.msra.mxu0 0.0
    %3178 = vmatprep.subr.mxu0 0.0
    %3179 = vmatpush1.msra.mxu0 0.0
    %3180 = vmatprep.subr.mxu0 0.0
    %3181 = vmatpush1.msra.mxu0 0.0
    %3182 = vmatprep.subr.mxu0 0.0
    %3183 = vmatpush1.msra.mxu0 0.0
    %3184 = vmatprep.mubr.f32.mxu0 0.0
    %3185 = vmatmul.mubr.f32.gmra.mrb[0].mxu0 %v3118
    %v3186 = vpop.f32.mrb[0].mxu0
    %v3187 = vadd.f32 0.0, %v3186
    %v3188 = vpop.f32.mrb[0].mxu0
    %3189 = vdwg.mxu0
    %3190 = vrot.lane.b32.xlu0 %v2867, 120
    %v3191 = vpop.permute.xlu0 %3190
    %3192 = vrot.lane.b32.xlu0 %v2946, 120
    %v3193 = vpop.permute.xlu0 %3192
    %v3194 = vsel %vm162, %v3191, 0
    %v3196 = vsel %vm162, %v3193, 0
    %3198 = vmatprep.subr.mxu0 0.0
    %3199 = vmatpush1.xpose.msra.mxu0 %v3196
    %3200 = vmatprep.subr.mxu0 0.0
    %3201 = vmatpush1.xpose.msra.mxu0 0.0
    %3202 = vmatprep.subr.mxu0 0.0
    %3203 = vmatpush1.xpose.msra.mxu0 0.0
    %3204 = vmatprep.subr.mxu0 0.0
    %3205 = vmatpush1.xpose.msra.mxu0 0.0
    %3206 = vmatprep.subr.mxu0 0.0
    %3207 = vmatpush1.xpose.msra.mxu0 0.0
    %3208 = vmatprep.subr.mxu0 0.0
    %3209 = vmatpush1.xpose.msra.mxu0 0.0
    %3210 = vmatprep.subr.mxu0 0.0
    %3211 = vmatpush1.xpose.msra.mxu0 0.0
    %3212 = vmatprep.subr.mxu0 0.0
    %3213 = vmatpush1.xpose.msra.mxu0 0.0
    %3214 = vmatprep.subr.mxu0 0.0
    %3215 = vmatpush1.xpose.msra.mxu0 0.0
    %3216 = vmatprep.subr.mxu0 0.0
    %3217 = vmatpush1.xpose.msra.mxu0 0.0
    %3218 = vmatprep.subr.mxu0 0.0
    %3219 = vmatpush1.xpose.msra.mxu0 0.0
    %3220 = vmatprep.subr.mxu0 0.0
    %3221 = vmatpush1.xpose.msra.mxu0 0.0
    %3222 = vmatprep.subr.mxu0 0.0
    %3223 = vmatpush1.xpose.msra.mxu0 0.0
    %3224 = vmatprep.subr.mxu0 0.0
    %3225 = vmatpush1.xpose.msra.mxu0 0.0
    %3226 = vmatprep.subr.mxu0 0.0
    %3227 = vmatpush1.xpose.msra.mxu0 0.0
    %3228 = vmatprep.subr.mxu0 0.0
    %3229 = vmatpush1.xpose.msra.mxu0 0.0
    %3230 = vmatprep.subr.mxu0 0.0
    %3231 = vmatpush1.xpose.msra.mxu0 0.0
    %3232 = vmatprep.subr.mxu0 0.0
    %3233 = vmatpush1.xpose.msra.mxu0 0.0
    %3234 = vmatprep.subr.mxu0 0.0
    %3235 = vmatpush1.xpose.msra.mxu0 0.0
    %3236 = vmatprep.subr.mxu0 0.0
    %3237 = vmatpush1.xpose.msra.mxu0 0.0
    %3238 = vmatprep.subr.mxu0 0.0
    %3239 = vmatpush1.xpose.msra.mxu0 0.0
    %3240 = vmatprep.subr.mxu0 0.0
    %3241 = vmatpush1.xpose.msra.mxu0 0.0
    %3242 = vmatprep.subr.mxu0 0.0
    %3243 = vmatpush1.xpose.msra.mxu0 0.0
    %3244 = vmatprep.subr.mxu0 0.0
    %3245 = vmatpush1.xpose.msra.mxu0 0.0
    %3246 = vmatprep.subr.mxu0 0.0
    %3247 = vmatpush1.xpose.msra.mxu0 0.0
    %3248 = vmatprep.subr.mxu0 0.0
    %3249 = vmatpush1.xpose.msra.mxu0 0.0
    %3250 = vmatprep.subr.mxu0 0.0
    %3251 = vmatpush1.xpose.msra.mxu0 0.0
    %3252 = vmatprep.subr.mxu0 0.0
    %3253 = vmatpush1.xpose.msra.mxu0 0.0
    %3254 = vmatprep.subr.mxu0 0.0
    %3255 = vmatpush1.xpose.msra.mxu0 0.0
    %3256 = vmatprep.subr.mxu0 0.0
    %3257 = vmatpush1.xpose.msra.mxu0 0.0
    %3258 = vmatprep.subr.mxu0 0.0
    %3259 = vmatpush1.xpose.msra.mxu0 0.0
    %3260 = vmatprep.subr.mxu0 0.0
    %3261 = vmatpush1.xpose.msra.mxu0 0.0
    %3262 = vmatprep.mubr.f32.mxu0 0.0
    %3263 = vmatmul.mubr.f32.gmra.mrb[0].mxu0 %v3194
    %v3264 = vpop.f32.mrb[0].mxu0
    %v3265 = vadd.f32 0.0, %v3264
    %v3266 = vpop.f32.mrb[0].mxu0
    %3267 = vdwg.mxu0
    %v3268 = vmul.f32 %v3265, 0.35355338
    %v3269 = vadd.f32 %v3268, %v176
    %v3270 = vsel %vm162, %v3269, -inf
    %3271 = vmax.xlane.f32.xlu0 %v3270
    %v3272 = vpop.xlane.xlu0 %3271
    %v3273 = vsub.f32 %v3269, %v3272
    %v3274 = vmul.f32 %v3273, 1.442695
    %v3275 = vpow.pop %v3274
    %v3276 = vsel %vm162, %v3275, 0.0
    %3277 = vadd.xlane.f32.xlu0 %v3276
    %v3278 = vpop.xlane.xlu0 %3277
    %v3279 = vrcp.pop %v3278
    %v3280 = vmul.f32 %v3275, %v3279
    %3282 = vrot.lane.b32.xlu0 %v3025, 120
    %v3283 = vpop.permute.xlu0 %3282
    %v3286 = vsel %vm162, %v3280, 0
    %3288 = vmatprep.subr.mxu0 0.0
    %3289 = vmatpush1.msra.mxu0 %v3283
    %3290 = vmatprep.subr.mxu0 0.0
    %3291 = vmatpush1.msra.mxu0 0.0
    %3292 = vmatprep.subr.mxu0 0.0
    %3293 = vmatpush1.msra.mxu0 0.0
    %3294 = vmatprep.subr.mxu0 0.0
    %3295 = vmatpush1.msra.mxu0 0.0
    %3296 = vmatprep.subr.mxu0 0.0
    %3297 = vmatpush1.msra.mxu0 0.0
    %3298 = vmatprep.subr.mxu0 0.0
    %3299 = vmatpush1.msra.mxu0 0.0
    %3300 = vmatprep.subr.mxu0 0.0
    %3301 = vmatpush1.msra.mxu0 0.0
    %3302 = vmatprep.subr.mxu0 0.0
    %3303 = vmatpush1.msra.mxu0 0.0
    %3304 = vmatprep.subr.mxu0 0.0
    %3305 = vmatpush1.msra.mxu0 0.0
    %3306 = vmatprep.subr.mxu0 0.0
    %3307 = vmatpush1.msra.mxu0 0.0
    %3308 = vmatprep.subr.mxu0 0.0
    %3309 = vmatpush1.msra.mxu0 0.0
    %3310 = vmatprep.subr.mxu0 0.0
    %3311 = vmatpush1.msra.mxu0 0.0
    %3312 = vmatprep.subr.mxu0 0.0
    %3313 = vmatpush1.msra.mxu0 0.0
    %3314 = vmatprep.subr.mxu0 0.0
    %3315 = vmatpush1.msra.mxu0 0.0
    %3316 = vmatprep.subr.mxu0 0.0
    %3317 = vmatpush1.msra.mxu0 0.0
    %3318 = vmatprep.subr.mxu0 0.0
    %3319 = vmatpush1.msra.mxu0 0.0
    %3320 = vmatprep.subr.mxu0 0.0
    %3321 = vmatpush1.msra.mxu0 0.0
    %3322 = vmatprep.subr.mxu0 0.0
    %3323 = vmatpush1.msra.mxu0 0.0
    %3324 = vmatprep.subr.mxu0 0.0
    %3325 = vmatpush1.msra.mxu0 0.0
    %3326 = vmatprep.subr.mxu0 0.0
    %3327 = vmatpush1.msra.mxu0 0.0
    %3328 = vmatprep.subr.mxu0 0.0
    %3329 = vmatpush1.msra.mxu0 0.0
    %3330 = vmatprep.subr.mxu0 0.0
    %3331 = vmatpush1.msra.mxu0 0.0
    %3332 = vmatprep.subr.mxu0 0.0
    %3333 = vmatpush1.msra.mxu0 0.0
    %3334 = vmatprep.subr.mxu0 0.0
    %3335 = vmatpush1.msra.mxu0 0.0
    %3336 = vmatprep.subr.mxu0 0.0
    %3337 = vmatpush1.msra.mxu0 0.0
    %3338 = vmatprep.subr.mxu0 0.0
    %3339 = vmatpush1.msra.mxu0 0.0
    %3340 = vmatprep.subr.mxu0 0.0
    %3341 = vmatpush1.msra.mxu0 0.0
    %3342 = vmatprep.subr.mxu0 0.0
    %3343 = vmatpush1.msra.mxu0 0.0
    %3344 = vmatprep.subr.mxu0 0.0
    %3345 = vmatpush1.msra.mxu0 0.0
    %3346 = vmatprep.subr.mxu0 0.0
    %3347 = vmatpush1.msra.mxu0 0.0
    %3348 = vmatprep.subr.mxu0 0.0
    %3349 = vmatpush1.msra.mxu0 0.0
    %3350 = vmatprep.subr.mxu0 0.0
    %3351 = vmatpush1.msra.mxu0 0.0
    %3352 = vmatprep.mubr.f32.mxu0 0.0
    %3353 = vmatmul.mubr.f32.gmra.mrb[0].mxu0 %v3286
    %v3354 = vpop.f32.mrb[0].mxu0
    %v3355 = vadd.f32 0.0, %v3354
    %v3356 = vpop.f32.mrb[0].mxu0
    %3357 = vdwg.mxu0
    %3358 = vrot.lane.b32.xlu0 %v2867, 112
    %v3359 = vpop.permute.xlu0 %3358
    %3360 = vrot.lane.b32.xlu0 %v2946, 112
    %v3361 = vpop.permute.xlu0 %3360
    %v3362 = vsel %vm162, %v3359, 0
    %v3364 = vsel %vm162, %v3361, 0
    %3366 = vmatprep.subr.mxu0 0.0
    %3367 = vmatpush1.xpose.msra.mxu0 %v3364
    %3368 = vmatprep.subr.mxu0 0.0
    %3369 = vmatpush1.xpose.msra.mxu0 0.0
    %3370 = vmatprep.subr.mxu0 0.0
    %3371 = vmatpush1.xpose.msra.mxu0 0.0
    %3372 = vmatprep.subr.mxu0 0.0
    %3373 = vmatpush1.xpose.msra.mxu0 0.0
    %3374 = vmatprep.subr.mxu0 0.0
    %3375 = vmatpush1.xpose.msra.mxu0 0.0
    %3376 = vmatprep.subr.mxu0 0.0
    %3377 = vmatpush1.xpose.msra.mxu0 0.0
    %3378 = vmatprep.subr.mxu0 0.0
    %3379 = vmatpush1.xpose.msra.mxu0 0.0
    %3380 = vmatprep.subr.mxu0 0.0
    %3381 = vmatpush1.xpose.msra.mxu0 0.0
    %3382 = vmatprep.subr.mxu0 0.0
    %3383 = vmatpush1.xpose.msra.mxu0 0.0
    %3384 = vmatprep.subr.mxu0 0.0
    %3385 = vmatpush1.xpose.msra.mxu0 0.0
    %3386 = vmatprep.subr.mxu0 0.0
    %3387 = vmatpush1.xpose.msra.mxu0 0.0
    %3388 = vmatprep.subr.mxu0 0.0
    %3389 = vmatpush1.xpose.msra.mxu0 0.0
    %3390 = vmatprep.subr.mxu0 0.0
    %3391 = vmatpush1.xpose.msra.mxu0 0.0
    %3392 = vmatprep.subr.mxu0 0.0
    %3393 = vmatpush1.xpose.msra.mxu0 0.0
    %3394 = vmatprep.subr.mxu0 0.0
    %3395 = vmatpush1.xpose.msra.mxu0 0.0
    %3396 = vmatprep.subr.mxu0 0.0
    %3397 = vmatpush1.xpose.msra.mxu0 0.0
    %3398 = vmatprep.subr.mxu0 0.0
    %3399 = vmatpush1.xpose.msra.mxu0 0.0
    %3400 = vmatprep.subr.mxu0 0.0
    %3401 = vmatpush1.xpose.msra.mxu0 0.0
    %3402 = vmatprep.subr.mxu0 0.0
    %3403 = vmatpush1.xpose.msra.mxu0 0.0
    %3404 = vmatprep.subr.mxu0 0.0
    %3405 = vmatpush1.xpose.msra.mxu0 0.0
    %3406 = vmatprep.subr.mxu0 0.0
    %3407 = vmatpush1.xpose.msra.mxu0 0.0
    %3408 = vmatprep.subr.mxu0 0.0
    %3409 = vmatpush1.xpose.msra.mxu0 0.0
    %3410 = vmatprep.subr.mxu0 0.0
    %3411 = vmatpush1.xpose.msra.mxu0 0.0
    %3412 = vmatprep.subr.mxu0 0.0
    %3413 = vmatpush1.xpose.msra.mxu0 0.0
    %3414 = vmatprep.subr.mxu0 0.0
    %3415 = vmatpush1.xpose.msra.mxu0 0.0
    %3416 = vmatprep.subr.mxu0 0.0
    %3417 = vmatpush1.xpose.msra.mxu0 0.0
    %3418 = vmatprep.subr.mxu0 0.0
    %3419 = vmatpush1.xpose.msra.mxu0 0.0
    %3420 = vmatprep.subr.mxu0 0.0
    %3421 = vmatpush1.xpose.msra.mxu0 0.0
    %3422 = vmatprep.subr.mxu0 0.0
    %3423 = vmatpush1.xpose.msra.mxu0 0.0
    %3424 = vmatprep.subr.mxu0 0.0
    %3425 = vmatpush1.xpose.msra.mxu0 0.0
    %3426 = vmatprep.subr.mxu0 0.0
    %3427 = vmatpush1.xpose.msra.mxu0 0.0
    %3428 = vmatprep.subr.mxu0 0.0
    %3429 = vmatpush1.xpose.msra.mxu0 0.0
    %3430 = vmatprep.mubr.f32.mxu0 0.0
    %3431 = vmatmul.mubr.f32.gmra.mrb[0].mxu0 %v3362
    %v3432 = vpop.f32.mrb[0].mxu0
    %v3433 = vadd.f32 0.0, %v3432
    %v3434 = vpop.f32.mrb[0].mxu0
    %3435 = vdwg.mxu0
    %v3436 = vmul.f32 %v3433, 0.35355338
    %v3437 = vadd.f32 %v3436, %v176
    %v3438 = vsel %vm162, %v3437, -inf
    %3439 = vmax.xlane.f32.xlu0 %v3438
    %v3440 = vpop.xlane.xlu0 %3439
    %v3441 = vsub.f32 %v3437, %v3440
    %v3442 = vmul.f32 %v3441, 1.442695
    %v3443 = vpow.pop %v3442
    %v3444 = vsel %vm162, %v3443, 0.0
    %3445 = vadd.xlane.f32.xlu0 %v3444
    %v3446 = vpop.xlane.xlu0 %3445
    %v3447 = vrcp.pop %v3446
    %v3448 = vmul.f32 %v3443, %v3447
    %3449 = vrot.lane.b32.xlu0 %v3025, 112
    %v3450 = vpop.permute.xlu0 %3449
    %v3453 = vsel %vm162, %v3448, 0
    %3455 = vmatprep.subr.mxu0 0.0
    %3456 = vmatpush1.msra.mxu0 %v3450
    %3457 = vmatprep.subr.mxu0 0.0
    %3458 = vmatpush1.msra.mxu0 0.0
    %3459 = vmatprep.subr.mxu0 0.0
    %3460 = vmatpush1.msra.mxu0 0.0
    %3461 = vmatprep.subr.mxu0 0.0
    %3462 = vmatpush1.msra.mxu0 0.0
    %3463 = vmatprep.subr.mxu0 0.0
    %3464 = vmatpush1.msra.mxu0 0.0
    %3465 = vmatprep.subr.mxu0 0.0
    %3466 = vmatpush1.msra.mxu0 0.0
    %3467 = vmatprep.subr.mxu0 0.0
    %3468 = vmatpush1.msra.mxu0 0.0
    %3469 = vmatprep.subr.mxu0 0.0
    %3470 = vmatpush1.msra.mxu0 0.0
    %3471 = vmatprep.subr.mxu0 0.0
    %3472 = vmatpush1.msra.mxu0 0.0
    %3473 = vmatprep.subr.mxu0 0.0
    %3474 = vmatpush1.msra.mxu0 0.0
    %3475 = vmatprep.subr.mxu0 0.0
    %3476 = vmatpush1.msra.mxu0 0.0
    %3477 = vmatprep.subr.mxu0 0.0
    %3478 = vmatpush1.msra.mxu0 0.0
    %3479 = vmatprep.subr.mxu0 0.0
    %3480 = vmatpush1.msra.mxu0 0.0
    %3481 = vmatprep.subr.mxu0 0.0
    %3482 = vmatpush1.msra.mxu0 0.0
    %3483 = vmatprep.subr.mxu0 0.0
    %3484 = vmatpush1.msra.mxu0 0.0
    %3485 = vmatprep.subr.mxu0 0.0
    %3486 = vmatpush1.msra.mxu0 0.0
    %3487 = vmatprep.subr.mxu0 0.0
    %3488 = vmatpush1.msra.mxu0 0.0
    %3489 = vmatprep.subr.mxu0 0.0
    %3490 = vmatpush1.msra.mxu0 0.0
    %3491 = vmatprep.subr.mxu0 0.0
    %3492 = vmatpush1.msra.mxu0 0.0
    %3493 = vmatprep.subr.mxu0 0.0
    %3494 = vmatpush1.msra.mxu0 0.0
    %3495 = vmatprep.subr.mxu0 0.0
    %3496 = vmatpush1.msra.mxu0 0.0
    %3497 = vmatprep.subr.mxu0 0.0
    %3498 = vmatpush1.msra.mxu0 0.0
    %3499 = vmatprep.subr.mxu0 0.0
    %3500 = vmatpush1.msra.mxu0 0.0
    %3501 = vmatprep.subr.mxu0 0.0
    %3502 = vmatpush1.msra.mxu0 0.0
    %3503 = vmatprep.subr.mxu0 0.0
    %3504 = vmatpush1.msra.mxu0 0.0
    %3505 = vmatprep.subr.mxu0 0.0
    %3506 = vmatpush1.msra.mxu0 0.0
    %3507 = vmatprep.subr.mxu0 0.0
    %3508 = vmatpush1.msra.mxu0 0.0
    %3509 = vmatprep.subr.mxu0 0.0
    %3510 = vmatpush1.msra.mxu0 0.0
    %3511 = vmatprep.subr.mxu0 0.0
    %3512 = vmatpush1.msra.mxu0 0.0
    %3513 = vmatprep.subr.mxu0 0.0
    %3514 = vmatpush1.msra.mxu0 0.0
    %3515 = vmatprep.subr.mxu0 0.0
    %3516 = vmatpush1.msra.mxu0 0.0
    %3517 = vmatprep.subr.mxu0 0.0
    %3518 = vmatpush1.msra.mxu0 0.0
    %3519 = vmatprep.mubr.f32.mxu0 0.0
    %3520 = vmatmul.mubr.f32.gmra.mrb[0].mxu0 %v3453
    %v3521 = vpop.f32.mrb[0].mxu0
    %v3522 = vadd.f32 0.0, %v3521
    %v3523 = vpop.f32.mrb[0].mxu0
    %3524 = vdwg.mxu0
    %3525 = vrot.lane.b32.xlu0 %v2867, 104
    %v3526 = vpop.permute.xlu0 %3525
    %3527 = vrot.lane.b32.xlu0 %v2946, 104
    %v3528 = vpop.permute.xlu0 %3527
    %v3529 = vsel %vm162, %v3526, 0
    %v3531 = vsel %vm162, %v3528, 0
    %3533 = vmatprep.subr.mxu0 0.0
    %3534 = vmatpush1.xpose.msra.mxu0 %v3531
    %3535 = vmatprep.subr.mxu0 0.0
    %3536 = vmatpush1.xpose.msra.mxu0 0.0
    %3537 = vmatprep.subr.mxu0 0.0
    %3538 = vmatpush1.xpose.msra.mxu0 0.0
    %3539 = vmatprep.subr.mxu0 0.0
    %3540 = vmatpush1.xpose.msra.mxu0 0.0
    %3541 = vmatprep.subr.mxu0 0.0
    %3542 = vmatpush1.xpose.msra.mxu0 0.0
    %3543 = vmatprep.subr.mxu0 0.0
    %3544 = vmatpush1.xpose.msra.mxu0 0.0
    %3545 = vmatprep.subr.mxu0 0.0
    %3546 = vmatpush1.xpose.msra.mxu0 0.0
    %3547 = vmatprep.subr.mxu0 0.0
    %3548 = vmatpush1.xpose.msra.mxu0 0.0
    %3549 = vmatprep.subr.mxu0 0.0
    %3550 = vmatpush1.xpose.msra.mxu0 0.0
    %3551 = vmatprep.subr.mxu0 0.0
    %3552 = vmatpush1.xpose.msra.mxu0 0.0
    %3553 = vmatprep.subr.mxu0 0.0
    %3554 = vmatpush1.xpose.msra.mxu0 0.0
    %3555 = vmatprep.subr.mxu0 0.0
    %3556 = vmatpush1.xpose.msra.mxu0 0.0
    %3557 = vmatprep.subr.mxu0 0.0
    %3558 = vmatpush1.xpose.msra.mxu0 0.0
    %3559 = vmatprep.subr.mxu0 0.0
    %3560 = vmatpush1.xpose.msra.mxu0 0.0
    %3561 = vmatprep.subr.mxu0 0.0
    %3562 = vmatpush1.xpose.msra.mxu0 0.0
    %3563 = vmatprep.subr.mxu0 0.0
    %3564 = vmatpush1.xpose.msra.mxu0 0.0
    %3565 = vmatprep.subr.mxu0 0.0
    %3566 = vmatpush1.xpose.msra.mxu0 0.0
    %3567 = vmatprep.subr.mxu0 0.0
    %3568 = vmatpush1.xpose.msra.mxu0 0.0
    %3569 = vmatprep.subr.mxu0 0.0
    %3570 = vmatpush1.xpose.msra.mxu0 0.0
    %3571 = vmatprep.subr.mxu0 0.0
    %3572 = vmatpush1.xpose.msra.mxu0 0.0
    %3573 = vmatprep.subr.mxu0 0.0
    %3574 = vmatpush1.xpose.msra.mxu0 0.0
    %3575 = vmatprep.subr.mxu0 0.0
    %3576 = vmatpush1.xpose.msra.mxu0 0.0
    %3577 = vmatprep.subr.mxu0 0.0
    %3578 = vmatpush1.xpose.msra.mxu0 0.0
    %3579 = vmatprep.subr.mxu0 0.0
    %3580 = vmatpush1.xpose.msra.mxu0 0.0
    %3581 = vmatprep.subr.mxu0 0.0
    %3582 = vmatpush1.xpose.msra.mxu0 0.0
    %3583 = vmatprep.subr.mxu0 0.0
    %3584 = vmatpush1.xpose.msra.mxu0 0.0
    %3585 = vmatprep.subr.mxu0 0.0
    %3586 = vmatpush1.xpose.msra.mxu0 0.0
    %3587 = vmatprep.subr.mxu0 0.0
    %3588 = vmatpush1.xpose.msra.mxu0 0.0
    %3589 = vmatprep.subr.mxu0 0.0
    %3590 = vmatpush1.xpose.msra.mxu0 0.0
    %3591 = vmatprep.subr.mxu0 0.0
    %3592 = vmatpush1.xpose.msra.mxu0 0.0
    %3593 = vmatprep.subr.mxu0 0.0
    %3594 = vmatpush1.xpose.msra.mxu0 0.0
    %3595 = vmatprep.subr.mxu0 0.0
    %3596 = vmatpush1.xpose.msra.mxu0 0.0
    %3597 = vmatprep.mubr.f32.mxu0 0.0
    %3598 = vmatmul.mubr.f32.gmra.mrb[0].mxu0 %v3529
    %v3599 = vpop.f32.mrb[0].mxu0
    %v3600 = vadd.f32 0.0, %v3599
    %v3601 = vpop.f32.mrb[0].mxu0
    %3602 = vdwg.mxu0
    %v3603 = vmul.f32 %v3600, 0.35355338
    %v3604 = vadd.f32 %v3603, %v176
    %v3605 = vsel %vm162, %v3604, -inf
    %3606 = vmax.xlane.f32.xlu0 %v3605
    %v3607 = vpop.xlane.xlu0 %3606
    %v3608 = vsub.f32 %v3604, %v3607
    %v3609 = vmul.f32 %v3608, 1.442695
    %v3610 = vpow.pop %v3609
    %v3611 = vsel %vm162, %v3610, 0.0
    %3612 = vadd.xlane.f32.xlu0 %v3611
    %v3613 = vpop.xlane.xlu0 %3612
    %v3614 = vrcp.pop %v3613
    %v3615 = vmul.f32 %v3610, %v3614
    %3616 = vrot.lane.b32.xlu0 %v3025, 104
    %v3617 = vpop.permute.xlu0 %3616
    %v3620 = vsel %vm162, %v3615, 0
    %3622 = vmatprep.subr.mxu0 0.0
    %3623 = vmatpush1.msra.mxu0 %v3617
    %3624 = vmatprep.subr.mxu0 0.0
    %3625 = vmatpush1.msra.mxu0 0.0
    %3626 = vmatprep.subr.mxu0 0.0
    %3627 = vmatpush1.msra.mxu0 0.0
    %3628 = vmatprep.subr.mxu0 0.0
    %3629 = vmatpush1.msra.mxu0 0.0
    %3630 = vmatprep.subr.mxu0 0.0
    %3631 = vmatpush1.msra.mxu0 0.0
    %3632 = vmatprep.subr.mxu0 0.0
    %3633 = vmatpush1.msra.mxu0 0.0
    %3634 = vmatprep.subr.mxu0 0.0
    %3635 = vmatpush1.msra.mxu0 0.0
    %3636 = vmatprep.subr.mxu0 0.0
    %3637 = vmatpush1.msra.mxu0 0.0
    %3638 = vmatprep.subr.mxu0 0.0
    %3639 = vmatpush1.msra.mxu0 0.0
    %3640 = vmatprep.subr.mxu0 0.0
    %3641 = vmatpush1.msra.mxu0 0.0
    %3642 = vmatprep.subr.mxu0 0.0
    %3643 = vmatpush1.msra.mxu0 0.0
    %3644 = vmatprep.subr.mxu0 0.0
    %3645 = vmatpush1.msra.mxu0 0.0
    %3646 = vmatprep.subr.mxu0 0.0
    %3647 = vmatpush1.msra.mxu0 0.0
    %3648 = vmatprep.subr.mxu0 0.0
    %3649 = vmatpush1.msra.mxu0 0.0
    %3650 = vmatprep.subr.mxu0 0.0
    %3651 = vmatpush1.msra.mxu0 0.0
    %3652 = vmatprep.subr.mxu0 0.0
    %3653 = vmatpush1.msra.mxu0 0.0
    %3654 = vmatprep.subr.mxu0 0.0
    %3655 = vmatpush1.msra.mxu0 0.0
    %3656 = vmatprep.subr.mxu0 0.0
    %3657 = vmatpush1.msra.mxu0 0.0
    %3658 = vmatprep.subr.mxu0 0.0
    %3659 = vmatpush1.msra.mxu0 0.0
    %3660 = vmatprep.subr.mxu0 0.0
    %3661 = vmatpush1.msra.mxu0 0.0
    %3662 = vmatprep.subr.mxu0 0.0
    %3663 = vmatpush1.msra.mxu0 0.0
    %3664 = vmatprep.subr.mxu0 0.0
    %3665 = vmatpush1.msra.mxu0 0.0
    %3666 = vmatprep.subr.mxu0 0.0
    %3667 = vmatpush1.msra.mxu0 0.0
    %3668 = vmatprep.subr.mxu0 0.0
    %3669 = vmatpush1.msra.mxu0 0.0
    %3670 = vmatprep.subr.mxu0 0.0
    %3671 = vmatpush1.msra.mxu0 0.0
    %3672 = vmatprep.subr.mxu0 0.0
    %3673 = vmatpush1.msra.mxu0 0.0
    %3674 = vmatprep.subr.mxu0 0.0
    %3675 = vmatpush1.msra.mxu0 0.0
    %3676 = vmatprep.subr.mxu0 0.0
    %3677 = vmatpush1.msra.mxu0 0.0
    %3678 = vmatprep.subr.mxu0 0.0
    %3679 = vmatpush1.msra.mxu0 0.0
    %3680 = vmatprep.subr.mxu0 0.0
    %3681 = vmatpush1.msra.mxu0 0.0
    %3682 = vmatprep.subr.mxu0 0.0
    %3683 = vmatpush1.msra.mxu0 0.0
    %3684 = vmatprep.subr.mxu0 0.0
    %3685 = vmatpush1.msra.mxu0 0.0
    %3686 = vmatprep.mubr.f32.mxu0 0.0
    %3687 = vmatmul.mubr.f32.gmra.mrb[0].mxu0 %v3620
    %v3688 = vpop.f32.mrb[0].mxu0
    %v3689 = vadd.f32 0.0, %v3688
    %v3690 = vpop.f32.mrb[0].mxu0
    %3691 = vdwg.mxu0
    %3693 = vrot.lane.b32.xlu0 %v3355, 8
    %v3694 = vpop.permute.xlu0 %3693
    %3697 = vrot.lane.b32.xlu0 %v3522, 16
    %v3698 = vpop.permute.xlu0 %3697
    %3701 = vrot.lane.b32.xlu0 %v3689, 24
    %v3702 = vpop.permute.xlu0 %3701
    %v3704 = vsel %vm162, %v3187, %v3694
    %v3705 = vsel %vm1096, %v3704, %v3698
    %v3706 = vsel %vm1098, %v3705, %v3702
    %s3707 = scalar_lea.vmem %s3, 32
    %v3708 = vld [vmem:[%s3707] sm:$0xff]
    %v3709 = vld [vmem:[%s3707 + $0x8] sm:$0xff]
    %v3710 = vld [vmem:[%s3707 + $0x10] sm:$0xff]
    %v3711 = vld [vmem:[%s3707 + $0x18] sm:$0xff]
    %v3712 = vlaneseq
    %v3713 = vshrl.u32 %v3712, 7
    %v3714 = vsub.s32 3, %v3713
    %v3715 = vrot.slane %v2786, %v3714
    %v3717 = vsel %vm38, %v3706, 0
    %3719 = vmatprep.subr.mxu0 0.0
    %3720 = vmatpush1.msra.mxu0 %v3708
    %3721 = vmatprep.subr.mxu0 0.0
    %3722 = vmatpush1.msra.mxu0 %v3709
    %3723 = vmatprep.subr.mxu0 0.0
    %3724 = vmatpush1.msra.mxu0 %v3710
    %3725 = vmatprep.subr.mxu0 0.0
    %3726 = vmatpush1.msra.mxu0 %v3711
    %3727 = vmatprep.subr.mxu0 0.0
    %3728 = vmatpush1.msra.mxu0 0.0
    %3729 = vmatprep.subr.mxu0 0.0
    %3730 = vmatpush1.msra.mxu0 0.0
    %3731 = vmatprep.subr.mxu0 0.0
    %3732 = vmatpush1.msra.mxu0 0.0
    %3733 = vmatprep.subr.mxu0 0.0
    %3734 = vmatpush1.msra.mxu0 0.0
    %3735 = vmatprep.subr.mxu0 0.0
    %3736 = vmatpush1.msra.mxu0 0.0
    %3737 = vmatprep.subr.mxu0 0.0
    %3738 = vmatpush1.msra.mxu0 0.0
    %3739 = vmatprep.subr.mxu0 0.0
    %3740 = vmatpush1.msra.mxu0 0.0
    %3741 = vmatprep.subr.mxu0 0.0
    %3742 = vmatpush1.msra.mxu0 0.0
    %3743 = vmatprep.subr.mxu0 0.0
    %3744 = vmatpush1.msra.mxu0 0.0
    %3745 = vmatprep.subr.mxu0 0.0
    %3746 = vmatpush1.msra.mxu0 0.0
    %3747 = vmatprep.subr.mxu0 0.0
    %3748 = vmatpush1.msra.mxu0 0.0
    %3749 = vmatprep.subr.mxu0 0.0
    %3750 = vmatpush1.msra.mxu0 0.0
    %3751 = vmatprep.subr.mxu0 0.0
    %3752 = vmatpush1.msra.mxu0 0.0
    %3753 = vmatprep.subr.mxu0 0.0
    %3754 = vmatpush1.msra.mxu0 0.0
    %3755 = vmatprep.subr.mxu0 0.0
    %3756 = vmatpush1.msra.mxu0 0.0
    %3757 = vmatprep.subr.mxu0 0.0
    %3758 = vmatpush1.msra.mxu0 0.0
    %3759 = vmatprep.subr.mxu0 0.0
    %3760 = vmatpush1.msra.mxu0 0.0
    %3761 = vmatprep.subr.mxu0 0.0
    %3762 = vmatpush1.msra.mxu0 0.0
    %3763 = vmatprep.subr.mxu0 0.0
    %3764 = vmatpush1.msra.mxu0 0.0
    %3765 = vmatprep.subr.mxu0 0.0
    %3766 = vmatpush1.msra.mxu0 0.0
    %3767 = vmatprep.subr.mxu0 0.0
    %3768 = vmatpush1.msra.mxu0 0.0
    %3769 = vmatprep.subr.mxu0 0.0
    %3770 = vmatpush1.msra.mxu0 0.0
    %3771 = vmatprep.subr.mxu0 0.0
    %3772 = vmatpush1.msra.mxu0 0.0
    %3773 = vmatprep.subr.mxu0 0.0
    %3774 = vmatpush1.msra.mxu0 0.0
    %3775 = vmatprep.subr.mxu0 0.0
    %3776 = vmatpush1.msra.mxu0 0.0
    %3777 = vmatprep.subr.mxu0 0.0
    %3778 = vmatpush1.msra.mxu0 0.0
    %3779 = vmatprep.subr.mxu0 0.0
    %3780 = vmatpush1.msra.mxu0 0.0
    %3781 = vmatprep.subr.mxu0 0.0
    %3782 = vmatpush1.msra.mxu0 0.0
    %3783 = vmatprep.mubr.f32.mxu0 0.0
    %3784 = vmatmul.mubr.f32.gmra.mrb[0].mxu0 %v3717
    %v3785 = vpop.f32.mrb[0].mxu0
    %v3786 = vadd.f32 %v3715, %v3785
    %v3787 = vpop.f32.mrb[0].mxu0
    %3788 = vdwg.mxu0
    %v3789 = vadd.f32 %v2784, %v3786
    %v3790 = vsel %vm38, %v3789, 0.0
    %3791 = vadd.xlane.f32.xlu0 %v3790
    %v3792 = vpop.xlane.xlu0 %3791
    %v3793 = vmul.f32 %v3792, %v1185
    %v3794 = vsub.f32 %v3789, %v3793
    %v3795 = vmul.f32 %v3794, %v3794
    %v3796 = vsel %vm38, %v3795, 0.0
    %3797 = vadd.xlane.f32.xlu0 %v3796
    %v3798 = vpop.xlane.xlu0 %3797
    %v3799 = vmul.f32 %v3798, %v1185
    %v3800 = vadd.f32 %v3799, 1e-05
    %v3801 = vrsqrt.pop %v3800
    %v3802 = vmul.f32 %v3794, %v3801
    %v3803 = vlaneseq
    %v3804 = vshrl.u32 %v3803, 7
    %v3805 = vsub.s32 5, %v3804
    %v3806 = vrot.slane %v2786, %v3805
    %v3807 = vmul.f32 %v3802, %v3806
    %v3808 = vlaneseq
    %v3809 = vshrl.u32 %v3808, 7
    %v3810 = vsub.s32 6, %v3809
    %v3811 = vrot.slane %v2786, %v3810
    %v3812 = vadd.f32 %v3807, %v3811
    %s3813 = scalar_lea.vmem %s4, 512
    %v3814 = vld [vmem:[%s3813] sm:$0xff]
    %v3815 = vld [vmem:[%s3813 + $0x8] sm:$0xff]
    %v3816 = vld [vmem:[%s3813 + $0x10] sm:$0xff]
    %v3817 = vld [vmem:[%s3813 + $0x18] sm:$0xff]
    %v3818 = vld [vmem:[%s3813 + $0x20] sm:$0xff]
    %v3819 = vld [vmem:[%s3813 + $0x28] sm:$0xff]
    %v3820 = vld [vmem:[%s3813 + $0x30] sm:$0xff]
    %v3821 = vld [vmem:[%s3813 + $0x38] sm:$0xff]
    %v3822 = vld [vmem:[%s3813 + $0x40] sm:$0xff]
    %v3823 = vld [vmem:[%s3813 + $0x48] sm:$0xff]
    %v3824 = vld [vmem:[%s3813 + $0x50] sm:$0xff]
    %v3825 = vld [vmem:[%s3813 + $0x58] sm:$0xff]
    %v3826 = vld [vmem:[%s3813 + $0x60] sm:$0xff]
    %v3827 = vld [vmem:[%s3813 + $0x68] sm:$0xff]
    %v3828 = vld [vmem:[%s3813 + $0x70] sm:$0xff]
    %v3829 = vld [vmem:[%s3813 + $0x78] sm:$0xff]
    %v3830 = vld [vmem:[%s3813 + $0x80] sm:$0xff]
    %v3831 = vld [vmem:[%s3813 + $0x88] sm:$0xff]
    %v3832 = vld [vmem:[%s3813 + $0x90] sm:$0xff]
    %v3833 = vld [vmem:[%s3813 + $0x98] sm:$0xff]
    %v3834 = vld [vmem:[%s3813 + $0xa0] sm:$0xff]
    %v3835 = vld [vmem:[%s3813 + $0xa8] sm:$0xff]
    %v3836 = vld [vmem:[%s3813 + $0xb0] sm:$0xff]
    %v3837 = vld [vmem:[%s3813 + $0xb8] sm:$0xff]
    %v3838 = vld [vmem:[%s3813 + $0xc0] sm:$0xff]
    %v3839 = vld [vmem:[%s3813 + $0xc8] sm:$0xff]
    %v3840 = vld [vmem:[%s3813 + $0xd0] sm:$0xff]
    %v3841 = vld [vmem:[%s3813 + $0xd8] sm:$0xff]
    %v3842 = vld [vmem:[%s3813 + $0xe0] sm:$0xff]
    %v3843 = vld [vmem:[%s3813 + $0xe8] sm:$0xff]
    %v3844 = vld [vmem:[%s3813 + $0xf0] sm:$0xff]
    %v3845 = vld [vmem:[%s3813 + $0xf8] sm:$0xff]
    %v3846 = vld [vmem:[%s3813 + $0x100] sm:$0xff]
    %v3847 = vld [vmem:[%s3813 + $0x108] sm:$0xff]
    %v3848 = vld [vmem:[%s3813 + $0x110] sm:$0xff]
    %v3849 = vld [vmem:[%s3813 + $0x118] sm:$0xff]
    %v3850 = vld [vmem:[%s3813 + $0x120] sm:$0xff]
    %v3851 = vld [vmem:[%s3813 + $0x128] sm:$0xff]
    %v3852 = vld [vmem:[%s3813 + $0x130] sm:$0xff]
    %v3853 = vld [vmem:[%s3813 + $0x138] sm:$0xff]
    %v3854 = vld [vmem:[%s3813 + $0x140] sm:$0xff]
    %v3855 = vld [vmem:[%s3813 + $0x148] sm:$0xff]
    %v3856 = vld [vmem:[%s3813 + $0x150] sm:$0xff]
    %v3857 = vld [vmem:[%s3813 + $0x158] sm:$0xff]
    %v3858 = vld [vmem:[%s3813 + $0x160] sm:$0xff]
    %v3859 = vld [vmem:[%s3813 + $0x168] sm:$0xff]
    %v3860 = vld [vmem:[%s3813 + $0x170] sm:$0xff]
    %v3861 = vld [vmem:[%s3813 + $0x178] sm:$0xff]
    %v3862 = vld [vmem:[%s3813 + $0x180] sm:$0xff]
    %v3863 = vld [vmem:[%s3813 + $0x188] sm:$0xff]
    %v3864 = vld [vmem:[%s3813 + $0x190] sm:$0xff]
    %v3865 = vld [vmem:[%s3813 + $0x198] sm:$0xff]
    %v3866 = vld [vmem:[%s3813 + $0x1a0] sm:$0xff]
    %v3867 = vld [vmem:[%s3813 + $0x1a8] sm:$0xff]
    %v3868 = vld [vmem:[%s3813 + $0x1b0] sm:$0xff]
    %v3869 = vld [vmem:[%s3813 + $0x1b8] sm:$0xff]
    %v3870 = vld [vmem:[%s3813 + $0x1c0] sm:$0xff]
    %v3871 = vld [vmem:[%s3813 + $0x1c8] sm:$0xff]
    %v3872 = vld [vmem:[%s3813 + $0x1d0] sm:$0xff]
    %v3873 = vld [vmem:[%s3813 + $0x1d8] sm:$0xff]
    %v3874 = vld [vmem:[%s3813 + $0x1e0] sm:$0xff]
    %v3875 = vld [vmem:[%s3813 + $0x1e8] sm:$0xff]
    %v3876 = vld [vmem:[%s3813 + $0x1f0] sm:$0xff]
    %v3877 = vld [vmem:[%s3813 + $0x1f8] sm:$0xff]
    %s3878 = scalar_lea.vmem %s6, 16
    %v3879 = vld [vmem:[%s3878] sm:$0xff]
    %v3880 = vld [vmem:[%s3878 + $0x8] sm:$0xff]
    %v3883 = vlaneseq
    %v3884 = vshrl.u32 %v3883, 7
    %v3885 = vsub.s32 0, %v3884
    %v3886 = vrot.slane %v3879, %v3885
    %v3887 = vlaneseq
    %v3888 = vshrl.u32 %v3887, 7
    %v3889 = vsub.s32 1, %v3888
    %v3890 = vrot.slane %v3879, %v3889
    %v3891 = vlaneseq
    %v3892 = vshrl.u32 %v3891, 7
    %v3893 = vsub.s32 2, %v3892
    %v3894 = vrot.slane %v3879, %v3893
    %v3895 = vlaneseq
    %v3896 = vshrl.u32 %v3895, 7
    %v3897 = vsub.s32 3, %v3896
    %v3898 = vrot.slane %v3879, %v3897
    %v3899 = vlaneseq
    %v3900 = vshrl.u32 %v3899, 7
    %v3901 = vsub.s32 4, %v3900
    %v3902 = vrot.slane %v3879, %v3901
    %v3903 = vlaneseq
    %v3904 = vshrl.u32 %v3903, 7
    %v3905 = vsub.s32 5, %v3904
    %v3906 = vrot.slane %v3879, %v3905
    %v3907 = vlaneseq
    %v3908 = vshrl.u32 %v3907, 7
    %v3909 = vsub.s32 6, %v3908
    %v3910 = vrot.slane %v3879, %v3909
    %v3911 = vlaneseq
    %v3912 = vshrl.u32 %v3911, 7
    %v3913 = vsub.s32 7, %v3912
    %v3914 = vrot.slane %v3879, %v3913
    %v3915 = vlaneseq
    %v3916 = vshrl.u32 %v3915, 7
    %v3917 = vsub.s32 0, %v3916
    %v3918 = vrot.slane %v3880, %v3917
    %v3919 = vlaneseq
    %v3920 = vshrl.u32 %v3919, 7
    %v3921 = vsub.s32 1, %v3920
    %v3922 = vrot.slane %v3880, %v3921
    %v3923 = vlaneseq
    %v3924 = vshrl.u32 %v3923, 7
    %v3925 = vsub.s32 2, %v3924
    %v3926 = vrot.slane %v3880, %v3925
    %v3927 = vlaneseq
    %v3928 = vshrl.u32 %v3927, 7
    %v3929 = vsub.s32 3, %v3928
    %v3930 = vrot.slane %v3880, %v3929
    %v3931 = vlaneseq
    %v3932 = vshrl.u32 %v3931, 7
    %v3933 = vsub.s32 4, %v3932
    %v3934 = vrot.slane %v3880, %v3933
    %v3935 = vlaneseq
    %v3936 = vshrl.u32 %v3935, 7
    %v3937 = vsub.s32 5, %v3936
    %v3938 = vrot.slane %v3880, %v3937
    %v3939 = vlaneseq
    %v3940 = vshrl.u32 %v3939, 7
    %v3941 = vsub.s32 6, %v3940
    %v3942 = vrot.slane %v3880, %v3941
    %v3943 = vlaneseq
    %v3944 = vshrl.u32 %v3943, 7
    %v3945 = vsub.s32 7, %v3944
    %v3946 = vrot.slane %v3880, %v3945
    %v3964 = vsel %vm38, %v3812, 0
    %3966 = vmatprep.subr.mxu0 %v3815
    %3967 = vmatpush1.msra.mxu0 %v3814
    %3968 = vmatprep.subr.mxu0 %v3831
    %3969 = vmatpush1.msra.mxu0 %v3830
    %3970 = vmatprep.subr.mxu0 %v3847
    %3971 = vmatpush1.msra.mxu0 %v3846
    %3972 = vmatprep.subr.mxu0 %v3863
    %3973 = vmatpush1.msra.mxu0 %v3862
    %3974 = vmatprep.subr.mxu0 0.0
    %3975 = vmatpush1.msra.mxu0 0.0
    %3976 = vmatprep.subr.mxu0 0.0
    %3977 = vmatpush1.msra.mxu0 0.0
    %3978 = vmatprep.subr.mxu0 0.0
    %3979 = vmatpush1.msra.mxu0 0.0
    %3980 = vmatprep.subr.mxu0 0.0
    %3981 = vmatpush1.msra.mxu0 0.0
    %3982 = vmatprep.subr.mxu0 0.0
    %3983 = vmatpush1.msra.mxu0 0.0
    %3984 = vmatprep.subr.mxu0 0.0
    %3985 = vmatpush1.msra.mxu0 0.0
    %3986 = vmatprep.subr.mxu0 0.0
    %3987 = vmatpush1.msra.mxu0 0.0
    %3988 = vmatprep.subr.mxu0 0.0
    %3989 = vmatpush1.msra.mxu0 0.0
    %3990 = vmatprep.subr.mxu0 0.0
    %3991 = vmatpush1.msra.mxu0 0.0
    %3992 = vmatprep.subr.mxu0 0.0
    %3993 = vmatpush1.msra.mxu0 0.0
    %3994 = vmatprep.subr.mxu0 0.0
    %3995 = vmatpush1.msra.mxu0 0.0
    %3996 = vmatprep.subr.mxu0 0.0
    %3997 = vmatpush1.msra.mxu0 0.0
    %3998 = vmatprep.subr.mxu0 0.0
    %3999 = vmatpush1.msra.mxu0 0.0
    %4000 = vmatprep.subr.mxu0 0.0
    %4001 = vmatpush1.msra.mxu0 0.0
    %4002 = vmatprep.subr.mxu0 0.0
    %4003 = vmatpush1.msra.mxu0 0.0
    %4004 = vmatprep.subr.mxu0 0.0
    %4005 = vmatpush1.msra.mxu0 0.0
    %4006 = vmatprep.subr.mxu0 0.0
    %4007 = vmatpush1.msra.mxu0 0.0
    %4008 = vmatprep.subr.mxu0 0.0
    %4009 = vmatpush1.msra.mxu0 0.0
    %4010 = vmatprep.subr.mxu0 0.0
    %4011 = vmatpush1.msra.mxu0 0.0
    %4012 = vmatprep.subr.mxu0 0.0
    %4013 = vmatpush1.msra.mxu0 0.0
    %4014 = vmatprep.subr.mxu0 0.0
    %4015 = vmatpush1.msra.mxu0 0.0
    %4016 = vmatprep.subr.mxu0 0.0
    %4017 = vmatpush1.msra.mxu0 0.0
    %4018 = vmatprep.subr.mxu0 0.0
    %4019 = vmatpush1.msra.mxu0 0.0
    %4020 = vmatprep.subr.mxu0 0.0
    %4021 = vmatpush1.msra.mxu0 0.0
    %4022 = vmatprep.subr.mxu0 0.0
    %4023 = vmatpush1.msra.mxu0 0.0
    %4024 = vmatprep.subr.mxu0 0.0
    %4025 = vmatpush1.msra.mxu0 0.0
    %4026 = vmatprep.subr.mxu0 0.0
    %4027 = vmatpush1.msra.mxu0 0.0
    %4028 = vmatprep.subr.mxu0 0.0
    %4029 = vmatpush1.msra.mxu0 0.0
    %4030 = vmatprep.mubr.f32.mxu0 0.0
    %4031 = vmatmul.mubr.f32.gmra.mrb[0].mxu0 %v3964
    %v4032 = vpop.f32.mrb[0].mxu0
    %v4033 = vadd.f32 %v3886, %v4032
    %v4034 = vpop.f32.mrb[0].mxu0
    %v4035 = vadd.f32 %v3890, %v4034
    %4036 = vdwg.mxu0
    %4037 = vmatprep.subr.mxu0 %v3817
    %4038 = vmatpush1.msra.mxu0 %v3816
    %4039 = vmatprep.subr.mxu0 %v3833
    %4040 = vmatpush1.msra.mxu0 %v3832
    %4041 = vmatprep.subr.mxu0 %v3849
    %4042 = vmatpush1.msra.mxu0 %v3848
    %4043 = vmatprep.subr.mxu0 %v3865
    %4044 = vmatpush1.msra.mxu0 %v3864
    %4045 = vmatprep.subr.mxu0 0.0
    %4046 = vmatpush1.msra.mxu0 0.0
    %4047 = vmatprep.subr.mxu0 0.0
    %4048 = vmatpush1.msra.mxu0 0.0
    %4049 = vmatprep.subr.mxu0 0.0
    %4050 = vmatpush1.msra.mxu0 0.0
    %4051 = vmatprep.subr.mxu0 0.0
    %4052 = vmatpush1.msra.mxu0 0.0
    %4053 = vmatprep.subr.mxu0 0.0
    %4054 = vmatpush1.msra.mxu0 0.0
    %4055 = vmatprep.subr.mxu0 0.0
    %4056 = vmatpush1.msra.mxu0 0.0
    %4057 = vmatprep.subr.mxu0 0.0
    %4058 = vmatpush1.msra.mxu0 0.0
    %4059 = vmatprep.subr.mxu0 0.0
    %4060 = vmatpush1.msra.mxu0 0.0
    %4061 = vmatprep.subr.mxu0 0.0
    %4062 = vmatpush1.msra.mxu0 0.0
    %4063 = vmatprep.subr.mxu0 0.0
    %4064 = vmatpush1.msra.mxu0 0.0
    %4065 = vmatprep.subr.mxu0 0.0
    %4066 = vmatpush1.msra.mxu0 0.0
    %4067 = vmatprep.subr.mxu0 0.0
    %4068 = vmatpush1.msra.mxu0 0.0
    %4069 = vmatprep.subr.mxu0 0.0
    %4070 = vmatpush1.msra.mxu0 0.0
    %4071 = vmatprep.subr.mxu0 0.0
    %4072 = vmatpush1.msra.mxu0 0.0
    %4073 = vmatprep.subr.mxu0 0.0
    %4074 = vmatpush1.msra.mxu0 0.0
    %4075 = vmatprep.subr.mxu0 0.0
    %4076 = vmatpush1.msra.mxu0 0.0
    %4077 = vmatprep.subr.mxu0 0.0
    %4078 = vmatpush1.msra.mxu0 0.0
    %4079 = vmatprep.subr.mxu0 0.0
    %4080 = vmatpush1.msra.mxu0 0.0
    %4081 = vmatprep.subr.mxu0 0.0
    %4082 = vmatpush1.msra.mxu0 0.0
    %4083 = vmatprep.subr.mxu0 0.0
    %4084 = vmatpush1.msra.mxu0 0.0
    %4085 = vmatprep.subr.mxu0 0.0
    %4086 = vmatpush1.msra.mxu0 0.0
    %4087 = vmatprep.subr.mxu0 0.0
    %4088 = vmatpush1.msra.mxu0 0.0
    %4089 = vmatprep.subr.mxu0 0.0
    %4090 = vmatpush1.msra.mxu0 0.0
    %4091 = vmatprep.subr.mxu0 0.0
    %4092 = vmatpush1.msra.mxu0 0.0
    %4093 = vmatprep.subr.mxu0 0.0
    %4094 = vmatpush1.msra.mxu0 0.0
    %4095 = vmatprep.subr.mxu0 0.0
    %4096 = vmatpush1.msra.mxu0 0.0
    %4097 = vmatprep.subr.mxu0 0.0
    %4098 = vmatpush1.msra.mxu0 0.0
    %4099 = vmatprep.subr.mxu0 0.0
    %4100 = vmatpush1.msra.mxu0 0.0
    %4101 = vmatprep.mubr.f32.mxu0 0.0
    %4102 = vmatmul.mubr.f32.gmra.mrb[0].mxu0 %v3964
    %v4103 = vpop.f32.mrb[0].mxu0
    %v4104 = vadd.f32 %v3894, %v4103
    %v4105 = vpop.f32.mrb[0].mxu0
    %v4106 = vadd.f32 %v3898, %v4105
    %4107 = vdwg.mxu0
    %4108 = vmatprep.subr.mxu0 %v3819
    %4109 = vmatpush1.msra.mxu0 %v3818
    %4110 = vmatprep.subr.mxu0 %v3835
    %4111 = vmatpush1.msra.mxu0 %v3834
    %4112 = vmatprep.subr.mxu0 %v3851
    %4113 = vmatpush1.msra.mxu0 %v3850
    %4114 = vmatprep.subr.mxu0 %v3867
    %4115 = vmatpush1.msra.mxu0 %v3866
    %4116 = vmatprep.subr.mxu0 0.0
    %4117 = vmatpush1.msra.mxu0 0.0
    %4118 = vmatprep.subr.mxu0 0.0
    %4119 = vmatpush1.msra.mxu0 0.0
    %4120 = vmatprep.subr.mxu0 0.0
    %4121 = vmatpush1.msra.mxu0 0.0
    %4122 = vmatprep.subr.mxu0 0.0
    %4123 = vmatpush1.msra.mxu0 0.0
    %4124 = vmatprep.subr.mxu0 0.0
    %4125 = vmatpush1.msra.mxu0 0.0
    %4126 = vmatprep.subr.mxu0 0.0
    %4127 = vmatpush1.msra.mxu0 0.0
    %4128 = vmatprep.subr.mxu0 0.0
    %4129 = vmatpush1.msra.mxu0 0.0
    %4130 = vmatprep.subr.mxu0 0.0
    %4131 = vmatpush1.msra.mxu0 0.0
    %4132 = vmatprep.subr.mxu0 0.0
    %4133 = vmatpush1.msra.mxu0 0.0
    %4134 = vmatprep.subr.mxu0 0.0
    %4135 = vmatpush1.msra.mxu0 0.0
    %4136 = vmatprep.subr.mxu0 0.0
    %4137 = vmatpush1.msra.mxu0 0.0
    %4138 = vmatprep.subr.mxu0 0.0
    %4139 = vmatpush1.msra.mxu0 0.0
    %4140 = vmatprep.subr.mxu0 0.0
    %4141 = vmatpush1.msra.mxu0 0.0
    %4142 = vmatprep.subr.mxu0 0.0
    %4143 = vmatpush1.msra.mxu0 0.0
    %4144 = vmatprep.subr.mxu0 0.0
    %4145 = vmatpush1.msra.mxu0 0.0
    %4146 = vmatprep.subr.mxu0 0.0
    %4147 = vmatpush1.msra.mxu0 0.0
    %4148 = vmatprep.subr.mxu0 0.0
    %4149 = vmatpush1.msra.mxu0 0.0
    %4150 = vmatprep.subr.mxu0 0.0
    %4151 = vmatpush1.msra.mxu0 0.0
    %4152 = vmatprep.subr.mxu0 0.0
    %4153 = vmatpush1.msra.mxu0 0.0
    %4154 = vmatprep.subr.mxu0 0.0
    %4155 = vmatpush1.msra.mxu0 0.0
    %4156 = vmatprep.subr.mxu0 0.0
    %4157 = vmatpush1.msra.mxu0 0.0
    %4158 = vmatprep.subr.mxu0 0.0
    %4159 = vmatpush1.msra.mxu0 0.0
    %4160 = vmatprep.subr.mxu0 0.0
    %4161 = vmatpush1.msra.mxu0 0.0
    %4162 = vmatprep.subr.mxu0 0.0
    %4163 = vmatpush1.msra.mxu0 0.0
    %4164 = vmatprep.subr.mxu0 0.0
    %4165 = vmatpush1.msra.mxu0 0.0
    %4166 = vmatprep.subr.mxu0 0.0
    %4167 = vmatpush1.msra.mxu0 0.0
    %4168 = vmatprep.subr.mxu0 0.0
    %4169 = vmatpush1.msra.mxu0 0.0
    %4170 = vmatprep.subr.mxu0 0.0
    %4171 = vmatpush1.msra.mxu0 0.0
    %4172 = vmatprep.mubr.f32.mxu0 0.0
    %4173 = vmatmul.mubr.f32.gmra.mrb[0].mxu0 %v3964
    %v4174 = vpop.f32.mrb[0].mxu0
    %v4175 = vadd.f32 %v3902, %v4174
    %v4176 = vpop.f32.mrb[0].mxu0
    %v4177 = vadd.f32 %v3906, %v4176
    %4178 = vdwg.mxu0
    %4179 = vmatprep.subr.mxu0 %v3821
    %4180 = vmatpush1.msra.mxu0 %v3820
    %4181 = vmatprep.subr.mxu0 %v3837
    %4182 = vmatpush1.msra.mxu0 %v3836
    %4183 = vmatprep.subr.mxu0 %v3853
    %4184 = vmatpush1.msra.mxu0 %v3852
    %4185 = vmatprep.subr.mxu0 %v3869
    %4186 = vmatpush1.msra.mxu0 %v3868
    %4187 = vmatprep.subr.mxu0 0.0
    %4188 = vmatpush1.msra.mxu0 0.0
    %4189 = vmatprep.subr.mxu0 0.0
    %4190 = vmatpush1.msra.mxu0 0.0
    %4191 = vmatprep.subr.mxu0 0.0
    %4192 = vmatpush1.msra.mxu0 0.0
    %4193 = vmatprep.subr.mxu0 0.0
    %4194 = vmatpush1.msra.mxu0 0.0
    %4195 = vmatprep.subr.mxu0 0.0
    %4196 = vmatpush1.msra.mxu0 0.0
    %4197 = vmatprep.subr.mxu0 0.0
    %4198 = vmatpush1.msra.mxu0 0.0
    %4199 = vmatprep.subr.mxu0 0.0
    %4200 = vmatpush1.msra.mxu0 0.0
    %4201 = vmatprep.subr.mxu0 0.0
    %4202 = vmatpush1.msra.mxu0 0.0
    %4203 = vmatprep.subr.mxu0 0.0
    %4204 = vmatpush1.msra.mxu0 0.0
    %4205 = vmatprep.subr.mxu0 0.0
    %4206 = vmatpush1.msra.mxu0 0.0
    %4207 = vmatprep.subr.mxu0 0.0
    %4208 = vmatpush1.msra.mxu0 0.0
    %4209 = vmatprep.subr.mxu0 0.0
    %4210 = vmatpush1.msra.mxu0 0.0
    %4211 = vmatprep.subr.mxu0 0.0
    %4212 = vmatpush1.msra.mxu0 0.0
    %4213 = vmatprep.subr.mxu0 0.0
    %4214 = vmatpush1.msra.mxu0 0.0
    %4215 = vmatprep.subr.mxu0 0.0
    %4216 = vmatpush1.msra.mxu0 0.0
    %4217 = vmatprep.subr.mxu0 0.0
    %4218 = vmatpush1.msra.mxu0 0.0
    %4219 = vmatprep.subr.mxu0 0.0
    %4220 = vmatpush1.msra.mxu0 0.0
    %4221 = vmatprep.subr.mxu0 0.0
    %4222 = vmatpush1.msra.mxu0 0.0
    %4223 = vmatprep.subr.mxu0 0.0
    %4224 = vmatpush1.msra.mxu0 0.0
    %4225 = vmatprep.subr.mxu0 0.0
    %4226 = vmatpush1.msra.mxu0 0.0
    %4227 = vmatprep.subr.mxu0 0.0
    %4228 = vmatpush1.msra.mxu0 0.0
    %4229 = vmatprep.subr.mxu0 0.0
    %4230 = vmatpush1.msra.mxu0 0.0
    %4231 = vmatprep.subr.mxu0 0.0
    %4232 = vmatpush1.msra.mxu0 0.0
    %4233 = vmatprep.subr.mxu0 0.0
    %4234 = vmatpush1.msra.mxu0 0.0
    %4235 = vmatprep.subr.mxu0 0.0
    %4236 = vmatpush1.msra.mxu0 0.0
    %4237 = vmatprep.subr.mxu0 0.0
    %4238 = vmatpush1.msra.mxu0 0.0
    %4239 = vmatprep.subr.mxu0 0.0
    %4240 = vmatpush1.msra.mxu0 0.0
    %4241 = vmatprep.subr.mxu0 0.0
    %4242 = vmatpush1.msra.mxu0 0.0
    %4243 = vmatprep.mubr.f32.mxu0 0.0
    %4244 = vmatmul.mubr.f32.gmra.mrb[0].mxu0 %v3964
    %v4245 = vpop.f32.mrb[0].mxu0
    %v4246 = vadd.f32 %v3910, %v4245
    %v4247 = vpop.f32.mrb[0].mxu0
    %v4248 = vadd.f32 %v3914, %v4247
    %4249 = vdwg.mxu0
    %4250 = vmatprep.subr.mxu0 %v3823
    %4251 = vmatpush1.msra.mxu0 %v3822
    %4252 = vmatprep.subr.mxu0 %v3839
    %4253 = vmatpush1.msra.mxu0 %v3838
    %4254 = vmatprep.subr.mxu0 %v3855
    %4255 = vmatpush1.msra.mxu0 %v3854
    %4256 = vmatprep.subr.mxu0 %v3871
    %4257 = vmatpush1.msra.mxu0 %v3870
    %4258 = vmatprep.subr.mxu0 0.0
    %4259 = vmatpush1.msra.mxu0 0.0
    %4260 = vmatprep.subr.mxu0 0.0
    %4261 = vmatpush1.msra.mxu0 0.0
    %4262 = vmatprep.subr.mxu0 0.0
    %4263 = vmatpush1.msra.mxu0 0.0
    %4264 = vmatprep.subr.mxu0 0.0
    %4265 = vmatpush1.msra.mxu0 0.0
    %4266 = vmatprep.subr.mxu0 0.0
    %4267 = vmatpush1.msra.mxu0 0.0
    %4268 = vmatprep.subr.mxu0 0.0
    %4269 = vmatpush1.msra.mxu0 0.0
    %4270 = vmatprep.subr.mxu0 0.0
    %4271 = vmatpush1.msra.mxu0 0.0
    %4272 = vmatprep.subr.mxu0 0.0
    %4273 = vmatpush1.msra.mxu0 0.0
    %4274 = vmatprep.subr.mxu0 0.0
    %4275 = vmatpush1.msra.mxu0 0.0
    %4276 = vmatprep.subr.mxu0 0.0
    %4277 = vmatpush1.msra.mxu0 0.0
    %4278 = vmatprep.subr.mxu0 0.0
    %4279 = vmatpush1.msra.mxu0 0.0
    %4280 = vmatprep.subr.mxu0 0.0
    %4281 = vmatpush1.msra.mxu0 0.0
    %4282 = vmatprep.subr.mxu0 0.0
    %4283 = vmatpush1.msra.mxu0 0.0
    %4284 = vmatprep.subr.mxu0 0.0
    %4285 = vmatpush1.msra.mxu0 0.0
    %4286 = vmatprep.subr.mxu0 0.0
    %4287 = vmatpush1.msra.mxu0 0.0
    %4288 = vmatprep.subr.mxu0 0.0
    %4289 = vmatpush1.msra.mxu0 0.0
    %4290 = vmatprep.subr.mxu0 0.0
    %4291 = vmatpush1.msra.mxu0 0.0
    %4292 = vmatprep.subr.mxu0 0.0
    %4293 = vmatpush1.msra.mxu0 0.0
    %4294 = vmatprep.subr.mxu0 0.0
    %4295 = vmatpush1.msra.mxu0 0.0
    %4296 = vmatprep.subr.mxu0 0.0
    %4297 = vmatpush1.msra.mxu0 0.0
    %4298 = vmatprep.subr.mxu0 0.0
    %4299 = vmatpush1.msra.mxu0 0.0
    %4300 = vmatprep.subr.mxu0 0.0
    %4301 = vmatpush1.msra.mxu0 0.0
    %4302 = vmatprep.subr.mxu0 0.0
    %4303 = vmatpush1.msra.mxu0 0.0
    %4304 = vmatprep.subr.mxu0 0.0
    %4305 = vmatpush1.msra.mxu0 0.0
    %4306 = vmatprep.subr.mxu0 0.0
    %4307 = vmatpush1.msra.mxu0 0.0
    %4308 = vmatprep.subr.mxu0 0.0
    %4309 = vmatpush1.msra.mxu0 0.0
    %4310 = vmatprep.subr.mxu0 0.0
    %4311 = vmatpush1.msra.mxu0 0.0
    %4312 = vmatprep.subr.mxu0 0.0
    %4313 = vmatpush1.msra.mxu0 0.0
    %4314 = vmatprep.mubr.f32.mxu0 0.0
    %4315 = vmatmul.mubr.f32.gmra.mrb[0].mxu0 %v3964
    %v4316 = vpop.f32.mrb[0].mxu0
    %v4317 = vadd.f32 %v3918, %v4316
    %v4318 = vpop.f32.mrb[0].mxu0
    %v4319 = vadd.f32 %v3922, %v4318
    %4320 = vdwg.mxu0
    %4321 = vmatprep.subr.mxu0 %v3825
    %4322 = vmatpush1.msra.mxu0 %v3824
    %4323 = vmatprep.subr.mxu0 %v3841
    %4324 = vmatpush1.msra.mxu0 %v3840
    %4325 = vmatprep.subr.mxu0 %v3857
    %4326 = vmatpush1.msra.mxu0 %v3856
    %4327 = vmatprep.subr.mxu0 %v3873
    %4328 = vmatpush1.msra.mxu0 %v3872
    %4329 = vmatprep.subr.mxu0 0.0
    %4330 = vmatpush1.msra.mxu0 0.0
    %4331 = vmatprep.subr.mxu0 0.0
    %4332 = vmatpush1.msra.mxu0 0.0
    %4333 = vmatprep.subr.mxu0 0.0
    %4334 = vmatpush1.msra.mxu0 0.0
    %4335 = vmatprep.subr.mxu0 0.0
    %4336 = vmatpush1.msra.mxu0 0.0
    %4337 = vmatprep.subr.mxu0 0.0
    %4338 = vmatpush1.msra.mxu0 0.0
    %4339 = vmatprep.subr.mxu0 0.0
    %4340 = vmatpush1.msra.mxu0 0.0
    %4341 = vmatprep.subr.mxu0 0.0
    %4342 = vmatpush1.msra.mxu0 0.0
    %4343 = vmatprep.subr.mxu0 0.0
    %4344 = vmatpush1.msra.mxu0 0.0
    %4345 = vmatprep.subr.mxu0 0.0
    %4346 = vmatpush1.msra.mxu0 0.0
    %4347 = vmatprep.subr.mxu0 0.0
    %4348 = vmatpush1.msra.mxu0 0.0
    %4349 = vmatprep.subr.mxu0 0.0
    %4350 = vmatpush1.msra.mxu0 0.0
    %4351 = vmatprep.subr.mxu0 0.0
    %4352 = vmatpush1.msra.mxu0 0.0
    %4353 = vmatprep.subr.mxu0 0.0
    %4354 = vmatpush1.msra.mxu0 0.0
    %4355 = vmatprep.subr.mxu0 0.0
    %4356 = vmatpush1.msra.mxu0 0.0
    %4357 = vmatprep.subr.mxu0 0.0
    %4358 = vmatpush1.msra.mxu0 0.0
    %4359 = vmatprep.subr.mxu0 0.0
    %4360 = vmatpush1.msra.mxu0 0.0
    %4361 = vmatprep.subr.mxu0 0.0
    %4362 = vmatpush1.msra.mxu0 0.0
    %4363 = vmatprep.subr.mxu0 0.0
    %4364 = vmatpush1.msra.mxu0 0.0
    %4365 = vmatprep.subr.mxu0 0.0
    %4366 = vmatpush1.msra.mxu0 0.0
    %4367 = vmatprep.subr.mxu0 0.0
    %4368 = vmatpush1.msra.mxu0 0.0
    %4369 = vmatprep.subr.mxu0 0.0
    %4370 = vmatpush1.msra.mxu0 0.0
    %4371 = vmatprep.subr.mxu0 0.0
    %4372 = vmatpush1.msra.mxu0 0.0
    %4373 = vmatprep.subr.mxu0 0.0
    %4374 = vmatpush1.msra.mxu0 0.0
    %4375 = vmatprep.subr.mxu0 0.0
    %4376 = vmatpush1.msra.mxu0 0.0
    %4377 = vmatprep.subr.mxu0 0.0
    %4378 = vmatpush1.msra.mxu0 0.0
    %4379 = vmatprep.subr.mxu0 0.0
    %4380 = vmatpush1.msra.mxu0 0.0
    %4381 = vmatprep.subr.mxu0 0.0
    %4382 = vmatpush1.msra.mxu0 0.0
    %4383 = vmatprep.subr.mxu0 0.0
    %4384 = vmatpush1.msra.mxu0 0.0
    %4385 = vmatprep.mubr.f32.mxu0 0.0
    %4386 = vmatmul.mubr.f32.gmra.mrb[0].mxu0 %v3964
    %v4387 = vpop.f32.mrb[0].mxu0
    %v4388 = vadd.f32 %v3926, %v4387
    %v4389 = vpop.f32.mrb[0].mxu0
    %v4390 = vadd.f32 %v3930, %v4389
    %4391 = vdwg.mxu0
    %4392 = vmatprep.subr.mxu0 %v3827
    %4393 = vmatpush1.msra.mxu0 %v3826
    %4394 = vmatprep.subr.mxu0 %v3843
    %4395 = vmatpush1.msra.mxu0 %v3842
    %4396 = vmatprep.subr.mxu0 %v3859
    %4397 = vmatpush1.msra.mxu0 %v3858
    %4398 = vmatprep.subr.mxu0 %v3875
    %4399 = vmatpush1.msra.mxu0 %v3874
    %4400 = vmatprep.subr.mxu0 0.0
    %4401 = vmatpush1.msra.mxu0 0.0
    %4402 = vmatprep.subr.mxu0 0.0
    %4403 = vmatpush1.msra.mxu0 0.0
    %4404 = vmatprep.subr.mxu0 0.0
    %4405 = vmatpush1.msra.mxu0 0.0
    %4406 = vmatprep.subr.mxu0 0.0
    %4407 = vmatpush1.msra.mxu0 0.0
    %4408 = vmatprep.subr.mxu0 0.0
    %4409 = vmatpush1.msra.mxu0 0.0
    %4410 = vmatprep.subr.mxu0 0.0
    %4411 = vmatpush1.msra.mxu0 0.0
    %4412 = vmatprep.subr.mxu0 0.0
    %4413 = vmatpush1.msra.mxu0 0.0
    %4414 = vmatprep.subr.mxu0 0.0
    %4415 = vmatpush1.msra.mxu0 0.0
    %4416 = vmatprep.subr.mxu0 0.0
    %4417 = vmatpush1.msra.mxu0 0.0
    %4418 = vmatprep.subr.mxu0 0.0
    %4419 = vmatpush1.msra.mxu0 0.0
    %4420 = vmatprep.subr.mxu0 0.0
    %4421 = vmatpush1.msra.mxu0 0.0
    %4422 = vmatprep.subr.mxu0 0.0
    %4423 = vmatpush1.msra.mxu0 0.0
    %4424 = vmatprep.subr.mxu0 0.0
    %4425 = vmatpush1.msra.mxu0 0.0
    %4426 = vmatprep.subr.mxu0 0.0
    %4427 = vmatpush1.msra.mxu0 0.0
    %4428 = vmatprep.subr.mxu0 0.0
    %4429 = vmatpush1.msra.mxu0 0.0
    %4430 = vmatprep.subr.mxu0 0.0
    %4431 = vmatpush1.msra.mxu0 0.0
    %4432 = vmatprep.subr.mxu0 0.0
    %4433 = vmatpush1.msra.mxu0 0.0
    %4434 = vmatprep.subr.mxu0 0.0
    %4435 = vmatpush1.msra.mxu0 0.0
    %4436 = vmatprep.subr.mxu0 0.0
    %4437 = vmatpush1.msra.mxu0 0.0
    %4438 = vmatprep.subr.mxu0 0.0
    %4439 = vmatpush1.msra.mxu0 0.0
    %4440 = vmatprep.subr.mxu0 0.0
    %4441 = vmatpush1.msra.mxu0 0.0
    %4442 = vmatprep.subr.mxu0 0.0
    %4443 = vmatpush1.msra.mxu0 0.0
    %4444 = vmatprep.subr.mxu0 0.0
    %4445 = vmatpush1.msra.mxu0 0.0
    %4446 = vmatprep.subr.mxu0 0.0
    %4447 = vmatpush1.msra.mxu0 0.0
    %4448 = vmatprep.subr.mxu0 0.0
    %4449 = vmatpush1.msra.mxu0 0.0
    %4450 = vmatprep.subr.mxu0 0.0
    %4451 = vmatpush1.msra.mxu0 0.0
    %4452 = vmatprep.subr.mxu0 0.0
    %4453 = vmatpush1.msra.mxu0 0.0
    %4454 = vmatprep.subr.mxu0 0.0
    %4455 = vmatpush1.msra.mxu0 0.0
    %4456 = vmatprep.mubr.f32.mxu0 0.0
    %4457 = vmatmul.mubr.f32.gmra.mrb[0].mxu0 %v3964
    %v4458 = vpop.f32.mrb[0].mxu0
    %v4459 = vadd.f32 %v3934, %v4458
    %v4460 = vpop.f32.mrb[0].mxu0
    %v4461 = vadd.f32 %v3938, %v4460
    %4462 = vdwg.mxu0
    %4463 = vmatprep.subr.mxu0 %v3829
    %4464 = vmatpush1.msra.mxu0 %v3828
    %4465 = vmatprep.subr.mxu0 %v3845
    %4466 = vmatpush1.msra.mxu0 %v3844
    %4467 = vmatprep.subr.mxu0 %v3861
    %4468 = vmatpush1.msra.mxu0 %v3860
    %4469 = vmatprep.subr.mxu0 %v3877
    %4470 = vmatpush1.msra.mxu0 %v3876
    %4471 = vmatprep.subr.mxu0 0.0
    %4472 = vmatpush1.msra.mxu0 0.0
    %4473 = vmatprep.subr.mxu0 0.0
    %4474 = vmatpush1.msra.mxu0 0.0
    %4475 = vmatprep.subr.mxu0 0.0
    %4476 = vmatpush1.msra.mxu0 0.0
    %4477 = vmatprep.subr.mxu0 0.0
    %4478 = vmatpush1.msra.mxu0 0.0
    %4479 = vmatprep.subr.mxu0 0.0
    %4480 = vmatpush1.msra.mxu0 0.0
    %4481 = vmatprep.subr.mxu0 0.0
    %4482 = vmatpush1.msra.mxu0 0.0
    %4483 = vmatprep.subr.mxu0 0.0
    %4484 = vmatpush1.msra.mxu0 0.0
    %4485 = vmatprep.subr.mxu0 0.0
    %4486 = vmatpush1.msra.mxu0 0.0
    %4487 = vmatprep.subr.mxu0 0.0
    %4488 = vmatpush1.msra.mxu0 0.0
    %4489 = vmatprep.subr.mxu0 0.0
    %4490 = vmatpush1.msra.mxu0 0.0
    %4491 = vmatprep.subr.mxu0 0.0
    %4492 = vmatpush1.msra.mxu0 0.0
    %4493 = vmatprep.subr.mxu0 0.0
    %4494 = vmatpush1.msra.mxu0 0.0
    %4495 = vmatprep.subr.mxu0 0.0
    %4496 = vmatpush1.msra.mxu0 0.0
    %4497 = vmatprep.subr.mxu0 0.0
    %4498 = vmatpush1.msra.mxu0 0.0
    %4499 = vmatprep.subr.mxu0 0.0
    %4500 = vmatpush1.msra.mxu0 0.0
    %4501 = vmatprep.subr.mxu0 0.0
    %4502 = vmatpush1.msra.mxu0 0.0
    %4503 = vmatprep.subr.mxu0 0.0
    %4504 = vmatpush1.msra.mxu0 0.0
    %4505 = vmatprep.subr.mxu0 0.0
    %4506 = vmatpush1.msra.mxu0 0.0
    %4507 = vmatprep.subr.mxu0 0.0
    %4508 = vmatpush1.msra.mxu0 0.0
    %4509 = vmatprep.subr.mxu0 0.0
    %4510 = vmatpush1.msra.mxu0 0.0
    %4511 = vmatprep.subr.mxu0 0.0
    %4512 = vmatpush1.msra.mxu0 0.0
    %4513 = vmatprep.subr.mxu0 0.0
    %4514 = vmatpush1.msra.mxu0 0.0
    %4515 = vmatprep.subr.mxu0 0.0
    %4516 = vmatpush1.msra.mxu0 0.0
    %4517 = vmatprep.subr.mxu0 0.0
    %4518 = vmatpush1.msra.mxu0 0.0
    %4519 = vmatprep.subr.mxu0 0.0
    %4520 = vmatpush1.msra.mxu0 0.0
    %4521 = vmatprep.subr.mxu0 0.0
    %4522 = vmatpush1.msra.mxu0 0.0
    %4523 = vmatprep.subr.mxu0 0.0
    %4524 = vmatpush1.msra.mxu0 0.0
    %4525 = vmatprep.subr.mxu0 0.0
    %4526 = vmatpush1.msra.mxu0 0.0
    %4527 = vmatprep.mubr.f32.mxu0 0.0
    %4528 = vmatmul.mubr.f32.gmra.mrb[0].mxu0 %v3964
    %v4529 = vpop.f32.mrb[0].mxu0
    %v4530 = vadd.f32 %v3942, %v4529
    %v4531 = vpop.f32.mrb[0].mxu0
    %v4532 = vadd.f32 %v3946, %v4531
    %4533 = vdwg.mxu0
    %v4534 = vmax.f32 %v4033, 0.0
    %v4535 = vmax.f32 %v4035, 0.0
    %v4536 = vmax.f32 %v4104, 0.0
    %v4537 = vmax.f32 %v4106, 0.0
    %v4538 = vmax.f32 %v4175, 0.0
    %v4539 = vmax.f32 %v4177, 0.0
    %v4540 = vmax.f32 %v4246, 0.0
    %v4541 = vmax.f32 %v4248, 0.0
    %v4542 = vmax.f32 %v4317, 0.0
    %v4543 = vmax.f32 %v4319, 0.0
    %v4544 = vmax.f32 %v4388, 0.0
    %v4545 = vmax.f32 %v4390, 0.0
    %v4546 = vmax.f32 %v4459, 0.0
    %v4547 = vmax.f32 %v4461, 0.0
    %v4548 = vmax.f32 %v4530, 0.0
    %v4549 = vmax.f32 %v4532, 0.0
    %s4550 = scalar_lea.vmem %s5, 2048
    %v4551 = vld [vmem:[%s4550] sm:$0xff]
    %v4552 = vld [vmem:[%s4550 + $0x8] sm:$0xff]
    %v4553 = vld [vmem:[%s4550 + $0x10] sm:$0xff]
    %v4554 = vld [vmem:[%s4550 + $0x18] sm:$0xff]
    %v4555 = vld [vmem:[%s4550 + $0x20] sm:$0xff]
    %v4556 = vld [vmem:[%s4550 + $0x28] sm:$0xff]
    %v4557 = vld [vmem:[%s4550 + $0x30] sm:$0xff]
    %v4558 = vld [vmem:[%s4550 + $0x38] sm:$0xff]
    %v4559 = vld [vmem:[%s4550 + $0x40] sm:$0xff]
    %v4560 = vld [vmem:[%s4550 + $0x48] sm:$0xff]
    %v4561 = vld [vmem:[%s4550 + $0x50] sm:$0xff]
    %v4562 = vld [vmem:[%s4550 + $0x58] sm:$0xff]
    %v4563 = vld [vmem:[%s4550 + $0x60] sm:$0xff]
    %v4564 = vld [vmem:[%s4550 + $0x68] sm:$0xff]
    %v4565 = vld [vmem:[%s4550 + $0x70] sm:$0xff]
    %v4566 = vld [vmem:[%s4550 + $0x78] sm:$0xff]
    %v4567 = vld [vmem:[%s4550 + $0x80] sm:$0xff]
    %v4568 = vld [vmem:[%s4550 + $0x88] sm:$0xff]
    %v4569 = vld [vmem:[%s4550 + $0x90] sm:$0xff]
    %v4570 = vld [vmem:[%s4550 + $0x98] sm:$0xff]
    %v4571 = vld [vmem:[%s4550 + $0xa0] sm:$0xff]
    %v4572 = vld [vmem:[%s4550 + $0xa8] sm:$0xff]
    %v4573 = vld [vmem:[%s4550 + $0xb0] sm:$0xff]
    %v4574 = vld [vmem:[%s4550 + $0xb8] sm:$0xff]
    %v4575 = vld [vmem:[%s4550 + $0xc0] sm:$0xff]
    %v4576 = vld [vmem:[%s4550 + $0xc8] sm:$0xff]
    %v4577 = vld [vmem:[%s4550 + $0xd0] sm:$0xff]
    %v4578 = vld [vmem:[%s4550 + $0xd8] sm:$0xff]
    %v4579 = vld [vmem:[%s4550 + $0xe0] sm:$0xff]
    %v4580 = vld [vmem:[%s4550 + $0xe8] sm:$0xff]
    %v4581 = vld [vmem:[%s4550 + $0xf0] sm:$0xff]
    %v4582 = vld [vmem:[%s4550 + $0xf8] sm:$0xff]
    %v4583 = vld [vmem:[%s4550 + $0x100] sm:$0xff]
    %v4584 = vld [vmem:[%s4550 + $0x108] sm:$0xff]
    %v4585 = vld [vmem:[%s4550 + $0x110] sm:$0xff]
    %v4586 = vld [vmem:[%s4550 + $0x118] sm:$0xff]
    %v4587 = vld [vmem:[%s4550 + $0x120] sm:$0xff]
    %v4588 = vld [vmem:[%s4550 + $0x128] sm:$0xff]
    %v4589 = vld [vmem:[%s4550 + $0x130] sm:$0xff]
    %v4590 = vld [vmem:[%s4550 + $0x138] sm:$0xff]
    %v4591 = vld [vmem:[%s4550 + $0x140] sm:$0xff]
    %v4592 = vld [vmem:[%s4550 + $0x148] sm:$0xff]
    %v4593 = vld [vmem:[%s4550 + $0x150] sm:$0xff]
    %v4594 = vld [vmem:[%s4550 + $0x158] sm:$0xff]
    %v4595 = vld [vmem:[%s4550 + $0x160] sm:$0xff]
    %v4596 = vld [vmem:[%s4550 + $0x168] sm:$0xff]
    %v4597 = vld [vmem:[%s4550 + $0x170] sm:$0xff]
    %v4598 = vld [vmem:[%s4550 + $0x178] sm:$0xff]
    %v4599 = vld [vmem:[%s4550 + $0x180] sm:$0xff]
    %v4600 = vld [vmem:[%s4550 + $0x188] sm:$0xff]
    %v4601 = vld [vmem:[%s4550 + $0x190] sm:$0xff]
    %v4602 = vld [vmem:[%s4550 + $0x198] sm:$0xff]
    %v4603 = vld [vmem:[%s4550 + $0x1a0] sm:$0xff]
    %v4604 = vld [vmem:[%s4550 + $0x1a8] sm:$0xff]
    %v4605 = vld [vmem:[%s4550 + $0x1b0] sm:$0xff]
    %v4606 = vld [vmem:[%s4550 + $0x1b8] sm:$0xff]
    %v4607 = vld [vmem:[%s4550 + $0x1c0] sm:$0xff]
    %v4608 = vld [vmem:[%s4550 + $0x1c8] sm:$0xff]
    %v4609 = vld [vmem:[%s4550 + $0x1d0] sm:$0xff]
    %v4610 = vld [vmem:[%s4550 + $0x1d8] sm:$0xff]
    %v4611 = vld [vmem:[%s4550 + $0x1e0] sm:$0xff]
    %v4612 = vld [vmem:[%s4550 + $0x1e8] sm:$0xff]
    %v4613 = vld [vmem:[%s4550 + $0x1f0] sm:$0xff]
    %v4614 = vld [vmem:[%s4550 + $0x1f8] sm:$0xff]
    %v4615 = vld [vmem:[%s4550 + $0x200] sm:$0xff]
    %v4616 = vld [vmem:[%s4550 + $0x208] sm:$0xff]
    %v4617 = vld [vmem:[%s4550 + $0x210] sm:$0xff]
    %v4618 = vld [vmem:[%s4550 + $0x218] sm:$0xff]
    %v4619 = vld [vmem:[%s4550 + $0x220] sm:$0xff]
    %v4620 = vld [vmem:[%s4550 + $0x228] sm:$0xff]
    %v4621 = vld [vmem:[%s4550 + $0x230] sm:$0xff]
    %v4622 = vld [vmem:[%s4550 + $0x238] sm:$0xff]
    %v4623 = vld [vmem:[%s4550 + $0x240] sm:$0xff]
    %v4624 = vld [vmem:[%s4550 + $0x248] sm:$0xff]
    %v4625 = vld [vmem:[%s4550 + $0x250] sm:$0xff]
    %v4626 = vld [vmem:[%s4550 + $0x258] sm:$0xff]
    %v4627 = vld [vmem:[%s4550 + $0x260] sm:$0xff]
    %v4628 = vld [vmem:[%s4550 + $0x268] sm:$0xff]
    %v4629 = vld [vmem:[%s4550 + $0x270] sm:$0xff]
    %v4630 = vld [vmem:[%s4550 + $0x278] sm:$0xff]
    %v4631 = vld [vmem:[%s4550 + $0x280] sm:$0xff]
    %v4632 = vld [vmem:[%s4550 + $0x288] sm:$0xff]
    %v4633 = vld [vmem:[%s4550 + $0x290] sm:$0xff]
    %v4634 = vld [vmem:[%s4550 + $0x298] sm:$0xff]
    %v4635 = vld [vmem:[%s4550 + $0x2a0] sm:$0xff]
    %v4636 = vld [vmem:[%s4550 + $0x2a8] sm:$0xff]
    %v4637 = vld [vmem:[%s4550 + $0x2b0] sm:$0xff]
    %v4638 = vld [vmem:[%s4550 + $0x2b8] sm:$0xff]
    %v4639 = vld [vmem:[%s4550 + $0x2c0] sm:$0xff]
    %v4640 = vld [vmem:[%s4550 + $0x2c8] sm:$0xff]
    %v4641 = vld [vmem:[%s4550 + $0x2d0] sm:$0xff]
    %v4642 = vld [vmem:[%s4550 + $0x2d8] sm:$0xff]
    %v4643 = vld [vmem:[%s4550 + $0x2e0] sm:$0xff]
    %v4644 = vld [vmem:[%s4550 + $0x2e8] sm:$0xff]
    %v4645 = vld [vmem:[%s4550 + $0x2f0] sm:$0xff]
    %v4646 = vld [vmem:[%s4550 + $0x2f8] sm:$0xff]
    %v4647 = vld [vmem:[%s4550 + $0x300] sm:$0xff]
    %v4648 = vld [vmem:[%s4550 + $0x308] sm:$0xff]
    %v4649 = vld [vmem:[%s4550 + $0x310] sm:$0xff]
    %v4650 = vld [vmem:[%s4550 + $0x318] sm:$0xff]
    %v4651 = vld [vmem:[%s4550 + $0x320] sm:$0xff]
    %v4652 = vld [vmem:[%s4550 + $0x328] sm:$0xff]
    %v4653 = vld [vmem:[%s4550 + $0x330] sm:$0xff]
    %v4654 = vld [vmem:[%s4550 + $0x338] sm:$0xff]
    %v4655 = vld [vmem:[%s4550 + $0x340] sm:$0xff]
    %v4656 = vld [vmem:[%s4550 + $0x348] sm:$0xff]
    %v4657 = vld [vmem:[%s4550 + $0x350] sm:$0xff]
    %v4658 = vld [vmem:[%s4550 + $0x358] sm:$0xff]
    %v4659 = vld [vmem:[%s4550 + $0x360] sm:$0xff]
    %v4660 = vld [vmem:[%s4550 + $0x368] sm:$0xff]
    %v4661 = vld [vmem:[%s4550 + $0x370] sm:$0xff]
    %v4662 = vld [vmem:[%s4550 + $0x378] sm:$0xff]
    %v4663 = vld [vmem:[%s4550 + $0x380] sm:$0xff]
    %v4664 = vld [vmem:[%s4550 + $0x388] sm:$0xff]
    %v4665 = vld [vmem:[%s4550 + $0x390] sm:$0xff]
    %v4666 = vld [vmem:[%s4550 + $0x398] sm:$0xff]
    %v4667 = vld [vmem:[%s4550 + $0x3a0] sm:$0xff]
    %v4668 = vld [vmem:[%s4550 + $0x3a8] sm:$0xff]
    %v4669 = vld [vmem:[%s4550 + $0x3b0] sm:$0xff]
    %v4670 = vld [vmem:[%s4550 + $0x3b8] sm:$0xff]
    %v4671 = vld [vmem:[%s4550 + $0x3c0] sm:$0xff]
    %v4672 = vld [vmem:[%s4550 + $0x3c8] sm:$0xff]
    %v4673 = vld [vmem:[%s4550 + $0x3d0] sm:$0xff]
    %v4674 = vld [vmem:[%s4550 + $0x3d8] sm:$0xff]
    %v4675 = vld [vmem:[%s4550 + $0x3e0] sm:$0xff]
    %v4676 = vld [vmem:[%s4550 + $0x3e8] sm:$0xff]
    %v4677 = vld [vmem:[%s4550 + $0x3f0] sm:$0xff]
    %v4678 = vld [vmem:[%s4550 + $0x3f8] sm:$0xff]
    %v4679 = vld [vmem:[%s4550 + $0x400] sm:$0xff]
    %v4680 = vld [vmem:[%s4550 + $0x408] sm:$0xff]
    %v4681 = vld [vmem:[%s4550 + $0x410] sm:$0xff]
    %v4682 = vld [vmem:[%s4550 + $0x418] sm:$0xff]
    %v4683 = vld [vmem:[%s4550 + $0x420] sm:$0xff]
    %v4684 = vld [vmem:[%s4550 + $0x428] sm:$0xff]
    %v4685 = vld [vmem:[%s4550 + $0x430] sm:$0xff]
    %v4686 = vld [vmem:[%s4550 + $0x438] sm:$0xff]
    %v4687 = vld [vmem:[%s4550 + $0x440] sm:$0xff]
    %v4688 = vld [vmem:[%s4550 + $0x448] sm:$0xff]
    %v4689 = vld [vmem:[%s4550 + $0x450] sm:$0xff]
    %v4690 = vld [vmem:[%s4550 + $0x458] sm:$0xff]
    %v4691 = vld [vmem:[%s4550 + $0x460] sm:$0xff]
    %v4692 = vld [vmem:[%s4550 + $0x468] sm:$0xff]
    %v4693 = vld [vmem:[%s4550 + $0x470] sm:$0xff]
    %v4694 = vld [vmem:[%s4550 + $0x478] sm:$0xff]
    %v4695 = vld [vmem:[%s4550 + $0x480] sm:$0xff]
    %v4696 = vld [vmem:[%s4550 + $0x488] sm:$0xff]
    %v4697 = vld [vmem:[%s4550 + $0x490] sm:$0xff]
    %v4698 = vld [vmem:[%s4550 + $0x498] sm:$0xff]
    %v4699 = vld [vmem:[%s4550 + $0x4a0] sm:$0xff]
    %v4700 = vld [vmem:[%s4550 + $0x4a8] sm:$0xff]
    %v4701 = vld [vmem:[%s4550 + $0x4b0] sm:$0xff]
    %v4702 = vld [vmem:[%s4550 + $0x4b8] sm:$0xff]
    %v4703 = vld [vmem:[%s4550 + $0x4c0] sm:$0xff]
    %v4704 = vld [vmem:[%s4550 + $0x4c8] sm:$0xff]
    %v4705 = vld [vmem:[%s4550 + $0x4d0] sm:$0xff]
    %v4706 = vld [vmem:[%s4550 + $0x4d8] sm:$0xff]
    %v4707 = vld [vmem:[%s4550 + $0x4e0] sm:$0xff]
    %v4708 = vld [vmem:[%s4550 + $0x4e8] sm:$0xff]
    %v4709 = vld [vmem:[%s4550 + $0x4f0] sm:$0xff]
    %v4710 = vld [vmem:[%s4550 + $0x4f8] sm:$0xff]
    %v4711 = vld [vmem:[%s4550 + $0x500] sm:$0xff]
    %v4712 = vld [vmem:[%s4550 + $0x508] sm:$0xff]
    %v4713 = vld [vmem:[%s4550 + $0x510] sm:$0xff]
    %v4714 = vld [vmem:[%s4550 + $0x518] sm:$0xff]
    %v4715 = vld [vmem:[%s4550 + $0x520] sm:$0xff]
    %v4716 = vld [vmem:[%s4550 + $0x528] sm:$0xff]
    %v4717 = vld [vmem:[%s4550 + $0x530] sm:$0xff]
    %v4718 = vld [vmem:[%s4550 + $0x538] sm:$0xff]
    %v4719 = vld [vmem:[%s4550 + $0x540] sm:$0xff]
    %v4720 = vld [vmem:[%s4550 + $0x548] sm:$0xff]
    %v4721 = vld [vmem:[%s4550 + $0x550] sm:$0xff]
    %v4722 = vld [vmem:[%s4550 + $0x558] sm:$0xff]
    %v4723 = vld [vmem:[%s4550 + $0x560] sm:$0xff]
    %v4724 = vld [vmem:[%s4550 + $0x568] sm:$0xff]
    %v4725 = vld [vmem:[%s4550 + $0x570] sm:$0xff]
    %v4726 = vld [vmem:[%s4550 + $0x578] sm:$0xff]
    %v4727 = vld [vmem:[%s4550 + $0x580] sm:$0xff]
    %v4728 = vld [vmem:[%s4550 + $0x588] sm:$0xff]
    %v4729 = vld [vmem:[%s4550 + $0x590] sm:$0xff]
    %v4730 = vld [vmem:[%s4550 + $0x598] sm:$0xff]
    %v4731 = vld [vmem:[%s4550 + $0x5a0] sm:$0xff]
    %v4732 = vld [vmem:[%s4550 + $0x5a8] sm:$0xff]
    %v4733 = vld [vmem:[%s4550 + $0x5b0] sm:$0xff]
    %v4734 = vld [vmem:[%s4550 + $0x5b8] sm:$0xff]
    %v4735 = vld [vmem:[%s4550 + $0x5c0] sm:$0xff]
    %v4736 = vld [vmem:[%s4550 + $0x5c8] sm:$0xff]
    %v4737 = vld [vmem:[%s4550 + $0x5d0] sm:$0xff]
    %v4738 = vld [vmem:[%s4550 + $0x5d8] sm:$0xff]
    %v4739 = vld [vmem:[%s4550 + $0x5e0] sm:$0xff]
    %v4740 = vld [vmem:[%s4550 + $0x5e8] sm:$0xff]
    %v4741 = vld [vmem:[%s4550 + $0x5f0] sm:$0xff]
    %v4742 = vld [vmem:[%s4550 + $0x5f8] sm:$0xff]
    %v4743 = vld [vmem:[%s4550 + $0x600] sm:$0xff]
    %v4744 = vld [vmem:[%s4550 + $0x608] sm:$0xff]
    %v4745 = vld [vmem:[%s4550 + $0x610] sm:$0xff]
    %v4746 = vld [vmem:[%s4550 + $0x618] sm:$0xff]
    %v4747 = vld [vmem:[%s4550 + $0x620] sm:$0xff]
    %v4748 = vld [vmem:[%s4550 + $0x628] sm:$0xff]
    %v4749 = vld [vmem:[%s4550 + $0x630] sm:$0xff]
    %v4750 = vld [vmem:[%s4550 + $0x638] sm:$0xff]
    %v4751 = vld [vmem:[%s4550 + $0x640] sm:$0xff]
    %v4752 = vld [vmem:[%s4550 + $0x648] sm:$0xff]
    %v4753 = vld [vmem:[%s4550 + $0x650] sm:$0xff]
    %v4754 = vld [vmem:[%s4550 + $0x658] sm:$0xff]
    %v4755 = vld [vmem:[%s4550 + $0x660] sm:$0xff]
    %v4756 = vld [vmem:[%s4550 + $0x668] sm:$0xff]
    %v4757 = vld [vmem:[%s4550 + $0x670] sm:$0xff]
    %v4758 = vld [vmem:[%s4550 + $0x678] sm:$0xff]
    %v4759 = vld [vmem:[%s4550 + $0x680] sm:$0xff]
    %v4760 = vld [vmem:[%s4550 + $0x688] sm:$0xff]
    %v4761 = vld [vmem:[%s4550 + $0x690] sm:$0xff]
    %v4762 = vld [vmem:[%s4550 + $0x698] sm:$0xff]
    %v4763 = vld [vmem:[%s4550 + $0x6a0] sm:$0xff]
    %v4764 = vld [vmem:[%s4550 + $0x6a8] sm:$0xff]
    %v4765 = vld [vmem:[%s4550 + $0x6b0] sm:$0xff]
    %v4766 = vld [vmem:[%s4550 + $0x6b8] sm:$0xff]
    %v4767 = vld [vmem:[%s4550 + $0x6c0] sm:$0xff]
    %v4768 = vld [vmem:[%s4550 + $0x6c8] sm:$0xff]
    %v4769 = vld [vmem:[%s4550 + $0x6d0] sm:$0xff]
    %v4770 = vld [vmem:[%s4550 + $0x6d8] sm:$0xff]
    %v4771 = vld [vmem:[%s4550 + $0x6e0] sm:$0xff]
    %v4772 = vld [vmem:[%s4550 + $0x6e8] sm:$0xff]
    %v4773 = vld [vmem:[%s4550 + $0x6f0] sm:$0xff]
    %v4774 = vld [vmem:[%s4550 + $0x6f8] sm:$0xff]
    %v4775 = vld [vmem:[%s4550 + $0x700] sm:$0xff]
    %v4776 = vld [vmem:[%s4550 + $0x708] sm:$0xff]
    %v4777 = vld [vmem:[%s4550 + $0x710] sm:$0xff]
    %v4778 = vld [vmem:[%s4550 + $0x718] sm:$0xff]
    %v4779 = vld [vmem:[%s4550 + $0x720] sm:$0xff]
    %v4780 = vld [vmem:[%s4550 + $0x728] sm:$0xff]
    %v4781 = vld [vmem:[%s4550 + $0x730] sm:$0xff]
    %v4782 = vld [vmem:[%s4550 + $0x738] sm:$0xff]
    %v4783 = vld [vmem:[%s4550 + $0x740] sm:$0xff]
    %v4784 = vld [vmem:[%s4550 + $0x748] sm:$0xff]
    %v4785 = vld [vmem:[%s4550 + $0x750] sm:$0xff]
    %v4786 = vld [vmem:[%s4550 + $0x758] sm:$0xff]
    %v4787 = vld [vmem:[%s4550 + $0x760] sm:$0xff]
    %v4788 = vld [vmem:[%s4550 + $0x768] sm:$0xff]
    %v4789 = vld [vmem:[%s4550 + $0x770] sm:$0xff]
    %v4790 = vld [vmem:[%s4550 + $0x778] sm:$0xff]
    %v4791 = vld [vmem:[%s4550 + $0x780] sm:$0xff]
    %v4792 = vld [vmem:[%s4550 + $0x788] sm:$0xff]
    %v4793 = vld [vmem:[%s4550 + $0x790] sm:$0xff]
    %v4794 = vld [vmem:[%s4550 + $0x798] sm:$0xff]
    %v4795 = vld [vmem:[%s4550 + $0x7a0] sm:$0xff]
    %v4796 = vld [vmem:[%s4550 + $0x7a8] sm:$0xff]
    %v4797 = vld [vmem:[%s4550 + $0x7b0] sm:$0xff]
    %v4798 = vld [vmem:[%s4550 + $0x7b8] sm:$0xff]
    %v4799 = vld [vmem:[%s4550 + $0x7c0] sm:$0xff]
    %v4800 = vld [vmem:[%s4550 + $0x7c8] sm:$0xff]
    %v4801 = vld [vmem:[%s4550 + $0x7d0] sm:$0xff]
    %v4802 = vld [vmem:[%s4550 + $0x7d8] sm:$0xff]
    %v4803 = vld [vmem:[%s4550 + $0x7e0] sm:$0xff]
    %v4804 = vld [vmem:[%s4550 + $0x7e8] sm:$0xff]
    %v4805 = vld [vmem:[%s4550 + $0x7f0] sm:$0xff]
    %v4806 = vld [vmem:[%s4550 + $0x7f8] sm:$0xff]
    %v4807 = vlaneseq
    %v4808 = vshrl.u32 %v4807, 7
    %v4809 = vsub.s32 4, %v4808
    %v4810 = vrot.slane %v2786, %v4809
    %4811 = vmatprep.subr.mxu0 0.0
    %4812 = vmatpush1.msra.mxu0 %v4551
    %4813 = vmatprep.subr.mxu0 0.0
    %4814 = vmatpush1.msra.mxu0 %v4552
    %4815 = vmatprep.subr.mxu0 0.0
    %4816 = vmatpush1.msra.mxu0 %v4553
    %4817 = vmatprep.subr.mxu0 0.0
    %4818 = vmatpush1.msra.mxu0 %v4554
    %4819 = vmatprep.subr.mxu0 0.0
    %4820 = vmatpush1.msra.mxu0 %v4555
    %4821 = vmatprep.subr.mxu0 0.0
    %4822 = vmatpush1.msra.mxu0 %v4556
    %4823 = vmatprep.subr.mxu0 0.0
    %4824 = vmatpush1.msra.mxu0 %v4557
    %4825 = vmatprep.subr.mxu0 0.0
    %4826 = vmatpush1.msra.mxu0 %v4558
    %4827 = vmatprep.subr.mxu0 0.0
    %4828 = vmatpush1.msra.mxu0 %v4559
    %4829 = vmatprep.subr.mxu0 0.0
    %4830 = vmatpush1.msra.mxu0 %v4560
    %4831 = vmatprep.subr.mxu0 0.0
    %4832 = vmatpush1.msra.mxu0 %v4561
    %4833 = vmatprep.subr.mxu0 0.0
    %4834 = vmatpush1.msra.mxu0 %v4562
    %4835 = vmatprep.subr.mxu0 0.0
    %4836 = vmatpush1.msra.mxu0 %v4563
    %4837 = vmatprep.subr.mxu0 0.0
    %4838 = vmatpush1.msra.mxu0 %v4564
    %4839 = vmatprep.subr.mxu0 0.0
    %4840 = vmatpush1.msra.mxu0 %v4565
    %4841 = vmatprep.subr.mxu0 0.0
    %4842 = vmatpush1.msra.mxu0 %v4566
    %4843 = vmatprep.subr.mxu0 0.0
    %4844 = vmatpush1.msra.mxu0 %v4567
    %4845 = vmatprep.subr.mxu0 0.0
    %4846 = vmatpush1.msra.mxu0 %v4568
    %4847 = vmatprep.subr.mxu0 0.0
    %4848 = vmatpush1.msra.mxu0 %v4569
    %4849 = vmatprep.subr.mxu0 0.0
    %4850 = vmatpush1.msra.mxu0 %v4570
    %4851 = vmatprep.subr.mxu0 0.0
    %4852 = vmatpush1.msra.mxu0 %v4571
    %4853 = vmatprep.subr.mxu0 0.0
    %4854 = vmatpush1.msra.mxu0 %v4572
    %4855 = vmatprep.subr.mxu0 0.0
    %4856 = vmatpush1.msra.mxu0 %v4573
    %4857 = vmatprep.subr.mxu0 0.0
    %4858 = vmatpush1.msra.mxu0 %v4574
    %4859 = vmatprep.subr.mxu0 0.0
    %4860 = vmatpush1.msra.mxu0 %v4575
    %4861 = vmatprep.subr.mxu0 0.0
    %4862 = vmatpush1.msra.mxu0 %v4576
    %4863 = vmatprep.subr.mxu0 0.0
    %4864 = vmatpush1.msra.mxu0 %v4577
    %4865 = vmatprep.subr.mxu0 0.0
    %4866 = vmatpush1.msra.mxu0 %v4578
    %4867 = vmatprep.subr.mxu0 0.0
    %4868 = vmatpush1.msra.mxu0 %v4579
    %4869 = vmatprep.subr.mxu0 0.0
    %4870 = vmatpush1.msra.mxu0 %v4580
    %4871 = vmatprep.subr.mxu0 0.0
    %4872 = vmatpush1.msra.mxu0 %v4581
    %4873 = vmatprep.subr.mxu0 0.0
    %4874 = vmatpush1.msra.mxu0 %v4582
    %4875 = vmatprep.mubr.f32.mxu0 %v4535
    %4876 = vmatmul.mubr.f32.gmra.mrb[0].mxu0 %v4534
    %v4877 = vpop.f32.mrb[0].mxu0
    %v4878 = vadd.f32 %v4810, %v4877
    %v4879 = vpop.f32.mrb[0].mxu0
    %4880 = vdwg.mxu0
    %4881 = vmatprep.subr.mxu0 0.0
    %4882 = vmatpush1.msra.mxu0 %v4583
    %4883 = vmatprep.subr.mxu0 0.0
    %4884 = vmatpush1.msra.mxu0 %v4584
    %4885 = vmatprep.subr.mxu0 0.0
    %4886 = vmatpush1.msra.mxu0 %v4585
    %4887 = vmatprep.subr.mxu0 0.0
    %4888 = vmatpush1.msra.mxu0 %v4586
    %4889 = vmatprep.subr.mxu0 0.0
    %4890 = vmatpush1.msra.mxu0 %v4587
    %4891 = vmatprep.subr.mxu0 0.0
    %4892 = vmatpush1.msra.mxu0 %v4588
    %4893 = vmatprep.subr.mxu0 0.0
    %4894 = vmatpush1.msra.mxu0 %v4589
    %4895 = vmatprep.subr.mxu0 0.0
    %4896 = vmatpush1.msra.mxu0 %v4590
    %4897 = vmatprep.subr.mxu0 0.0
    %4898 = vmatpush1.msra.mxu0 %v4591
    %4899 = vmatprep.subr.mxu0 0.0
    %4900 = vmatpush1.msra.mxu0 %v4592
    %4901 = vmatprep.subr.mxu0 0.0
    %4902 = vmatpush1.msra.mxu0 %v4593
    %4903 = vmatprep.subr.mxu0 0.0
    %4904 = vmatpush1.msra.mxu0 %v4594
    %4905 = vmatprep.subr.mxu0 0.0
    %4906 = vmatpush1.msra.mxu0 %v4595
    %4907 = vmatprep.subr.mxu0 0.0
    %4908 = vmatpush1.msra.mxu0 %v4596
    %4909 = vmatprep.subr.mxu0 0.0
    %4910 = vmatpush1.msra.mxu0 %v4597
    %4911 = vmatprep.subr.mxu0 0.0
    %4912 = vmatpush1.msra.mxu0 %v4598
    %4913 = vmatprep.subr.mxu0 0.0
    %4914 = vmatpush1.msra.mxu0 %v4599
    %4915 = vmatprep.subr.mxu0 0.0
    %4916 = vmatpush1.msra.mxu0 %v4600
    %4917 = vmatprep.subr.mxu0 0.0
    %4918 = vmatpush1.msra.mxu0 %v4601
    %4919 = vmatprep.subr.mxu0 0.0
    %4920 = vmatpush1.msra.mxu0 %v4602
    %4921 = vmatprep.subr.mxu0 0.0
    %4922 = vmatpush1.msra.mxu0 %v4603
    %4923 = vmatprep.subr.mxu0 0.0
    %4924 = vmatpush1.msra.mxu0 %v4604
    %4925 = vmatprep.subr.mxu0 0.0
    %4926 = vmatpush1.msra.mxu0 %v4605
    %4927 = vmatprep.subr.mxu0 0.0
    %4928 = vmatpush1.msra.mxu0 %v4606
    %4929 = vmatprep.subr.mxu0 0.0
    %4930 = vmatpush1.msra.mxu0 %v4607
    %4931 = vmatprep.subr.mxu0 0.0
    %4932 = vmatpush1.msra.mxu0 %v4608
    %4933 = vmatprep.subr.mxu0 0.0
    %4934 = vmatpush1.msra.mxu0 %v4609
    %4935 = vmatprep.subr.mxu0 0.0
    %4936 = vmatpush1.msra.mxu0 %v4610
    %4937 = vmatprep.subr.mxu0 0.0
    %4938 = vmatpush1.msra.mxu0 %v4611
    %4939 = vmatprep.subr.mxu0 0.0
    %4940 = vmatpush1.msra.mxu0 %v4612
    %4941 = vmatprep.subr.mxu0 0.0
    %4942 = vmatpush1.msra.mxu0 %v4613
    %4943 = vmatprep.subr.mxu0 0.0
    %4944 = vmatpush1.msra.mxu0 %v4614
    %4945 = vmatprep.mubr.f32.mxu0 %v4537
    %4946 = vmatmul.mubr.f32.gmra.mrb[0].mxu0 %v4536
    %v4947 = vpop.f32.mrb[0].mxu0
    %v4948 = vadd.f32 %v4878, %v4947
    %v4949 = vpop.f32.mrb[0].mxu0
    %4950 = vdwg.mxu0
    %4951 = vmatprep.subr.mxu0 0.0
    %4952 = vmatpush1.msra.mxu0 %v4615
    %4953 = vmatprep.subr.mxu0 0.0
    %4954 = vmatpush1.msra.mxu0 %v4616
    %4955 = vmatprep.subr.mxu0 0.0
    %4956 = vmatpush1.msra.mxu0 %v4617
    %4957 = vmatprep.subr.mxu0 0.0
    %4958 = vmatpush1.msra.mxu0 %v4618
    %4959 = vmatprep.subr.mxu0 0.0
    %4960 = vmatpush1.msra.mxu0 %v4619
    %4961 = vmatprep.subr.mxu0 0.0
    %4962 = vmatpush1.msra.mxu0 %v4620
    %4963 = vmatprep.subr.mxu0 0.0
    %4964 = vmatpush1.msra.mxu0 %v4621
    %4965 = vmatprep.subr.mxu0 0.0
    %4966 = vmatpush1.msra.mxu0 %v4622
    %4967 = vmatprep.subr.mxu0 0.0
    %4968 = vmatpush1.msra.mxu0 %v4623
    %4969 = vmatprep.subr.mxu0 0.0
    %4970 = vmatpush1.msra.mxu0 %v4624
    %4971 = vmatprep.subr.mxu0 0.0
    %4972 = vmatpush1.msra.mxu0 %v4625
    %4973 = vmatprep.subr.mxu0 0.0
    %4974 = vmatpush1.msra.mxu0 %v4626
    %4975 = vmatprep.subr.mxu0 0.0
    %4976 = vmatpush1.msra.mxu0 %v4627
    %4977 = vmatprep.subr.mxu0 0.0
    %4978 = vmatpush1.msra.mxu0 %v4628
    %4979 = vmatprep.subr.mxu0 0.0
    %4980 = vmatpush1.msra.mxu0 %v4629
    %4981 = vmatprep.subr.mxu0 0.0
    %4982 = vmatpush1.msra.mxu0 %v4630
    %4983 = vmatprep.subr.mxu0 0.0
    %4984 = vmatpush1.msra.mxu0 %v4631
    %4985 = vmatprep.subr.mxu0 0.0
    %4986 = vmatpush1.msra.mxu0 %v4632
    %4987 = vmatprep.subr.mxu0 0.0
    %4988 = vmatpush1.msra.mxu0 %v4633
    %4989 = vmatprep.subr.mxu0 0.0
    %4990 = vmatpush1.msra.mxu0 %v4634
    %4991 = vmatprep.subr.mxu0 0.0
    %4992 = vmatpush1.msra.mxu0 %v4635
    %4993 = vmatprep.subr.mxu0 0.0
    %4994 = vmatpush1.msra.mxu0 %v4636
    %4995 = vmatprep.subr.mxu0 0.0
    %4996 = vmatpush1.msra.mxu0 %v4637
    %4997 = vmatprep.subr.mxu0 0.0
    %4998 = vmatpush1.msra.mxu0 %v4638
    %4999 = vmatprep.subr.mxu0 0.0
    %5000 = vmatpush1.msra.mxu0 %v4639
    %5001 = vmatprep.subr.mxu0 0.0
    %5002 = vmatpush1.msra.mxu0 %v4640
    %5003 = vmatprep.subr.mxu0 0.0
    %5004 = vmatpush1.msra.mxu0 %v4641
    %5005 = vmatprep.subr.mxu0 0.0
    %5006 = vmatpush1.msra.mxu0 %v4642
    %5007 = vmatprep.subr.mxu0 0.0
    %5008 = vmatpush1.msra.mxu0 %v4643
    %5009 = vmatprep.subr.mxu0 0.0
    %5010 = vmatpush1.msra.mxu0 %v4644
    %5011 = vmatprep.subr.mxu0 0.0
    %5012 = vmatpush1.msra.mxu0 %v4645
    %5013 = vmatprep.subr.mxu0 0.0
    %5014 = vmatpush1.msra.mxu0 %v4646
    %5015 = vmatprep.mubr.f32.mxu0 %v4539
    %5016 = vmatmul.mubr.f32.gmra.mrb[0].mxu0 %v4538
    %v5017 = vpop.f32.mrb[0].mxu0
    %v5018 = vadd.f32 %v4948, %v5017
    %v5019 = vpop.f32.mrb[0].mxu0
    %5020 = vdwg.mxu0
    %5021 = vmatprep.subr.mxu0 0.0
    %5022 = vmatpush1.msra.mxu0 %v4647
    %5023 = vmatprep.subr.mxu0 0.0
    %5024 = vmatpush1.msra.mxu0 %v4648
    %5025 = vmatprep.subr.mxu0 0.0
    %5026 = vmatpush1.msra.mxu0 %v4649
    %5027 = vmatprep.subr.mxu0 0.0
    %5028 = vmatpush1.msra.mxu0 %v4650
    %5029 = vmatprep.subr.mxu0 0.0
    %5030 = vmatpush1.msra.mxu0 %v4651
    %5031 = vmatprep.subr.mxu0 0.0
    %5032 = vmatpush1.msra.mxu0 %v4652
    %5033 = vmatprep.subr.mxu0 0.0
    %5034 = vmatpush1.msra.mxu0 %v4653
    %5035 = vmatprep.subr.mxu0 0.0
    %5036 = vmatpush1.msra.mxu0 %v4654
    %5037 = vmatprep.subr.mxu0 0.0
    %5038 = vmatpush1.msra.mxu0 %v4655
    %5039 = vmatprep.subr.mxu0 0.0
    %5040 = vmatpush1.msra.mxu0 %v4656
    %5041 = vmatprep.subr.mxu0 0.0
    %5042 = vmatpush1.msra.mxu0 %v4657
    %5043 = vmatprep.subr.mxu0 0.0
    %5044 = vmatpush1.msra.mxu0 %v4658
    %5045 = vmatprep.subr.mxu0 0.0
    %5046 = vmatpush1.msra.mxu0 %v4659
    %5047 = vmatprep.subr.mxu0 0.0
    %5048 = vmatpush1.msra.mxu0 %v4660
    %5049 = vmatprep.subr.mxu0 0.0
    %5050 = vmatpush1.msra.mxu0 %v4661
    %5051 = vmatprep.subr.mxu0 0.0
    %5052 = vmatpush1.msra.mxu0 %v4662
    %5053 = vmatprep.subr.mxu0 0.0
    %5054 = vmatpush1.msra.mxu0 %v4663
    %5055 = vmatprep.subr.mxu0 0.0
    %5056 = vmatpush1.msra.mxu0 %v4664
    %5057 = vmatprep.subr.mxu0 0.0
    %5058 = vmatpush1.msra.mxu0 %v4665
    %5059 = vmatprep.subr.mxu0 0.0
    %5060 = vmatpush1.msra.mxu0 %v4666
    %5061 = vmatprep.subr.mxu0 0.0
    %5062 = vmatpush1.msra.mxu0 %v4667
    %5063 = vmatprep.subr.mxu0 0.0
    %5064 = vmatpush1.msra.mxu0 %v4668
    %5065 = vmatprep.subr.mxu0 0.0
    %5066 = vmatpush1.msra.mxu0 %v4669
    %5067 = vmatprep.subr.mxu0 0.0
    %5068 = vmatpush1.msra.mxu0 %v4670
    %5069 = vmatprep.subr.mxu0 0.0
    %5070 = vmatpush1.msra.mxu0 %v4671
    %5071 = vmatprep.subr.mxu0 0.0
    %5072 = vmatpush1.msra.mxu0 %v4672
    %5073 = vmatprep.subr.mxu0 0.0
    %5074 = vmatpush1.msra.mxu0 %v4673
    %5075 = vmatprep.subr.mxu0 0.0
    %5076 = vmatpush1.msra.mxu0 %v4674
    %5077 = vmatprep.subr.mxu0 0.0
    %5078 = vmatpush1.msra.mxu0 %v4675
    %5079 = vmatprep.subr.mxu0 0.0
    %5080 = vmatpush1.msra.mxu0 %v4676
    %5081 = vmatprep.subr.mxu0 0.0
    %5082 = vmatpush1.msra.mxu0 %v4677
    %5083 = vmatprep.subr.mxu0 0.0
    %5084 = vmatpush1.msra.mxu0 %v4678
    %5085 = vmatprep.mubr.f32.mxu0 %v4541
    %5086 = vmatmul.mubr.f32.gmra.mrb[0].mxu0 %v4540
    %v5087 = vpop.f32.mrb[0].mxu0
    %v5088 = vadd.f32 %v5018, %v5087
    %v5089 = vpop.f32.mrb[0].mxu0
    %5090 = vdwg.mxu0
    %5091 = vmatprep.subr.mxu0 0.0
    %5092 = vmatpush1.msra.mxu0 %v4679
    %5093 = vmatprep.subr.mxu0 0.0
    %5094 = vmatpush1.msra.mxu0 %v4680
    %5095 = vmatprep.subr.mxu0 0.0
    %5096 = vmatpush1.msra.mxu0 %v4681
    %5097 = vmatprep.subr.mxu0 0.0
    %5098 = vmatpush1.msra.mxu0 %v4682
    %5099 = vmatprep.subr.mxu0 0.0
    %5100 = vmatpush1.msra.mxu0 %v4683
    %5101 = vmatprep.subr.mxu0 0.0
    %5102 = vmatpush1.msra.mxu0 %v4684
    %5103 = vmatprep.subr.mxu0 0.0
    %5104 = vmatpush1.msra.mxu0 %v4685
    %5105 = vmatprep.subr.mxu0 0.0
    %5106 = vmatpush1.msra.mxu0 %v4686
    %5107 = vmatprep.subr.mxu0 0.0
    %5108 = vmatpush1.msra.mxu0 %v4687
    %5109 = vmatprep.subr.mxu0 0.0
    %5110 = vmatpush1.msra.mxu0 %v4688
    %5111 = vmatprep.subr.mxu0 0.0
    %5112 = vmatpush1.msra.mxu0 %v4689
    %5113 = vmatprep.subr.mxu0 0.0
    %5114 = vmatpush1.msra.mxu0 %v4690
    %5115 = vmatprep.subr.mxu0 0.0
    %5116 = vmatpush1.msra.mxu0 %v4691
    %5117 = vmatprep.subr.mxu0 0.0
    %5118 = vmatpush1.msra.mxu0 %v4692
    %5119 = vmatprep.subr.mxu0 0.0
    %5120 = vmatpush1.msra.mxu0 %v4693
    %5121 = vmatprep.subr.mxu0 0.0
    %5122 = vmatpush1.msra.mxu0 %v4694
    %5123 = vmatprep.subr.mxu0 0.0
    %5124 = vmatpush1.msra.mxu0 %v4695
    %5125 = vmatprep.subr.mxu0 0.0
    %5126 = vmatpush1.msra.mxu0 %v4696
    %5127 = vmatprep.subr.mxu0 0.0
    %5128 = vmatpush1.msra.mxu0 %v4697
    %5129 = vmatprep.subr.mxu0 0.0
    %5130 = vmatpush1.msra.mxu0 %v4698
    %5131 = vmatprep.subr.mxu0 0.0
    %5132 = vmatpush1.msra.mxu0 %v4699
    %5133 = vmatprep.subr.mxu0 0.0
    %5134 = vmatpush1.msra.mxu0 %v4700
    %5135 = vmatprep.subr.mxu0 0.0
    %5136 = vmatpush1.msra.mxu0 %v4701
    %5137 = vmatprep.subr.mxu0 0.0
    %5138 = vmatpush1.msra.mxu0 %v4702
    %5139 = vmatprep.subr.mxu0 0.0
    %5140 = vmatpush1.msra.mxu0 %v4703
    %5141 = vmatprep.subr.mxu0 0.0
    %5142 = vmatpush1.msra.mxu0 %v4704
    %5143 = vmatprep.subr.mxu0 0.0
    %5144 = vmatpush1.msra.mxu0 %v4705
    %5145 = vmatprep.subr.mxu0 0.0
    %5146 = vmatpush1.msra.mxu0 %v4706
    %5147 = vmatprep.subr.mxu0 0.0
    %5148 = vmatpush1.msra.mxu0 %v4707
    %5149 = vmatprep.subr.mxu0 0.0
    %5150 = vmatpush1.msra.mxu0 %v4708
    %5151 = vmatprep.subr.mxu0 0.0
    %5152 = vmatpush1.msra.mxu0 %v4709
    %5153 = vmatprep.subr.mxu0 0.0
    %5154 = vmatpush1.msra.mxu0 %v4710
    %5155 = vmatprep.mubr.f32.mxu0 %v4543
    %5156 = vmatmul.mubr.f32.gmra.mrb[0].mxu0 %v4542
    %v5157 = vpop.f32.mrb[0].mxu0
    %v5158 = vadd.f32 %v5088, %v5157
    %v5159 = vpop.f32.mrb[0].mxu0
    %5160 = vdwg.mxu0
    %5161 = vmatprep.subr.mxu0 0.0
    %5162 = vmatpush1.msra.mxu0 %v4711
    %5163 = vmatprep.subr.mxu0 0.0
    %5164 = vmatpush1.msra.mxu0 %v4712
    %5165 = vmatprep.subr.mxu0 0.0
    %5166 = vmatpush1.msra.mxu0 %v4713
    %5167 = vmatprep.subr.mxu0 0.0
    %5168 = vmatpush1.msra.mxu0 %v4714
    %5169 = vmatprep.subr.mxu0 0.0
    %5170 = vmatpush1.msra.mxu0 %v4715
    %5171 = vmatprep.subr.mxu0 0.0
    %5172 = vmatpush1.msra.mxu0 %v4716
    %5173 = vmatprep.subr.mxu0 0.0
    %5174 = vmatpush1.msra.mxu0 %v4717
    %5175 = vmatprep.subr.mxu0 0.0
    %5176 = vmatpush1.msra.mxu0 %v4718
    %5177 = vmatprep.subr.mxu0 0.0
    %5178 = vmatpush1.msra.mxu0 %v4719
    %5179 = vmatprep.subr.mxu0 0.0
    %5180 = vmatpush1.msra.mxu0 %v4720
    %5181 = vmatprep.subr.mxu0 0.0
    %5182 = vmatpush1.msra.mxu0 %v4721
    %5183 = vmatprep.subr.mxu0 0.0
    %5184 = vmatpush1.msra.mxu0 %v4722
    %5185 = vmatprep.subr.mxu0 0.0
    %5186 = vmatpush1.msra.mxu0 %v4723
    %5187 = vmatprep.subr.mxu0 0.0
    %5188 = vmatpush1.msra.mxu0 %v4724
    %5189 = vmatprep.subr.mxu0 0.0
    %5190 = vmatpush1.msra.mxu0 %v4725
    %5191 = vmatprep.subr.mxu0 0.0
    %5192 = vmatpush1.msra.mxu0 %v4726
    %5193 = vmatprep.subr.mxu0 0.0
    %5194 = vmatpush1.msra.mxu0 %v4727
    %5195 = vmatprep.subr.mxu0 0.0
    %5196 = vmatpush1.msra.mxu0 %v4728
    %5197 = vmatprep.subr.mxu0 0.0
    %5198 = vmatpush1.msra.mxu0 %v4729
    %5199 = vmatprep.subr.mxu0 0.0
    %5200 = vmatpush1.msra.mxu0 %v4730
    %5201 = vmatprep.subr.mxu0 0.0
    %5202 = vmatpush1.msra.mxu0 %v4731
    %5203 = vmatprep.subr.mxu0 0.0
    %5204 = vmatpush1.msra.mxu0 %v4732
    %5205 = vmatprep.subr.mxu0 0.0
    %5206 = vmatpush1.msra.mxu0 %v4733
    %5207 = vmatprep.subr.mxu0 0.0
    %5208 = vmatpush1.msra.mxu0 %v4734
    %5209 = vmatprep.subr.mxu0 0.0
    %5210 = vmatpush1.msra.mxu0 %v4735
    %5211 = vmatprep.subr.mxu0 0.0
    %5212 = vmatpush1.msra.mxu0 %v4736
    %5213 = vmatprep.subr.mxu0 0.0
    %5214 = vmatpush1.msra.mxu0 %v4737
    %5215 = vmatprep.subr.mxu0 0.0
    %5216 = vmatpush1.msra.mxu0 %v4738
    %5217 = vmatprep.subr.mxu0 0.0
    %5218 = vmatpush1.msra.mxu0 %v4739
    %5219 = vmatprep.subr.mxu0 0.0
    %5220 = vmatpush1.msra.mxu0 %v4740
    %5221 = vmatprep.subr.mxu0 0.0
    %5222 = vmatpush1.msra.mxu0 %v4741
    %5223 = vmatprep.subr.mxu0 0.0
    %5224 = vmatpush1.msra.mxu0 %v4742
    %5225 = vmatprep.mubr.f32.mxu0 %v4545
    %5226 = vmatmul.mubr.f32.gmra.mrb[0].mxu0 %v4544
    %v5227 = vpop.f32.mrb[0].mxu0
    %v5228 = vadd.f32 %v5158, %v5227
    %v5229 = vpop.f32.mrb[0].mxu0
    %5230 = vdwg.mxu0
    %5231 = vmatprep.subr.mxu0 0.0
    %5232 = vmatpush1.msra.mxu0 %v4743
    %5233 = vmatprep.subr.mxu0 0.0
    %5234 = vmatpush1.msra.mxu0 %v4744
    %5235 = vmatprep.subr.mxu0 0.0
    %5236 = vmatpush1.msra.mxu0 %v4745
    %5237 = vmatprep.subr.mxu0 0.0
    %5238 = vmatpush1.msra.mxu0 %v4746
    %5239 = vmatprep.subr.mxu0 0.0
    %5240 = vmatpush1.msra.mxu0 %v4747
    %5241 = vmatprep.subr.mxu0 0.0
    %5242 = vmatpush1.msra.mxu0 %v4748
    %5243 = vmatprep.subr.mxu0 0.0
    %5244 = vmatpush1.msra.mxu0 %v4749
    %5245 = vmatprep.subr.mxu0 0.0
    %5246 = vmatpush1.msra.mxu0 %v4750
    %5247 = vmatprep.subr.mxu0 0.0
    %5248 = vmatpush1.msra.mxu0 %v4751
    %5249 = vmatprep.subr.mxu0 0.0
    %5250 = vmatpush1.msra.mxu0 %v4752
    %5251 = vmatprep.subr.mxu0 0.0
    %5252 = vmatpush1.msra.mxu0 %v4753
    %5253 = vmatprep.subr.mxu0 0.0
    %5254 = vmatpush1.msra.mxu0 %v4754
    %5255 = vmatprep.subr.mxu0 0.0
    %5256 = vmatpush1.msra.mxu0 %v4755
    %5257 = vmatprep.subr.mxu0 0.0
    %5258 = vmatpush1.msra.mxu0 %v4756
    %5259 = vmatprep.subr.mxu0 0.0
    %5260 = vmatpush1.msra.mxu0 %v4757
    %5261 = vmatprep.subr.mxu0 0.0
    %5262 = vmatpush1.msra.mxu0 %v4758
    %5263 = vmatprep.subr.mxu0 0.0
    %5264 = vmatpush1.msra.mxu0 %v4759
    %5265 = vmatprep.subr.mxu0 0.0
    %5266 = vmatpush1.msra.mxu0 %v4760
    %5267 = vmatprep.subr.mxu0 0.0
    %5268 = vmatpush1.msra.mxu0 %v4761
    %5269 = vmatprep.subr.mxu0 0.0
    %5270 = vmatpush1.msra.mxu0 %v4762
    %5271 = vmatprep.subr.mxu0 0.0
    %5272 = vmatpush1.msra.mxu0 %v4763
    %5273 = vmatprep.subr.mxu0 0.0
    %5274 = vmatpush1.msra.mxu0 %v4764
    %5275 = vmatprep.subr.mxu0 0.0
    %5276 = vmatpush1.msra.mxu0 %v4765
    %5277 = vmatprep.subr.mxu0 0.0
    %5278 = vmatpush1.msra.mxu0 %v4766
    %5279 = vmatprep.subr.mxu0 0.0
    %5280 = vmatpush1.msra.mxu0 %v4767
    %5281 = vmatprep.subr.mxu0 0.0
    %5282 = vmatpush1.msra.mxu0 %v4768
    %5283 = vmatprep.subr.mxu0 0.0
    %5284 = vmatpush1.msra.mxu0 %v4769
    %5285 = vmatprep.subr.mxu0 0.0
    %5286 = vmatpush1.msra.mxu0 %v4770
    %5287 = vmatprep.subr.mxu0 0.0
    %5288 = vmatpush1.msra.mxu0 %v4771
    %5289 = vmatprep.subr.mxu0 0.0
    %5290 = vmatpush1.msra.mxu0 %v4772
    %5291 = vmatprep.subr.mxu0 0.0
    %5292 = vmatpush1.msra.mxu0 %v4773
    %5293 = vmatprep.subr.mxu0 0.0
    %5294 = vmatpush1.msra.mxu0 %v4774
    %5295 = vmatprep.mubr.f32.mxu0 %v4547
    %5296 = vmatmul.mubr.f32.gmra.mrb[0].mxu0 %v4546
    %v5297 = vpop.f32.mrb[0].mxu0
    %v5298 = vadd.f32 %v5228, %v5297
    %v5299 = vpop.f32.mrb[0].mxu0
    %5300 = vdwg.mxu0
    %5301 = vmatprep.subr.mxu0 0.0
    %5302 = vmatpush1.msra.mxu0 %v4775
    %5303 = vmatprep.subr.mxu0 0.0
    %5304 = vmatpush1.msra.mxu0 %v4776
    %5305 = vmatprep.subr.mxu0 0.0
    %5306 = vmatpush1.msra.mxu0 %v4777
    %5307 = vmatprep.subr.mxu0 0.0
    %5308 = vmatpush1.msra.mxu0 %v4778
    %5309 = vmatprep.subr.mxu0 0.0
    %5310 = vmatpush1.msra.mxu0 %v4779
    %5311 = vmatprep.subr.mxu0 0.0
    %5312 = vmatpush1.msra.mxu0 %v4780
    %5313 = vmatprep.subr.mxu0 0.0
    %5314 = vmatpush1.msra.mxu0 %v4781
    %5315 = vmatprep.subr.mxu0 0.0
    %5316 = vmatpush1.msra.mxu0 %v4782
    %5317 = vmatprep.subr.mxu0 0.0
    %5318 = vmatpush1.msra.mxu0 %v4783
    %5319 = vmatprep.subr.mxu0 0.0
    %5320 = vmatpush1.msra.mxu0 %v4784
    %5321 = vmatprep.subr.mxu0 0.0
    %5322 = vmatpush1.msra.mxu0 %v4785
    %5323 = vmatprep.subr.mxu0 0.0
    %5324 = vmatpush1.msra.mxu0 %v4786
    %5325 = vmatprep.subr.mxu0 0.0
    %5326 = vmatpush1.msra.mxu0 %v4787
    %5327 = vmatprep.subr.mxu0 0.0
    %5328 = vmatpush1.msra.mxu0 %v4788
    %5329 = vmatprep.subr.mxu0 0.0
    %5330 = vmatpush1.msra.mxu0 %v4789
    %5331 = vmatprep.subr.mxu0 0.0
    %5332 = vmatpush1.msra.mxu0 %v4790
    %5333 = vmatprep.subr.mxu0 0.0
    %5334 = vmatpush1.msra.mxu0 %v4791
    %5335 = vmatprep.subr.mxu0 0.0
    %5336 = vmatpush1.msra.mxu0 %v4792
    %5337 = vmatprep.subr.mxu0 0.0
    %5338 = vmatpush1.msra.mxu0 %v4793
    %5339 = vmatprep.subr.mxu0 0.0
    %5340 = vmatpush1.msra.mxu0 %v4794
    %5341 = vmatprep.subr.mxu0 0.0
    %5342 = vmatpush1.msra.mxu0 %v4795
    %5343 = vmatprep.subr.mxu0 0.0
    %5344 = vmatpush1.msra.mxu0 %v4796
    %5345 = vmatprep.subr.mxu0 0.0
    %5346 = vmatpush1.msra.mxu0 %v4797
    %5347 = vmatprep.subr.mxu0 0.0
    %5348 = vmatpush1.msra.mxu0 %v4798
    %5349 = vmatprep.subr.mxu0 0.0
    %5350 = vmatpush1.msra.mxu0 %v4799
    %5351 = vmatprep.subr.mxu0 0.0
    %5352 = vmatpush1.msra.mxu0 %v4800
    %5353 = vmatprep.subr.mxu0 0.0
    %5354 = vmatpush1.msra.mxu0 %v4801
    %5355 = vmatprep.subr.mxu0 0.0
    %5356 = vmatpush1.msra.mxu0 %v4802
    %5357 = vmatprep.subr.mxu0 0.0
    %5358 = vmatpush1.msra.mxu0 %v4803
    %5359 = vmatprep.subr.mxu0 0.0
    %5360 = vmatpush1.msra.mxu0 %v4804
    %5361 = vmatprep.subr.mxu0 0.0
    %5362 = vmatpush1.msra.mxu0 %v4805
    %5363 = vmatprep.subr.mxu0 0.0
    %5364 = vmatpush1.msra.mxu0 %v4806
    %5365 = vmatprep.mubr.f32.mxu0 %v4549
    %5366 = vmatmul.mubr.f32.gmra.mrb[0].mxu0 %v4548
    %v5367 = vpop.f32.mrb[0].mxu0
    %v5368 = vadd.f32 %v5298, %v5367
    %v5369 = vpop.f32.mrb[0].mxu0
    %5370 = vdwg.mxu0
    %v5371 = vadd.f32 %v3812, %v5368
    %v5372 = vsel %vm38, %v5371, 0.0
    %5373 = vadd.xlane.f32.xlu0 %v5372
    %v5374 = vpop.xlane.xlu0 %5373
    %v5375 = vmul.f32 %v5374, %v1185
    %v5376 = vsub.f32 %v5371, %v5375
    %v5377 = vmul.f32 %v5376, %v5376
    %v5378 = vsel %vm38, %v5377, 0.0
    %5379 = vadd.xlane.f32.xlu0 %v5378
    %v5380 = vpop.xlane.xlu0 %5379
    %v5381 = vmul.f32 %v5380, %v1185
    %v5382 = vadd.f32 %v5381, 1e-05
    %v5383 = vrsqrt.pop %v5382
    %v5384 = vmul.f32 %v5376, %v5383
    %v5385 = vlaneseq
    %v5386 = vshrl.u32 %v5385, 7
    %v5387 = vsub.s32 7, %v5386
    %v5388 = vrot.slane %v2786, %v5387
    %v5389 = vmul.f32 %v5384, %v5388
    %v5390 = vlaneseq
    %v5391 = vshrl.u32 %v5390, 7
    %v5392 = vsub.s32 0, %v5391
    %v5393 = vrot.slane %v2787, %v5392
    %v5394 = vadd.f32 %v5389, %v5393
    %v5395 = vld [vmem:[%s8] sm:$0xff]
    %v5396 = vld [vmem:[%s8 + $0x8] sm:$0xff]
    %v5397 = vld [vmem:[%s8 + $0x10] sm:$0xff]
    %v5398 = vld [vmem:[%s8 + $0x18] sm:$0xff]
    %v5399 = vld [vmem:[%s9] sm:$0x1]
    %v5401 = vlaneseq
    %v5402 = vshrl.u32 %v5401, 7
    %v5403 = vsub.s32 0, %v5402
    %v5404 = vrot.slane %v5399, %v5403
    %v5407 = vsel %vm38, %v5394, 0
    %5409 = vmatprep.subr.mxu0 0.0
    %5410 = vmatpush1.msra.mxu0 %v5395
    %5411 = vmatprep.subr.mxu0 0.0
    %5412 = vmatpush1.msra.mxu0 %v5396
    %5413 = vmatprep.subr.mxu0 0.0
    %5414 = vmatpush1.msra.mxu0 %v5397
    %5415 = vmatprep.subr.mxu0 0.0
    %5416 = vmatpush1.msra.mxu0 %v5398
    %5417 = vmatprep.subr.mxu0 0.0
    %5418 = vmatpush1.msra.mxu0 0.0
    %5419 = vmatprep.subr.mxu0 0.0
    %5420 = vmatpush1.msra.mxu0 0.0
    %5421 = vmatprep.subr.mxu0 0.0
    %5422 = vmatpush1.msra.mxu0 0.0
    %5423 = vmatprep.subr.mxu0 0.0
    %5424 = vmatpush1.msra.mxu0 0.0
    %5425 = vmatprep.subr.mxu0 0.0
    %5426 = vmatpush1.msra.mxu0 0.0
    %5427 = vmatprep.subr.mxu0 0.0
    %5428 = vmatpush1.msra.mxu0 0.0
    %5429 = vmatprep.subr.mxu0 0.0
    %5430 = vmatpush1.msra.mxu0 0.0
    %5431 = vmatprep.subr.mxu0 0.0
    %5432 = vmatpush1.msra.mxu0 0.0
    %5433 = vmatprep.subr.mxu0 0.0
    %5434 = vmatpush1.msra.mxu0 0.0
    %5435 = vmatprep.subr.mxu0 0.0
    %5436 = vmatpush1.msra.mxu0 0.0
    %5437 = vmatprep.subr.mxu0 0.0
    %5438 = vmatpush1.msra.mxu0 0.0
    %5439 = vmatprep.subr.mxu0 0.0
    %5440 = vmatpush1.msra.mxu0 0.0
    %5441 = vmatprep.subr.mxu0 0.0
    %5442 = vmatpush1.msra.mxu0 0.0
    %5443 = vmatprep.subr.mxu0 0.0
    %5444 = vmatpush1.msra.mxu0 0.0
    %5445 = vmatprep.subr.mxu0 0.0
    %5446 = vmatpush1.msra.mxu0 0.0
    %5447 = vmatprep.subr.mxu0 0.0
    %5448 = vmatpush1.msra.mxu0 0.0
    %5449 = vmatprep.subr.mxu0 0.0
    %5450 = vmatpush1.msra.mxu0 0.0
    %5451 = vmatprep.subr.mxu0 0.0
    %5452 = vmatpush1.msra.mxu0 0.0
    %5453 = vmatprep.subr.mxu0 0.0
    %5454 = vmatpush1.msra.mxu0 0.0
    %5455 = vmatprep.subr.mxu0 0.0
    %5456 = vmatpush1.msra.mxu0 0.0
    %5457 = vmatprep.subr.mxu0 0.0
    %5458 = vmatpush1.msra.mxu0 0.0
    %5459 = vmatprep.subr.mxu0 0.0
    %5460 = vmatpush1.msra.mxu0 0.0
    %5461 = vmatprep.subr.mxu0 0.0
    %5462 = vmatpush1.msra.mxu0 0.0
    %5463 = vmatprep.subr.mxu0 0.0
    %5464 = vmatpush1.msra.mxu0 0.0
    %5465 = vmatprep.subr.mxu0 0.0
    %5466 = vmatpush1.msra.mxu0 0.0
    %5467 = vmatprep.subr.mxu0 0.0
    %5468 = vmatpush1.msra.mxu0 0.0
    %5469 = vmatprep.subr.mxu0 0.0
    %5470 = vmatpush1.msra.mxu0 0.0
    %5471 = vmatprep.subr.mxu0 0.0
    %5472 = vmatpush1.msra.mxu0 0.0
    %5473 = vmatprep.mubr.f32.mxu0 0.0
    %5474 = vmatmul.mubr.f32.gmra.mrb[0].mxu0 %v5407
    %v5475 = vpop.f32.mrb[0].mxu0
    %v5476 = vadd.f32 %v5404, %v5475
    %v5477 = vpop.f32.mrb[0].mxu0
    %5478 = vdwg.mxu0
    %5479 = vst.msk [vmem:[#allocation2] sm:$0xff] %vm1096, %v5476
    // Predicated region
    $region42: #{tpu_custom_call.1} parent=1 // pred_check
      _
    $region43: #{tpu_custom_call.1} parent=1 // pred_check_branch
      %5481 = sbr.rel (0) target = $region45
    $region44: #{tpu_custom_call.1} parent=1 // pred_region
      %s5483 = ssub.s32 128, 128
      %5484 = vsyncadd [#allocation3], %s5483
      %s5486 = sshll.u32 [#allocation2], 4
      %s5487 = int_to_ptr.vmem [resolvable:$true] %s5486
      %5489 = dma.vmem_to_hbm [thread:$0]  %s5487, 128, %s10, [#allocation3]
    $region45: #{tpu_custom_call.1} parent=1 // pred_fallthru
      _
    // Predicated region
    $region46: #{tpu_custom_call.1} parent=1 // pred_check
      _
    $region47: #{tpu_custom_call.1} parent=1 // pred_check_branch
      %5491 = sbr.rel (0) target = $region49
    $region48: #{tpu_custom_call.1} parent=1 // pred_region
      %5492 = dma.done [#allocation3], 128
    $region49: #{tpu_custom_call.1} parent=1 // pred_fallthru
      _
    %5493 = vsyncpa [#allocation3], 1

</llo_original>
